<compile_context>
chip_gen: v6e
topology: v6e:2x2x1
jax: 0.10.0
libtpu: 0.0.40
codegen_flags: <defaults>
</compile_context>

<pallas_src>
import functools
from typing import NamedTuple

import numpy as np
import jax
import jax.numpy as jnp
from jax import lax
from jax.experimental import pallas as pl
from jax.experimental.pallas import tpu as pltpu


# ----------------------------- static geometry ------------------------------

class Dims(NamedTuple):
    C: int    # input channels
    CP: int   # input channels padded to a multiple of 8
    H: int
    W: int
    K: int    # kernel size (3)
    OC: int   # conv out channels (32)
    HID: int  # linear hidden size (256)
    OH1: int  # conv1 output height
    OW1: int  # conv1 output width
    PH: int   # pool output height
    PW: int   # pool output width
    QH: int   # conv2 output height
    QW: int   # conv2 output width
    L1: int   # conv1 raster rows
    LP: int   # pooled raster rows (2x dilated)
    L2: int   # conv2 raster rows (2x dilated)
    XR: int   # padded input raster rows


def _round_up(x, m):
    return (x + m - 1) // m * m


def derive_dims(C, H, W, K=3, OC=32, HID=256):
    OH1, OW1 = H - K + 1, W - K + 1                     # conv1 (valid, stride 1)
    PH, PW = (OH1 - 2) // 2 + 1, (OW1 - 2) // 2 + 1     # AvgPool2d(2)
    QH, QW = PH - K + 1, PW - K + 1                     # conv2 (valid, stride 1)
    CP = _round_up(C, 8)
    # Working row counts of the dilated rasters. Only rows r = 2*W*i + 2*j (and
    # r = W*i + j for conv1) are valid; the rest is harmless finite garbage.
    L2 = _round_up(2 * W * (QH - 1) + 2 * (QW - 1) + 1, 8)      # conv2 rows
    LP = _round_up(L2 + 2 * W * (K - 1) + 2 * (K - 1), 8)       # pooled rows
    L1 = _round_up(LP + W + 1, 8)                               # conv1 rows
    XR = _round_up(max(L1 + W * (K - 1) + (K - 1), H * W), 8)   # input rows
    return Dims(C, CP, H, W, K, OC, HID, OH1, OW1, PH, PW, QH, QW, L1, LP, L2, XR)


# ------------------------------ Pallas kernel --------------------------------

def _cnn_kernel(x_ref, w1_ref, b1_ref, w2_ref, b2_ref, wl_ref, bl_ref,
                o_ref, acc1_ref, pool_ref, *, dims):
    d = dims
    f32 = jnp.float32

    # ---- conv1: 9 shifted (L1, CP) x (CP, OC) MXU matmuls, accumulated in regs.
    a1 = None
    for kh in range(d.K):
        for kw in range(d.K):
            xs = x_ref[0, pl.ds(kh * d.W + kw, d.L1), :]            # (L1, CP)
            t = jnp.dot(xs, w1_ref[kh * d.K + kw],
                        preferred_element_type=f32)                 # (L1, OC)
            a1 = t if a1 is None else a1 + t
    acc1_ref[...] = a1

    # ---- AvgPool2d(2) on the VPU: four shifted contiguous slices. Output lives
    # on a 2x-dilated raster (only rows 2*W*i + 2*j are valid). The conv1 bias
    # commutes with the average, so it is added here.
    pool_ref[...] = 0.25 * (acc1_ref[pl.ds(0, d.LP), :]
                            + acc1_ref[pl.ds(1, d.LP), :]
                            + acc1_ref[pl.ds(d.W, d.LP), :]
                            + acc1_ref[pl.ds(d.W + 1, d.LP), :]) + b1_ref[...]

    # ---- conv2 (+bias, +ReLU): 9 shifted (L2, OC) x (OC, OC) MXU matmuls on the
    # dilated raster (tap offset = 2*W*kh + 2*kw).
    a2 = None
    for kh in range(d.K):
        for kw in range(d.K):
            ps = pool_ref[pl.ds(2 * d.W * kh + 2 * kw, d.L2), :]    # (L2, OC)
            t = jnp.dot(ps, w2_ref[kh * d.K + kw],
                        preferred_element_type=f32)                 # (L2, OC)
            a2 = t if a2 is None else a2 + t
    a2 = jnp.maximum(a2 + b2_ref[...], 0.0)

    # ---- Flatten + Linear (+bias, +ReLU). The NCHW flatten permutation and the
    # torch weight transpose are folded into wl's layout at init time, so this is
    # QH small MXU matmuls; we accumulate their "diagonal" 256-lane blocks.
    acc = jnp.zeros((1, d.HID), f32)
    for oh2 in range(d.QH):
        lhs = a2[2 * d.W * oh2: 2 * d.W * oh2 + (2 * d.QW - 1), :]  # (2QW-1, OC)
        wc = wl_ref[:, oh2 * d.QW * d.HID: (oh2 + 1) * d.QW * d.HID]
        t = jnp.dot(lhs, wc, preferred_element_type=f32)            # (2QW-1, QW*HID)
        for ow2 in range(d.QW):
            acc = acc + t[2 * ow2: 2 * ow2 + 1,
                          ow2 * d.HID: (ow2 + 1) * d.HID]
    o_ref[0] = jnp.maximum(acc + bl_ref[...], 0.0).astype(o_ref.dtype)


# ------------------------------ host wrappers ---------------------------------

def prepare_params(params, dims):
    """Repack torch-layout parameters once at init time (fold transposes/flatten)."""
    d = dims
    w1 = jnp.asarray(params["w1"], jnp.float32)          # (OC, C, K, K)
    w2 = jnp.asarray(params["w2"], jnp.float32)          # (OC, OC, K, K)
    wl = jnp.asarray(params["wl"], jnp.float32)          # (HID, OC*QH*QW)

    w1t = jnp.transpose(w1, (2, 3, 1, 0)).reshape(d.K * d.K, d.C, d.OC)
    w1t = jnp.pad(w1t, ((0, 0), (0, d.CP - d.C), (0, 0)))    # zero in-channel pad
    w2t = jnp.transpose(w2, (2, 3, 1, 0)).reshape(d.K * d.K, d.OC, d.OC)
    # WL[oc, (oh2*QW + ow2)*HID + hid] = wl[hid, oc*QH*QW + oh2*QW + ow2]
    WL = (wl.reshape(d.HID, d.OC, d.QH * d.QW)
            .transpose(1, 2, 0)
            .reshape(d.OC, d.QH * d.QW * d.HID))
    return dict(
        w1t=w1t,
        b1=jnp.asarray(params["b1"], jnp.float32).reshape(1, d.OC),
        w2t=w2t,
        b2=jnp.asarray(params["b2"], jnp.float32).reshape(1, d.OC),
        wl=WL,
        bl=jnp.asarray(params["bl"], jnp.float32).reshape(1, d.HID),
    )


@functools.partial(jax.jit, static_argnums=(2,))
def cnn_forward(packed, x_nchw, dims):
    d = dims
    N = x_nchw.shape[0]
    # NCHW -> row raster (N, H*W, C); zero-pad rows + channels (tiny input, this
    # is the only runtime layout plumbing left outside the kernel).
    x = jnp.transpose(x_nchw.astype(jnp.float32), (0, 2, 3, 1)).reshape(N, d.H * d.W, d.C)
    x = jnp.pad(x, ((0, 0), (0, d.XR - d.H * d.W), (0, d.CP - d.C)))

    out = pl.pallas_call(
        functools.partial(_cnn_kernel, dims=d),
        out_shape=jax.ShapeDtypeStruct((N, 1, d.HID), jnp.float32),
        grid=(N,),
        in_specs=[
            pl.BlockSpec((1, d.XR, d.CP), lambda b: (b, 0, 0)),           # input raster
            pl.BlockSpec((d.K * d.K, d.CP, d.OC), lambda b: (0, 0, 0)),   # conv1 taps
            pl.BlockSpec((1, d.OC), lambda b: (0, 0)),                    # b1
            pl.BlockSpec((d.K * d.K, d.OC, d.OC), lambda b: (0, 0, 0)),   # conv2 taps
            pl.BlockSpec((1, d.OC), lambda b: (0, 0)),                    # b2
            pl.BlockSpec((d.OC, d.QH * d.QW * d.HID), lambda b: (0, 0)),  # folded linear weight
            pl.BlockSpec((1, d.HID), lambda b: (0, 0)),                   # bl
        ],
        out_specs=pl.BlockSpec((1, 1, d.HID), lambda b: (b, 0, 0)),       # lane-dense output
        scratch_shapes=[
            pltpu.VMEM((d.L1, d.OC), jnp.float32),   # conv1 raster
            pltpu.VMEM((d.LP, d.OC), jnp.float32),   # pooled raster (dilated)
        ],
        compiler_params=pltpu.CompilerParams(
            dimension_semantics=("parallel",),       # batch shards across cores (v7x)
        ),
    )(x, packed["w1t"], packed["b1"], packed["w2t"], packed["b2"],
      packed["wl"], packed["bl"])
    return out.reshape(N, d.HID)


# -------------------------- init & pure-JAX reference -------------------------

def orthogonal_init(key, shape, gain):
    """Deterministic orthogonal init (same semantics as nn.init.orthogonal_)."""
    rows = shape[0]
    cols = int(np.prod(shape[1:]))
    n, m = max(rows, cols), min(rows, cols)
    a = jax.random.normal(key, (n, m), jnp.float32)
    q, r = jnp.linalg.qr(a)
    dsign = jnp.diagonal(r)
    q = q * jnp.where(dsign >= 0, 1.0, -1.0)
    if rows < cols:
        q = q.T
    return (gain * q[:rows, :cols]).reshape(shape)


def reference_forward(params, x_nchw):
    """Plain-JAX reference for correctness checking."""
    dn = ("NCHW", "OIHW", "NCHW")
    y = lax.conv_general_dilated(x_nchw, params["w1"], (1, 1), "VALID",
                                 dimension_numbers=dn)
    y = y + params["b1"][None, :, None, None]
    n, c, h, w = y.shape
    y = y.reshape(n, c, h // 2, 2, w // 2, 2).mean(axis=(3, 5))      # AvgPool2d(2)
    y = lax.conv_general_dilated(y, params["w2"], (1, 1), "VALID",
                                 dimension_numbers=dn)
    y = jnp.maximum(y + params["b2"][None, :, None, None], 0.0)
    flat = y.reshape(n, -1)                                          # NCHW flatten
    out = flat @ params["wl"].T + params["bl"]
    return jnp.maximum(out, 0.0)


# ------------------------------------ main ------------------------------------

if __name__ == "__main__":
    # Small shapes consistent with the module (kernel is size-generic; the spec's
    # default state_shape [4, 30, 30] works too).
    state_shape = [4, 16, 16]
    C, H, W = state_shape
    OC, HID, K, BATCH = 32, 256, 3, 2

    dims = derive_dims(C, H, W, K=K, OC=OC, HID=HID)
    n_flatten = OC * dims.QH * dims.QW

    key = jax.random.PRNGKey(0)
    k0, k1, k2, k3 = jax.random.split(key, 4)
    gain = float(np.sqrt(2.0))  # nn.init.calculate_gain('relu')

    params = {
        "w1": orthogonal_init(k0, (OC, C, K, K), gain),
        "b1": jnp.zeros((OC,), jnp.float32),
        "w2": orthogonal_init(k1, (OC, OC, K, K), gain),
        "b2": jnp.zeros((OC,), jnp.float32),
        "wl": orthogonal_init(k2, (HID, n_flatten), gain),
        "bl": jnp.zeros((HID,), jnp.float32),
    }
    packed = prepare_params(params, dims)

    x = jax.random.normal(k3, (BATCH, C, H, W), jnp.float32)  # NCHW input
    out = cnn_forward(packed, x, dims)
    out = jax.block_until_ready(out)

    assert out.shape == (BATCH, HID), out.shape
    ref = reference_forward(params, x)
    assert jnp.allclose(out, ref, rtol=5e-2, atol=2e-1), float(jnp.max(jnp.abs(out - ref)))
    print("KERNEL_OK")
</pallas_src>

<mosaic_0001>
module attributes {stable_mosaic.version = 11 : i64} {
  func.func @_cnn_kernel(%arg0: i32, %arg1: memref<1x280x8xf32, #tpu.memory_space<vmem>>, %arg2: memref<9x8x32xf32, #tpu.memory_space<vmem>>, %arg3: memref<1x32xf32, #tpu.memory_space<vmem>>, %arg4: memref<9x32x32xf32, #tpu.memory_space<vmem>>, %arg5: memref<1x32xf32, #tpu.memory_space<vmem>>, %arg6: memref<32x6400xf32, #tpu.memory_space<vmem>>, %arg7: memref<1x256xf32, #tpu.memory_space<vmem>>, %arg8: memref<1x1x256xf32, #tpu.memory_space<vmem>>, %arg9: memref<240x32xf32, #tpu.memory_space<vmem>>, %arg10: memref<216x32xf32, #tpu.memory_space<vmem>>) attributes {dimension_semantics = [#tpu.dimension_semantics<parallel>], iteration_bounds = array<i64: 2>, scalar_prefetch = 0 : i64, scratch_operands = 2 : i64, tpu.core_type = #tpu.core_type<tc>, window_params = [{transform_indices = @transform_0, window_bounds = array<i64: 1, 280, 8>}, {pipeline_mode = #tpu.pipeline_mode<synchronous>, transform_indices = @transform_1, window_bounds = array<i64: 9, 8, 32>}, {pipeline_mode = #tpu.pipeline_mode<synchronous>, transform_indices = @transform_2, window_bounds = array<i64: 1, 32>}, {pipeline_mode = #tpu.pipeline_mode<synchronous>, transform_indices = @transform_3, window_bounds = array<i64: 9, 32, 32>}, {pipeline_mode = #tpu.pipeline_mode<synchronous>, transform_indices = @transform_4, window_bounds = array<i64: 1, 32>}, {pipeline_mode = #tpu.pipeline_mode<synchronous>, transform_indices = @transform_5, window_bounds = array<i64: 32, 6400>}, {pipeline_mode = #tpu.pipeline_mode<synchronous>, transform_indices = @transform_6, window_bounds = array<i64: 1, 256>}, {transform_indices = @transform_7, window_bounds = array<i64: 1, 1, 256>}]} {
    %c0 = arith.constant 0 : index
    %c0_0 = arith.constant 0 : index
    %c0_1 = arith.constant 0 : index
    %0 = vector.load %arg1[%c0, %c0_0, %c0_1] : memref<1x280x8xf32, #tpu.memory_space<vmem>>, vector<1x240x8xf32>
    %1 = vector.shape_cast %0 : vector<1x240x8xf32> to vector<240x8xf32>
    %c0_2 = arith.constant 0 : index
    %c0_3 = arith.constant 0 : index
    %c0_4 = arith.constant 0 : index
    %2 = vector.load %arg2[%c0_2, %c0_3, %c0_4] : memref<9x8x32xf32, #tpu.memory_space<vmem>>, vector<1x8x32xf32>
    %3 = vector.shape_cast %2 : vector<1x8x32xf32> to vector<8x32xf32>
    %cst = arith.constant dense<0.000000e+00> : vector<240x32xf32>
    %4 = tpu.matmul %1, %3, %cst {dimension_numbers = #tpu.dot_dimension_numbers<[1], [0], [0], [1], [0, 0, 1, 1], [], []>} : vector<240x8xf32>, vector<8x32xf32>, vector<240x32xf32> -> vector<240x32xf32>
    %c0_5 = arith.constant 0 : index
    %c1 = arith.constant 1 : index
    %c0_6 = arith.constant 0 : index
    %5 = vector.load %arg1[%c0_5, %c1, %c0_6] : memref<1x280x8xf32, #tpu.memory_space<vmem>>, vector<1x240x8xf32>
    %6 = vector.shape_cast %5 : vector<1x240x8xf32> to vector<240x8xf32>
    %c1_7 = arith.constant 1 : index
    %c0_8 = arith.constant 0 : index
    %c0_9 = arith.constant 0 : index
    %7 = vector.load %arg2[%c1_7, %c0_8, %c0_9] : memref<9x8x32xf32, #tpu.memory_space<vmem>>, vector<1x8x32xf32>
    %8 = vector.shape_cast %7 : vector<1x8x32xf32> to vector<8x32xf32>
    %cst_10 = arith.constant dense<0.000000e+00> : vector<240x32xf32>
    %9 = tpu.matmul %6, %8, %cst_10 {dimension_numbers = #tpu.dot_dimension_numbers<[1], [0], [0], [1], [0, 0, 1, 1], [], []>} : vector<240x8xf32>, vector<8x32xf32>, vector<240x32xf32> -> vector<240x32xf32>
    %10 = arith.addf %4, %9 : vector<240x32xf32>
    %c0_11 = arith.constant 0 : index
    %c2 = arith.constant 2 : index
    %c0_12 = arith.constant 0 : index
    %11 = vector.load %arg1[%c0_11, %c2, %c0_12] : memref<1x280x8xf32, #tpu.memory_space<vmem>>, vector<1x240x8xf32>
    %12 = vector.shape_cast %11 : vector<1x240x8xf32> to vector<240x8xf32>
    %c2_13 = arith.constant 2 : index
    %c0_14 = arith.constant 0 : index
    %c0_15 = arith.constant 0 : index
    %13 = vector.load %arg2[%c2_13, %c0_14, %c0_15] : memref<9x8x32xf32, #tpu.memory_space<vmem>>, vector<1x8x32xf32>
    %14 = vector.shape_cast %13 : vector<1x8x32xf32> to vector<8x32xf32>
    %cst_16 = arith.constant dense<0.000000e+00> : vector<240x32xf32>
    %15 = tpu.matmul %12, %14, %cst_16 {dimension_numbers = #tpu.dot_dimension_numbers<[1], [0], [0], [1], [0, 0, 1, 1], [], []>} : vector<240x8xf32>, vector<8x32xf32>, vector<240x32xf32> -> vector<240x32xf32>
    %16 = arith.addf %10, %15 : vector<240x32xf32>
    %c0_17 = arith.constant 0 : index
    %c16 = arith.constant 16 : index
    %c0_18 = arith.constant 0 : index
    %17 = vector.load %arg1[%c0_17, %c16, %c0_18] : memref<1x280x8xf32, #tpu.memory_space<vmem>>, vector<1x240x8xf32>
    %18 = vector.shape_cast %17 : vector<1x240x8xf32> to vector<240x8xf32>
    %c3 = arith.constant 3 : index
    %c0_19 = arith.constant 0 : index
    %c0_20 = arith.constant 0 : index
    %19 = vector.load %arg2[%c3, %c0_19, %c0_20] : memref<9x8x32xf32, #tpu.memory_space<vmem>>, vector<1x8x32xf32>
    %20 = vector.shape_cast %19 : vector<1x8x32xf32> to vector<8x32xf32>
    %cst_21 = arith.constant dense<0.000000e+00> : vector<240x32xf32>
    %21 = tpu.matmul %18, %20, %cst_21 {dimension_numbers = #tpu.dot_dimension_numbers<[1], [0], [0], [1], [0, 0, 1, 1], [], []>} : vector<240x8xf32>, vector<8x32xf32>, vector<240x32xf32> -> vector<240x32xf32>
    %22 = arith.addf %16, %21 : vector<240x32xf32>
    %c0_22 = arith.constant 0 : index
    %c17 = arith.constant 17 : index
    %c0_23 = arith.constant 0 : index
    %23 = vector.load %arg1[%c0_22, %c17, %c0_23] : memref<1x280x8xf32, #tpu.memory_space<vmem>>, vector<1x240x8xf32>
    %24 = vector.shape_cast %23 : vector<1x240x8xf32> to vector<240x8xf32>
    %c4 = arith.constant 4 : index
    %c0_24 = arith.constant 0 : index
    %c0_25 = arith.constant 0 : index
    %25 = vector.load %arg2[%c4, %c0_24, %c0_25] : memref<9x8x32xf32, #tpu.memory_space<vmem>>, vector<1x8x32xf32>
    %26 = vector.shape_cast %25 : vector<1x8x32xf32> to vector<8x32xf32>
    %cst_26 = arith.constant dense<0.000000e+00> : vector<240x32xf32>
    %27 = tpu.matmul %24, %26, %cst_26 {dimension_numbers = #tpu.dot_dimension_numbers<[1], [0], [0], [1], [0, 0, 1, 1], [], []>} : vector<240x8xf32>, vector<8x32xf32>, vector<240x32xf32> -> vector<240x32xf32>
    %28 = arith.addf %22, %27 : vector<240x32xf32>
    %c0_27 = arith.constant 0 : index
    %c18 = arith.constant 18 : index
    %c0_28 = arith.constant 0 : index
    %29 = vector.load %arg1[%c0_27, %c18, %c0_28] : memref<1x280x8xf32, #tpu.memory_space<vmem>>, vector<1x240x8xf32>
    %30 = vector.shape_cast %29 : vector<1x240x8xf32> to vector<240x8xf32>
    %c5 = arith.constant 5 : index
    %c0_29 = arith.constant 0 : index
    %c0_30 = arith.constant 0 : index
    %31 = vector.load %arg2[%c5, %c0_29, %c0_30] : memref<9x8x32xf32, #tpu.memory_space<vmem>>, vector<1x8x32xf32>
    %32 = vector.shape_cast %31 : vector<1x8x32xf32> to vector<8x32xf32>
    %cst_31 = arith.constant dense<0.000000e+00> : vector<240x32xf32>
    %33 = tpu.matmul %30, %32, %cst_31 {dimension_numbers = #tpu.dot_dimension_numbers<[1], [0], [0], [1], [0, 0, 1, 1], [], []>} : vector<240x8xf32>, vector<8x32xf32>, vector<240x32xf32> -> vector<240x32xf32>
    %34 = arith.addf %28, %33 : vector<240x32xf32>
    %c0_32 = arith.constant 0 : index
    %c32 = arith.constant 32 : index
    %c0_33 = arith.constant 0 : index
    %35 = vector.load %arg1[%c0_32, %c32, %c0_33] : memref<1x280x8xf32, #tpu.memory_space<vmem>>, vector<1x240x8xf32>
    %36 = vector.shape_cast %35 : vector<1x240x8xf32> to vector<240x8xf32>
    %c6 = arith.constant 6 : index
    %c0_34 = arith.constant 0 : index
    %c0_35 = arith.constant 0 : index
    %37 = vector.load %arg2[%c6, %c0_34, %c0_35] : memref<9x8x32xf32, #tpu.memory_space<vmem>>, vector<1x8x32xf32>
    %38 = vector.shape_cast %37 : vector<1x8x32xf32> to vector<8x32xf32>
    %cst_36 = arith.constant dense<0.000000e+00> : vector<240x32xf32>
    %39 = tpu.matmul %36, %38, %cst_36 {dimension_numbers = #tpu.dot_dimension_numbers<[1], [0], [0], [1], [0, 0, 1, 1], [], []>} : vector<240x8xf32>, vector<8x32xf32>, vector<240x32xf32> -> vector<240x32xf32>
    %40 = arith.addf %34, %39 : vector<240x32xf32>
    %c0_37 = arith.constant 0 : index
    %c33 = arith.constant 33 : index
    %c0_38 = arith.constant 0 : index
    %41 = vector.load %arg1[%c0_37, %c33, %c0_38] : memref<1x280x8xf32, #tpu.memory_space<vmem>>, vector<1x240x8xf32>
    %42 = vector.shape_cast %41 : vector<1x240x8xf32> to vector<240x8xf32>
    %c7 = arith.constant 7 : index
    %c0_39 = arith.constant 0 : index
    %c0_40 = arith.constant 0 : index
    %43 = vector.load %arg2[%c7, %c0_39, %c0_40] : memref<9x8x32xf32, #tpu.memory_space<vmem>>, vector<1x8x32xf32>
    %44 = vector.shape_cast %43 : vector<1x8x32xf32> to vector<8x32xf32>
    %cst_41 = arith.constant dense<0.000000e+00> : vector<240x32xf32>
    %45 = tpu.matmul %42, %44, %cst_41 {dimension_numbers = #tpu.dot_dimension_numbers<[1], [0], [0], [1], [0, 0, 1, 1], [], []>} : vector<240x8xf32>, vector<8x32xf32>, vector<240x32xf32> -> vector<240x32xf32>
    %46 = arith.addf %40, %45 : vector<240x32xf32>
    %c0_42 = arith.constant 0 : index
    %c34 = arith.constant 34 : index
    %c0_43 = arith.constant 0 : index
    %47 = vector.load %arg1[%c0_42, %c34, %c0_43] : memref<1x280x8xf32, #tpu.memory_space<vmem>>, vector<1x240x8xf32>
    %48 = vector.shape_cast %47 : vector<1x240x8xf32> to vector<240x8xf32>
    %c8 = arith.constant 8 : index
    %c0_44 = arith.constant 0 : index
    %c0_45 = arith.constant 0 : index
    %49 = vector.load %arg2[%c8, %c0_44, %c0_45] : memref<9x8x32xf32, #tpu.memory_space<vmem>>, vector<1x8x32xf32>
    %50 = vector.shape_cast %49 : vector<1x8x32xf32> to vector<8x32xf32>
    %cst_46 = arith.constant dense<0.000000e+00> : vector<240x32xf32>
    %51 = tpu.matmul %48, %50, %cst_46 {dimension_numbers = #tpu.dot_dimension_numbers<[1], [0], [0], [1], [0, 0, 1, 1], [], []>} : vector<240x8xf32>, vector<8x32xf32>, vector<240x32xf32> -> vector<240x32xf32>
    %52 = arith.addf %46, %51 : vector<240x32xf32>
    %c0_47 = arith.constant 0 : index
    %c0_48 = arith.constant 0 : index
    %53 = vector.load %arg9[%c0_47, %c0_48] : memref<240x32xf32, #tpu.memory_space<vmem>>, vector<240x32xf32>
    tpu.vector_store %arg9[%c0_47, %c0_48], %52 {strides = array<i32>} : memref<240x32xf32, #tpu.memory_space<vmem>>, vector<240x32xf32>,
    %c0_49 = arith.constant 0 : index
    %c0_50 = arith.constant 0 : index
    %54 = vector.load %arg9[%c0_49, %c0_50] : memref<240x32xf32, #tpu.memory_space<vmem>>, vector<216x32xf32>
    %c1_51 = arith.constant 1 : index
    %c0_52 = arith.constant 0 : index
    %55 = vector.load %arg9[%c1_51, %c0_52] : memref<240x32xf32, #tpu.memory_space<vmem>>, vector<216x32xf32>
    %56 = arith.addf %54, %55 : vector<216x32xf32>
    %c16_53 = arith.constant 16 : index
    %c0_54 = arith.constant 0 : index
    %57 = vector.load %arg9[%c16_53, %c0_54] : memref<240x32xf32, #tpu.memory_space<vmem>>, vector<216x32xf32>
    %58 = arith.addf %56, %57 : vector<216x32xf32>
    %c17_55 = arith.constant 17 : index
    %c0_56 = arith.constant 0 : index
    %59 = vector.load %arg9[%c17_55, %c0_56] : memref<240x32xf32, #tpu.memory_space<vmem>>, vector<216x32xf32>
    %60 = arith.addf %58, %59 : vector<216x32xf32>
    %cst_57 = arith.constant 2.500000e-01 : f32
    %61 = vector.broadcast %cst_57 : f32 to vector<216x32xf32>
    %62 = arith.mulf %61, %60 : vector<216x32xf32>
    %c0_58 = arith.constant 0 : index
    %c0_59 = arith.constant 0 : index
    %63 = vector.load %arg3[%c0_58, %c0_59] : memref<1x32xf32, #tpu.memory_space<vmem>>, vector<1x32xf32>
    %64 = vector.broadcast %63 : vector<1x32xf32> to vector<216x32xf32>
    %65 = arith.addf %62, %64 : vector<216x32xf32>
    %c0_60 = arith.constant 0 : index
    %c0_61 = arith.constant 0 : index
    %66 = vector.load %arg10[%c0_60, %c0_61] : memref<216x32xf32, #tpu.memory_space<vmem>>, vector<216x32xf32>
    tpu.vector_store %arg10[%c0_60, %c0_61], %65 {strides = array<i32>} : memref<216x32xf32, #tpu.memory_space<vmem>>, vector<216x32xf32>,
    %c0_62 = arith.constant 0 : index
    %c0_63 = arith.constant 0 : index
    %67 = vector.load %arg10[%c0_62, %c0_63] : memref<216x32xf32, #tpu.memory_space<vmem>>, vector<144x32xf32>
    %c0_64 = arith.constant 0 : index
    %c0_65 = arith.constant 0 : index
    %c0_66 = arith.constant 0 : index
    %68 = vector.load %arg4[%c0_64, %c0_65, %c0_66] : memref<9x32x32xf32, #tpu.memory_space<vmem>>, vector<1x32x32xf32>
    %69 = vector.shape_cast %68 : vector<1x32x32xf32> to vector<32x32xf32>
    %cst_67 = arith.constant dense<0.000000e+00> : vector<144x32xf32>
    %70 = tpu.matmul %67, %69, %cst_67 {dimension_numbers = #tpu.dot_dimension_numbers<[1], [0], [0], [1], [0, 0, 1, 1], [], []>} : vector<144x32xf32>, vector<32x32xf32>, vector<144x32xf32> -> vector<144x32xf32>
    %c2_68 = arith.constant 2 : index
    %c0_69 = arith.constant 0 : index
    %71 = vector.load %arg10[%c2_68, %c0_69] : memref<216x32xf32, #tpu.memory_space<vmem>>, vector<144x32xf32>
    %c1_70 = arith.constant 1 : index
    %c0_71 = arith.constant 0 : index
    %c0_72 = arith.constant 0 : index
    %72 = vector.load %arg4[%c1_70, %c0_71, %c0_72] : memref<9x32x32xf32, #tpu.memory_space<vmem>>, vector<1x32x32xf32>
    %73 = vector.shape_cast %72 : vector<1x32x32xf32> to vector<32x32xf32>
    %cst_73 = arith.constant dense<0.000000e+00> : vector<144x32xf32>
    %74 = tpu.matmul %71, %73, %cst_73 {dimension_numbers = #tpu.dot_dimension_numbers<[1], [0], [0], [1], [0, 0, 1, 1], [], []>} : vector<144x32xf32>, vector<32x32xf32>, vector<144x32xf32> -> vector<144x32xf32>
    %75 = arith.addf %70, %74 : vector<144x32xf32>
    %c4_74 = arith.constant 4 : index
    %c0_75 = arith.constant 0 : index
    %76 = vector.load %arg10[%c4_74, %c0_75] : memref<216x32xf32, #tpu.memory_space<vmem>>, vector<144x32xf32>
    %c2_76 = arith.constant 2 : index
    %c0_77 = arith.constant 0 : index
    %c0_78 = arith.constant 0 : index
    %77 = vector.load %arg4[%c2_76, %c0_77, %c0_78] : memref<9x32x32xf32, #tpu.memory_space<vmem>>, vector<1x32x32xf32>
    %78 = vector.shape_cast %77 : vector<1x32x32xf32> to vector<32x32xf32>
    %cst_79 = arith.constant dense<0.000000e+00> : vector<144x32xf32>
    %79 = tpu.matmul %76, %78, %cst_79 {dimension_numbers = #tpu.dot_dimension_numbers<[1], [0], [0], [1], [0, 0, 1, 1], [], []>} : vector<144x32xf32>, vector<32x32xf32>, vector<144x32xf32> -> vector<144x32xf32>
    %80 = arith.addf %75, %79 : vector<144x32xf32>
    %c32_80 = arith.constant 32 : index
    %c0_81 = arith.constant 0 : index
    %81 = vector.load %arg10[%c32_80, %c0_81] : memref<216x32xf32, #tpu.memory_space<vmem>>, vector<144x32xf32>
    %c3_82 = arith.constant 3 : index
    %c0_83 = arith.constant 0 : index
    %c0_84 = arith.constant 0 : index
    %82 = vector.load %arg4[%c3_82, %c0_83, %c0_84] : memref<9x32x32xf32, #tpu.memory_space<vmem>>, vector<1x32x32xf32>
    %83 = vector.shape_cast %82 : vector<1x32x32xf32> to vector<32x32xf32>
    %cst_85 = arith.constant dense<0.000000e+00> : vector<144x32xf32>
    %84 = tpu.matmul %81, %83, %cst_85 {dimension_numbers = #tpu.dot_dimension_numbers<[1], [0], [0], [1], [0, 0, 1, 1], [], []>} : vector<144x32xf32>, vector<32x32xf32>, vector<144x32xf32> -> vector<144x32xf32>
    %85 = arith.addf %80, %84 : vector<144x32xf32>
    %c34_86 = arith.constant 34 : index
    %c0_87 = arith.constant 0 : index
    %86 = vector.load %arg10[%c34_86, %c0_87] : memref<216x32xf32, #tpu.memory_space<vmem>>, vector<144x32xf32>
    %c4_88 = arith.constant 4 : index
    %c0_89 = arith.constant 0 : index
    %c0_90 = arith.constant 0 : index
    %87 = vector.load %arg4[%c4_88, %c0_89, %c0_90] : memref<9x32x32xf32, #tpu.memory_space<vmem>>, vector<1x32x32xf32>
    %88 = vector.shape_cast %87 : vector<1x32x32xf32> to vector<32x32xf32>
    %cst_91 = arith.constant dense<0.000000e+00> : vector<144x32xf32>
    %89 = tpu.matmul %86, %88, %cst_91 {dimension_numbers = #tpu.dot_dimension_numbers<[1], [0], [0], [1], [0, 0, 1, 1], [], []>} : vector<144x32xf32>, vector<32x32xf32>, vector<144x32xf32> -> vector<144x32xf32>
    %90 = arith.addf %85, %89 : vector<144x32xf32>
    %c36 = arith.constant 36 : index
    %c0_92 = arith.constant 0 : index
    %91 = vector.load %arg10[%c36, %c0_92] : memref<216x32xf32, #tpu.memory_space<vmem>>, vector<144x32xf32>
    %c5_93 = arith.constant 5 : index
    %c0_94 = arith.constant 0 : index
    %c0_95 = arith.constant 0 : index
    %92 = vector.load %arg4[%c5_93, %c0_94, %c0_95] : memref<9x32x32xf32, #tpu.memory_space<vmem>>, vector<1x32x32xf32>
    %93 = vector.shape_cast %92 : vector<1x32x32xf32> to vector<32x32xf32>
    %cst_96 = arith.constant dense<0.000000e+00> : vector<144x32xf32>
    %94 = tpu.matmul %91, %93, %cst_96 {dimension_numbers = #tpu.dot_dimension_numbers<[1], [0], [0], [1], [0, 0, 1, 1], [], []>} : vector<144x32xf32>, vector<32x32xf32>, vector<144x32xf32> -> vector<144x32xf32>
    %95 = arith.addf %90, %94 : vector<144x32xf32>
    %c64 = arith.constant 64 : index
    %c0_97 = arith.constant 0 : index
    %96 = vector.load %arg10[%c64, %c0_97] : memref<216x32xf32, #tpu.memory_space<vmem>>, vector<144x32xf32>
    %c6_98 = arith.constant 6 : index
    %c0_99 = arith.constant 0 : index
    %c0_100 = arith.constant 0 : index
    %97 = vector.load %arg4[%c6_98, %c0_99, %c0_100] : memref<9x32x32xf32, #tpu.memory_space<vmem>>, vector<1x32x32xf32>
    %98 = vector.shape_cast %97 : vector<1x32x32xf32> to vector<32x32xf32>
    %cst_101 = arith.constant dense<0.000000e+00> : vector<144x32xf32>
    %99 = tpu.matmul %96, %98, %cst_101 {dimension_numbers = #tpu.dot_dimension_numbers<[1], [0], [0], [1], [0, 0, 1, 1], [], []>} : vector<144x32xf32>, vector<32x32xf32>, vector<144x32xf32> -> vector<144x32xf32>
    %100 = arith.addf %95, %99 : vector<144x32xf32>
    %c66 = arith.constant 66 : index
    %c0_102 = arith.constant 0 : index
    %101 = vector.load %arg10[%c66, %c0_102] : memref<216x32xf32, #tpu.memory_space<vmem>>, vector<144x32xf32>
    %c7_103 = arith.constant 7 : index
    %c0_104 = arith.constant 0 : index
    %c0_105 = arith.constant 0 : index
    %102 = vector.load %arg4[%c7_103, %c0_104, %c0_105] : memref<9x32x32xf32, #tpu.memory_space<vmem>>, vector<1x32x32xf32>
    %103 = vector.shape_cast %102 : vector<1x32x32xf32> to vector<32x32xf32>
    %cst_106 = arith.constant dense<0.000000e+00> : vector<144x32xf32>
    %104 = tpu.matmul %101, %103, %cst_106 {dimension_numbers = #tpu.dot_dimension_numbers<[1], [0], [0], [1], [0, 0, 1, 1], [], []>} : vector<144x32xf32>, vector<32x32xf32>, vector<144x32xf32> -> vector<144x32xf32>
    %105 = arith.addf %100, %104 : vector<144x32xf32>
    %c68 = arith.constant 68 : index
    %c0_107 = arith.constant 0 : index
    %106 = vector.load %arg10[%c68, %c0_107] : memref<216x32xf32, #tpu.memory_space<vmem>>, vector<144x32xf32>
    %c8_108 = arith.constant 8 : index
    %c0_109 = arith.constant 0 : index
    %c0_110 = arith.constant 0 : index
    %107 = vector.load %arg4[%c8_108, %c0_109, %c0_110] : memref<9x32x32xf32, #tpu.memory_space<vmem>>, vector<1x32x32xf32>
    %108 = vector.shape_cast %107 : vector<1x32x32xf32> to vector<32x32xf32>
    %cst_111 = arith.constant dense<0.000000e+00> : vector<144x32xf32>
    %109 = tpu.matmul %106, %108, %cst_111 {dimension_numbers = #tpu.dot_dimension_numbers<[1], [0], [0], [1], [0, 0, 1, 1], [], []>} : vector<144x32xf32>, vector<32x32xf32>, vector<144x32xf32> -> vector<144x32xf32>
    %110 = arith.addf %105, %109 : vector<144x32xf32>
    %c0_112 = arith.constant 0 : index
    %c0_113 = arith.constant 0 : index
    %111 = vector.load %arg5[%c0_112, %c0_113] : memref<1x32xf32, #tpu.memory_space<vmem>>, vector<1x32xf32>
    %112 = vector.broadcast %111 : vector<1x32xf32> to vector<144x32xf32>
    %113 = arith.addf %110, %112 : vector<144x32xf32>
    %cst_114 = arith.constant 0.000000e+00 : f32
    %114 = vector.broadcast %cst_114 : f32 to vector<144x32xf32>
    %115 = arith.maximumf %113, %114 : vector<144x32xf32>
    %cst_115 = arith.constant 0.000000e+00 : f32
    %116 = vector.broadcast %cst_115 : f32 to vector<1x256xf32>
    %117 = vector.extract_strided_slice %115 {offsets = [0, 0], sizes = [9, 32], strides = [1, 1]} : vector<144x32xf32> to vector<9x32xf32>
    %c0_116 = arith.constant 0 : index
    %c0_117 = arith.constant 0 : index
    %118 = vector.load %arg6[%c0_116, %c0_117] : memref<32x6400xf32, #tpu.memory_space<vmem>>, vector<32x1280xf32>
    %cst_118 = arith.constant dense<0.000000e+00> : vector<9x1280xf32>
    %119 = tpu.matmul %117, %118, %cst_118 {dimension_numbers = #tpu.dot_dimension_numbers<[1], [0], [0], [1], [0, 0, 1, 1], [], []>} : vector<9x32xf32>, vector<32x1280xf32>, vector<9x1280xf32> -> vector<9x1280xf32>
    %120 = vector.extract_strided_slice %119 {offsets = [0, 0], sizes = [1, 256], strides = [1, 1]} : vector<9x1280xf32> to vector<1x256xf32>
    %121 = arith.addf %116, %120 : vector<1x256xf32>
    %122 = vector.extract_strided_slice %119 {offsets = [2, 256], sizes = [1, 256], strides = [1, 1]} : vector<9x1280xf32> to vector<1x256xf32>
    %123 = arith.addf %121, %122 : vector<1x256xf32>
    %124 = vector.extract_strided_slice %119 {offsets = [4, 512], sizes = [1, 256], strides = [1, 1]} : vector<9x1280xf32> to vector<1x256xf32>
    %125 = arith.addf %123, %124 : vector<1x256xf32>
    %126 = vector.extract_strided_slice %119 {offsets = [6, 768], sizes = [1, 256], strides = [1, 1]} : vector<9x1280xf32> to vector<1x256xf32>
    %127 = arith.addf %125, %126 : vector<1x256xf32>
    %128 = vector.extract_strided_slice %119 {offsets = [8, 1024], sizes = [1, 256], strides = [1, 1]} : vector<9x1280xf32> to vector<1x256xf32>
    %129 = arith.addf %127, %128 : vector<1x256xf32>
    %130 = vector.extract_strided_slice %115 {offsets = [32, 0], sizes = [9, 32], strides = [1, 1]} : vector<144x32xf32> to vector<9x32xf32>
    %c0_119 = arith.constant 0 : index
    %c1280 = arith.constant 1280 : index
    %131 = vector.load %arg6[%c0_119, %c1280] : memref<32x6400xf32, #tpu.memory_space<vmem>>, vector<32x1280xf32>
    %cst_120 = arith.constant dense<0.000000e+00> : vector<9x1280xf32>
    %132 = tpu.matmul %130, %131, %cst_120 {dimension_numbers = #tpu.dot_dimension_numbers<[1], [0], [0], [1], [0, 0, 1, 1], [], []>} : vector<9x32xf32>, vector<32x1280xf32>, vector<9x1280xf32> -> vector<9x1280xf32>
    %133 = vector.extract_strided_slice %132 {offsets = [0, 0], sizes = [1, 256], strides = [1, 1]} : vector<9x1280xf32> to vector<1x256xf32>
    %134 = arith.addf %129, %133 : vector<1x256xf32>
    %135 = vector.extract_strided_slice %132 {offsets = [2, 256], sizes = [1, 256], strides = [1, 1]} : vector<9x1280xf32> to vector<1x256xf32>
    %136 = arith.addf %134, %135 : vector<1x256xf32>
    %137 = vector.extract_strided_slice %132 {offsets = [4, 512], sizes = [1, 256], strides = [1, 1]} : vector<9x1280xf32> to vector<1x256xf32>
    %138 = arith.addf %136, %137 : vector<1x256xf32>
    %139 = vector.extract_strided_slice %132 {offsets = [6, 768], sizes = [1, 256], strides = [1, 1]} : vector<9x1280xf32> to vector<1x256xf32>
    %140 = arith.addf %138, %139 : vector<1x256xf32>
    %141 = vector.extract_strided_slice %132 {offsets = [8, 1024], sizes = [1, 256], strides = [1, 1]} : vector<9x1280xf32> to vector<1x256xf32>
    %142 = arith.addf %140, %141 : vector<1x256xf32>
    %143 = vector.extract_strided_slice %115 {offsets = [64, 0], sizes = [9, 32], strides = [1, 1]} : vector<144x32xf32> to vector<9x32xf32>
    %c0_121 = arith.constant 0 : index
    %c2560 = arith.constant 2560 : index
    %144 = vector.load %arg6[%c0_121, %c2560] : memref<32x6400xf32, #tpu.memory_space<vmem>>, vector<32x1280xf32>
    %cst_122 = arith.constant dense<0.000000e+00> : vector<9x1280xf32>
    %145 = tpu.matmul %143, %144, %cst_122 {dimension_numbers = #tpu.dot_dimension_numbers<[1], [0], [0], [1], [0, 0, 1, 1], [], []>} : vector<9x32xf32>, vector<32x1280xf32>, vector<9x1280xf32> -> vector<9x1280xf32>
    %146 = vector.extract_strided_slice %145 {offsets = [0, 0], sizes = [1, 256], strides = [1, 1]} : vector<9x1280xf32> to vector<1x256xf32>
    %147 = arith.addf %142, %146 : vector<1x256xf32>
    %148 = vector.extract_strided_slice %145 {offsets = [2, 256], sizes = [1, 256], strides = [1, 1]} : vector<9x1280xf32> to vector<1x256xf32>
    %149 = arith.addf %147, %148 : vector<1x256xf32>
    %150 = vector.extract_strided_slice %145 {offsets = [4, 512], sizes = [1, 256], strides = [1, 1]} : vector<9x1280xf32> to vector<1x256xf32>
    %151 = arith.addf %149, %150 : vector<1x256xf32>
    %152 = vector.extract_strided_slice %145 {offsets = [6, 768], sizes = [1, 256], strides = [1, 1]} : vector<9x1280xf32> to vector<1x256xf32>
    %153 = arith.addf %151, %152 : vector<1x256xf32>
    %154 = vector.extract_strided_slice %145 {offsets = [8, 1024], sizes = [1, 256], strides = [1, 1]} : vector<9x1280xf32> to vector<1x256xf32>
    %155 = arith.addf %153, %154 : vector<1x256xf32>
    %156 = vector.extract_strided_slice %115 {offsets = [96, 0], sizes = [9, 32], strides = [1, 1]} : vector<144x32xf32> to vector<9x32xf32>
    %c0_123 = arith.constant 0 : index
    %c3840 = arith.constant 3840 : index
    %157 = vector.load %arg6[%c0_123, %c3840] : memref<32x6400xf32, #tpu.memory_space<vmem>>, vector<32x1280xf32>
    %cst_124 = arith.constant dense<0.000000e+00> : vector<9x1280xf32>
    %158 = tpu.matmul %156, %157, %cst_124 {dimension_numbers = #tpu.dot_dimension_numbers<[1], [0], [0], [1], [0, 0, 1, 1], [], []>} : vector<9x32xf32>, vector<32x1280xf32>, vector<9x1280xf32> -> vector<9x1280xf32>
    %159 = vector.extract_strided_slice %158 {offsets = [0, 0], sizes = [1, 256], strides = [1, 1]} : vector<9x1280xf32> to vector<1x256xf32>
    %160 = arith.addf %155, %159 : vector<1x256xf32>
    %161 = vector.extract_strided_slice %158 {offsets = [2, 256], sizes = [1, 256], strides = [1, 1]} : vector<9x1280xf32> to vector<1x256xf32>
    %162 = arith.addf %160, %161 : vector<1x256xf32>
    %163 = vector.extract_strided_slice %158 {offsets = [4, 512], sizes = [1, 256], strides = [1, 1]} : vector<9x1280xf32> to vector<1x256xf32>
    %164 = arith.addf %162, %163 : vector<1x256xf32>
    %165 = vector.extract_strided_slice %158 {offsets = [6, 768], sizes = [1, 256], strides = [1, 1]} : vector<9x1280xf32> to vector<1x256xf32>
    %166 = arith.addf %164, %165 : vector<1x256xf32>
    %167 = vector.extract_strided_slice %158 {offsets = [8, 1024], sizes = [1, 256], strides = [1, 1]} : vector<9x1280xf32> to vector<1x256xf32>
    %168 = arith.addf %166, %167 : vector<1x256xf32>
    %169 = vector.extract_strided_slice %115 {offsets = [128, 0], sizes = [9, 32], strides = [1, 1]} : vector<144x32xf32> to vector<9x32xf32>
    %c0_125 = arith.constant 0 : index
    %c5120 = arith.constant 5120 : index
    %170 = vector.load %arg6[%c0_125, %c5120] : memref<32x6400xf32, #tpu.memory_space<vmem>>, vector<32x1280xf32>
    %cst_126 = arith.constant dense<0.000000e+00> : vector<9x1280xf32>
    %171 = tpu.matmul %169, %170, %cst_126 {dimension_numbers = #tpu.dot_dimension_numbers<[1], [0], [0], [1], [0, 0, 1, 1], [], []>} : vector<9x32xf32>, vector<32x1280xf32>, vector<9x1280xf32> -> vector<9x1280xf32>
    %172 = vector.extract_strided_slice %171 {offsets = [0, 0], sizes = [1, 256], strides = [1, 1]} : vector<9x1280xf32> to vector<1x256xf32>
    %173 = arith.addf %168, %172 : vector<1x256xf32>
    %174 = vector.extract_strided_slice %171 {offsets = [2, 256], sizes = [1, 256], strides = [1, 1]} : vector<9x1280xf32> to vector<1x256xf32>
    %175 = arith.addf %173, %174 : vector<1x256xf32>
    %176 = vector.extract_strided_slice %171 {offsets = [4, 512], sizes = [1, 256], strides = [1, 1]} : vector<9x1280xf32> to vector<1x256xf32>
    %177 = arith.addf %175, %176 : vector<1x256xf32>
    %178 = vector.extract_strided_slice %171 {offsets = [6, 768], sizes = [1, 256], strides = [1, 1]} : vector<9x1280xf32> to vector<1x256xf32>
    %179 = arith.addf %177, %178 : vector<1x256xf32>
    %180 = vector.extract_strided_slice %171 {offsets = [8, 1024], sizes = [1, 256], strides = [1, 1]} : vector<9x1280xf32> to vector<1x256xf32>
    %181 = arith.addf %179, %180 : vector<1x256xf32>
    %c0_127 = arith.constant 0 : index
    %c0_128 = arith.constant 0 : index
    %182 = vector.load %arg7[%c0_127, %c0_128] : memref<1x256xf32, #tpu.memory_space<vmem>>, vector<1x256xf32>
    %183 = arith.addf %181, %182 : vector<1x256xf32>
    %cst_129 = arith.constant 0.000000e+00 : f32
    %184 = vector.broadcast %cst_129 : f32 to vector<1x256xf32>
    %185 = arith.maximumf %183, %184 : vector<1x256xf32>
    %c0_130 = arith.constant 0 : index
    %c0_131 = arith.constant 0 : index
    %c0_132 = arith.constant 0 : index
    %186 = vector.load %arg8[%c0_130, %c0_131, %c0_132] : memref<1x1x256xf32, #tpu.memory_space<vmem>>, vector<1x1x256xf32>
    %187 = vector.shape_cast %186 : vector<1x1x256xf32> to vector<1x256xf32>
    %188 = vector.shape_cast %185 : vector<1x256xf32> to vector<1x1x256xf32>
    tpu.vector_store %arg8[%c0_130, %c0_131, %c0_132], %188 {strides = array<i32>} : memref<1x1x256xf32, #tpu.memory_space<vmem>>, vector<1x1x256xf32>,
    return
  }
  func.func @transform_0(%arg0: i32) -> (i32, i32, i32) {
    %c0_i32 = arith.constant 0 : i32
    %c0_i32_0 = arith.constant 0 : i32
    %c0_i32_1 = arith.constant 0 : i32
    return %arg0, %c0_i32, %c0_i32_0 : i32, i32, i32
  }
  func.func @transform_1(%arg0: i32) -> (i32, i32, i32) {
    %c0_i32 = arith.constant 0 : i32
    %c0_i32_0 = arith.constant 0 : i32
    %c0_i32_1 = arith.constant 0 : i32
    %c0_i32_2 = arith.constant 0 : i32
    return %c0_i32, %c0_i32_0, %c0_i32_1 : i32, i32, i32
  }
  func.func @transform_2(%arg0: i32) -> (i32, i32) {
    %c0_i32 = arith.constant 0 : i32
    %c0_i32_0 = arith.constant 0 : i32
    %c0_i32_1 = arith.constant 0 : i32
    return %c0_i32, %c0_i32_0 : i32, i32
  }
  func.func @transform_3(%arg0: i32) -> (i32, i32, i32) {
    %c0_i32 = arith.constant 0 : i32
    %c0_i32_0 = arith.constant 0 : i32
    %c0_i32_1 = arith.constant 0 : i32
    %c0_i32_2 = arith.constant 0 : i32
    return %c0_i32, %c0_i32_0, %c0_i32_1 : i32, i32, i32
  }
  func.func @transform_4(%arg0: i32) -> (i32, i32) {
    %c0_i32 = arith.constant 0 : i32
    %c0_i32_0 = arith.constant 0 : i32
    %c0_i32_1 = arith.constant 0 : i32
    return %c0_i32, %c0_i32_0 : i32, i32
  }
  func.func @transform_5(%arg0: i32) -> (i32, i32) {
    %c0_i32 = arith.constant 0 : i32
    %c0_i32_0 = arith.constant 0 : i32
    %c0_i32_1 = arith.constant 0 : i32
    return %c0_i32, %c0_i32_0 : i32, i32
  }
  func.func @transform_6(%arg0: i32) -> (i32, i32) {
    %c0_i32 = arith.constant 0 : i32
    %c0_i32_0 = arith.constant 0 : i32
    %c0_i32_1 = arith.constant 0 : i32
    return %c0_i32, %c0_i32_0 : i32, i32
  }
  func.func @transform_7(%arg0: i32) -> (i32, i32, i32) {
    %c0_i32 = arith.constant 0 : i32
    %c0_i32_0 = arith.constant 0 : i32
    %c0_i32_1 = arith.constant 0 : i32
    return %arg0, %c0_i32, %c0_i32_0 : i32, i32, i32
  }
}

</mosaic_0001>

<llo_original>
// kernel: cnn_forward.1
$region0: #{cnn_forward.1}
  #allocation0 [shape = 'u32[]', space=smem, size = 0x4, offset = 0x4, fixed_abs, tag = 'smem constant byte address 0x4 - core index']
  #allocation1 [shape = 'u32[144,128]{1,0:T(1,128)}', space=vmem, size = 0x12000, scoped, tag = 'internal scratch']
  #allocation2 [shape = 'f32[240,32]{1,0:T(8,128)}', space=vmem, size = 0x1e000, scoped, tag = 'scratch operand']
  #allocation3 [shape = 'f32[216,32]{1,0:T(8,128)}', space=vmem, size = 0x1b000, scoped, tag = 'scratch operand']
  %s0 = inlined_call_operand.vmem [shape: f32[2,280,8], index: 0, kind: input, shape index: {}]
  %s1 = inlined_call_operand.vmem [shape: f32[9,8,32], index: 1, kind: input, shape index: {}]
  %s2 = inlined_call_operand.vmem [shape: f32[1,32], index: 2, kind: input, shape index: {}]
  %s3 = inlined_call_operand.hbm [shape: f32[9,32,32], index: 3, kind: input, shape index: {}]
  %s4 = inlined_call_operand.vmem [shape: f32[1,32], index: 4, kind: input, shape index: {}]
  %s5 = inlined_call_operand.vmem [shape: f32[32,6400], index: 5, kind: input, shape index: {}]
  %s6 = inlined_call_operand.vmem [shape: f32[1,256], index: 6, kind: input, shape index: {}]
  %s7 = inlined_call_operand.vmem [shape: f32[2,1,256], index: 7, kind: output, shape index: {}]
  %s8 = sld [smem:[#allocation0]]
  $region65: #{cnn_forward.1} parent=0
    _
  %s10 = ssub.s32 1, %s8
  %s11 = scalar_select 0, %s10, %s8
  $region1: #{cnn_forward.1} parent=0
    #allocation4 [shape = 'u8[147456]{0}', space=vmem, size = 0x24000, scoped, tag = 'input window, operand 3, single buffered']
    #allocation5 [shape = 's32[2]{0}', space=sflag, size = 0x8, scoped, tag = 'scoped memory for cnn_forward.1']
    %12 = vsyncpa [#allocation5], 0
    loop: start=0, step=1, limit=4
    $region2: #{cnn_forward.1} parent=1 // loop_pre_header
      _
    $region3: #{cnn_forward.1} parent=1 // loop_header
      %s14 = sphi 0, %s18
      %p15 = scmp.ge.s32.totalorder %s14, 4
      %s24 = sphi 0, %s26
      %s27 = sphi 0, %s24
      %s28 = sphi 0, %s27
      %s44 = sphi 0, %s28
      %s48 = sphi 0, %s48
      %s50 = sphi 0, %s48
      %s51 = sphi 0, %s50
      %s65 = sphi 0, %s51
      %s69 = sphi 0, %s69
      %s71 = sphi 0, %s69
      %s72 = sphi 0, %s71
      %s86 = sphi 0, %s72
      %s90 = sphi 0, %s90
      %s92 = sphi 0, %s90
      %s93 = sphi 0, %s92
      %s107 = sphi 0, %s93
      %s111 = sphi 0, %s111
      %s113 = sphi 0, %s111
      %s114 = sphi 0, %s113
      %s128 = sphi 0, %s114
      %s132 = sphi 0, %s132
      %s134 = sphi 0, %s132
      %s135 = sphi 0, %s134
      %s149 = sphi 0, %s135
      %s153 = sphi 0, %s153
      %s155 = sphi 0, %s153
      %s156 = sphi 0, %s155
      %s170 = sphi 0, %s156
      %s176 = sphi 0, %s178
      %s179 = sphi 0, %s176
      %s180 = sphi 0, %s179
      %s196 = sphi 0, %s180
    $region4: #{cnn_forward.1} parent=1 // loop_header_branch
      %17 = sbr.rel (%p15) target = $region8
    $region5: #{cnn_forward.1} parent=1 // loop_body
      %s19 = ssub.s32 %s14, 1
      %s20 = ssub.s32 %s14, 2
      %s21 = sadd.s32 %s14, 1
      %s22 = ssub.s32 %s14, %s21
      %p23 = scmp.eq.s32.totalorder %s22, 0
      %s25 = sadd.s32 %s24, 1
      %s26 = scalar_select %p23, %s24, %s25
      %p29 = pneg %p23
      %p30 = scmp.eq.s32.totalorder %s14, 1
      %p31 = por %p29, %p30
      %p32 = scmp.ne.s32.totalorder %s24, %s27
      %p33 = scmp.eq.s32.totalorder %s14, 0
      %p34 = por %p32, %p33
      %p35 = scmp.ne.s32.totalorder %s24, %s27
      %p36 = scmp.eq.s32.totalorder %s19, 1
      %p37 = por %p35, %p36
      %p38 = scmp.ne.s32.totalorder %s27, %s28
      %p39 = scmp.eq.s32.totalorder %s19, 0
      %p40 = por %p38, %p39
      %p41 = scmp.ne.s32.totalorder %s27, %s28
      %p42 = scmp.eq.s32.totalorder %s20, 1
      %p43 = por %p41, %p42
      %p45 = scmp.ne.s32.totalorder %s28, %s44
      %p46 = scmp.eq.s32.totalorder %s20, 0
      %p47 = por %p45, %p46
      %s49 = sadd.s32 %s48, 1
      %p52 = scmp.eq.s32.totalorder %s14, 1
      %p53 = scmp.ne.s32.totalorder %s48, %s50
      %p54 = scmp.eq.s32.totalorder %s14, 0
      %p55 = por %p53, %p54
      %p56 = scmp.ne.s32.totalorder %s48, %s50
      %p57 = scmp.eq.s32.totalorder %s19, 1
      %p58 = por %p56, %p57
      %p59 = scmp.ne.s32.totalorder %s50, %s51
      %p60 = scmp.eq.s32.totalorder %s19, 0
      %p61 = por %p59, %p60
      %p62 = scmp.ne.s32.totalorder %s50, %s51
      %p63 = scmp.eq.s32.totalorder %s20, 1
      %p64 = por %p62, %p63
      %p66 = scmp.ne.s32.totalorder %s51, %s65
      %p67 = scmp.eq.s32.totalorder %s20, 0
      %p68 = por %p66, %p67
      %s70 = sadd.s32 %s69, 1
      %p73 = scmp.eq.s32.totalorder %s14, 1
      %p74 = scmp.ne.s32.totalorder %s69, %s71
      %p75 = scmp.eq.s32.totalorder %s14, 0
      %p76 = por %p74, %p75
      %p77 = scmp.ne.s32.totalorder %s69, %s71
      %p78 = scmp.eq.s32.totalorder %s19, 1
      %p79 = por %p77, %p78
      %p80 = scmp.ne.s32.totalorder %s71, %s72
      %p81 = scmp.eq.s32.totalorder %s19, 0
      %p82 = por %p80, %p81
      %p83 = scmp.ne.s32.totalorder %s71, %s72
      %p84 = scmp.eq.s32.totalorder %s20, 1
      %p85 = por %p83, %p84
      %p87 = scmp.ne.s32.totalorder %s72, %s86
      %p88 = scmp.eq.s32.totalorder %s20, 0
      %p89 = por %p87, %p88
      %s91 = sadd.s32 %s90, 1
      %p94 = scmp.eq.s32.totalorder %s14, 1
      %p95 = scmp.ne.s32.totalorder %s90, %s92
      %p96 = scmp.eq.s32.totalorder %s14, 0
      %p97 = por %p95, %p96
      %p98 = scmp.ne.s32.totalorder %s90, %s92
      %p99 = scmp.eq.s32.totalorder %s19, 1
      %p100 = por %p98, %p99
      %p101 = scmp.ne.s32.totalorder %s92, %s93
      %p102 = scmp.eq.s32.totalorder %s19, 0
      %p103 = por %p101, %p102
      %p104 = scmp.ne.s32.totalorder %s92, %s93
      %p105 = scmp.eq.s32.totalorder %s20, 1
      %p106 = por %p104, %p105
      %p108 = scmp.ne.s32.totalorder %s93, %s107
      %p109 = scmp.eq.s32.totalorder %s20, 0
      %p110 = por %p108, %p109
      %s112 = sadd.s32 %s111, 1
      %p115 = scmp.eq.s32.totalorder %s14, 1
      %p116 = scmp.ne.s32.totalorder %s111, %s113
      %p117 = scmp.eq.s32.totalorder %s14, 0
      %p118 = por %p116, %p117
      %p119 = scmp.ne.s32.totalorder %s111, %s113
      %p120 = scmp.eq.s32.totalorder %s19, 1
      %p121 = por %p119, %p120
      %p122 = scmp.ne.s32.totalorder %s113, %s114
      %p123 = scmp.eq.s32.totalorder %s19, 0
      %p124 = por %p122, %p123
      %p125 = scmp.ne.s32.totalorder %s113, %s114
      %p126 = scmp.eq.s32.totalorder %s20, 1
      %p127 = por %p125, %p126
      %p129 = scmp.ne.s32.totalorder %s114, %s128
      %p130 = scmp.eq.s32.totalorder %s20, 0
      %p131 = por %p129, %p130
      %s133 = sadd.s32 %s132, 1
      %p136 = scmp.eq.s32.totalorder %s14, 1
      %p137 = scmp.ne.s32.totalorder %s132, %s134
      %p138 = scmp.eq.s32.totalorder %s14, 0
      %p139 = por %p137, %p138
      %p140 = scmp.ne.s32.totalorder %s132, %s134
      %p141 = scmp.eq.s32.totalorder %s19, 1
      %p142 = por %p140, %p141
      %p143 = scmp.ne.s32.totalorder %s134, %s135
      %p144 = scmp.eq.s32.totalorder %s19, 0
      %p145 = por %p143, %p144
      %p146 = scmp.ne.s32.totalorder %s134, %s135
      %p147 = scmp.eq.s32.totalorder %s20, 1
      %p148 = por %p146, %p147
      %p150 = scmp.ne.s32.totalorder %s135, %s149
      %p151 = scmp.eq.s32.totalorder %s20, 0
      %p152 = por %p150, %p151
      %s154 = sadd.s32 %s153, 1
      %p157 = scmp.eq.s32.totalorder %s14, 1
      %p158 = scmp.ne.s32.totalorder %s153, %s155
      %p159 = scmp.eq.s32.totalorder %s14, 0
      %p160 = por %p158, %p159
      %p161 = scmp.ne.s32.totalorder %s153, %s155
      %p162 = scmp.eq.s32.totalorder %s19, 1
      %p163 = por %p161, %p162
      %p164 = scmp.ne.s32.totalorder %s155, %s156
      %p165 = scmp.eq.s32.totalorder %s19, 0
      %p166 = por %p164, %p165
      %p167 = scmp.ne.s32.totalorder %s155, %s156
      %p168 = scmp.eq.s32.totalorder %s20, 1
      %p169 = por %p167, %p168
      %p171 = scmp.ne.s32.totalorder %s156, %s170
      %p172 = scmp.eq.s32.totalorder %s20, 0
      %p173 = por %p171, %p172
      %s174 = ssub.s32 %s14, %s21
      %p175 = scmp.eq.s32.totalorder %s174, 0
      %s177 = sadd.s32 %s176, 1
      %s178 = scalar_select %p175, %s176, %s177
      %p181 = pneg %p175
      %p182 = scmp.eq.s32.totalorder %s14, 1
      %p183 = por %p181, %p182
      %p184 = scmp.ne.s32.totalorder %s176, %s179
      %p185 = scmp.eq.s32.totalorder %s14, 0
      %p186 = por %p184, %p185
      %p187 = scmp.ne.s32.totalorder %s176, %s179
      %p188 = scmp.eq.s32.totalorder %s19, 1
      %p189 = por %p187, %p188
      %p190 = scmp.ne.s32.totalorder %s179, %s180
      %p191 = scmp.eq.s32.totalorder %s19, 0
      %p192 = por %p190, %p191
      %p193 = scmp.ne.s32.totalorder %s179, %s180
      %p194 = scmp.eq.s32.totalorder %s20, 1
      %p195 = por %p193, %p194
      %p197 = scmp.ne.s32.totalorder %s180, %s196
      %p198 = scmp.eq.s32.totalorder %s20, 0
      %p199 = por %p197, %p198
      %p200 = scmp.le.s32.totalorder 1, %s14
      %p201 = scmp.lt.s32.totalorder %s14, 3
      %p202 = pnand %p200, %p201
      %p203 = pneg %p202
      // Predicated region
      $region9: #{cnn_forward.1} parent=5 // pred_check
        _
      $region10: #{cnn_forward.1} parent=5 // pred_check_branch
        %205 = sbr.rel (%p202) target = $region12
      $region11: #{cnn_forward.1} parent=5 // pred_region
        %s206 = ssub.s32 %s14, 1
        // Predicated region
        $region13: #{cnn_forward.1} parent=11 // pred_check
          %p207 = pneg %p61
        $region14: #{cnn_forward.1} parent=11 // pred_check_branch
          %209 = sbr.rel (%p207) target = $region16
        $region15: #{cnn_forward.1} parent=11 // pred_region
          _
        $region16: #{cnn_forward.1} parent=11 // pred_fallthru
          _
        // Predicated region
        $region17: #{cnn_forward.1} parent=11 // pred_check
          %p210 = pneg %p82
        $region18: #{cnn_forward.1} parent=11 // pred_check_branch
          %212 = sbr.rel (%p210) target = $region20
        $region19: #{cnn_forward.1} parent=11 // pred_region
          _
        $region20: #{cnn_forward.1} parent=11 // pred_fallthru
          _
        // Predicated region
        $region21: #{cnn_forward.1} parent=11 // pred_check
          %p213 = pneg %p103
        $region22: #{cnn_forward.1} parent=11 // pred_check_branch
          %215 = sbr.rel (%p213) target = $region24
        $region23: #{cnn_forward.1} parent=11 // pred_region
          %s217 = ssub.s32 4608, 4608
          %218 = vsyncadd [#allocation5], %s217
          %s219 = sshll.u32 [#allocation4], 4
          %s220 = int_to_ptr.vmem [resolvable:$true] %s219
          %225 = dma.hbm_to_vmem [thread:$0]  %s3, 4608, %s220, [#allocation5], 128, 128, 8
        $region24: #{cnn_forward.1} parent=11 // pred_fallthru
          _
        // Predicated region
        $region25: #{cnn_forward.1} parent=11 // pred_check
          %p226 = pneg %p124
        $region26: #{cnn_forward.1} parent=11 // pred_check_branch
          %228 = sbr.rel (%p226) target = $region28
        $region27: #{cnn_forward.1} parent=11 // pred_region
          _
        $region28: #{cnn_forward.1} parent=11 // pred_fallthru
          _
        // Predicated region
        $region29: #{cnn_forward.1} parent=11 // pred_check
          %p229 = pneg %p145
        $region30: #{cnn_forward.1} parent=11 // pred_check_branch
          %231 = sbr.rel (%p229) target = $region32
        $region31: #{cnn_forward.1} parent=11 // pred_region
          _
        $region32: #{cnn_forward.1} parent=11 // pred_fallthru
          _
        // Predicated region
        $region33: #{cnn_forward.1} parent=11 // pred_check
          %p232 = pneg %p166
        $region34: #{cnn_forward.1} parent=11 // pred_check_branch
          %234 = sbr.rel (%p232) target = $region36
        $region35: #{cnn_forward.1} parent=11 // pred_region
          _
        $region36: #{cnn_forward.1} parent=11 // pred_fallthru
          _
      $region12: #{cnn_forward.1} parent=5 // pred_fallthru
        _
      %p235 = scmp.lt.s32.totalorder %s14, 2
      // Predicated region
      $region37: #{cnn_forward.1} parent=5 // pred_check
        %p236 = pneg %p235
      $region38: #{cnn_forward.1} parent=5 // pred_check_branch
        %238 = sbr.rel (%p236) target = $region40
      $region39: #{cnn_forward.1} parent=5 // pred_region
        // Predicated region
        $region41: #{cnn_forward.1} parent=39 // pred_check
          %p239 = pneg %p34
        $region42: #{cnn_forward.1} parent=39 // pred_check_branch
          %241 = sbr.rel (%p239) target = $region44
        $region43: #{cnn_forward.1} parent=39 // pred_region
          %p242 = scmp.lt.s32.totalorder %s14, 1
          %s243 = scalar_select %p242, %s14, 1
          %s244 = smul.addr %s243, 35
          %s245 = smul.addr %s244, 8
          %s246 = scalar_lea.vmem %s0, %s245
        $region44: #{cnn_forward.1} parent=39 // pred_fallthru
          _
      $region40: #{cnn_forward.1} parent=5 // pred_fallthru
        _
      %p247 = scmp.le.s32.totalorder 1, %s14
      %p248 = scmp.lt.s32.totalorder %s14, 3
      %p249 = pnand %p247, %p248
      %p250 = pneg %p249
      // Predicated region
      $region45: #{cnn_forward.1} parent=5 // pred_check
        _
      $region46: #{cnn_forward.1} parent=5 // pred_check_branch
        %252 = sbr.rel (%p249) target = $region48
      $region47: #{cnn_forward.1} parent=5 // pred_region
        %s253 = ssub.s32 %s14, 1
        // Predicated region
        $region49: #{cnn_forward.1} parent=47 // pred_check
          %p254 = pneg %p103
        $region50: #{cnn_forward.1} parent=47 // pred_check_branch
          %256 = sbr.rel (%p254) target = $region52
        $region51: #{cnn_forward.1} parent=47 // pred_region
          %257 = dma.done [#allocation5], 4608
        $region52: #{cnn_forward.1} parent=47 // pred_fallthru
          _
        %p258 = scmp.lt.s32.totalorder %s19, 1
        %s259 = scalar_select %p258, %s19, 1
        %s260 = smul.addr %s259, 35
        %s261 = smul.addr %s260, 8
        %s262 = scalar_lea.vmem %s0, %s261
        %p263 = pneg %p40
        %p264 = pneg %p37
        %p265 = pneg %p61
        %p266 = pneg %p58
        %p267 = pneg %p82
        %p268 = pneg %p79
        %p269 = pneg %p103
        %p270 = pneg %p100
        %p271 = pneg %p124
        %p272 = pneg %p121
        %p273 = pneg %p145
        %p274 = pneg %p142
        %p275 = pneg %p166
        %p276 = pneg %p163
        %p277 = pneg %p192
        %p278 = pneg %p189
        %p279 = scmp.lt.s32.totalorder %s19, 1
        %s280 = scalar_select %p279, %s19, 1
        %s281 = smul.addr %s280, 2
        %s282 = scalar_lea.vmem %s7, %s281
        %p283 = scmp.lt.s32.totalorder %s19, 1
        %s284 = scalar_select %p283, %s19, 1
        %s285 = smul.addr %s284, 35
        %s286 = smul.addr %s285, 8
        %s287 = scalar_lea.vmem %s0, %s286
        %p288 = scmp.lt.s32.totalorder %s19, 1
        %s289 = scalar_select %p288, %s19, 1
        %s290 = smul.addr %s289, 2
        %s291 = scalar_lea.vmem %s7, %s290
        %v292 = vld [vmem:[%s287] sm:$0xff]
        %v293 = vld [vmem:[%s287 + $0x8] sm:$0xff]
        %v294 = vld [vmem:[%s287 + $0x10] sm:$0xff]
        %v295 = vld [vmem:[%s287 + $0x18] sm:$0xff]
        %v296 = vld [vmem:[%s287 + $0x20] sm:$0xff]
        %v297 = vld [vmem:[%s287 + $0x28] sm:$0xff]
        %v298 = vld [vmem:[%s287 + $0x30] sm:$0xff]
        %v299 = vld [vmem:[%s287 + $0x38] sm:$0xff]
        %v300 = vld [vmem:[%s287 + $0x40] sm:$0xff]
        %v301 = vld [vmem:[%s287 + $0x48] sm:$0xff]
        %v302 = vld [vmem:[%s287 + $0x50] sm:$0xff]
        %v303 = vld [vmem:[%s287 + $0x58] sm:$0xff]
        %v304 = vld [vmem:[%s287 + $0x60] sm:$0xff]
        %v305 = vld [vmem:[%s287 + $0x68] sm:$0xff]
        %v306 = vld [vmem:[%s287 + $0x70] sm:$0xff]
        %v307 = vld [vmem:[%s287 + $0x78] sm:$0xff]
        %v308 = vld [vmem:[%s287 + $0x80] sm:$0xff]
        %v309 = vld [vmem:[%s287 + $0x88] sm:$0xff]
        %v310 = vld [vmem:[%s287 + $0x90] sm:$0xff]
        %v311 = vld [vmem:[%s287 + $0x98] sm:$0xff]
        %v312 = vld [vmem:[%s287 + $0xa0] sm:$0xff]
        %v313 = vld [vmem:[%s287 + $0xa8] sm:$0xff]
        %v314 = vld [vmem:[%s287 + $0xb0] sm:$0xff]
        %v315 = vld [vmem:[%s287 + $0xb8] sm:$0xff]
        %v316 = vld [vmem:[%s287 + $0xc0] sm:$0xff]
        %v317 = vld [vmem:[%s287 + $0xc8] sm:$0xff]
        %v318 = vld [vmem:[%s287 + $0xd0] sm:$0xff]
        %v319 = vld [vmem:[%s287 + $0xd8] sm:$0xff]
        %v320 = vld [vmem:[%s287 + $0xe0] sm:$0xff]
        %v321 = vld [vmem:[%s287 + $0xe8] sm:$0xff]
        %v322 = vld [vmem:[%s1] sm:$0xff]
        %v323 = vld [vmem:[%s287 + $0x1] sm:$0xff]
        %v324 = vld [vmem:[%s287 + $0x9] sm:$0xff]
        %v325 = vld [vmem:[%s287 + $0x11] sm:$0xff]
        %v326 = vld [vmem:[%s287 + $0x19] sm:$0xff]
        %v327 = vld [vmem:[%s287 + $0x21] sm:$0xff]
        %v328 = vld [vmem:[%s287 + $0x29] sm:$0xff]
        %v329 = vld [vmem:[%s287 + $0x31] sm:$0xff]
        %v330 = vld [vmem:[%s287 + $0x39] sm:$0xff]
        %v331 = vld [vmem:[%s287 + $0x41] sm:$0xff]
        %v332 = vld [vmem:[%s287 + $0x49] sm:$0xff]
        %v333 = vld [vmem:[%s287 + $0x51] sm:$0xff]
        %v334 = vld [vmem:[%s287 + $0x59] sm:$0xff]
        %v335 = vld [vmem:[%s287 + $0x61] sm:$0xff]
        %v336 = vld [vmem:[%s287 + $0x69] sm:$0xff]
        %v337 = vld [vmem:[%s287 + $0x71] sm:$0xff]
        %v338 = vld [vmem:[%s287 + $0x79] sm:$0xff]
        %v339 = vld [vmem:[%s287 + $0x81] sm:$0xff]
        %v340 = vld [vmem:[%s287 + $0x89] sm:$0xff]
        %v341 = vld [vmem:[%s287 + $0x91] sm:$0xff]
        %v342 = vld [vmem:[%s287 + $0x99] sm:$0xff]
        %v343 = vld [vmem:[%s287 + $0xa1] sm:$0xff]
        %v344 = vld [vmem:[%s287 + $0xa9] sm:$0xff]
        %v345 = vld [vmem:[%s287 + $0xb1] sm:$0xff]
        %v346 = vld [vmem:[%s287 + $0xb9] sm:$0xff]
        %v347 = vld [vmem:[%s287 + $0xc1] sm:$0xff]
        %v348 = vld [vmem:[%s287 + $0xc9] sm:$0xff]
        %v349 = vld [vmem:[%s287 + $0xd1] sm:$0xff]
        %v350 = vld [vmem:[%s287 + $0xd9] sm:$0xff]
        %v351 = vld [vmem:[%s287 + $0xe1] sm:$0xff]
        %v352 = vld [vmem:[%s287 + $0xe9] sm:$0xff]
        %s353 = scalar_lea.vmem %s1, 8
        %v354 = vld [vmem:[%s353] sm:$0xff]
        %vm355 = vcmask 64512
        %v357 = vsel %vm355, %v323, 0
        %v360 = vsel %vm355, %v324, 0
        %v363 = vsel %vm355, %v325, 0
        %v366 = vsel %vm355, %v326, 0
        %v369 = vsel %vm355, %v327, 0
        %v372 = vsel %vm355, %v328, 0
        %v375 = vsel %vm355, %v329, 0
        %v378 = vsel %vm355, %v330, 0
        %v381 = vsel %vm355, %v331, 0
        %v384 = vsel %vm355, %v332, 0
        %v387 = vsel %vm355, %v333, 0
        %v390 = vsel %vm355, %v334, 0
        %v393 = vsel %vm355, %v335, 0
        %v396 = vsel %vm355, %v336, 0
        %v399 = vsel %vm355, %v337, 0
        %v402 = vsel %vm355, %v338, 0
        %v405 = vsel %vm355, %v339, 0
        %v408 = vsel %vm355, %v340, 0
        %v411 = vsel %vm355, %v341, 0
        %v414 = vsel %vm355, %v342, 0
        %v417 = vsel %vm355, %v343, 0
        %v420 = vsel %vm355, %v344, 0
        %v423 = vsel %vm355, %v345, 0
        %v426 = vsel %vm355, %v346, 0
        %v429 = vsel %vm355, %v347, 0
        %v432 = vsel %vm355, %v348, 0
        %v435 = vsel %vm355, %v349, 0
        %v438 = vsel %vm355, %v350, 0
        %v441 = vsel %vm355, %v351, 0
        %v444 = vsel %vm355, %v352, 0
        %446 = vmatprep.subr.mxu0 0.0
        %447 = vmatpush1.msra.mxu0 0.0
        %448 = vmatprep.subr.mxu0 0.0
        %449 = vmatpush1.msra.mxu0 0.0
        %450 = vmatprep.subr.mxu0 0.0
        %451 = vmatpush1.msra.mxu0 0.0
        %452 = vmatprep.subr.mxu0 0.0
        %453 = vmatpush1.msra.mxu0 0.0
        %454 = vmatprep.subr.mxu0 0.0
        %455 = vmatpush1.msra.mxu0 0.0
        %456 = vmatprep.subr.mxu0 0.0
        %457 = vmatpush1.msra.mxu0 0.0
        %458 = vmatprep.subr.mxu0 0.0
        %459 = vmatpush1.msra.mxu0 0.0
        %460 = vmatprep.subr.mxu0 0.0
        %461 = vmatpush1.msra.mxu0 0.0
        %462 = vmatprep.subr.mxu0 0.0
        %463 = vmatpush1.msra.mxu0 0.0
        %464 = vmatprep.subr.mxu0 0.0
        %465 = vmatpush1.msra.mxu0 0.0
        %466 = vmatprep.subr.mxu0 0.0
        %467 = vmatpush1.msra.mxu0 0.0
        %468 = vmatprep.subr.mxu0 0.0
        %469 = vmatpush1.msra.mxu0 0.0
        %470 = vmatprep.subr.mxu0 0.0
        %471 = vmatpush1.msra.mxu0 0.0
        %472 = vmatprep.subr.mxu0 0.0
        %473 = vmatpush1.msra.mxu0 0.0
        %474 = vmatprep.subr.mxu0 0.0
        %475 = vmatpush1.msra.mxu0 0.0
        %476 = vmatprep.subr.mxu0 0.0
        %477 = vmatpush1.msra.mxu0 %v354
        %478 = vmatprep.subr.mxu0 0.0
        %479 = vmatpush2.msra.mxu0 0.0
        %480 = vmatprep.subr.mxu0 0.0
        %481 = vmatpush2.msra.mxu0 0.0
        %482 = vmatprep.subr.mxu0 0.0
        %483 = vmatpush2.msra.mxu0 0.0
        %484 = vmatprep.subr.mxu0 0.0
        %485 = vmatpush2.msra.mxu0 0.0
        %486 = vmatprep.subr.mxu0 0.0
        %487 = vmatpush2.msra.mxu0 0.0
        %488 = vmatprep.subr.mxu0 0.0
        %489 = vmatpush2.msra.mxu0 0.0
        %490 = vmatprep.subr.mxu0 0.0
        %491 = vmatpush2.msra.mxu0 0.0
        %492 = vmatprep.subr.mxu0 0.0
        %493 = vmatpush2.msra.mxu0 0.0
        %494 = vmatprep.subr.mxu0 0.0
        %495 = vmatpush2.msra.mxu0 0.0
        %496 = vmatprep.subr.mxu0 0.0
        %497 = vmatpush2.msra.mxu0 0.0
        %498 = vmatprep.subr.mxu0 0.0
        %499 = vmatpush2.msra.mxu0 0.0
        %500 = vmatprep.subr.mxu0 0.0
        %501 = vmatpush2.msra.mxu0 0.0
        %502 = vmatprep.subr.mxu0 0.0
        %503 = vmatpush2.msra.mxu0 0.0
        %504 = vmatprep.subr.mxu0 0.0
        %505 = vmatpush2.msra.mxu0 0.0
        %506 = vmatprep.subr.mxu0 0.0
        %507 = vmatpush2.msra.mxu0 0.0
        %508 = vmatprep.subr.mxu0 0.0
        %509 = vmatpush2.msra.mxu0 0.0
        %510 = vmatprep.mubr.f32.mxu0 0.0
        %511 = vmatmul.mubr.f32.gmra.mxu0 %v357
        %v512 = vpop.f32.mrf.mxu0
        %v513 = vadd.f32 0.0, %v512
        %v514 = vpop.f32.mrf.mxu0
        %515 = vmatprep.mubr.f32.mxu0 0.0
        %516 = vmatmul.mubr.f32.gmra.mxu0 %v360
        %v517 = vpop.f32.mrf.mxu0
        %v518 = vadd.f32 0.0, %v517
        %v519 = vpop.f32.mrf.mxu0
        %520 = vmatprep.mubr.f32.mxu0 0.0
        %521 = vmatmul.mubr.f32.gmra.mxu0 %v363
        %v522 = vpop.f32.mrf.mxu0
        %v523 = vadd.f32 0.0, %v522
        %v524 = vpop.f32.mrf.mxu0
        %525 = vmatprep.mubr.f32.mxu0 0.0
        %526 = vmatmul.mubr.f32.gmra.mxu0 %v366
        %v527 = vpop.f32.mrf.mxu0
        %v528 = vadd.f32 0.0, %v527
        %v529 = vpop.f32.mrf.mxu0
        %530 = vmatprep.mubr.f32.mxu0 0.0
        %531 = vmatmul.mubr.f32.gmra.mxu0 %v369
        %v532 = vpop.f32.mrf.mxu0
        %v533 = vadd.f32 0.0, %v532
        %v534 = vpop.f32.mrf.mxu0
        %535 = vmatprep.mubr.f32.mxu0 0.0
        %536 = vmatmul.mubr.f32.gmra.mxu0 %v372
        %v537 = vpop.f32.mrf.mxu0
        %v538 = vadd.f32 0.0, %v537
        %v539 = vpop.f32.mrf.mxu0
        %540 = vmatprep.mubr.f32.mxu0 0.0
        %541 = vmatmul.mubr.f32.gmra.mxu0 %v375
        %v542 = vpop.f32.mrf.mxu0
        %v543 = vadd.f32 0.0, %v542
        %v544 = vpop.f32.mrf.mxu0
        %545 = vmatprep.mubr.f32.mxu0 0.0
        %546 = vmatmul.mubr.f32.gmra.mxu0 %v378
        %v547 = vpop.f32.mrf.mxu0
        %v548 = vadd.f32 0.0, %v547
        %v549 = vpop.f32.mrf.mxu0
        %550 = vmatprep.mubr.f32.mxu0 0.0
        %551 = vmatmul.mubr.f32.gmra.mxu0 %v381
        %v552 = vpop.f32.mrf.mxu0
        %v553 = vadd.f32 0.0, %v552
        %v554 = vpop.f32.mrf.mxu0
        %555 = vmatprep.mubr.f32.mxu0 0.0
        %556 = vmatmul.mubr.f32.gmra.mxu0 %v384
        %v557 = vpop.f32.mrf.mxu0
        %v558 = vadd.f32 0.0, %v557
        %v559 = vpop.f32.mrf.mxu0
        %560 = vmatprep.mubr.f32.mxu0 0.0
        %561 = vmatmul.mubr.f32.gmra.mxu0 %v387
        %v562 = vpop.f32.mrf.mxu0
        %v563 = vadd.f32 0.0, %v562
        %v564 = vpop.f32.mrf.mxu0
        %565 = vmatprep.mubr.f32.mxu0 0.0
        %566 = vmatmul.mubr.f32.gmra.mxu0 %v390
        %v567 = vpop.f32.mrf.mxu0
        %v568 = vadd.f32 0.0, %v567
        %v569 = vpop.f32.mrf.mxu0
        %570 = vmatprep.mubr.f32.mxu0 0.0
        %571 = vmatmul.mubr.f32.gmra.mxu0 %v393
        %v572 = vpop.f32.mrf.mxu0
        %v573 = vadd.f32 0.0, %v572
        %v574 = vpop.f32.mrf.mxu0
        %575 = vmatprep.mubr.f32.mxu0 0.0
        %576 = vmatmul.mubr.f32.gmra.mxu0 %v396
        %v577 = vpop.f32.mrf.mxu0
        %v578 = vadd.f32 0.0, %v577
        %v579 = vpop.f32.mrf.mxu0
        %580 = vmatprep.mubr.f32.mxu0 0.0
        %581 = vmatmul.mubr.f32.gmra.mxu0 %v399
        %v582 = vpop.f32.mrf.mxu0
        %v583 = vadd.f32 0.0, %v582
        %v584 = vpop.f32.mrf.mxu0
        %585 = vmatprep.mubr.f32.mxu0 0.0
        %586 = vmatmul.mubr.f32.gmra.mxu0 %v402
        %v587 = vpop.f32.mrf.mxu0
        %v588 = vadd.f32 0.0, %v587
        %v589 = vpop.f32.mrf.mxu0
        %590 = vmatprep.mubr.f32.mxu0 0.0
        %591 = vmatmul.mubr.f32.gmra.mxu0 %v405
        %v592 = vpop.f32.mrf.mxu0
        %v593 = vadd.f32 0.0, %v592
        %v594 = vpop.f32.mrf.mxu0
        %595 = vmatprep.mubr.f32.mxu0 0.0
        %596 = vmatmul.mubr.f32.gmra.mxu0 %v408
        %v597 = vpop.f32.mrf.mxu0
        %v598 = vadd.f32 0.0, %v597
        %v599 = vpop.f32.mrf.mxu0
        %600 = vmatprep.mubr.f32.mxu0 0.0
        %601 = vmatmul.mubr.f32.gmra.mxu0 %v411
        %v602 = vpop.f32.mrf.mxu0
        %v603 = vadd.f32 0.0, %v602
        %v604 = vpop.f32.mrf.mxu0
        %605 = vmatprep.mubr.f32.mxu0 0.0
        %606 = vmatmul.mubr.f32.gmra.mxu0 %v414
        %v607 = vpop.f32.mrf.mxu0
        %v608 = vadd.f32 0.0, %v607
        %v609 = vpop.f32.mrf.mxu0
        %610 = vmatprep.mubr.f32.mxu0 0.0
        %611 = vmatmul.mubr.f32.gmra.mxu0 %v417
        %v612 = vpop.f32.mrf.mxu0
        %v613 = vadd.f32 0.0, %v612
        %v614 = vpop.f32.mrf.mxu0
        %615 = vmatprep.mubr.f32.mxu0 0.0
        %616 = vmatmul.mubr.f32.gmra.mxu0 %v420
        %v617 = vpop.f32.mrf.mxu0
        %v618 = vadd.f32 0.0, %v617
        %v619 = vpop.f32.mrf.mxu0
        %620 = vmatprep.mubr.f32.mxu0 0.0
        %621 = vmatmul.mubr.f32.gmra.mxu0 %v423
        %v622 = vpop.f32.mrf.mxu0
        %v623 = vadd.f32 0.0, %v622
        %v624 = vpop.f32.mrf.mxu0
        %625 = vmatprep.mubr.f32.mxu0 0.0
        %626 = vmatmul.mubr.f32.gmra.mxu0 %v426
        %v627 = vpop.f32.mrf.mxu0
        %v628 = vadd.f32 0.0, %v627
        %v629 = vpop.f32.mrf.mxu0
        %630 = vmatprep.mubr.f32.mxu0 0.0
        %631 = vmatmul.mubr.f32.gmra.mxu0 %v429
        %v632 = vpop.f32.mrf.mxu0
        %v633 = vadd.f32 0.0, %v632
        %v634 = vpop.f32.mrf.mxu0
        %635 = vmatprep.mubr.f32.mxu0 0.0
        %636 = vmatmul.mubr.f32.gmra.mxu0 %v432
        %v637 = vpop.f32.mrf.mxu0
        %v638 = vadd.f32 0.0, %v637
        %v639 = vpop.f32.mrf.mxu0
        %640 = vmatprep.mubr.f32.mxu0 0.0
        %641 = vmatmul.mubr.f32.gmra.mxu0 %v435
        %v642 = vpop.f32.mrf.mxu0
        %v643 = vadd.f32 0.0, %v642
        %v644 = vpop.f32.mrf.mxu0
        %645 = vmatprep.mubr.f32.mxu0 0.0
        %646 = vmatmul.mubr.f32.gmra.mxu0 %v438
        %v647 = vpop.f32.mrf.mxu0
        %v648 = vadd.f32 0.0, %v647
        %v649 = vpop.f32.mrf.mxu0
        %650 = vmatprep.mubr.f32.mxu0 0.0
        %651 = vmatmul.mubr.f32.gmra.mxu0 %v441
        %v652 = vpop.f32.mrf.mxu0
        %v653 = vadd.f32 0.0, %v652
        %v654 = vpop.f32.mrf.mxu0
        %655 = vmatprep.mubr.f32.mxu0 0.0
        %656 = vmatmul.mubr.f32.gmra.mxu0 %v444
        %v657 = vpop.f32.mrf.mxu0
        %v658 = vadd.f32 0.0, %v657
        %v659 = vpop.f32.mrf.mxu0
        %660 = vdwg.mxu0
        %v662 = vsel %vm355, %v292, 0
        %v665 = vsel %vm355, %v293, 0
        %v668 = vsel %vm355, %v294, 0
        %v671 = vsel %vm355, %v295, 0
        %v674 = vsel %vm355, %v296, 0
        %v677 = vsel %vm355, %v297, 0
        %v680 = vsel %vm355, %v298, 0
        %v683 = vsel %vm355, %v299, 0
        %v686 = vsel %vm355, %v300, 0
        %v689 = vsel %vm355, %v301, 0
        %v692 = vsel %vm355, %v302, 0
        %v695 = vsel %vm355, %v303, 0
        %v698 = vsel %vm355, %v304, 0
        %v701 = vsel %vm355, %v305, 0
        %v704 = vsel %vm355, %v306, 0
        %v707 = vsel %vm355, %v307, 0
        %v710 = vsel %vm355, %v308, 0
        %v713 = vsel %vm355, %v309, 0
        %v716 = vsel %vm355, %v310, 0
        %v719 = vsel %vm355, %v311, 0
        %v722 = vsel %vm355, %v312, 0
        %v725 = vsel %vm355, %v313, 0
        %v728 = vsel %vm355, %v314, 0
        %v731 = vsel %vm355, %v315, 0
        %v734 = vsel %vm355, %v316, 0
        %v737 = vsel %vm355, %v317, 0
        %v740 = vsel %vm355, %v318, 0
        %v743 = vsel %vm355, %v319, 0
        %v746 = vsel %vm355, %v320, 0
        %v749 = vsel %vm355, %v321, 0
        %751 = vmatprep.subr.mxu0 0.0
        %752 = vmatpush1.msra.mxu0 0.0
        %753 = vmatprep.subr.mxu0 0.0
        %754 = vmatpush1.msra.mxu0 0.0
        %755 = vmatprep.subr.mxu0 0.0
        %756 = vmatpush1.msra.mxu0 0.0
        %757 = vmatprep.subr.mxu0 0.0
        %758 = vmatpush1.msra.mxu0 0.0
        %759 = vmatprep.subr.mxu0 0.0
        %760 = vmatpush1.msra.mxu0 0.0
        %761 = vmatprep.subr.mxu0 0.0
        %762 = vmatpush1.msra.mxu0 0.0
        %763 = vmatprep.subr.mxu0 0.0
        %764 = vmatpush1.msra.mxu0 0.0
        %765 = vmatprep.subr.mxu0 0.0
        %766 = vmatpush1.msra.mxu0 0.0
        %767 = vmatprep.subr.mxu0 0.0
        %768 = vmatpush1.msra.mxu0 0.0
        %769 = vmatprep.subr.mxu0 0.0
        %770 = vmatpush1.msra.mxu0 0.0
        %771 = vmatprep.subr.mxu0 0.0
        %772 = vmatpush1.msra.mxu0 0.0
        %773 = vmatprep.subr.mxu0 0.0
        %774 = vmatpush1.msra.mxu0 0.0
        %775 = vmatprep.subr.mxu0 0.0
        %776 = vmatpush1.msra.mxu0 0.0
        %777 = vmatprep.subr.mxu0 0.0
        %778 = vmatpush1.msra.mxu0 0.0
        %779 = vmatprep.subr.mxu0 0.0
        %780 = vmatpush1.msra.mxu0 0.0
        %781 = vmatprep.subr.mxu0 0.0
        %782 = vmatpush1.msra.mxu0 %v322
        %783 = vmatprep.subr.mxu0 0.0
        %784 = vmatpush2.msra.mxu0 0.0
        %785 = vmatprep.subr.mxu0 0.0
        %786 = vmatpush2.msra.mxu0 0.0
        %787 = vmatprep.subr.mxu0 0.0
        %788 = vmatpush2.msra.mxu0 0.0
        %789 = vmatprep.subr.mxu0 0.0
        %790 = vmatpush2.msra.mxu0 0.0
        %791 = vmatprep.subr.mxu0 0.0
        %792 = vmatpush2.msra.mxu0 0.0
        %793 = vmatprep.subr.mxu0 0.0
        %794 = vmatpush2.msra.mxu0 0.0
        %795 = vmatprep.subr.mxu0 0.0
        %796 = vmatpush2.msra.mxu0 0.0
        %797 = vmatprep.subr.mxu0 0.0
        %798 = vmatpush2.msra.mxu0 0.0
        %799 = vmatprep.subr.mxu0 0.0
        %800 = vmatpush2.msra.mxu0 0.0
        %801 = vmatprep.subr.mxu0 0.0
        %802 = vmatpush2.msra.mxu0 0.0
        %803 = vmatprep.subr.mxu0 0.0
        %804 = vmatpush2.msra.mxu0 0.0
        %805 = vmatprep.subr.mxu0 0.0
        %806 = vmatpush2.msra.mxu0 0.0
        %807 = vmatprep.subr.mxu0 0.0
        %808 = vmatpush2.msra.mxu0 0.0
        %809 = vmatprep.subr.mxu0 0.0
        %810 = vmatpush2.msra.mxu0 0.0
        %811 = vmatprep.subr.mxu0 0.0
        %812 = vmatpush2.msra.mxu0 0.0
        %813 = vmatprep.subr.mxu0 0.0
        %814 = vmatpush2.msra.mxu0 0.0
        %815 = vmatprep.mubr.f32.mxu0 0.0
        %816 = vmatmul.mubr.f32.gmra.mxu0 %v662
        %v817 = vpop.f32.mrf.mxu0
        %v818 = vadd.f32 %v513, %v817
        %v819 = vpop.f32.mrf.mxu0
        %820 = vmatprep.mubr.f32.mxu0 0.0
        %821 = vmatmul.mubr.f32.gmra.mxu0 %v665
        %v822 = vpop.f32.mrf.mxu0
        %v823 = vadd.f32 %v518, %v822
        %v824 = vpop.f32.mrf.mxu0
        %825 = vmatprep.mubr.f32.mxu0 0.0
        %826 = vmatmul.mubr.f32.gmra.mxu0 %v668
        %v827 = vpop.f32.mrf.mxu0
        %v828 = vadd.f32 %v523, %v827
        %v829 = vpop.f32.mrf.mxu0
        %830 = vmatprep.mubr.f32.mxu0 0.0
        %831 = vmatmul.mubr.f32.gmra.mxu0 %v671
        %v832 = vpop.f32.mrf.mxu0
        %v833 = vadd.f32 %v528, %v832
        %v834 = vpop.f32.mrf.mxu0
        %835 = vmatprep.mubr.f32.mxu0 0.0
        %836 = vmatmul.mubr.f32.gmra.mxu0 %v674
        %v837 = vpop.f32.mrf.mxu0
        %v838 = vadd.f32 %v533, %v837
        %v839 = vpop.f32.mrf.mxu0
        %840 = vmatprep.mubr.f32.mxu0 0.0
        %841 = vmatmul.mubr.f32.gmra.mxu0 %v677
        %v842 = vpop.f32.mrf.mxu0
        %v843 = vadd.f32 %v538, %v842
        %v844 = vpop.f32.mrf.mxu0
        %845 = vmatprep.mubr.f32.mxu0 0.0
        %846 = vmatmul.mubr.f32.gmra.mxu0 %v680
        %v847 = vpop.f32.mrf.mxu0
        %v848 = vadd.f32 %v543, %v847
        %v849 = vpop.f32.mrf.mxu0
        %850 = vmatprep.mubr.f32.mxu0 0.0
        %851 = vmatmul.mubr.f32.gmra.mxu0 %v683
        %v852 = vpop.f32.mrf.mxu0
        %v853 = vadd.f32 %v548, %v852
        %v854 = vpop.f32.mrf.mxu0
        %855 = vmatprep.mubr.f32.mxu0 0.0
        %856 = vmatmul.mubr.f32.gmra.mxu0 %v686
        %v857 = vpop.f32.mrf.mxu0
        %v858 = vadd.f32 %v553, %v857
        %v859 = vpop.f32.mrf.mxu0
        %860 = vmatprep.mubr.f32.mxu0 0.0
        %861 = vmatmul.mubr.f32.gmra.mxu0 %v689
        %v862 = vpop.f32.mrf.mxu0
        %v863 = vadd.f32 %v558, %v862
        %v864 = vpop.f32.mrf.mxu0
        %865 = vmatprep.mubr.f32.mxu0 0.0
        %866 = vmatmul.mubr.f32.gmra.mxu0 %v692
        %v867 = vpop.f32.mrf.mxu0
        %v868 = vadd.f32 %v563, %v867
        %v869 = vpop.f32.mrf.mxu0
        %870 = vmatprep.mubr.f32.mxu0 0.0
        %871 = vmatmul.mubr.f32.gmra.mxu0 %v695
        %v872 = vpop.f32.mrf.mxu0
        %v873 = vadd.f32 %v568, %v872
        %v874 = vpop.f32.mrf.mxu0
        %875 = vmatprep.mubr.f32.mxu0 0.0
        %876 = vmatmul.mubr.f32.gmra.mxu0 %v698
        %v877 = vpop.f32.mrf.mxu0
        %v878 = vadd.f32 %v573, %v877
        %v879 = vpop.f32.mrf.mxu0
        %880 = vmatprep.mubr.f32.mxu0 0.0
        %881 = vmatmul.mubr.f32.gmra.mxu0 %v701
        %v882 = vpop.f32.mrf.mxu0
        %v883 = vadd.f32 %v578, %v882
        %v884 = vpop.f32.mrf.mxu0
        %885 = vmatprep.mubr.f32.mxu0 0.0
        %886 = vmatmul.mubr.f32.gmra.mxu0 %v704
        %v887 = vpop.f32.mrf.mxu0
        %v888 = vadd.f32 %v583, %v887
        %v889 = vpop.f32.mrf.mxu0
        %890 = vmatprep.mubr.f32.mxu0 0.0
        %891 = vmatmul.mubr.f32.gmra.mxu0 %v707
        %v892 = vpop.f32.mrf.mxu0
        %v893 = vadd.f32 %v588, %v892
        %v894 = vpop.f32.mrf.mxu0
        %895 = vmatprep.mubr.f32.mxu0 0.0
        %896 = vmatmul.mubr.f32.gmra.mxu0 %v710
        %v897 = vpop.f32.mrf.mxu0
        %v898 = vadd.f32 %v593, %v897
        %v899 = vpop.f32.mrf.mxu0
        %900 = vmatprep.mubr.f32.mxu0 0.0
        %901 = vmatmul.mubr.f32.gmra.mxu0 %v713
        %v902 = vpop.f32.mrf.mxu0
        %v903 = vadd.f32 %v598, %v902
        %v904 = vpop.f32.mrf.mxu0
        %905 = vmatprep.mubr.f32.mxu0 0.0
        %906 = vmatmul.mubr.f32.gmra.mxu0 %v716
        %v907 = vpop.f32.mrf.mxu0
        %v908 = vadd.f32 %v603, %v907
        %v909 = vpop.f32.mrf.mxu0
        %910 = vmatprep.mubr.f32.mxu0 0.0
        %911 = vmatmul.mubr.f32.gmra.mxu0 %v719
        %v912 = vpop.f32.mrf.mxu0
        %v913 = vadd.f32 %v608, %v912
        %v914 = vpop.f32.mrf.mxu0
        %915 = vmatprep.mubr.f32.mxu0 0.0
        %916 = vmatmul.mubr.f32.gmra.mxu0 %v722
        %v917 = vpop.f32.mrf.mxu0
        %v918 = vadd.f32 %v613, %v917
        %v919 = vpop.f32.mrf.mxu0
        %920 = vmatprep.mubr.f32.mxu0 0.0
        %921 = vmatmul.mubr.f32.gmra.mxu0 %v725
        %v922 = vpop.f32.mrf.mxu0
        %v923 = vadd.f32 %v618, %v922
        %v924 = vpop.f32.mrf.mxu0
        %925 = vmatprep.mubr.f32.mxu0 0.0
        %926 = vmatmul.mubr.f32.gmra.mxu0 %v728
        %v927 = vpop.f32.mrf.mxu0
        %v928 = vadd.f32 %v623, %v927
        %v929 = vpop.f32.mrf.mxu0
        %930 = vmatprep.mubr.f32.mxu0 0.0
        %931 = vmatmul.mubr.f32.gmra.mxu0 %v731
        %v932 = vpop.f32.mrf.mxu0
        %v933 = vadd.f32 %v628, %v932
        %v934 = vpop.f32.mrf.mxu0
        %935 = vmatprep.mubr.f32.mxu0 0.0
        %936 = vmatmul.mubr.f32.gmra.mxu0 %v734
        %v937 = vpop.f32.mrf.mxu0
        %v938 = vadd.f32 %v633, %v937
        %v939 = vpop.f32.mrf.mxu0
        %940 = vmatprep.mubr.f32.mxu0 0.0
        %941 = vmatmul.mubr.f32.gmra.mxu0 %v737
        %v942 = vpop.f32.mrf.mxu0
        %v943 = vadd.f32 %v638, %v942
        %v944 = vpop.f32.mrf.mxu0
        %945 = vmatprep.mubr.f32.mxu0 0.0
        %946 = vmatmul.mubr.f32.gmra.mxu0 %v740
        %v947 = vpop.f32.mrf.mxu0
        %v948 = vadd.f32 %v643, %v947
        %v949 = vpop.f32.mrf.mxu0
        %950 = vmatprep.mubr.f32.mxu0 0.0
        %951 = vmatmul.mubr.f32.gmra.mxu0 %v743
        %v952 = vpop.f32.mrf.mxu0
        %v953 = vadd.f32 %v648, %v952
        %v954 = vpop.f32.mrf.mxu0
        %955 = vmatprep.mubr.f32.mxu0 0.0
        %956 = vmatmul.mubr.f32.gmra.mxu0 %v746
        %v957 = vpop.f32.mrf.mxu0
        %v958 = vadd.f32 %v653, %v957
        %v959 = vpop.f32.mrf.mxu0
        %960 = vmatprep.mubr.f32.mxu0 0.0
        %961 = vmatmul.mubr.f32.gmra.mxu0 %v749
        %v962 = vpop.f32.mrf.mxu0
        %v963 = vadd.f32 %v658, %v962
        %v964 = vpop.f32.mrf.mxu0
        %965 = vdwg.mxu0
        %v966 = vld [vmem:[%s287 + $0x2] sm:$0xff]
        %v967 = vld [vmem:[%s287 + $0xa] sm:$0xff]
        %v968 = vld [vmem:[%s287 + $0x12] sm:$0xff]
        %v969 = vld [vmem:[%s287 + $0x1a] sm:$0xff]
        %v970 = vld [vmem:[%s287 + $0x22] sm:$0xff]
        %v971 = vld [vmem:[%s287 + $0x2a] sm:$0xff]
        %v972 = vld [vmem:[%s287 + $0x32] sm:$0xff]
        %v973 = vld [vmem:[%s287 + $0x3a] sm:$0xff]
        %v974 = vld [vmem:[%s287 + $0x42] sm:$0xff]
        %v975 = vld [vmem:[%s287 + $0x4a] sm:$0xff]
        %v976 = vld [vmem:[%s287 + $0x52] sm:$0xff]
        %v977 = vld [vmem:[%s287 + $0x5a] sm:$0xff]
        %v978 = vld [vmem:[%s287 + $0x62] sm:$0xff]
        %v979 = vld [vmem:[%s287 + $0x6a] sm:$0xff]
        %v980 = vld [vmem:[%s287 + $0x72] sm:$0xff]
        %v981 = vld [vmem:[%s287 + $0x7a] sm:$0xff]
        %v982 = vld [vmem:[%s287 + $0x82] sm:$0xff]
        %v983 = vld [vmem:[%s287 + $0x8a] sm:$0xff]
        %v984 = vld [vmem:[%s287 + $0x92] sm:$0xff]
        %v985 = vld [vmem:[%s287 + $0x9a] sm:$0xff]
        %v986 = vld [vmem:[%s287 + $0xa2] sm:$0xff]
        %v987 = vld [vmem:[%s287 + $0xaa] sm:$0xff]
        %v988 = vld [vmem:[%s287 + $0xb2] sm:$0xff]
        %v989 = vld [vmem:[%s287 + $0xba] sm:$0xff]
        %v990 = vld [vmem:[%s287 + $0xc2] sm:$0xff]
        %v991 = vld [vmem:[%s287 + $0xca] sm:$0xff]
        %v992 = vld [vmem:[%s287 + $0xd2] sm:$0xff]
        %v993 = vld [vmem:[%s287 + $0xda] sm:$0xff]
        %v994 = vld [vmem:[%s287 + $0xe2] sm:$0xff]
        %v995 = vld [vmem:[%s287 + $0xea] sm:$0xff]
        %s996 = scalar_lea.vmem %s1, 16
        %v997 = vld [vmem:[%s996] sm:$0xff]
        %v999 = vsel %vm355, %v966, 0
        %v1002 = vsel %vm355, %v967, 0
        %v1005 = vsel %vm355, %v968, 0
        %v1008 = vsel %vm355, %v969, 0
        %v1011 = vsel %vm355, %v970, 0
        %v1014 = vsel %vm355, %v971, 0
        %v1017 = vsel %vm355, %v972, 0
        %v1020 = vsel %vm355, %v973, 0
        %v1023 = vsel %vm355, %v974, 0
        %v1026 = vsel %vm355, %v975, 0
        %v1029 = vsel %vm355, %v976, 0
        %v1032 = vsel %vm355, %v977, 0
        %v1035 = vsel %vm355, %v978, 0
        %v1038 = vsel %vm355, %v979, 0
        %v1041 = vsel %vm355, %v980, 0
        %v1044 = vsel %vm355, %v981, 0
        %v1047 = vsel %vm355, %v982, 0
        %v1050 = vsel %vm355, %v983, 0
        %v1053 = vsel %vm355, %v984, 0
        %v1056 = vsel %vm355, %v985, 0
        %v1059 = vsel %vm355, %v986, 0
        %v1062 = vsel %vm355, %v987, 0
        %v1065 = vsel %vm355, %v988, 0
        %v1068 = vsel %vm355, %v989, 0
        %v1071 = vsel %vm355, %v990, 0
        %v1074 = vsel %vm355, %v991, 0
        %v1077 = vsel %vm355, %v992, 0
        %v1080 = vsel %vm355, %v993, 0
        %v1083 = vsel %vm355, %v994, 0
        %v1086 = vsel %vm355, %v995, 0
        %1088 = vmatprep.subr.mxu0 0.0
        %1089 = vmatpush1.msra.mxu0 0.0
        %1090 = vmatprep.subr.mxu0 0.0
        %1091 = vmatpush1.msra.mxu0 0.0
        %1092 = vmatprep.subr.mxu0 0.0
        %1093 = vmatpush1.msra.mxu0 0.0
        %1094 = vmatprep.subr.mxu0 0.0
        %1095 = vmatpush1.msra.mxu0 0.0
        %1096 = vmatprep.subr.mxu0 0.0
        %1097 = vmatpush1.msra.mxu0 0.0
        %1098 = vmatprep.subr.mxu0 0.0
        %1099 = vmatpush1.msra.mxu0 0.0
        %1100 = vmatprep.subr.mxu0 0.0
        %1101 = vmatpush1.msra.mxu0 0.0
        %1102 = vmatprep.subr.mxu0 0.0
        %1103 = vmatpush1.msra.mxu0 0.0
        %1104 = vmatprep.subr.mxu0 0.0
        %1105 = vmatpush1.msra.mxu0 0.0
        %1106 = vmatprep.subr.mxu0 0.0
        %1107 = vmatpush1.msra.mxu0 0.0
        %1108 = vmatprep.subr.mxu0 0.0
        %1109 = vmatpush1.msra.mxu0 0.0
        %1110 = vmatprep.subr.mxu0 0.0
        %1111 = vmatpush1.msra.mxu0 0.0
        %1112 = vmatprep.subr.mxu0 0.0
        %1113 = vmatpush1.msra.mxu0 0.0
        %1114 = vmatprep.subr.mxu0 0.0
        %1115 = vmatpush1.msra.mxu0 0.0
        %1116 = vmatprep.subr.mxu0 0.0
        %1117 = vmatpush1.msra.mxu0 0.0
        %1118 = vmatprep.subr.mxu0 0.0
        %1119 = vmatpush1.msra.mxu0 %v997
        %1120 = vmatprep.subr.mxu0 0.0
        %1121 = vmatpush2.msra.mxu0 0.0
        %1122 = vmatprep.subr.mxu0 0.0
        %1123 = vmatpush2.msra.mxu0 0.0
        %1124 = vmatprep.subr.mxu0 0.0
        %1125 = vmatpush2.msra.mxu0 0.0
        %1126 = vmatprep.subr.mxu0 0.0
        %1127 = vmatpush2.msra.mxu0 0.0
        %1128 = vmatprep.subr.mxu0 0.0
        %1129 = vmatpush2.msra.mxu0 0.0
        %1130 = vmatprep.subr.mxu0 0.0
        %1131 = vmatpush2.msra.mxu0 0.0
        %1132 = vmatprep.subr.mxu0 0.0
        %1133 = vmatpush2.msra.mxu0 0.0
        %1134 = vmatprep.subr.mxu0 0.0
        %1135 = vmatpush2.msra.mxu0 0.0
        %1136 = vmatprep.subr.mxu0 0.0
        %1137 = vmatpush2.msra.mxu0 0.0
        %1138 = vmatprep.subr.mxu0 0.0
        %1139 = vmatpush2.msra.mxu0 0.0
        %1140 = vmatprep.subr.mxu0 0.0
        %1141 = vmatpush2.msra.mxu0 0.0
        %1142 = vmatprep.subr.mxu0 0.0
        %1143 = vmatpush2.msra.mxu0 0.0
        %1144 = vmatprep.subr.mxu0 0.0
        %1145 = vmatpush2.msra.mxu0 0.0
        %1146 = vmatprep.subr.mxu0 0.0
        %1147 = vmatpush2.msra.mxu0 0.0
        %1148 = vmatprep.subr.mxu0 0.0
        %1149 = vmatpush2.msra.mxu0 0.0
        %1150 = vmatprep.subr.mxu0 0.0
        %1151 = vmatpush2.msra.mxu0 0.0
        %1152 = vmatprep.mubr.f32.mxu0 0.0
        %1153 = vmatmul.mubr.f32.gmra.mxu0 %v999
        %v1154 = vpop.f32.mrf.mxu0
        %v1155 = vadd.f32 0.0, %v1154
        %v1156 = vpop.f32.mrf.mxu0
        %1157 = vmatprep.mubr.f32.mxu0 0.0
        %1158 = vmatmul.mubr.f32.gmra.mxu0 %v1002
        %v1159 = vpop.f32.mrf.mxu0
        %v1160 = vadd.f32 0.0, %v1159
        %v1161 = vpop.f32.mrf.mxu0
        %1162 = vmatprep.mubr.f32.mxu0 0.0
        %1163 = vmatmul.mubr.f32.gmra.mxu0 %v1005
        %v1164 = vpop.f32.mrf.mxu0
        %v1165 = vadd.f32 0.0, %v1164
        %v1166 = vpop.f32.mrf.mxu0
        %1167 = vmatprep.mubr.f32.mxu0 0.0
        %1168 = vmatmul.mubr.f32.gmra.mxu0 %v1008
        %v1169 = vpop.f32.mrf.mxu0
        %v1170 = vadd.f32 0.0, %v1169
        %v1171 = vpop.f32.mrf.mxu0
        %1172 = vmatprep.mubr.f32.mxu0 0.0
        %1173 = vmatmul.mubr.f32.gmra.mxu0 %v1011
        %v1174 = vpop.f32.mrf.mxu0
        %v1175 = vadd.f32 0.0, %v1174
        %v1176 = vpop.f32.mrf.mxu0
        %1177 = vmatprep.mubr.f32.mxu0 0.0
        %1178 = vmatmul.mubr.f32.gmra.mxu0 %v1014
        %v1179 = vpop.f32.mrf.mxu0
        %v1180 = vadd.f32 0.0, %v1179
        %v1181 = vpop.f32.mrf.mxu0
        %1182 = vmatprep.mubr.f32.mxu0 0.0
        %1183 = vmatmul.mubr.f32.gmra.mxu0 %v1017
        %v1184 = vpop.f32.mrf.mxu0
        %v1185 = vadd.f32 0.0, %v1184
        %v1186 = vpop.f32.mrf.mxu0
        %1187 = vmatprep.mubr.f32.mxu0 0.0
        %1188 = vmatmul.mubr.f32.gmra.mxu0 %v1020
        %v1189 = vpop.f32.mrf.mxu0
        %v1190 = vadd.f32 0.0, %v1189
        %v1191 = vpop.f32.mrf.mxu0
        %1192 = vmatprep.mubr.f32.mxu0 0.0
        %1193 = vmatmul.mubr.f32.gmra.mxu0 %v1023
        %v1194 = vpop.f32.mrf.mxu0
        %v1195 = vadd.f32 0.0, %v1194
        %v1196 = vpop.f32.mrf.mxu0
        %1197 = vmatprep.mubr.f32.mxu0 0.0
        %1198 = vmatmul.mubr.f32.gmra.mxu0 %v1026
        %v1199 = vpop.f32.mrf.mxu0
        %v1200 = vadd.f32 0.0, %v1199
        %v1201 = vpop.f32.mrf.mxu0
        %1202 = vmatprep.mubr.f32.mxu0 0.0
        %1203 = vmatmul.mubr.f32.gmra.mxu0 %v1029
        %v1204 = vpop.f32.mrf.mxu0
        %v1205 = vadd.f32 0.0, %v1204
        %v1206 = vpop.f32.mrf.mxu0
        %1207 = vmatprep.mubr.f32.mxu0 0.0
        %1208 = vmatmul.mubr.f32.gmra.mxu0 %v1032
        %v1209 = vpop.f32.mrf.mxu0
        %v1210 = vadd.f32 0.0, %v1209
        %v1211 = vpop.f32.mrf.mxu0
        %1212 = vmatprep.mubr.f32.mxu0 0.0
        %1213 = vmatmul.mubr.f32.gmra.mxu0 %v1035
        %v1214 = vpop.f32.mrf.mxu0
        %v1215 = vadd.f32 0.0, %v1214
        %v1216 = vpop.f32.mrf.mxu0
        %1217 = vmatprep.mubr.f32.mxu0 0.0
        %1218 = vmatmul.mubr.f32.gmra.mxu0 %v1038
        %v1219 = vpop.f32.mrf.mxu0
        %v1220 = vadd.f32 0.0, %v1219
        %v1221 = vpop.f32.mrf.mxu0
        %1222 = vmatprep.mubr.f32.mxu0 0.0
        %1223 = vmatmul.mubr.f32.gmra.mxu0 %v1041
        %v1224 = vpop.f32.mrf.mxu0
        %v1225 = vadd.f32 0.0, %v1224
        %v1226 = vpop.f32.mrf.mxu0
        %1227 = vmatprep.mubr.f32.mxu0 0.0
        %1228 = vmatmul.mubr.f32.gmra.mxu0 %v1044
        %v1229 = vpop.f32.mrf.mxu0
        %v1230 = vadd.f32 0.0, %v1229
        %v1231 = vpop.f32.mrf.mxu0
        %1232 = vmatprep.mubr.f32.mxu0 0.0
        %1233 = vmatmul.mubr.f32.gmra.mxu0 %v1047
        %v1234 = vpop.f32.mrf.mxu0
        %v1235 = vadd.f32 0.0, %v1234
        %v1236 = vpop.f32.mrf.mxu0
        %1237 = vmatprep.mubr.f32.mxu0 0.0
        %1238 = vmatmul.mubr.f32.gmra.mxu0 %v1050
        %v1239 = vpop.f32.mrf.mxu0
        %v1240 = vadd.f32 0.0, %v1239
        %v1241 = vpop.f32.mrf.mxu0
        %1242 = vmatprep.mubr.f32.mxu0 0.0
        %1243 = vmatmul.mubr.f32.gmra.mxu0 %v1053
        %v1244 = vpop.f32.mrf.mxu0
        %v1245 = vadd.f32 0.0, %v1244
        %v1246 = vpop.f32.mrf.mxu0
        %1247 = vmatprep.mubr.f32.mxu0 0.0
        %1248 = vmatmul.mubr.f32.gmra.mxu0 %v1056
        %v1249 = vpop.f32.mrf.mxu0
        %v1250 = vadd.f32 0.0, %v1249
        %v1251 = vpop.f32.mrf.mxu0
        %1252 = vmatprep.mubr.f32.mxu0 0.0
        %1253 = vmatmul.mubr.f32.gmra.mxu0 %v1059
        %v1254 = vpop.f32.mrf.mxu0
        %v1255 = vadd.f32 0.0, %v1254
        %v1256 = vpop.f32.mrf.mxu0
        %1257 = vmatprep.mubr.f32.mxu0 0.0
        %1258 = vmatmul.mubr.f32.gmra.mxu0 %v1062
        %v1259 = vpop.f32.mrf.mxu0
        %v1260 = vadd.f32 0.0, %v1259
        %v1261 = vpop.f32.mrf.mxu0
        %1262 = vmatprep.mubr.f32.mxu0 0.0
        %1263 = vmatmul.mubr.f32.gmra.mxu0 %v1065
        %v1264 = vpop.f32.mrf.mxu0
        %v1265 = vadd.f32 0.0, %v1264
        %v1266 = vpop.f32.mrf.mxu0
        %1267 = vmatprep.mubr.f32.mxu0 0.0
        %1268 = vmatmul.mubr.f32.gmra.mxu0 %v1068
        %v1269 = vpop.f32.mrf.mxu0
        %v1270 = vadd.f32 0.0, %v1269
        %v1271 = vpop.f32.mrf.mxu0
        %1272 = vmatprep.mubr.f32.mxu0 0.0
        %1273 = vmatmul.mubr.f32.gmra.mxu0 %v1071
        %v1274 = vpop.f32.mrf.mxu0
        %v1275 = vadd.f32 0.0, %v1274
        %v1276 = vpop.f32.mrf.mxu0
        %1277 = vmatprep.mubr.f32.mxu0 0.0
        %1278 = vmatmul.mubr.f32.gmra.mxu0 %v1074
        %v1279 = vpop.f32.mrf.mxu0
        %v1280 = vadd.f32 0.0, %v1279
        %v1281 = vpop.f32.mrf.mxu0
        %1282 = vmatprep.mubr.f32.mxu0 0.0
        %1283 = vmatmul.mubr.f32.gmra.mxu0 %v1077
        %v1284 = vpop.f32.mrf.mxu0
        %v1285 = vadd.f32 0.0, %v1284
        %v1286 = vpop.f32.mrf.mxu0
        %1287 = vmatprep.mubr.f32.mxu0 0.0
        %1288 = vmatmul.mubr.f32.gmra.mxu0 %v1080
        %v1289 = vpop.f32.mrf.mxu0
        %v1290 = vadd.f32 0.0, %v1289
        %v1291 = vpop.f32.mrf.mxu0
        %1292 = vmatprep.mubr.f32.mxu0 0.0
        %1293 = vmatmul.mubr.f32.gmra.mxu0 %v1083
        %v1294 = vpop.f32.mrf.mxu0
        %v1295 = vadd.f32 0.0, %v1294
        %v1296 = vpop.f32.mrf.mxu0
        %1297 = vmatprep.mubr.f32.mxu0 0.0
        %1298 = vmatmul.mubr.f32.gmra.mxu0 %v1086
        %v1299 = vpop.f32.mrf.mxu0
        %v1300 = vadd.f32 0.0, %v1299
        %v1301 = vpop.f32.mrf.mxu0
        %1302 = vdwg.mxu0
        %v1303 = vadd.f32 %v818, %v1155
        %v1304 = vadd.f32 %v823, %v1160
        %v1305 = vadd.f32 %v828, %v1165
        %v1306 = vadd.f32 %v833, %v1170
        %v1307 = vadd.f32 %v838, %v1175
        %v1308 = vadd.f32 %v843, %v1180
        %v1309 = vadd.f32 %v848, %v1185
        %v1310 = vadd.f32 %v853, %v1190
        %v1311 = vadd.f32 %v858, %v1195
        %v1312 = vadd.f32 %v863, %v1200
        %v1313 = vadd.f32 %v868, %v1205
        %v1314 = vadd.f32 %v873, %v1210
        %v1315 = vadd.f32 %v878, %v1215
        %v1316 = vadd.f32 %v883, %v1220
        %v1317 = vadd.f32 %v888, %v1225
        %v1318 = vadd.f32 %v893, %v1230
        %v1319 = vadd.f32 %v898, %v1235
        %v1320 = vadd.f32 %v903, %v1240
        %v1321 = vadd.f32 %v908, %v1245
        %v1322 = vadd.f32 %v913, %v1250
        %v1323 = vadd.f32 %v918, %v1255
        %v1324 = vadd.f32 %v923, %v1260
        %v1325 = vadd.f32 %v928, %v1265
        %v1326 = vadd.f32 %v933, %v1270
        %v1327 = vadd.f32 %v938, %v1275
        %v1328 = vadd.f32 %v943, %v1280
        %v1329 = vadd.f32 %v948, %v1285
        %v1330 = vadd.f32 %v953, %v1290
        %v1331 = vadd.f32 %v958, %v1295
        %v1332 = vadd.f32 %v963, %v1300
        %v1333 = vld [vmem:[%s287 + $0x10] sm:$0xff]
        %v1334 = vld [vmem:[%s287 + $0x18] sm:$0xff]
        %v1335 = vld [vmem:[%s287 + $0x20] sm:$0xff]
        %v1336 = vld [vmem:[%s287 + $0x28] sm:$0xff]
        %v1337 = vld [vmem:[%s287 + $0x30] sm:$0xff]
        %v1338 = vld [vmem:[%s287 + $0x38] sm:$0xff]
        %v1339 = vld [vmem:[%s287 + $0x40] sm:$0xff]
        %v1340 = vld [vmem:[%s287 + $0x48] sm:$0xff]
        %v1341 = vld [vmem:[%s287 + $0x50] sm:$0xff]
        %v1342 = vld [vmem:[%s287 + $0x58] sm:$0xff]
        %v1343 = vld [vmem:[%s287 + $0x60] sm:$0xff]
        %v1344 = vld [vmem:[%s287 + $0x68] sm:$0xff]
        %v1345 = vld [vmem:[%s287 + $0x70] sm:$0xff]
        %v1346 = vld [vmem:[%s287 + $0x78] sm:$0xff]
        %v1347 = vld [vmem:[%s287 + $0x80] sm:$0xff]
        %v1348 = vld [vmem:[%s287 + $0x88] sm:$0xff]
        %v1349 = vld [vmem:[%s287 + $0x90] sm:$0xff]
        %v1350 = vld [vmem:[%s287 + $0x98] sm:$0xff]
        %v1351 = vld [vmem:[%s287 + $0xa0] sm:$0xff]
        %v1352 = vld [vmem:[%s287 + $0xa8] sm:$0xff]
        %v1353 = vld [vmem:[%s287 + $0xb0] sm:$0xff]
        %v1354 = vld [vmem:[%s287 + $0xb8] sm:$0xff]
        %v1355 = vld [vmem:[%s287 + $0xc0] sm:$0xff]
        %v1356 = vld [vmem:[%s287 + $0xc8] sm:$0xff]
        %v1357 = vld [vmem:[%s287 + $0xd0] sm:$0xff]
        %v1358 = vld [vmem:[%s287 + $0xd8] sm:$0xff]
        %v1359 = vld [vmem:[%s287 + $0xe0] sm:$0xff]
        %v1360 = vld [vmem:[%s287 + $0xe8] sm:$0xff]
        %v1361 = vld [vmem:[%s287 + $0xf0] sm:$0xff]
        %v1362 = vld [vmem:[%s287 + $0xf8] sm:$0xff]
        %s1363 = scalar_lea.vmem %s1, 24
        %v1364 = vld [vmem:[%s1363] sm:$0xff]
        %v1366 = vsel %vm355, %v1333, 0
        %v1369 = vsel %vm355, %v1334, 0
        %v1372 = vsel %vm355, %v1335, 0
        %v1375 = vsel %vm355, %v1336, 0
        %v1378 = vsel %vm355, %v1337, 0
        %v1381 = vsel %vm355, %v1338, 0
        %v1384 = vsel %vm355, %v1339, 0
        %v1387 = vsel %vm355, %v1340, 0
        %v1390 = vsel %vm355, %v1341, 0
        %v1393 = vsel %vm355, %v1342, 0
        %v1396 = vsel %vm355, %v1343, 0
        %v1399 = vsel %vm355, %v1344, 0
        %v1402 = vsel %vm355, %v1345, 0
        %v1405 = vsel %vm355, %v1346, 0
        %v1408 = vsel %vm355, %v1347, 0
        %v1411 = vsel %vm355, %v1348, 0
        %v1414 = vsel %vm355, %v1349, 0
        %v1417 = vsel %vm355, %v1350, 0
        %v1420 = vsel %vm355, %v1351, 0
        %v1423 = vsel %vm355, %v1352, 0
        %v1426 = vsel %vm355, %v1353, 0
        %v1429 = vsel %vm355, %v1354, 0
        %v1432 = vsel %vm355, %v1355, 0
        %v1435 = vsel %vm355, %v1356, 0
        %v1438 = vsel %vm355, %v1357, 0
        %v1441 = vsel %vm355, %v1358, 0
        %v1444 = vsel %vm355, %v1359, 0
        %v1447 = vsel %vm355, %v1360, 0
        %v1450 = vsel %vm355, %v1361, 0
        %v1453 = vsel %vm355, %v1362, 0
        %1455 = vmatprep.subr.mxu0 0.0
        %1456 = vmatpush1.msra.mxu0 0.0
        %1457 = vmatprep.subr.mxu0 0.0
        %1458 = vmatpush1.msra.mxu0 0.0
        %1459 = vmatprep.subr.mxu0 0.0
        %1460 = vmatpush1.msra.mxu0 0.0
        %1461 = vmatprep.subr.mxu0 0.0
        %1462 = vmatpush1.msra.mxu0 0.0
        %1463 = vmatprep.subr.mxu0 0.0
        %1464 = vmatpush1.msra.mxu0 0.0
        %1465 = vmatprep.subr.mxu0 0.0
        %1466 = vmatpush1.msra.mxu0 0.0
        %1467 = vmatprep.subr.mxu0 0.0
        %1468 = vmatpush1.msra.mxu0 0.0
        %1469 = vmatprep.subr.mxu0 0.0
        %1470 = vmatpush1.msra.mxu0 0.0
        %1471 = vmatprep.subr.mxu0 0.0
        %1472 = vmatpush1.msra.mxu0 0.0
        %1473 = vmatprep.subr.mxu0 0.0
        %1474 = vmatpush1.msra.mxu0 0.0
        %1475 = vmatprep.subr.mxu0 0.0
        %1476 = vmatpush1.msra.mxu0 0.0
        %1477 = vmatprep.subr.mxu0 0.0
        %1478 = vmatpush1.msra.mxu0 0.0
        %1479 = vmatprep.subr.mxu0 0.0
        %1480 = vmatpush1.msra.mxu0 0.0
        %1481 = vmatprep.subr.mxu0 0.0
        %1482 = vmatpush1.msra.mxu0 0.0
        %1483 = vmatprep.subr.mxu0 0.0
        %1484 = vmatpush1.msra.mxu0 0.0
        %1485 = vmatprep.subr.mxu0 0.0
        %1486 = vmatpush1.msra.mxu0 %v1364
        %1487 = vmatprep.subr.mxu0 0.0
        %1488 = vmatpush2.msra.mxu0 0.0
        %1489 = vmatprep.subr.mxu0 0.0
        %1490 = vmatpush2.msra.mxu0 0.0
        %1491 = vmatprep.subr.mxu0 0.0
        %1492 = vmatpush2.msra.mxu0 0.0
        %1493 = vmatprep.subr.mxu0 0.0
        %1494 = vmatpush2.msra.mxu0 0.0
        %1495 = vmatprep.subr.mxu0 0.0
        %1496 = vmatpush2.msra.mxu0 0.0
        %1497 = vmatprep.subr.mxu0 0.0
        %1498 = vmatpush2.msra.mxu0 0.0
        %1499 = vmatprep.subr.mxu0 0.0
        %1500 = vmatpush2.msra.mxu0 0.0
        %1501 = vmatprep.subr.mxu0 0.0
        %1502 = vmatpush2.msra.mxu0 0.0
        %1503 = vmatprep.subr.mxu0 0.0
        %1504 = vmatpush2.msra.mxu0 0.0
        %1505 = vmatprep.subr.mxu0 0.0
        %1506 = vmatpush2.msra.mxu0 0.0
        %1507 = vmatprep.subr.mxu0 0.0
        %1508 = vmatpush2.msra.mxu0 0.0
        %1509 = vmatprep.subr.mxu0 0.0
        %1510 = vmatpush2.msra.mxu0 0.0
        %1511 = vmatprep.subr.mxu0 0.0
        %1512 = vmatpush2.msra.mxu0 0.0
        %1513 = vmatprep.subr.mxu0 0.0
        %1514 = vmatpush2.msra.mxu0 0.0
        %1515 = vmatprep.subr.mxu0 0.0
        %1516 = vmatpush2.msra.mxu0 0.0
        %1517 = vmatprep.subr.mxu0 0.0
        %1518 = vmatpush2.msra.mxu0 0.0
        %1519 = vmatprep.mubr.f32.mxu0 0.0
        %1520 = vmatmul.mubr.f32.gmra.mxu0 %v1366
        %v1521 = vpop.f32.mrf.mxu0
        %v1522 = vadd.f32 0.0, %v1521
        %v1523 = vpop.f32.mrf.mxu0
        %1524 = vmatprep.mubr.f32.mxu0 0.0
        %1525 = vmatmul.mubr.f32.gmra.mxu0 %v1369
        %v1526 = vpop.f32.mrf.mxu0
        %v1527 = vadd.f32 0.0, %v1526
        %v1528 = vpop.f32.mrf.mxu0
        %1529 = vmatprep.mubr.f32.mxu0 0.0
        %1530 = vmatmul.mubr.f32.gmra.mxu0 %v1372
        %v1531 = vpop.f32.mrf.mxu0
        %v1532 = vadd.f32 0.0, %v1531
        %v1533 = vpop.f32.mrf.mxu0
        %1534 = vmatprep.mubr.f32.mxu0 0.0
        %1535 = vmatmul.mubr.f32.gmra.mxu0 %v1375
        %v1536 = vpop.f32.mrf.mxu0
        %v1537 = vadd.f32 0.0, %v1536
        %v1538 = vpop.f32.mrf.mxu0
        %1539 = vmatprep.mubr.f32.mxu0 0.0
        %1540 = vmatmul.mubr.f32.gmra.mxu0 %v1378
        %v1541 = vpop.f32.mrf.mxu0
        %v1542 = vadd.f32 0.0, %v1541
        %v1543 = vpop.f32.mrf.mxu0
        %1544 = vmatprep.mubr.f32.mxu0 0.0
        %1545 = vmatmul.mubr.f32.gmra.mxu0 %v1381
        %v1546 = vpop.f32.mrf.mxu0
        %v1547 = vadd.f32 0.0, %v1546
        %v1548 = vpop.f32.mrf.mxu0
        %1549 = vmatprep.mubr.f32.mxu0 0.0
        %1550 = vmatmul.mubr.f32.gmra.mxu0 %v1384
        %v1551 = vpop.f32.mrf.mxu0
        %v1552 = vadd.f32 0.0, %v1551
        %v1553 = vpop.f32.mrf.mxu0
        %1554 = vmatprep.mubr.f32.mxu0 0.0
        %1555 = vmatmul.mubr.f32.gmra.mxu0 %v1387
        %v1556 = vpop.f32.mrf.mxu0
        %v1557 = vadd.f32 0.0, %v1556
        %v1558 = vpop.f32.mrf.mxu0
        %1559 = vmatprep.mubr.f32.mxu0 0.0
        %1560 = vmatmul.mubr.f32.gmra.mxu0 %v1390
        %v1561 = vpop.f32.mrf.mxu0
        %v1562 = vadd.f32 0.0, %v1561
        %v1563 = vpop.f32.mrf.mxu0
        %1564 = vmatprep.mubr.f32.mxu0 0.0
        %1565 = vmatmul.mubr.f32.gmra.mxu0 %v1393
        %v1566 = vpop.f32.mrf.mxu0
        %v1567 = vadd.f32 0.0, %v1566
        %v1568 = vpop.f32.mrf.mxu0
        %1569 = vmatprep.mubr.f32.mxu0 0.0
        %1570 = vmatmul.mubr.f32.gmra.mxu0 %v1396
        %v1571 = vpop.f32.mrf.mxu0
        %v1572 = vadd.f32 0.0, %v1571
        %v1573 = vpop.f32.mrf.mxu0
        %1574 = vmatprep.mubr.f32.mxu0 0.0
        %1575 = vmatmul.mubr.f32.gmra.mxu0 %v1399
        %v1576 = vpop.f32.mrf.mxu0
        %v1577 = vadd.f32 0.0, %v1576
        %v1578 = vpop.f32.mrf.mxu0
        %1579 = vmatprep.mubr.f32.mxu0 0.0
        %1580 = vmatmul.mubr.f32.gmra.mxu0 %v1402
        %v1581 = vpop.f32.mrf.mxu0
        %v1582 = vadd.f32 0.0, %v1581
        %v1583 = vpop.f32.mrf.mxu0
        %1584 = vmatprep.mubr.f32.mxu0 0.0
        %1585 = vmatmul.mubr.f32.gmra.mxu0 %v1405
        %v1586 = vpop.f32.mrf.mxu0
        %v1587 = vadd.f32 0.0, %v1586
        %v1588 = vpop.f32.mrf.mxu0
        %1589 = vmatprep.mubr.f32.mxu0 0.0
        %1590 = vmatmul.mubr.f32.gmra.mxu0 %v1408
        %v1591 = vpop.f32.mrf.mxu0
        %v1592 = vadd.f32 0.0, %v1591
        %v1593 = vpop.f32.mrf.mxu0
        %1594 = vmatprep.mubr.f32.mxu0 0.0
        %1595 = vmatmul.mubr.f32.gmra.mxu0 %v1411
        %v1596 = vpop.f32.mrf.mxu0
        %v1597 = vadd.f32 0.0, %v1596
        %v1598 = vpop.f32.mrf.mxu0
        %1599 = vmatprep.mubr.f32.mxu0 0.0
        %1600 = vmatmul.mubr.f32.gmra.mxu0 %v1414
        %v1601 = vpop.f32.mrf.mxu0
        %v1602 = vadd.f32 0.0, %v1601
        %v1603 = vpop.f32.mrf.mxu0
        %1604 = vmatprep.mubr.f32.mxu0 0.0
        %1605 = vmatmul.mubr.f32.gmra.mxu0 %v1417
        %v1606 = vpop.f32.mrf.mxu0
        %v1607 = vadd.f32 0.0, %v1606
        %v1608 = vpop.f32.mrf.mxu0
        %1609 = vmatprep.mubr.f32.mxu0 0.0
        %1610 = vmatmul.mubr.f32.gmra.mxu0 %v1420
        %v1611 = vpop.f32.mrf.mxu0
        %v1612 = vadd.f32 0.0, %v1611
        %v1613 = vpop.f32.mrf.mxu0
        %1614 = vmatprep.mubr.f32.mxu0 0.0
        %1615 = vmatmul.mubr.f32.gmra.mxu0 %v1423
        %v1616 = vpop.f32.mrf.mxu0
        %v1617 = vadd.f32 0.0, %v1616
        %v1618 = vpop.f32.mrf.mxu0
        %1619 = vmatprep.mubr.f32.mxu0 0.0
        %1620 = vmatmul.mubr.f32.gmra.mxu0 %v1426
        %v1621 = vpop.f32.mrf.mxu0
        %v1622 = vadd.f32 0.0, %v1621
        %v1623 = vpop.f32.mrf.mxu0
        %1624 = vmatprep.mubr.f32.mxu0 0.0
        %1625 = vmatmul.mubr.f32.gmra.mxu0 %v1429
        %v1626 = vpop.f32.mrf.mxu0
        %v1627 = vadd.f32 0.0, %v1626
        %v1628 = vpop.f32.mrf.mxu0
        %1629 = vmatprep.mubr.f32.mxu0 0.0
        %1630 = vmatmul.mubr.f32.gmra.mxu0 %v1432
        %v1631 = vpop.f32.mrf.mxu0
        %v1632 = vadd.f32 0.0, %v1631
        %v1633 = vpop.f32.mrf.mxu0
        %1634 = vmatprep.mubr.f32.mxu0 0.0
        %1635 = vmatmul.mubr.f32.gmra.mxu0 %v1435
        %v1636 = vpop.f32.mrf.mxu0
        %v1637 = vadd.f32 0.0, %v1636
        %v1638 = vpop.f32.mrf.mxu0
        %1639 = vmatprep.mubr.f32.mxu0 0.0
        %1640 = vmatmul.mubr.f32.gmra.mxu0 %v1438
        %v1641 = vpop.f32.mrf.mxu0
        %v1642 = vadd.f32 0.0, %v1641
        %v1643 = vpop.f32.mrf.mxu0
        %1644 = vmatprep.mubr.f32.mxu0 0.0
        %1645 = vmatmul.mubr.f32.gmra.mxu0 %v1441
        %v1646 = vpop.f32.mrf.mxu0
        %v1647 = vadd.f32 0.0, %v1646
        %v1648 = vpop.f32.mrf.mxu0
        %1649 = vmatprep.mubr.f32.mxu0 0.0
        %1650 = vmatmul.mubr.f32.gmra.mxu0 %v1444
        %v1651 = vpop.f32.mrf.mxu0
        %v1652 = vadd.f32 0.0, %v1651
        %v1653 = vpop.f32.mrf.mxu0
        %1654 = vmatprep.mubr.f32.mxu0 0.0
        %1655 = vmatmul.mubr.f32.gmra.mxu0 %v1447
        %v1656 = vpop.f32.mrf.mxu0
        %v1657 = vadd.f32 0.0, %v1656
        %v1658 = vpop.f32.mrf.mxu0
        %1659 = vmatprep.mubr.f32.mxu0 0.0
        %1660 = vmatmul.mubr.f32.gmra.mxu0 %v1450
        %v1661 = vpop.f32.mrf.mxu0
        %v1662 = vadd.f32 0.0, %v1661
        %v1663 = vpop.f32.mrf.mxu0
        %1664 = vmatprep.mubr.f32.mxu0 0.0
        %1665 = vmatmul.mubr.f32.gmra.mxu0 %v1453
        %v1666 = vpop.f32.mrf.mxu0
        %v1667 = vadd.f32 0.0, %v1666
        %v1668 = vpop.f32.mrf.mxu0
        %1669 = vdwg.mxu0
        %v1670 = vadd.f32 %v1303, %v1522
        %v1671 = vadd.f32 %v1304, %v1527
        %v1672 = vadd.f32 %v1305, %v1532
        %v1673 = vadd.f32 %v1306, %v1537
        %v1674 = vadd.f32 %v1307, %v1542
        %v1675 = vadd.f32 %v1308, %v1547
        %v1676 = vadd.f32 %v1309, %v1552
        %v1677 = vadd.f32 %v1310, %v1557
        %v1678 = vadd.f32 %v1311, %v1562
        %v1679 = vadd.f32 %v1312, %v1567
        %v1680 = vadd.f32 %v1313, %v1572
        %v1681 = vadd.f32 %v1314, %v1577
        %v1682 = vadd.f32 %v1315, %v1582
        %v1683 = vadd.f32 %v1316, %v1587
        %v1684 = vadd.f32 %v1317, %v1592
        %v1685 = vadd.f32 %v1318, %v1597
        %v1686 = vadd.f32 %v1319, %v1602
        %v1687 = vadd.f32 %v1320, %v1607
        %v1688 = vadd.f32 %v1321, %v1612
        %v1689 = vadd.f32 %v1322, %v1617
        %v1690 = vadd.f32 %v1323, %v1622
        %v1691 = vadd.f32 %v1324, %v1627
        %v1692 = vadd.f32 %v1325, %v1632
        %v1693 = vadd.f32 %v1326, %v1637
        %v1694 = vadd.f32 %v1327, %v1642
        %v1695 = vadd.f32 %v1328, %v1647
        %v1696 = vadd.f32 %v1329, %v1652
        %v1697 = vadd.f32 %v1330, %v1657
        %v1698 = vadd.f32 %v1331, %v1662
        %v1699 = vadd.f32 %v1332, %v1667
        %v1700 = vld [vmem:[%s287 + $0x11] sm:$0xff]
        %v1701 = vld [vmem:[%s287 + $0x19] sm:$0xff]
        %v1702 = vld [vmem:[%s287 + $0x21] sm:$0xff]
        %v1703 = vld [vmem:[%s287 + $0x29] sm:$0xff]
        %v1704 = vld [vmem:[%s287 + $0x31] sm:$0xff]
        %v1705 = vld [vmem:[%s287 + $0x39] sm:$0xff]
        %v1706 = vld [vmem:[%s287 + $0x41] sm:$0xff]
        %v1707 = vld [vmem:[%s287 + $0x49] sm:$0xff]
        %v1708 = vld [vmem:[%s287 + $0x51] sm:$0xff]
        %v1709 = vld [vmem:[%s287 + $0x59] sm:$0xff]
        %v1710 = vld [vmem:[%s287 + $0x61] sm:$0xff]
        %v1711 = vld [vmem:[%s287 + $0x69] sm:$0xff]
        %v1712 = vld [vmem:[%s287 + $0x71] sm:$0xff]
        %v1713 = vld [vmem:[%s287 + $0x79] sm:$0xff]
        %v1714 = vld [vmem:[%s287 + $0x81] sm:$0xff]
        %v1715 = vld [vmem:[%s287 + $0x89] sm:$0xff]
        %v1716 = vld [vmem:[%s287 + $0x91] sm:$0xff]
        %v1717 = vld [vmem:[%s287 + $0x99] sm:$0xff]
        %v1718 = vld [vmem:[%s287 + $0xa1] sm:$0xff]
        %v1719 = vld [vmem:[%s287 + $0xa9] sm:$0xff]
        %v1720 = vld [vmem:[%s287 + $0xb1] sm:$0xff]
        %v1721 = vld [vmem:[%s287 + $0xb9] sm:$0xff]
        %v1722 = vld [vmem:[%s287 + $0xc1] sm:$0xff]
        %v1723 = vld [vmem:[%s287 + $0xc9] sm:$0xff]
        %v1724 = vld [vmem:[%s287 + $0xd1] sm:$0xff]
        %v1725 = vld [vmem:[%s287 + $0xd9] sm:$0xff]
        %v1726 = vld [vmem:[%s287 + $0xe1] sm:$0xff]
        %v1727 = vld [vmem:[%s287 + $0xe9] sm:$0xff]
        %v1728 = vld [vmem:[%s287 + $0xf1] sm:$0xff]
        %v1729 = vld [vmem:[%s287 + $0xf9] sm:$0xff]
        %s1730 = scalar_lea.vmem %s1, 32
        %v1731 = vld [vmem:[%s1730] sm:$0xff]
        %v1733 = vsel %vm355, %v1700, 0
        %v1736 = vsel %vm355, %v1701, 0
        %v1739 = vsel %vm355, %v1702, 0
        %v1742 = vsel %vm355, %v1703, 0
        %v1745 = vsel %vm355, %v1704, 0
        %v1748 = vsel %vm355, %v1705, 0
        %v1751 = vsel %vm355, %v1706, 0
        %v1754 = vsel %vm355, %v1707, 0
        %v1757 = vsel %vm355, %v1708, 0
        %v1760 = vsel %vm355, %v1709, 0
        %v1763 = vsel %vm355, %v1710, 0
        %v1766 = vsel %vm355, %v1711, 0
        %v1769 = vsel %vm355, %v1712, 0
        %v1772 = vsel %vm355, %v1713, 0
        %v1775 = vsel %vm355, %v1714, 0
        %v1778 = vsel %vm355, %v1715, 0
        %v1781 = vsel %vm355, %v1716, 0
        %v1784 = vsel %vm355, %v1717, 0
        %v1787 = vsel %vm355, %v1718, 0
        %v1790 = vsel %vm355, %v1719, 0
        %v1793 = vsel %vm355, %v1720, 0
        %v1796 = vsel %vm355, %v1721, 0
        %v1799 = vsel %vm355, %v1722, 0
        %v1802 = vsel %vm355, %v1723, 0
        %v1805 = vsel %vm355, %v1724, 0
        %v1808 = vsel %vm355, %v1725, 0
        %v1811 = vsel %vm355, %v1726, 0
        %v1814 = vsel %vm355, %v1727, 0
        %v1817 = vsel %vm355, %v1728, 0
        %v1820 = vsel %vm355, %v1729, 0
        %1822 = vmatprep.subr.mxu0 0.0
        %1823 = vmatpush1.msra.mxu0 0.0
        %1824 = vmatprep.subr.mxu0 0.0
        %1825 = vmatpush1.msra.mxu0 0.0
        %1826 = vmatprep.subr.mxu0 0.0
        %1827 = vmatpush1.msra.mxu0 0.0
        %1828 = vmatprep.subr.mxu0 0.0
        %1829 = vmatpush1.msra.mxu0 0.0
        %1830 = vmatprep.subr.mxu0 0.0
        %1831 = vmatpush1.msra.mxu0 0.0
        %1832 = vmatprep.subr.mxu0 0.0
        %1833 = vmatpush1.msra.mxu0 0.0
        %1834 = vmatprep.subr.mxu0 0.0
        %1835 = vmatpush1.msra.mxu0 0.0
        %1836 = vmatprep.subr.mxu0 0.0
        %1837 = vmatpush1.msra.mxu0 0.0
        %1838 = vmatprep.subr.mxu0 0.0
        %1839 = vmatpush1.msra.mxu0 0.0
        %1840 = vmatprep.subr.mxu0 0.0
        %1841 = vmatpush1.msra.mxu0 0.0
        %1842 = vmatprep.subr.mxu0 0.0
        %1843 = vmatpush1.msra.mxu0 0.0
        %1844 = vmatprep.subr.mxu0 0.0
        %1845 = vmatpush1.msra.mxu0 0.0
        %1846 = vmatprep.subr.mxu0 0.0
        %1847 = vmatpush1.msra.mxu0 0.0
        %1848 = vmatprep.subr.mxu0 0.0
        %1849 = vmatpush1.msra.mxu0 0.0
        %1850 = vmatprep.subr.mxu0 0.0
        %1851 = vmatpush1.msra.mxu0 0.0
        %1852 = vmatprep.subr.mxu0 0.0
        %1853 = vmatpush1.msra.mxu0 %v1731
        %1854 = vmatprep.subr.mxu0 0.0
        %1855 = vmatpush2.msra.mxu0 0.0
        %1856 = vmatprep.subr.mxu0 0.0
        %1857 = vmatpush2.msra.mxu0 0.0
        %1858 = vmatprep.subr.mxu0 0.0
        %1859 = vmatpush2.msra.mxu0 0.0
        %1860 = vmatprep.subr.mxu0 0.0
        %1861 = vmatpush2.msra.mxu0 0.0
        %1862 = vmatprep.subr.mxu0 0.0
        %1863 = vmatpush2.msra.mxu0 0.0
        %1864 = vmatprep.subr.mxu0 0.0
        %1865 = vmatpush2.msra.mxu0 0.0
        %1866 = vmatprep.subr.mxu0 0.0
        %1867 = vmatpush2.msra.mxu0 0.0
        %1868 = vmatprep.subr.mxu0 0.0
        %1869 = vmatpush2.msra.mxu0 0.0
        %1870 = vmatprep.subr.mxu0 0.0
        %1871 = vmatpush2.msra.mxu0 0.0
        %1872 = vmatprep.subr.mxu0 0.0
        %1873 = vmatpush2.msra.mxu0 0.0
        %1874 = vmatprep.subr.mxu0 0.0
        %1875 = vmatpush2.msra.mxu0 0.0
        %1876 = vmatprep.subr.mxu0 0.0
        %1877 = vmatpush2.msra.mxu0 0.0
        %1878 = vmatprep.subr.mxu0 0.0
        %1879 = vmatpush2.msra.mxu0 0.0
        %1880 = vmatprep.subr.mxu0 0.0
        %1881 = vmatpush2.msra.mxu0 0.0
        %1882 = vmatprep.subr.mxu0 0.0
        %1883 = vmatpush2.msra.mxu0 0.0
        %1884 = vmatprep.subr.mxu0 0.0
        %1885 = vmatpush2.msra.mxu0 0.0
        %1886 = vmatprep.mubr.f32.mxu0 0.0
        %1887 = vmatmul.mubr.f32.gmra.mxu0 %v1733
        %v1888 = vpop.f32.mrf.mxu0
        %v1889 = vadd.f32 0.0, %v1888
        %v1890 = vpop.f32.mrf.mxu0
        %1891 = vmatprep.mubr.f32.mxu0 0.0
        %1892 = vmatmul.mubr.f32.gmra.mxu0 %v1736
        %v1893 = vpop.f32.mrf.mxu0
        %v1894 = vadd.f32 0.0, %v1893
        %v1895 = vpop.f32.mrf.mxu0
        %1896 = vmatprep.mubr.f32.mxu0 0.0
        %1897 = vmatmul.mubr.f32.gmra.mxu0 %v1739
        %v1898 = vpop.f32.mrf.mxu0
        %v1899 = vadd.f32 0.0, %v1898
        %v1900 = vpop.f32.mrf.mxu0
        %1901 = vmatprep.mubr.f32.mxu0 0.0
        %1902 = vmatmul.mubr.f32.gmra.mxu0 %v1742
        %v1903 = vpop.f32.mrf.mxu0
        %v1904 = vadd.f32 0.0, %v1903
        %v1905 = vpop.f32.mrf.mxu0
        %1906 = vmatprep.mubr.f32.mxu0 0.0
        %1907 = vmatmul.mubr.f32.gmra.mxu0 %v1745
        %v1908 = vpop.f32.mrf.mxu0
        %v1909 = vadd.f32 0.0, %v1908
        %v1910 = vpop.f32.mrf.mxu0
        %1911 = vmatprep.mubr.f32.mxu0 0.0
        %1912 = vmatmul.mubr.f32.gmra.mxu0 %v1748
        %v1913 = vpop.f32.mrf.mxu0
        %v1914 = vadd.f32 0.0, %v1913
        %v1915 = vpop.f32.mrf.mxu0
        %1916 = vmatprep.mubr.f32.mxu0 0.0
        %1917 = vmatmul.mubr.f32.gmra.mxu0 %v1751
        %v1918 = vpop.f32.mrf.mxu0
        %v1919 = vadd.f32 0.0, %v1918
        %v1920 = vpop.f32.mrf.mxu0
        %1921 = vmatprep.mubr.f32.mxu0 0.0
        %1922 = vmatmul.mubr.f32.gmra.mxu0 %v1754
        %v1923 = vpop.f32.mrf.mxu0
        %v1924 = vadd.f32 0.0, %v1923
        %v1925 = vpop.f32.mrf.mxu0
        %1926 = vmatprep.mubr.f32.mxu0 0.0
        %1927 = vmatmul.mubr.f32.gmra.mxu0 %v1757
        %v1928 = vpop.f32.mrf.mxu0
        %v1929 = vadd.f32 0.0, %v1928
        %v1930 = vpop.f32.mrf.mxu0
        %1931 = vmatprep.mubr.f32.mxu0 0.0
        %1932 = vmatmul.mubr.f32.gmra.mxu0 %v1760
        %v1933 = vpop.f32.mrf.mxu0
        %v1934 = vadd.f32 0.0, %v1933
        %v1935 = vpop.f32.mrf.mxu0
        %1936 = vmatprep.mubr.f32.mxu0 0.0
        %1937 = vmatmul.mubr.f32.gmra.mxu0 %v1763
        %v1938 = vpop.f32.mrf.mxu0
        %v1939 = vadd.f32 0.0, %v1938
        %v1940 = vpop.f32.mrf.mxu0
        %1941 = vmatprep.mubr.f32.mxu0 0.0
        %1942 = vmatmul.mubr.f32.gmra.mxu0 %v1766
        %v1943 = vpop.f32.mrf.mxu0
        %v1944 = vadd.f32 0.0, %v1943
        %v1945 = vpop.f32.mrf.mxu0
        %1946 = vmatprep.mubr.f32.mxu0 0.0
        %1947 = vmatmul.mubr.f32.gmra.mxu0 %v1769
        %v1948 = vpop.f32.mrf.mxu0
        %v1949 = vadd.f32 0.0, %v1948
        %v1950 = vpop.f32.mrf.mxu0
        %1951 = vmatprep.mubr.f32.mxu0 0.0
        %1952 = vmatmul.mubr.f32.gmra.mxu0 %v1772
        %v1953 = vpop.f32.mrf.mxu0
        %v1954 = vadd.f32 0.0, %v1953
        %v1955 = vpop.f32.mrf.mxu0
        %1956 = vmatprep.mubr.f32.mxu0 0.0
        %1957 = vmatmul.mubr.f32.gmra.mxu0 %v1775
        %v1958 = vpop.f32.mrf.mxu0
        %v1959 = vadd.f32 0.0, %v1958
        %v1960 = vpop.f32.mrf.mxu0
        %1961 = vmatprep.mubr.f32.mxu0 0.0
        %1962 = vmatmul.mubr.f32.gmra.mxu0 %v1778
        %v1963 = vpop.f32.mrf.mxu0
        %v1964 = vadd.f32 0.0, %v1963
        %v1965 = vpop.f32.mrf.mxu0
        %1966 = vmatprep.mubr.f32.mxu0 0.0
        %1967 = vmatmul.mubr.f32.gmra.mxu0 %v1781
        %v1968 = vpop.f32.mrf.mxu0
        %v1969 = vadd.f32 0.0, %v1968
        %v1970 = vpop.f32.mrf.mxu0
        %1971 = vmatprep.mubr.f32.mxu0 0.0
        %1972 = vmatmul.mubr.f32.gmra.mxu0 %v1784
        %v1973 = vpop.f32.mrf.mxu0
        %v1974 = vadd.f32 0.0, %v1973
        %v1975 = vpop.f32.mrf.mxu0
        %1976 = vmatprep.mubr.f32.mxu0 0.0
        %1977 = vmatmul.mubr.f32.gmra.mxu0 %v1787
        %v1978 = vpop.f32.mrf.mxu0
        %v1979 = vadd.f32 0.0, %v1978
        %v1980 = vpop.f32.mrf.mxu0
        %1981 = vmatprep.mubr.f32.mxu0 0.0
        %1982 = vmatmul.mubr.f32.gmra.mxu0 %v1790
        %v1983 = vpop.f32.mrf.mxu0
        %v1984 = vadd.f32 0.0, %v1983
        %v1985 = vpop.f32.mrf.mxu0
        %1986 = vmatprep.mubr.f32.mxu0 0.0
        %1987 = vmatmul.mubr.f32.gmra.mxu0 %v1793
        %v1988 = vpop.f32.mrf.mxu0
        %v1989 = vadd.f32 0.0, %v1988
        %v1990 = vpop.f32.mrf.mxu0
        %1991 = vmatprep.mubr.f32.mxu0 0.0
        %1992 = vmatmul.mubr.f32.gmra.mxu0 %v1796
        %v1993 = vpop.f32.mrf.mxu0
        %v1994 = vadd.f32 0.0, %v1993
        %v1995 = vpop.f32.mrf.mxu0
        %1996 = vmatprep.mubr.f32.mxu0 0.0
        %1997 = vmatmul.mubr.f32.gmra.mxu0 %v1799
        %v1998 = vpop.f32.mrf.mxu0
        %v1999 = vadd.f32 0.0, %v1998
        %v2000 = vpop.f32.mrf.mxu0
        %2001 = vmatprep.mubr.f32.mxu0 0.0
        %2002 = vmatmul.mubr.f32.gmra.mxu0 %v1802
        %v2003 = vpop.f32.mrf.mxu0
        %v2004 = vadd.f32 0.0, %v2003
        %v2005 = vpop.f32.mrf.mxu0
        %2006 = vmatprep.mubr.f32.mxu0 0.0
        %2007 = vmatmul.mubr.f32.gmra.mxu0 %v1805
        %v2008 = vpop.f32.mrf.mxu0
        %v2009 = vadd.f32 0.0, %v2008
        %v2010 = vpop.f32.mrf.mxu0
        %2011 = vmatprep.mubr.f32.mxu0 0.0
        %2012 = vmatmul.mubr.f32.gmra.mxu0 %v1808
        %v2013 = vpop.f32.mrf.mxu0
        %v2014 = vadd.f32 0.0, %v2013
        %v2015 = vpop.f32.mrf.mxu0
        %2016 = vmatprep.mubr.f32.mxu0 0.0
        %2017 = vmatmul.mubr.f32.gmra.mxu0 %v1811
        %v2018 = vpop.f32.mrf.mxu0
        %v2019 = vadd.f32 0.0, %v2018
        %v2020 = vpop.f32.mrf.mxu0
        %2021 = vmatprep.mubr.f32.mxu0 0.0
        %2022 = vmatmul.mubr.f32.gmra.mxu0 %v1814
        %v2023 = vpop.f32.mrf.mxu0
        %v2024 = vadd.f32 0.0, %v2023
        %v2025 = vpop.f32.mrf.mxu0
        %2026 = vmatprep.mubr.f32.mxu0 0.0
        %2027 = vmatmul.mubr.f32.gmra.mxu0 %v1817
        %v2028 = vpop.f32.mrf.mxu0
        %v2029 = vadd.f32 0.0, %v2028
        %v2030 = vpop.f32.mrf.mxu0
        %2031 = vmatprep.mubr.f32.mxu0 0.0
        %2032 = vmatmul.mubr.f32.gmra.mxu0 %v1820
        %v2033 = vpop.f32.mrf.mxu0
        %v2034 = vadd.f32 0.0, %v2033
        %v2035 = vpop.f32.mrf.mxu0
        %2036 = vdwg.mxu0
        %v2037 = vadd.f32 %v1670, %v1889
        %v2038 = vadd.f32 %v1671, %v1894
        %v2039 = vadd.f32 %v1672, %v1899
        %v2040 = vadd.f32 %v1673, %v1904
        %v2041 = vadd.f32 %v1674, %v1909
        %v2042 = vadd.f32 %v1675, %v1914
        %v2043 = vadd.f32 %v1676, %v1919
        %v2044 = vadd.f32 %v1677, %v1924
        %v2045 = vadd.f32 %v1678, %v1929
        %v2046 = vadd.f32 %v1679, %v1934
        %v2047 = vadd.f32 %v1680, %v1939
        %v2048 = vadd.f32 %v1681, %v1944
        %v2049 = vadd.f32 %v1682, %v1949
        %v2050 = vadd.f32 %v1683, %v1954
        %v2051 = vadd.f32 %v1684, %v1959
        %v2052 = vadd.f32 %v1685, %v1964
        %v2053 = vadd.f32 %v1686, %v1969
        %v2054 = vadd.f32 %v1687, %v1974
        %v2055 = vadd.f32 %v1688, %v1979
        %v2056 = vadd.f32 %v1689, %v1984
        %v2057 = vadd.f32 %v1690, %v1989
        %v2058 = vadd.f32 %v1691, %v1994
        %v2059 = vadd.f32 %v1692, %v1999
        %v2060 = vadd.f32 %v1693, %v2004
        %v2061 = vadd.f32 %v1694, %v2009
        %v2062 = vadd.f32 %v1695, %v2014
        %v2063 = vadd.f32 %v1696, %v2019
        %v2064 = vadd.f32 %v1697, %v2024
        %v2065 = vadd.f32 %v1698, %v2029
        %v2066 = vadd.f32 %v1699, %v2034
        %v2067 = vld [vmem:[%s287 + $0x12] sm:$0xff]
        %v2068 = vld [vmem:[%s287 + $0x1a] sm:$0xff]
        %v2069 = vld [vmem:[%s287 + $0x22] sm:$0xff]
        %v2070 = vld [vmem:[%s287 + $0x2a] sm:$0xff]
        %v2071 = vld [vmem:[%s287 + $0x32] sm:$0xff]
        %v2072 = vld [vmem:[%s287 + $0x3a] sm:$0xff]
        %v2073 = vld [vmem:[%s287 + $0x42] sm:$0xff]
        %v2074 = vld [vmem:[%s287 + $0x4a] sm:$0xff]
        %v2075 = vld [vmem:[%s287 + $0x52] sm:$0xff]
        %v2076 = vld [vmem:[%s287 + $0x5a] sm:$0xff]
        %v2077 = vld [vmem:[%s287 + $0x62] sm:$0xff]
        %v2078 = vld [vmem:[%s287 + $0x6a] sm:$0xff]
        %v2079 = vld [vmem:[%s287 + $0x72] sm:$0xff]
        %v2080 = vld [vmem:[%s287 + $0x7a] sm:$0xff]
        %v2081 = vld [vmem:[%s287 + $0x82] sm:$0xff]
        %v2082 = vld [vmem:[%s287 + $0x8a] sm:$0xff]
        %v2083 = vld [vmem:[%s287 + $0x92] sm:$0xff]
        %v2084 = vld [vmem:[%s287 + $0x9a] sm:$0xff]
        %v2085 = vld [vmem:[%s287 + $0xa2] sm:$0xff]
        %v2086 = vld [vmem:[%s287 + $0xaa] sm:$0xff]
        %v2087 = vld [vmem:[%s287 + $0xb2] sm:$0xff]
        %v2088 = vld [vmem:[%s287 + $0xba] sm:$0xff]
        %v2089 = vld [vmem:[%s287 + $0xc2] sm:$0xff]
        %v2090 = vld [vmem:[%s287 + $0xca] sm:$0xff]
        %v2091 = vld [vmem:[%s287 + $0xd2] sm:$0xff]
        %v2092 = vld [vmem:[%s287 + $0xda] sm:$0xff]
        %v2093 = vld [vmem:[%s287 + $0xe2] sm:$0xff]
        %v2094 = vld [vmem:[%s287 + $0xea] sm:$0xff]
        %v2095 = vld [vmem:[%s287 + $0xf2] sm:$0xff]
        %v2096 = vld [vmem:[%s287 + $0xfa] sm:$0xff]
        %s2097 = scalar_lea.vmem %s1, 40
        %v2098 = vld [vmem:[%s2097] sm:$0xff]
        %v2100 = vsel %vm355, %v2067, 0
        %v2103 = vsel %vm355, %v2068, 0
        %v2106 = vsel %vm355, %v2069, 0
        %v2109 = vsel %vm355, %v2070, 0
        %v2112 = vsel %vm355, %v2071, 0
        %v2115 = vsel %vm355, %v2072, 0
        %v2118 = vsel %vm355, %v2073, 0
        %v2121 = vsel %vm355, %v2074, 0
        %v2124 = vsel %vm355, %v2075, 0
        %v2127 = vsel %vm355, %v2076, 0
        %v2130 = vsel %vm355, %v2077, 0
        %v2133 = vsel %vm355, %v2078, 0
        %v2136 = vsel %vm355, %v2079, 0
        %v2139 = vsel %vm355, %v2080, 0
        %v2142 = vsel %vm355, %v2081, 0
        %v2145 = vsel %vm355, %v2082, 0
        %v2148 = vsel %vm355, %v2083, 0
        %v2151 = vsel %vm355, %v2084, 0
        %v2154 = vsel %vm355, %v2085, 0
        %v2157 = vsel %vm355, %v2086, 0
        %v2160 = vsel %vm355, %v2087, 0
        %v2163 = vsel %vm355, %v2088, 0
        %v2166 = vsel %vm355, %v2089, 0
        %v2169 = vsel %vm355, %v2090, 0
        %v2172 = vsel %vm355, %v2091, 0
        %v2175 = vsel %vm355, %v2092, 0
        %v2178 = vsel %vm355, %v2093, 0
        %v2181 = vsel %vm355, %v2094, 0
        %v2184 = vsel %vm355, %v2095, 0
        %v2187 = vsel %vm355, %v2096, 0
        %2189 = vmatprep.subr.mxu0 0.0
        %2190 = vmatpush1.msra.mxu0 0.0
        %2191 = vmatprep.subr.mxu0 0.0
        %2192 = vmatpush1.msra.mxu0 0.0
        %2193 = vmatprep.subr.mxu0 0.0
        %2194 = vmatpush1.msra.mxu0 0.0
        %2195 = vmatprep.subr.mxu0 0.0
        %2196 = vmatpush1.msra.mxu0 0.0
        %2197 = vmatprep.subr.mxu0 0.0
        %2198 = vmatpush1.msra.mxu0 0.0
        %2199 = vmatprep.subr.mxu0 0.0
        %2200 = vmatpush1.msra.mxu0 0.0
        %2201 = vmatprep.subr.mxu0 0.0
        %2202 = vmatpush1.msra.mxu0 0.0
        %2203 = vmatprep.subr.mxu0 0.0
        %2204 = vmatpush1.msra.mxu0 0.0
        %2205 = vmatprep.subr.mxu0 0.0
        %2206 = vmatpush1.msra.mxu0 0.0
        %2207 = vmatprep.subr.mxu0 0.0
        %2208 = vmatpush1.msra.mxu0 0.0
        %2209 = vmatprep.subr.mxu0 0.0
        %2210 = vmatpush1.msra.mxu0 0.0
        %2211 = vmatprep.subr.mxu0 0.0
        %2212 = vmatpush1.msra.mxu0 0.0
        %2213 = vmatprep.subr.mxu0 0.0
        %2214 = vmatpush1.msra.mxu0 0.0
        %2215 = vmatprep.subr.mxu0 0.0
        %2216 = vmatpush1.msra.mxu0 0.0
        %2217 = vmatprep.subr.mxu0 0.0
        %2218 = vmatpush1.msra.mxu0 0.0
        %2219 = vmatprep.subr.mxu0 0.0
        %2220 = vmatpush1.msra.mxu0 %v2098
        %2221 = vmatprep.subr.mxu0 0.0
        %2222 = vmatpush2.msra.mxu0 0.0
        %2223 = vmatprep.subr.mxu0 0.0
        %2224 = vmatpush2.msra.mxu0 0.0
        %2225 = vmatprep.subr.mxu0 0.0
        %2226 = vmatpush2.msra.mxu0 0.0
        %2227 = vmatprep.subr.mxu0 0.0
        %2228 = vmatpush2.msra.mxu0 0.0
        %2229 = vmatprep.subr.mxu0 0.0
        %2230 = vmatpush2.msra.mxu0 0.0
        %2231 = vmatprep.subr.mxu0 0.0
        %2232 = vmatpush2.msra.mxu0 0.0
        %2233 = vmatprep.subr.mxu0 0.0
        %2234 = vmatpush2.msra.mxu0 0.0
        %2235 = vmatprep.subr.mxu0 0.0
        %2236 = vmatpush2.msra.mxu0 0.0
        %2237 = vmatprep.subr.mxu0 0.0
        %2238 = vmatpush2.msra.mxu0 0.0
        %2239 = vmatprep.subr.mxu0 0.0
        %2240 = vmatpush2.msra.mxu0 0.0
        %2241 = vmatprep.subr.mxu0 0.0
        %2242 = vmatpush2.msra.mxu0 0.0
        %2243 = vmatprep.subr.mxu0 0.0
        %2244 = vmatpush2.msra.mxu0 0.0
        %2245 = vmatprep.subr.mxu0 0.0
        %2246 = vmatpush2.msra.mxu0 0.0
        %2247 = vmatprep.subr.mxu0 0.0
        %2248 = vmatpush2.msra.mxu0 0.0
        %2249 = vmatprep.subr.mxu0 0.0
        %2250 = vmatpush2.msra.mxu0 0.0
        %2251 = vmatprep.subr.mxu0 0.0
        %2252 = vmatpush2.msra.mxu0 0.0
        %2253 = vmatprep.mubr.f32.mxu0 0.0
        %2254 = vmatmul.mubr.f32.gmra.mxu0 %v2100
        %v2255 = vpop.f32.mrf.mxu0
        %v2256 = vadd.f32 0.0, %v2255
        %v2257 = vpop.f32.mrf.mxu0
        %2258 = vmatprep.mubr.f32.mxu0 0.0
        %2259 = vmatmul.mubr.f32.gmra.mxu0 %v2103
        %v2260 = vpop.f32.mrf.mxu0
        %v2261 = vadd.f32 0.0, %v2260
        %v2262 = vpop.f32.mrf.mxu0
        %2263 = vmatprep.mubr.f32.mxu0 0.0
        %2264 = vmatmul.mubr.f32.gmra.mxu0 %v2106
        %v2265 = vpop.f32.mrf.mxu0
        %v2266 = vadd.f32 0.0, %v2265
        %v2267 = vpop.f32.mrf.mxu0
        %2268 = vmatprep.mubr.f32.mxu0 0.0
        %2269 = vmatmul.mubr.f32.gmra.mxu0 %v2109
        %v2270 = vpop.f32.mrf.mxu0
        %v2271 = vadd.f32 0.0, %v2270
        %v2272 = vpop.f32.mrf.mxu0
        %2273 = vmatprep.mubr.f32.mxu0 0.0
        %2274 = vmatmul.mubr.f32.gmra.mxu0 %v2112
        %v2275 = vpop.f32.mrf.mxu0
        %v2276 = vadd.f32 0.0, %v2275
        %v2277 = vpop.f32.mrf.mxu0
        %2278 = vmatprep.mubr.f32.mxu0 0.0
        %2279 = vmatmul.mubr.f32.gmra.mxu0 %v2115
        %v2280 = vpop.f32.mrf.mxu0
        %v2281 = vadd.f32 0.0, %v2280
        %v2282 = vpop.f32.mrf.mxu0
        %2283 = vmatprep.mubr.f32.mxu0 0.0
        %2284 = vmatmul.mubr.f32.gmra.mxu0 %v2118
        %v2285 = vpop.f32.mrf.mxu0
        %v2286 = vadd.f32 0.0, %v2285
        %v2287 = vpop.f32.mrf.mxu0
        %2288 = vmatprep.mubr.f32.mxu0 0.0
        %2289 = vmatmul.mubr.f32.gmra.mxu0 %v2121
        %v2290 = vpop.f32.mrf.mxu0
        %v2291 = vadd.f32 0.0, %v2290
        %v2292 = vpop.f32.mrf.mxu0
        %2293 = vmatprep.mubr.f32.mxu0 0.0
        %2294 = vmatmul.mubr.f32.gmra.mxu0 %v2124
        %v2295 = vpop.f32.mrf.mxu0
        %v2296 = vadd.f32 0.0, %v2295
        %v2297 = vpop.f32.mrf.mxu0
        %2298 = vmatprep.mubr.f32.mxu0 0.0
        %2299 = vmatmul.mubr.f32.gmra.mxu0 %v2127
        %v2300 = vpop.f32.mrf.mxu0
        %v2301 = vadd.f32 0.0, %v2300
        %v2302 = vpop.f32.mrf.mxu0
        %2303 = vmatprep.mubr.f32.mxu0 0.0
        %2304 = vmatmul.mubr.f32.gmra.mxu0 %v2130
        %v2305 = vpop.f32.mrf.mxu0
        %v2306 = vadd.f32 0.0, %v2305
        %v2307 = vpop.f32.mrf.mxu0
        %2308 = vmatprep.mubr.f32.mxu0 0.0
        %2309 = vmatmul.mubr.f32.gmra.mxu0 %v2133
        %v2310 = vpop.f32.mrf.mxu0
        %v2311 = vadd.f32 0.0, %v2310
        %v2312 = vpop.f32.mrf.mxu0
        %2313 = vmatprep.mubr.f32.mxu0 0.0
        %2314 = vmatmul.mubr.f32.gmra.mxu0 %v2136
        %v2315 = vpop.f32.mrf.mxu0
        %v2316 = vadd.f32 0.0, %v2315
        %v2317 = vpop.f32.mrf.mxu0
        %2318 = vmatprep.mubr.f32.mxu0 0.0
        %2319 = vmatmul.mubr.f32.gmra.mxu0 %v2139
        %v2320 = vpop.f32.mrf.mxu0
        %v2321 = vadd.f32 0.0, %v2320
        %v2322 = vpop.f32.mrf.mxu0
        %2323 = vmatprep.mubr.f32.mxu0 0.0
        %2324 = vmatmul.mubr.f32.gmra.mxu0 %v2142
        %v2325 = vpop.f32.mrf.mxu0
        %v2326 = vadd.f32 0.0, %v2325
        %v2327 = vpop.f32.mrf.mxu0
        %2328 = vmatprep.mubr.f32.mxu0 0.0
        %2329 = vmatmul.mubr.f32.gmra.mxu0 %v2145
        %v2330 = vpop.f32.mrf.mxu0
        %v2331 = vadd.f32 0.0, %v2330
        %v2332 = vpop.f32.mrf.mxu0
        %2333 = vmatprep.mubr.f32.mxu0 0.0
        %2334 = vmatmul.mubr.f32.gmra.mxu0 %v2148
        %v2335 = vpop.f32.mrf.mxu0
        %v2336 = vadd.f32 0.0, %v2335
        %v2337 = vpop.f32.mrf.mxu0
        %2338 = vmatprep.mubr.f32.mxu0 0.0
        %2339 = vmatmul.mubr.f32.gmra.mxu0 %v2151
        %v2340 = vpop.f32.mrf.mxu0
        %v2341 = vadd.f32 0.0, %v2340
        %v2342 = vpop.f32.mrf.mxu0
        %2343 = vmatprep.mubr.f32.mxu0 0.0
        %2344 = vmatmul.mubr.f32.gmra.mxu0 %v2154
        %v2345 = vpop.f32.mrf.mxu0
        %v2346 = vadd.f32 0.0, %v2345
        %v2347 = vpop.f32.mrf.mxu0
        %2348 = vmatprep.mubr.f32.mxu0 0.0
        %2349 = vmatmul.mubr.f32.gmra.mxu0 %v2157
        %v2350 = vpop.f32.mrf.mxu0
        %v2351 = vadd.f32 0.0, %v2350
        %v2352 = vpop.f32.mrf.mxu0
        %2353 = vmatprep.mubr.f32.mxu0 0.0
        %2354 = vmatmul.mubr.f32.gmra.mxu0 %v2160
        %v2355 = vpop.f32.mrf.mxu0
        %v2356 = vadd.f32 0.0, %v2355
        %v2357 = vpop.f32.mrf.mxu0
        %2358 = vmatprep.mubr.f32.mxu0 0.0
        %2359 = vmatmul.mubr.f32.gmra.mxu0 %v2163
        %v2360 = vpop.f32.mrf.mxu0
        %v2361 = vadd.f32 0.0, %v2360
        %v2362 = vpop.f32.mrf.mxu0
        %2363 = vmatprep.mubr.f32.mxu0 0.0
        %2364 = vmatmul.mubr.f32.gmra.mxu0 %v2166
        %v2365 = vpop.f32.mrf.mxu0
        %v2366 = vadd.f32 0.0, %v2365
        %v2367 = vpop.f32.mrf.mxu0
        %2368 = vmatprep.mubr.f32.mxu0 0.0
        %2369 = vmatmul.mubr.f32.gmra.mxu0 %v2169
        %v2370 = vpop.f32.mrf.mxu0
        %v2371 = vadd.f32 0.0, %v2370
        %v2372 = vpop.f32.mrf.mxu0
        %2373 = vmatprep.mubr.f32.mxu0 0.0
        %2374 = vmatmul.mubr.f32.gmra.mxu0 %v2172
        %v2375 = vpop.f32.mrf.mxu0
        %v2376 = vadd.f32 0.0, %v2375
        %v2377 = vpop.f32.mrf.mxu0
        %2378 = vmatprep.mubr.f32.mxu0 0.0
        %2379 = vmatmul.mubr.f32.gmra.mxu0 %v2175
        %v2380 = vpop.f32.mrf.mxu0
        %v2381 = vadd.f32 0.0, %v2380
        %v2382 = vpop.f32.mrf.mxu0
        %2383 = vmatprep.mubr.f32.mxu0 0.0
        %2384 = vmatmul.mubr.f32.gmra.mxu0 %v2178
        %v2385 = vpop.f32.mrf.mxu0
        %v2386 = vadd.f32 0.0, %v2385
        %v2387 = vpop.f32.mrf.mxu0
        %2388 = vmatprep.mubr.f32.mxu0 0.0
        %2389 = vmatmul.mubr.f32.gmra.mxu0 %v2181
        %v2390 = vpop.f32.mrf.mxu0
        %v2391 = vadd.f32 0.0, %v2390
        %v2392 = vpop.f32.mrf.mxu0
        %2393 = vmatprep.mubr.f32.mxu0 0.0
        %2394 = vmatmul.mubr.f32.gmra.mxu0 %v2184
        %v2395 = vpop.f32.mrf.mxu0
        %v2396 = vadd.f32 0.0, %v2395
        %v2397 = vpop.f32.mrf.mxu0
        %2398 = vmatprep.mubr.f32.mxu0 0.0
        %2399 = vmatmul.mubr.f32.gmra.mxu0 %v2187
        %v2400 = vpop.f32.mrf.mxu0
        %v2401 = vadd.f32 0.0, %v2400
        %v2402 = vpop.f32.mrf.mxu0
        %2403 = vdwg.mxu0
        %v2404 = vadd.f32 %v2037, %v2256
        %v2405 = vadd.f32 %v2038, %v2261
        %v2406 = vadd.f32 %v2039, %v2266
        %v2407 = vadd.f32 %v2040, %v2271
        %v2408 = vadd.f32 %v2041, %v2276
        %v2409 = vadd.f32 %v2042, %v2281
        %v2410 = vadd.f32 %v2043, %v2286
        %v2411 = vadd.f32 %v2044, %v2291
        %v2412 = vadd.f32 %v2045, %v2296
        %v2413 = vadd.f32 %v2046, %v2301
        %v2414 = vadd.f32 %v2047, %v2306
        %v2415 = vadd.f32 %v2048, %v2311
        %v2416 = vadd.f32 %v2049, %v2316
        %v2417 = vadd.f32 %v2050, %v2321
        %v2418 = vadd.f32 %v2051, %v2326
        %v2419 = vadd.f32 %v2052, %v2331
        %v2420 = vadd.f32 %v2053, %v2336
        %v2421 = vadd.f32 %v2054, %v2341
        %v2422 = vadd.f32 %v2055, %v2346
        %v2423 = vadd.f32 %v2056, %v2351
        %v2424 = vadd.f32 %v2057, %v2356
        %v2425 = vadd.f32 %v2058, %v2361
        %v2426 = vadd.f32 %v2059, %v2366
        %v2427 = vadd.f32 %v2060, %v2371
        %v2428 = vadd.f32 %v2061, %v2376
        %v2429 = vadd.f32 %v2062, %v2381
        %v2430 = vadd.f32 %v2063, %v2386
        %v2431 = vadd.f32 %v2064, %v2391
        %v2432 = vadd.f32 %v2065, %v2396
        %v2433 = vadd.f32 %v2066, %v2401
        %v2434 = vld [vmem:[%s287 + $0x20] sm:$0xff]
        %v2435 = vld [vmem:[%s287 + $0x28] sm:$0xff]
        %v2436 = vld [vmem:[%s287 + $0x30] sm:$0xff]
        %v2437 = vld [vmem:[%s287 + $0x38] sm:$0xff]
        %v2438 = vld [vmem:[%s287 + $0x40] sm:$0xff]
        %v2439 = vld [vmem:[%s287 + $0x48] sm:$0xff]
        %v2440 = vld [vmem:[%s287 + $0x50] sm:$0xff]
        %v2441 = vld [vmem:[%s287 + $0x58] sm:$0xff]
        %v2442 = vld [vmem:[%s287 + $0x60] sm:$0xff]
        %v2443 = vld [vmem:[%s287 + $0x68] sm:$0xff]
        %v2444 = vld [vmem:[%s287 + $0x70] sm:$0xff]
        %v2445 = vld [vmem:[%s287 + $0x78] sm:$0xff]
        %v2446 = vld [vmem:[%s287 + $0x80] sm:$0xff]
        %v2447 = vld [vmem:[%s287 + $0x88] sm:$0xff]
        %v2448 = vld [vmem:[%s287 + $0x90] sm:$0xff]
        %v2449 = vld [vmem:[%s287 + $0x98] sm:$0xff]
        %v2450 = vld [vmem:[%s287 + $0xa0] sm:$0xff]
        %v2451 = vld [vmem:[%s287 + $0xa8] sm:$0xff]
        %v2452 = vld [vmem:[%s287 + $0xb0] sm:$0xff]
        %v2453 = vld [vmem:[%s287 + $0xb8] sm:$0xff]
        %v2454 = vld [vmem:[%s287 + $0xc0] sm:$0xff]
        %v2455 = vld [vmem:[%s287 + $0xc8] sm:$0xff]
        %v2456 = vld [vmem:[%s287 + $0xd0] sm:$0xff]
        %v2457 = vld [vmem:[%s287 + $0xd8] sm:$0xff]
        %v2458 = vld [vmem:[%s287 + $0xe0] sm:$0xff]
        %v2459 = vld [vmem:[%s287 + $0xe8] sm:$0xff]
        %v2460 = vld [vmem:[%s287 + $0xf0] sm:$0xff]
        %v2461 = vld [vmem:[%s287 + $0xf8] sm:$0xff]
        %v2462 = vld [vmem:[%s287 + $0x100] sm:$0xff]
        %v2463 = vld [vmem:[%s287 + $0x108] sm:$0xff]
        %s2464 = scalar_lea.vmem %s1, 48
        %v2465 = vld [vmem:[%s2464] sm:$0xff]
        %v2467 = vsel %vm355, %v2434, 0
        %v2470 = vsel %vm355, %v2435, 0
        %v2473 = vsel %vm355, %v2436, 0
        %v2476 = vsel %vm355, %v2437, 0
        %v2479 = vsel %vm355, %v2438, 0
        %v2482 = vsel %vm355, %v2439, 0
        %v2485 = vsel %vm355, %v2440, 0
        %v2488 = vsel %vm355, %v2441, 0
        %v2491 = vsel %vm355, %v2442, 0
        %v2494 = vsel %vm355, %v2443, 0
        %v2497 = vsel %vm355, %v2444, 0
        %v2500 = vsel %vm355, %v2445, 0
        %v2503 = vsel %vm355, %v2446, 0
        %v2506 = vsel %vm355, %v2447, 0
        %v2509 = vsel %vm355, %v2448, 0
        %v2512 = vsel %vm355, %v2449, 0
        %v2515 = vsel %vm355, %v2450, 0
        %v2518 = vsel %vm355, %v2451, 0
        %v2521 = vsel %vm355, %v2452, 0
        %v2524 = vsel %vm355, %v2453, 0
        %v2527 = vsel %vm355, %v2454, 0
        %v2530 = vsel %vm355, %v2455, 0
        %v2533 = vsel %vm355, %v2456, 0
        %v2536 = vsel %vm355, %v2457, 0
        %v2539 = vsel %vm355, %v2458, 0
        %v2542 = vsel %vm355, %v2459, 0
        %v2545 = vsel %vm355, %v2460, 0
        %v2548 = vsel %vm355, %v2461, 0
        %v2551 = vsel %vm355, %v2462, 0
        %v2554 = vsel %vm355, %v2463, 0
        %2556 = vmatprep.subr.mxu0 0.0
        %2557 = vmatpush1.msra.mxu0 0.0
        %2558 = vmatprep.subr.mxu0 0.0
        %2559 = vmatpush1.msra.mxu0 0.0
        %2560 = vmatprep.subr.mxu0 0.0
        %2561 = vmatpush1.msra.mxu0 0.0
        %2562 = vmatprep.subr.mxu0 0.0
        %2563 = vmatpush1.msra.mxu0 0.0
        %2564 = vmatprep.subr.mxu0 0.0
        %2565 = vmatpush1.msra.mxu0 0.0
        %2566 = vmatprep.subr.mxu0 0.0
        %2567 = vmatpush1.msra.mxu0 0.0
        %2568 = vmatprep.subr.mxu0 0.0
        %2569 = vmatpush1.msra.mxu0 0.0
        %2570 = vmatprep.subr.mxu0 0.0
        %2571 = vmatpush1.msra.mxu0 0.0
        %2572 = vmatprep.subr.mxu0 0.0
        %2573 = vmatpush1.msra.mxu0 0.0
        %2574 = vmatprep.subr.mxu0 0.0
        %2575 = vmatpush1.msra.mxu0 0.0
        %2576 = vmatprep.subr.mxu0 0.0
        %2577 = vmatpush1.msra.mxu0 0.0
        %2578 = vmatprep.subr.mxu0 0.0
        %2579 = vmatpush1.msra.mxu0 0.0
        %2580 = vmatprep.subr.mxu0 0.0
        %2581 = vmatpush1.msra.mxu0 0.0
        %2582 = vmatprep.subr.mxu0 0.0
        %2583 = vmatpush1.msra.mxu0 0.0
        %2584 = vmatprep.subr.mxu0 0.0
        %2585 = vmatpush1.msra.mxu0 0.0
        %2586 = vmatprep.subr.mxu0 0.0
        %2587 = vmatpush1.msra.mxu0 %v2465
        %2588 = vmatprep.subr.mxu0 0.0
        %2589 = vmatpush2.msra.mxu0 0.0
        %2590 = vmatprep.subr.mxu0 0.0
        %2591 = vmatpush2.msra.mxu0 0.0
        %2592 = vmatprep.subr.mxu0 0.0
        %2593 = vmatpush2.msra.mxu0 0.0
        %2594 = vmatprep.subr.mxu0 0.0
        %2595 = vmatpush2.msra.mxu0 0.0
        %2596 = vmatprep.subr.mxu0 0.0
        %2597 = vmatpush2.msra.mxu0 0.0
        %2598 = vmatprep.subr.mxu0 0.0
        %2599 = vmatpush2.msra.mxu0 0.0
        %2600 = vmatprep.subr.mxu0 0.0
        %2601 = vmatpush2.msra.mxu0 0.0
        %2602 = vmatprep.subr.mxu0 0.0
        %2603 = vmatpush2.msra.mxu0 0.0
        %2604 = vmatprep.subr.mxu0 0.0
        %2605 = vmatpush2.msra.mxu0 0.0
        %2606 = vmatprep.subr.mxu0 0.0
        %2607 = vmatpush2.msra.mxu0 0.0
        %2608 = vmatprep.subr.mxu0 0.0
        %2609 = vmatpush2.msra.mxu0 0.0
        %2610 = vmatprep.subr.mxu0 0.0
        %2611 = vmatpush2.msra.mxu0 0.0
        %2612 = vmatprep.subr.mxu0 0.0
        %2613 = vmatpush2.msra.mxu0 0.0
        %2614 = vmatprep.subr.mxu0 0.0
        %2615 = vmatpush2.msra.mxu0 0.0
        %2616 = vmatprep.subr.mxu0 0.0
        %2617 = vmatpush2.msra.mxu0 0.0
        %2618 = vmatprep.subr.mxu0 0.0
        %2619 = vmatpush2.msra.mxu0 0.0
        %2620 = vmatprep.mubr.f32.mxu0 0.0
        %2621 = vmatmul.mubr.f32.gmra.mxu0 %v2467
        %v2622 = vpop.f32.mrf.mxu0
        %v2623 = vadd.f32 0.0, %v2622
        %v2624 = vpop.f32.mrf.mxu0
        %2625 = vmatprep.mubr.f32.mxu0 0.0
        %2626 = vmatmul.mubr.f32.gmra.mxu0 %v2470
        %v2627 = vpop.f32.mrf.mxu0
        %v2628 = vadd.f32 0.0, %v2627
        %v2629 = vpop.f32.mrf.mxu0
        %2630 = vmatprep.mubr.f32.mxu0 0.0
        %2631 = vmatmul.mubr.f32.gmra.mxu0 %v2473
        %v2632 = vpop.f32.mrf.mxu0
        %v2633 = vadd.f32 0.0, %v2632
        %v2634 = vpop.f32.mrf.mxu0
        %2635 = vmatprep.mubr.f32.mxu0 0.0
        %2636 = vmatmul.mubr.f32.gmra.mxu0 %v2476
        %v2637 = vpop.f32.mrf.mxu0
        %v2638 = vadd.f32 0.0, %v2637
        %v2639 = vpop.f32.mrf.mxu0
        %2640 = vmatprep.mubr.f32.mxu0 0.0
        %2641 = vmatmul.mubr.f32.gmra.mxu0 %v2479
        %v2642 = vpop.f32.mrf.mxu0
        %v2643 = vadd.f32 0.0, %v2642
        %v2644 = vpop.f32.mrf.mxu0
        %2645 = vmatprep.mubr.f32.mxu0 0.0
        %2646 = vmatmul.mubr.f32.gmra.mxu0 %v2482
        %v2647 = vpop.f32.mrf.mxu0
        %v2648 = vadd.f32 0.0, %v2647
        %v2649 = vpop.f32.mrf.mxu0
        %2650 = vmatprep.mubr.f32.mxu0 0.0
        %2651 = vmatmul.mubr.f32.gmra.mxu0 %v2485
        %v2652 = vpop.f32.mrf.mxu0
        %v2653 = vadd.f32 0.0, %v2652
        %v2654 = vpop.f32.mrf.mxu0
        %2655 = vmatprep.mubr.f32.mxu0 0.0
        %2656 = vmatmul.mubr.f32.gmra.mxu0 %v2488
        %v2657 = vpop.f32.mrf.mxu0
        %v2658 = vadd.f32 0.0, %v2657
        %v2659 = vpop.f32.mrf.mxu0
        %2660 = vmatprep.mubr.f32.mxu0 0.0
        %2661 = vmatmul.mubr.f32.gmra.mxu0 %v2491
        %v2662 = vpop.f32.mrf.mxu0
        %v2663 = vadd.f32 0.0, %v2662
        %v2664 = vpop.f32.mrf.mxu0
        %2665 = vmatprep.mubr.f32.mxu0 0.0
        %2666 = vmatmul.mubr.f32.gmra.mxu0 %v2494
        %v2667 = vpop.f32.mrf.mxu0
        %v2668 = vadd.f32 0.0, %v2667
        %v2669 = vpop.f32.mrf.mxu0
        %2670 = vmatprep.mubr.f32.mxu0 0.0
        %2671 = vmatmul.mubr.f32.gmra.mxu0 %v2497
        %v2672 = vpop.f32.mrf.mxu0
        %v2673 = vadd.f32 0.0, %v2672
        %v2674 = vpop.f32.mrf.mxu0
        %2675 = vmatprep.mubr.f32.mxu0 0.0
        %2676 = vmatmul.mubr.f32.gmra.mxu0 %v2500
        %v2677 = vpop.f32.mrf.mxu0
        %v2678 = vadd.f32 0.0, %v2677
        %v2679 = vpop.f32.mrf.mxu0
        %2680 = vmatprep.mubr.f32.mxu0 0.0
        %2681 = vmatmul.mubr.f32.gmra.mxu0 %v2503
        %v2682 = vpop.f32.mrf.mxu0
        %v2683 = vadd.f32 0.0, %v2682
        %v2684 = vpop.f32.mrf.mxu0
        %2685 = vmatprep.mubr.f32.mxu0 0.0
        %2686 = vmatmul.mubr.f32.gmra.mxu0 %v2506
        %v2687 = vpop.f32.mrf.mxu0
        %v2688 = vadd.f32 0.0, %v2687
        %v2689 = vpop.f32.mrf.mxu0
        %2690 = vmatprep.mubr.f32.mxu0 0.0
        %2691 = vmatmul.mubr.f32.gmra.mxu0 %v2509
        %v2692 = vpop.f32.mrf.mxu0
        %v2693 = vadd.f32 0.0, %v2692
        %v2694 = vpop.f32.mrf.mxu0
        %2695 = vmatprep.mubr.f32.mxu0 0.0
        %2696 = vmatmul.mubr.f32.gmra.mxu0 %v2512
        %v2697 = vpop.f32.mrf.mxu0
        %v2698 = vadd.f32 0.0, %v2697
        %v2699 = vpop.f32.mrf.mxu0
        %2700 = vmatprep.mubr.f32.mxu0 0.0
        %2701 = vmatmul.mubr.f32.gmra.mxu0 %v2515
        %v2702 = vpop.f32.mrf.mxu0
        %v2703 = vadd.f32 0.0, %v2702
        %v2704 = vpop.f32.mrf.mxu0
        %2705 = vmatprep.mubr.f32.mxu0 0.0
        %2706 = vmatmul.mubr.f32.gmra.mxu0 %v2518
        %v2707 = vpop.f32.mrf.mxu0
        %v2708 = vadd.f32 0.0, %v2707
        %v2709 = vpop.f32.mrf.mxu0
        %2710 = vmatprep.mubr.f32.mxu0 0.0
        %2711 = vmatmul.mubr.f32.gmra.mxu0 %v2521
        %v2712 = vpop.f32.mrf.mxu0
        %v2713 = vadd.f32 0.0, %v2712
        %v2714 = vpop.f32.mrf.mxu0
        %2715 = vmatprep.mubr.f32.mxu0 0.0
        %2716 = vmatmul.mubr.f32.gmra.mxu0 %v2524
        %v2717 = vpop.f32.mrf.mxu0
        %v2718 = vadd.f32 0.0, %v2717
        %v2719 = vpop.f32.mrf.mxu0
        %2720 = vmatprep.mubr.f32.mxu0 0.0
        %2721 = vmatmul.mubr.f32.gmra.mxu0 %v2527
        %v2722 = vpop.f32.mrf.mxu0
        %v2723 = vadd.f32 0.0, %v2722
        %v2724 = vpop.f32.mrf.mxu0
        %2725 = vmatprep.mubr.f32.mxu0 0.0
        %2726 = vmatmul.mubr.f32.gmra.mxu0 %v2530
        %v2727 = vpop.f32.mrf.mxu0
        %v2728 = vadd.f32 0.0, %v2727
        %v2729 = vpop.f32.mrf.mxu0
        %2730 = vmatprep.mubr.f32.mxu0 0.0
        %2731 = vmatmul.mubr.f32.gmra.mxu0 %v2533
        %v2732 = vpop.f32.mrf.mxu0
        %v2733 = vadd.f32 0.0, %v2732
        %v2734 = vpop.f32.mrf.mxu0
        %2735 = vmatprep.mubr.f32.mxu0 0.0
        %2736 = vmatmul.mubr.f32.gmra.mxu0 %v2536
        %v2737 = vpop.f32.mrf.mxu0
        %v2738 = vadd.f32 0.0, %v2737
        %v2739 = vpop.f32.mrf.mxu0
        %2740 = vmatprep.mubr.f32.mxu0 0.0
        %2741 = vmatmul.mubr.f32.gmra.mxu0 %v2539
        %v2742 = vpop.f32.mrf.mxu0
        %v2743 = vadd.f32 0.0, %v2742
        %v2744 = vpop.f32.mrf.mxu0
        %2745 = vmatprep.mubr.f32.mxu0 0.0
        %2746 = vmatmul.mubr.f32.gmra.mxu0 %v2542
        %v2747 = vpop.f32.mrf.mxu0
        %v2748 = vadd.f32 0.0, %v2747
        %v2749 = vpop.f32.mrf.mxu0
        %2750 = vmatprep.mubr.f32.mxu0 0.0
        %2751 = vmatmul.mubr.f32.gmra.mxu0 %v2545
        %v2752 = vpop.f32.mrf.mxu0
        %v2753 = vadd.f32 0.0, %v2752
        %v2754 = vpop.f32.mrf.mxu0
        %2755 = vmatprep.mubr.f32.mxu0 0.0
        %2756 = vmatmul.mubr.f32.gmra.mxu0 %v2548
        %v2757 = vpop.f32.mrf.mxu0
        %v2758 = vadd.f32 0.0, %v2757
        %v2759 = vpop.f32.mrf.mxu0
        %2760 = vmatprep.mubr.f32.mxu0 0.0
        %2761 = vmatmul.mubr.f32.gmra.mxu0 %v2551
        %v2762 = vpop.f32.mrf.mxu0
        %v2763 = vadd.f32 0.0, %v2762
        %v2764 = vpop.f32.mrf.mxu0
        %2765 = vmatprep.mubr.f32.mxu0 0.0
        %2766 = vmatmul.mubr.f32.gmra.mxu0 %v2554
        %v2767 = vpop.f32.mrf.mxu0
        %v2768 = vadd.f32 0.0, %v2767
        %v2769 = vpop.f32.mrf.mxu0
        %2770 = vdwg.mxu0
        %v2771 = vadd.f32 %v2404, %v2623
        %v2772 = vadd.f32 %v2405, %v2628
        %v2773 = vadd.f32 %v2406, %v2633
        %v2774 = vadd.f32 %v2407, %v2638
        %v2775 = vadd.f32 %v2408, %v2643
        %v2776 = vadd.f32 %v2409, %v2648
        %v2777 = vadd.f32 %v2410, %v2653
        %v2778 = vadd.f32 %v2411, %v2658
        %v2779 = vadd.f32 %v2412, %v2663
        %v2780 = vadd.f32 %v2413, %v2668
        %v2781 = vadd.f32 %v2414, %v2673
        %v2782 = vadd.f32 %v2415, %v2678
        %v2783 = vadd.f32 %v2416, %v2683
        %v2784 = vadd.f32 %v2417, %v2688
        %v2785 = vadd.f32 %v2418, %v2693
        %v2786 = vadd.f32 %v2419, %v2698
        %v2787 = vadd.f32 %v2420, %v2703
        %v2788 = vadd.f32 %v2421, %v2708
        %v2789 = vadd.f32 %v2422, %v2713
        %v2790 = vadd.f32 %v2423, %v2718
        %v2791 = vadd.f32 %v2424, %v2723
        %v2792 = vadd.f32 %v2425, %v2728
        %v2793 = vadd.f32 %v2426, %v2733
        %v2794 = vadd.f32 %v2427, %v2738
        %v2795 = vadd.f32 %v2428, %v2743
        %v2796 = vadd.f32 %v2429, %v2748
        %v2797 = vadd.f32 %v2430, %v2753
        %v2798 = vadd.f32 %v2431, %v2758
        %v2799 = vadd.f32 %v2432, %v2763
        %v2800 = vadd.f32 %v2433, %v2768
        %v2801 = vld [vmem:[%s287 + $0x21] sm:$0xff]
        %v2802 = vld [vmem:[%s287 + $0x29] sm:$0xff]
        %v2803 = vld [vmem:[%s287 + $0x31] sm:$0xff]
        %v2804 = vld [vmem:[%s287 + $0x39] sm:$0xff]
        %v2805 = vld [vmem:[%s287 + $0x41] sm:$0xff]
        %v2806 = vld [vmem:[%s287 + $0x49] sm:$0xff]
        %v2807 = vld [vmem:[%s287 + $0x51] sm:$0xff]
        %v2808 = vld [vmem:[%s287 + $0x59] sm:$0xff]
        %v2809 = vld [vmem:[%s287 + $0x61] sm:$0xff]
        %v2810 = vld [vmem:[%s287 + $0x69] sm:$0xff]
        %v2811 = vld [vmem:[%s287 + $0x71] sm:$0xff]
        %v2812 = vld [vmem:[%s287 + $0x79] sm:$0xff]
        %v2813 = vld [vmem:[%s287 + $0x81] sm:$0xff]
        %v2814 = vld [vmem:[%s287 + $0x89] sm:$0xff]
        %v2815 = vld [vmem:[%s287 + $0x91] sm:$0xff]
        %v2816 = vld [vmem:[%s287 + $0x99] sm:$0xff]
        %v2817 = vld [vmem:[%s287 + $0xa1] sm:$0xff]
        %v2818 = vld [vmem:[%s287 + $0xa9] sm:$0xff]
        %v2819 = vld [vmem:[%s287 + $0xb1] sm:$0xff]
        %v2820 = vld [vmem:[%s287 + $0xb9] sm:$0xff]
        %v2821 = vld [vmem:[%s287 + $0xc1] sm:$0xff]
        %v2822 = vld [vmem:[%s287 + $0xc9] sm:$0xff]
        %v2823 = vld [vmem:[%s287 + $0xd1] sm:$0xff]
        %v2824 = vld [vmem:[%s287 + $0xd9] sm:$0xff]
        %v2825 = vld [vmem:[%s287 + $0xe1] sm:$0xff]
        %v2826 = vld [vmem:[%s287 + $0xe9] sm:$0xff]
        %v2827 = vld [vmem:[%s287 + $0xf1] sm:$0xff]
        %v2828 = vld [vmem:[%s287 + $0xf9] sm:$0xff]
        %v2829 = vld [vmem:[%s287 + $0x101] sm:$0xff]
        %v2830 = vld [vmem:[%s287 + $0x109] sm:$0xff]
        %s2831 = scalar_lea.vmem %s1, 56
        %v2832 = vld [vmem:[%s2831] sm:$0xff]
        %v2834 = vsel %vm355, %v2801, 0
        %v2837 = vsel %vm355, %v2802, 0
        %v2840 = vsel %vm355, %v2803, 0
        %v2843 = vsel %vm355, %v2804, 0
        %v2846 = vsel %vm355, %v2805, 0
        %v2849 = vsel %vm355, %v2806, 0
        %v2852 = vsel %vm355, %v2807, 0
        %v2855 = vsel %vm355, %v2808, 0
        %v2858 = vsel %vm355, %v2809, 0
        %v2861 = vsel %vm355, %v2810, 0
        %v2864 = vsel %vm355, %v2811, 0
        %v2867 = vsel %vm355, %v2812, 0
        %v2870 = vsel %vm355, %v2813, 0
        %v2873 = vsel %vm355, %v2814, 0
        %v2876 = vsel %vm355, %v2815, 0
        %v2879 = vsel %vm355, %v2816, 0
        %v2882 = vsel %vm355, %v2817, 0
        %v2885 = vsel %vm355, %v2818, 0
        %v2888 = vsel %vm355, %v2819, 0
        %v2891 = vsel %vm355, %v2820, 0
        %v2894 = vsel %vm355, %v2821, 0
        %v2897 = vsel %vm355, %v2822, 0
        %v2900 = vsel %vm355, %v2823, 0
        %v2903 = vsel %vm355, %v2824, 0
        %v2906 = vsel %vm355, %v2825, 0
        %v2909 = vsel %vm355, %v2826, 0
        %v2912 = vsel %vm355, %v2827, 0
        %v2915 = vsel %vm355, %v2828, 0
        %v2918 = vsel %vm355, %v2829, 0
        %v2921 = vsel %vm355, %v2830, 0
        %2923 = vmatprep.subr.mxu0 0.0
        %2924 = vmatpush1.msra.mxu0 0.0
        %2925 = vmatprep.subr.mxu0 0.0
        %2926 = vmatpush1.msra.mxu0 0.0
        %2927 = vmatprep.subr.mxu0 0.0
        %2928 = vmatpush1.msra.mxu0 0.0
        %2929 = vmatprep.subr.mxu0 0.0
        %2930 = vmatpush1.msra.mxu0 0.0
        %2931 = vmatprep.subr.mxu0 0.0
        %2932 = vmatpush1.msra.mxu0 0.0
        %2933 = vmatprep.subr.mxu0 0.0
        %2934 = vmatpush1.msra.mxu0 0.0
        %2935 = vmatprep.subr.mxu0 0.0
        %2936 = vmatpush1.msra.mxu0 0.0
        %2937 = vmatprep.subr.mxu0 0.0
        %2938 = vmatpush1.msra.mxu0 0.0
        %2939 = vmatprep.subr.mxu0 0.0
        %2940 = vmatpush1.msra.mxu0 0.0
        %2941 = vmatprep.subr.mxu0 0.0
        %2942 = vmatpush1.msra.mxu0 0.0
        %2943 = vmatprep.subr.mxu0 0.0
        %2944 = vmatpush1.msra.mxu0 0.0
        %2945 = vmatprep.subr.mxu0 0.0
        %2946 = vmatpush1.msra.mxu0 0.0
        %2947 = vmatprep.subr.mxu0 0.0
        %2948 = vmatpush1.msra.mxu0 0.0
        %2949 = vmatprep.subr.mxu0 0.0
        %2950 = vmatpush1.msra.mxu0 0.0
        %2951 = vmatprep.subr.mxu0 0.0
        %2952 = vmatpush1.msra.mxu0 0.0
        %2953 = vmatprep.subr.mxu0 0.0
        %2954 = vmatpush1.msra.mxu0 %v2832
        %2955 = vmatprep.subr.mxu0 0.0
        %2956 = vmatpush2.msra.mxu0 0.0
        %2957 = vmatprep.subr.mxu0 0.0
        %2958 = vmatpush2.msra.mxu0 0.0
        %2959 = vmatprep.subr.mxu0 0.0
        %2960 = vmatpush2.msra.mxu0 0.0
        %2961 = vmatprep.subr.mxu0 0.0
        %2962 = vmatpush2.msra.mxu0 0.0
        %2963 = vmatprep.subr.mxu0 0.0
        %2964 = vmatpush2.msra.mxu0 0.0
        %2965 = vmatprep.subr.mxu0 0.0
        %2966 = vmatpush2.msra.mxu0 0.0
        %2967 = vmatprep.subr.mxu0 0.0
        %2968 = vmatpush2.msra.mxu0 0.0
        %2969 = vmatprep.subr.mxu0 0.0
        %2970 = vmatpush2.msra.mxu0 0.0
        %2971 = vmatprep.subr.mxu0 0.0
        %2972 = vmatpush2.msra.mxu0 0.0
        %2973 = vmatprep.subr.mxu0 0.0
        %2974 = vmatpush2.msra.mxu0 0.0
        %2975 = vmatprep.subr.mxu0 0.0
        %2976 = vmatpush2.msra.mxu0 0.0
        %2977 = vmatprep.subr.mxu0 0.0
        %2978 = vmatpush2.msra.mxu0 0.0
        %2979 = vmatprep.subr.mxu0 0.0
        %2980 = vmatpush2.msra.mxu0 0.0
        %2981 = vmatprep.subr.mxu0 0.0
        %2982 = vmatpush2.msra.mxu0 0.0
        %2983 = vmatprep.subr.mxu0 0.0
        %2984 = vmatpush2.msra.mxu0 0.0
        %2985 = vmatprep.subr.mxu0 0.0
        %2986 = vmatpush2.msra.mxu0 0.0
        %2987 = vmatprep.mubr.f32.mxu0 0.0
        %2988 = vmatmul.mubr.f32.gmra.mxu0 %v2834
        %v2989 = vpop.f32.mrf.mxu0
        %v2990 = vadd.f32 0.0, %v2989
        %v2991 = vpop.f32.mrf.mxu0
        %2992 = vmatprep.mubr.f32.mxu0 0.0
        %2993 = vmatmul.mubr.f32.gmra.mxu0 %v2837
        %v2994 = vpop.f32.mrf.mxu0
        %v2995 = vadd.f32 0.0, %v2994
        %v2996 = vpop.f32.mrf.mxu0
        %2997 = vmatprep.mubr.f32.mxu0 0.0
        %2998 = vmatmul.mubr.f32.gmra.mxu0 %v2840
        %v2999 = vpop.f32.mrf.mxu0
        %v3000 = vadd.f32 0.0, %v2999
        %v3001 = vpop.f32.mrf.mxu0
        %3002 = vmatprep.mubr.f32.mxu0 0.0
        %3003 = vmatmul.mubr.f32.gmra.mxu0 %v2843
        %v3004 = vpop.f32.mrf.mxu0
        %v3005 = vadd.f32 0.0, %v3004
        %v3006 = vpop.f32.mrf.mxu0
        %3007 = vmatprep.mubr.f32.mxu0 0.0
        %3008 = vmatmul.mubr.f32.gmra.mxu0 %v2846
        %v3009 = vpop.f32.mrf.mxu0
        %v3010 = vadd.f32 0.0, %v3009
        %v3011 = vpop.f32.mrf.mxu0
        %3012 = vmatprep.mubr.f32.mxu0 0.0
        %3013 = vmatmul.mubr.f32.gmra.mxu0 %v2849
        %v3014 = vpop.f32.mrf.mxu0
        %v3015 = vadd.f32 0.0, %v3014
        %v3016 = vpop.f32.mrf.mxu0
        %3017 = vmatprep.mubr.f32.mxu0 0.0
        %3018 = vmatmul.mubr.f32.gmra.mxu0 %v2852
        %v3019 = vpop.f32.mrf.mxu0
        %v3020 = vadd.f32 0.0, %v3019
        %v3021 = vpop.f32.mrf.mxu0
        %3022 = vmatprep.mubr.f32.mxu0 0.0
        %3023 = vmatmul.mubr.f32.gmra.mxu0 %v2855
        %v3024 = vpop.f32.mrf.mxu0
        %v3025 = vadd.f32 0.0, %v3024
        %v3026 = vpop.f32.mrf.mxu0
        %3027 = vmatprep.mubr.f32.mxu0 0.0
        %3028 = vmatmul.mubr.f32.gmra.mxu0 %v2858
        %v3029 = vpop.f32.mrf.mxu0
        %v3030 = vadd.f32 0.0, %v3029
        %v3031 = vpop.f32.mrf.mxu0
        %3032 = vmatprep.mubr.f32.mxu0 0.0
        %3033 = vmatmul.mubr.f32.gmra.mxu0 %v2861
        %v3034 = vpop.f32.mrf.mxu0
        %v3035 = vadd.f32 0.0, %v3034
        %v3036 = vpop.f32.mrf.mxu0
        %3037 = vmatprep.mubr.f32.mxu0 0.0
        %3038 = vmatmul.mubr.f32.gmra.mxu0 %v2864
        %v3039 = vpop.f32.mrf.mxu0
        %v3040 = vadd.f32 0.0, %v3039
        %v3041 = vpop.f32.mrf.mxu0
        %3042 = vmatprep.mubr.f32.mxu0 0.0
        %3043 = vmatmul.mubr.f32.gmra.mxu0 %v2867
        %v3044 = vpop.f32.mrf.mxu0
        %v3045 = vadd.f32 0.0, %v3044
        %v3046 = vpop.f32.mrf.mxu0
        %3047 = vmatprep.mubr.f32.mxu0 0.0
        %3048 = vmatmul.mubr.f32.gmra.mxu0 %v2870
        %v3049 = vpop.f32.mrf.mxu0
        %v3050 = vadd.f32 0.0, %v3049
        %v3051 = vpop.f32.mrf.mxu0
        %3052 = vmatprep.mubr.f32.mxu0 0.0
        %3053 = vmatmul.mubr.f32.gmra.mxu0 %v2873
        %v3054 = vpop.f32.mrf.mxu0
        %v3055 = vadd.f32 0.0, %v3054
        %v3056 = vpop.f32.mrf.mxu0
        %3057 = vmatprep.mubr.f32.mxu0 0.0
        %3058 = vmatmul.mubr.f32.gmra.mxu0 %v2876
        %v3059 = vpop.f32.mrf.mxu0
        %v3060 = vadd.f32 0.0, %v3059
        %v3061 = vpop.f32.mrf.mxu0
        %3062 = vmatprep.mubr.f32.mxu0 0.0
        %3063 = vmatmul.mubr.f32.gmra.mxu0 %v2879
        %v3064 = vpop.f32.mrf.mxu0
        %v3065 = vadd.f32 0.0, %v3064
        %v3066 = vpop.f32.mrf.mxu0
        %3067 = vmatprep.mubr.f32.mxu0 0.0
        %3068 = vmatmul.mubr.f32.gmra.mxu0 %v2882
        %v3069 = vpop.f32.mrf.mxu0
        %v3070 = vadd.f32 0.0, %v3069
        %v3071 = vpop.f32.mrf.mxu0
        %3072 = vmatprep.mubr.f32.mxu0 0.0
        %3073 = vmatmul.mubr.f32.gmra.mxu0 %v2885
        %v3074 = vpop.f32.mrf.mxu0
        %v3075 = vadd.f32 0.0, %v3074
        %v3076 = vpop.f32.mrf.mxu0
        %3077 = vmatprep.mubr.f32.mxu0 0.0
        %3078 = vmatmul.mubr.f32.gmra.mxu0 %v2888
        %v3079 = vpop.f32.mrf.mxu0
        %v3080 = vadd.f32 0.0, %v3079
        %v3081 = vpop.f32.mrf.mxu0
        %3082 = vmatprep.mubr.f32.mxu0 0.0
        %3083 = vmatmul.mubr.f32.gmra.mxu0 %v2891
        %v3084 = vpop.f32.mrf.mxu0
        %v3085 = vadd.f32 0.0, %v3084
        %v3086 = vpop.f32.mrf.mxu0
        %3087 = vmatprep.mubr.f32.mxu0 0.0
        %3088 = vmatmul.mubr.f32.gmra.mxu0 %v2894
        %v3089 = vpop.f32.mrf.mxu0
        %v3090 = vadd.f32 0.0, %v3089
        %v3091 = vpop.f32.mrf.mxu0
        %3092 = vmatprep.mubr.f32.mxu0 0.0
        %3093 = vmatmul.mubr.f32.gmra.mxu0 %v2897
        %v3094 = vpop.f32.mrf.mxu0
        %v3095 = vadd.f32 0.0, %v3094
        %v3096 = vpop.f32.mrf.mxu0
        %3097 = vmatprep.mubr.f32.mxu0 0.0
        %3098 = vmatmul.mubr.f32.gmra.mxu0 %v2900
        %v3099 = vpop.f32.mrf.mxu0
        %v3100 = vadd.f32 0.0, %v3099
        %v3101 = vpop.f32.mrf.mxu0
        %3102 = vmatprep.mubr.f32.mxu0 0.0
        %3103 = vmatmul.mubr.f32.gmra.mxu0 %v2903
        %v3104 = vpop.f32.mrf.mxu0
        %v3105 = vadd.f32 0.0, %v3104
        %v3106 = vpop.f32.mrf.mxu0
        %3107 = vmatprep.mubr.f32.mxu0 0.0
        %3108 = vmatmul.mubr.f32.gmra.mxu0 %v2906
        %v3109 = vpop.f32.mrf.mxu0
        %v3110 = vadd.f32 0.0, %v3109
        %v3111 = vpop.f32.mrf.mxu0
        %3112 = vmatprep.mubr.f32.mxu0 0.0
        %3113 = vmatmul.mubr.f32.gmra.mxu0 %v2909
        %v3114 = vpop.f32.mrf.mxu0
        %v3115 = vadd.f32 0.0, %v3114
        %v3116 = vpop.f32.mrf.mxu0
        %3117 = vmatprep.mubr.f32.mxu0 0.0
        %3118 = vmatmul.mubr.f32.gmra.mxu0 %v2912
        %v3119 = vpop.f32.mrf.mxu0
        %v3120 = vadd.f32 0.0, %v3119
        %v3121 = vpop.f32.mrf.mxu0
        %3122 = vmatprep.mubr.f32.mxu0 0.0
        %3123 = vmatmul.mubr.f32.gmra.mxu0 %v2915
        %v3124 = vpop.f32.mrf.mxu0
        %v3125 = vadd.f32 0.0, %v3124
        %v3126 = vpop.f32.mrf.mxu0
        %3127 = vmatprep.mubr.f32.mxu0 0.0
        %3128 = vmatmul.mubr.f32.gmra.mxu0 %v2918
        %v3129 = vpop.f32.mrf.mxu0
        %v3130 = vadd.f32 0.0, %v3129
        %v3131 = vpop.f32.mrf.mxu0
        %3132 = vmatprep.mubr.f32.mxu0 0.0
        %3133 = vmatmul.mubr.f32.gmra.mxu0 %v2921
        %v3134 = vpop.f32.mrf.mxu0
        %v3135 = vadd.f32 0.0, %v3134
        %v3136 = vpop.f32.mrf.mxu0
        %3137 = vdwg.mxu0
        %v3138 = vadd.f32 %v2771, %v2990
        %v3139 = vadd.f32 %v2772, %v2995
        %v3140 = vadd.f32 %v2773, %v3000
        %v3141 = vadd.f32 %v2774, %v3005
        %v3142 = vadd.f32 %v2775, %v3010
        %v3143 = vadd.f32 %v2776, %v3015
        %v3144 = vadd.f32 %v2777, %v3020
        %v3145 = vadd.f32 %v2778, %v3025
        %v3146 = vadd.f32 %v2779, %v3030
        %v3147 = vadd.f32 %v2780, %v3035
        %v3148 = vadd.f32 %v2781, %v3040
        %v3149 = vadd.f32 %v2782, %v3045
        %v3150 = vadd.f32 %v2783, %v3050
        %v3151 = vadd.f32 %v2784, %v3055
        %v3152 = vadd.f32 %v2785, %v3060
        %v3153 = vadd.f32 %v2786, %v3065
        %v3154 = vadd.f32 %v2787, %v3070
        %v3155 = vadd.f32 %v2788, %v3075
        %v3156 = vadd.f32 %v2789, %v3080
        %v3157 = vadd.f32 %v2790, %v3085
        %v3158 = vadd.f32 %v2791, %v3090
        %v3159 = vadd.f32 %v2792, %v3095
        %v3160 = vadd.f32 %v2793, %v3100
        %v3161 = vadd.f32 %v2794, %v3105
        %v3162 = vadd.f32 %v2795, %v3110
        %v3163 = vadd.f32 %v2796, %v3115
        %v3164 = vadd.f32 %v2797, %v3120
        %v3165 = vadd.f32 %v2798, %v3125
        %v3166 = vadd.f32 %v2799, %v3130
        %v3167 = vadd.f32 %v2800, %v3135
        %v3168 = vld [vmem:[%s287 + $0x22] sm:$0xff]
        %v3169 = vld [vmem:[%s287 + $0x2a] sm:$0xff]
        %v3170 = vld [vmem:[%s287 + $0x32] sm:$0xff]
        %v3171 = vld [vmem:[%s287 + $0x3a] sm:$0xff]
        %v3172 = vld [vmem:[%s287 + $0x42] sm:$0xff]
        %v3173 = vld [vmem:[%s287 + $0x4a] sm:$0xff]
        %v3174 = vld [vmem:[%s287 + $0x52] sm:$0xff]
        %v3175 = vld [vmem:[%s287 + $0x5a] sm:$0xff]
        %v3176 = vld [vmem:[%s287 + $0x62] sm:$0xff]
        %v3177 = vld [vmem:[%s287 + $0x6a] sm:$0xff]
        %v3178 = vld [vmem:[%s287 + $0x72] sm:$0xff]
        %v3179 = vld [vmem:[%s287 + $0x7a] sm:$0xff]
        %v3180 = vld [vmem:[%s287 + $0x82] sm:$0xff]
        %v3181 = vld [vmem:[%s287 + $0x8a] sm:$0xff]
        %v3182 = vld [vmem:[%s287 + $0x92] sm:$0xff]
        %v3183 = vld [vmem:[%s287 + $0x9a] sm:$0xff]
        %v3184 = vld [vmem:[%s287 + $0xa2] sm:$0xff]
        %v3185 = vld [vmem:[%s287 + $0xaa] sm:$0xff]
        %v3186 = vld [vmem:[%s287 + $0xb2] sm:$0xff]
        %v3187 = vld [vmem:[%s287 + $0xba] sm:$0xff]
        %v3188 = vld [vmem:[%s287 + $0xc2] sm:$0xff]
        %v3189 = vld [vmem:[%s287 + $0xca] sm:$0xff]
        %v3190 = vld [vmem:[%s287 + $0xd2] sm:$0xff]
        %v3191 = vld [vmem:[%s287 + $0xda] sm:$0xff]
        %v3192 = vld [vmem:[%s287 + $0xe2] sm:$0xff]
        %v3193 = vld [vmem:[%s287 + $0xea] sm:$0xff]
        %v3194 = vld [vmem:[%s287 + $0xf2] sm:$0xff]
        %v3195 = vld [vmem:[%s287 + $0xfa] sm:$0xff]
        %v3196 = vld [vmem:[%s287 + $0x102] sm:$0xff]
        %v3197 = vld [vmem:[%s287 + $0x10a] sm:$0xff]
        %s3198 = scalar_lea.vmem %s1, 64
        %v3199 = vld [vmem:[%s3198] sm:$0xff]
        %v3201 = vsel %vm355, %v3168, 0
        %v3204 = vsel %vm355, %v3169, 0
        %v3207 = vsel %vm355, %v3170, 0
        %v3210 = vsel %vm355, %v3171, 0
        %v3213 = vsel %vm355, %v3172, 0
        %v3216 = vsel %vm355, %v3173, 0
        %v3219 = vsel %vm355, %v3174, 0
        %v3222 = vsel %vm355, %v3175, 0
        %v3225 = vsel %vm355, %v3176, 0
        %v3228 = vsel %vm355, %v3177, 0
        %v3231 = vsel %vm355, %v3178, 0
        %v3234 = vsel %vm355, %v3179, 0
        %v3237 = vsel %vm355, %v3180, 0
        %v3240 = vsel %vm355, %v3181, 0
        %v3243 = vsel %vm355, %v3182, 0
        %v3246 = vsel %vm355, %v3183, 0
        %v3249 = vsel %vm355, %v3184, 0
        %v3252 = vsel %vm355, %v3185, 0
        %v3255 = vsel %vm355, %v3186, 0
        %v3258 = vsel %vm355, %v3187, 0
        %v3261 = vsel %vm355, %v3188, 0
        %v3264 = vsel %vm355, %v3189, 0
        %v3267 = vsel %vm355, %v3190, 0
        %v3270 = vsel %vm355, %v3191, 0
        %v3273 = vsel %vm355, %v3192, 0
        %v3276 = vsel %vm355, %v3193, 0
        %v3279 = vsel %vm355, %v3194, 0
        %v3282 = vsel %vm355, %v3195, 0
        %v3285 = vsel %vm355, %v3196, 0
        %v3288 = vsel %vm355, %v3197, 0
        %3290 = vmatprep.subr.mxu0 0.0
        %3291 = vmatpush1.msra.mxu0 0.0
        %3292 = vmatprep.subr.mxu0 0.0
        %3293 = vmatpush1.msra.mxu0 0.0
        %3294 = vmatprep.subr.mxu0 0.0
        %3295 = vmatpush1.msra.mxu0 0.0
        %3296 = vmatprep.subr.mxu0 0.0
        %3297 = vmatpush1.msra.mxu0 0.0
        %3298 = vmatprep.subr.mxu0 0.0
        %3299 = vmatpush1.msra.mxu0 0.0
        %3300 = vmatprep.subr.mxu0 0.0
        %3301 = vmatpush1.msra.mxu0 0.0
        %3302 = vmatprep.subr.mxu0 0.0
        %3303 = vmatpush1.msra.mxu0 0.0
        %3304 = vmatprep.subr.mxu0 0.0
        %3305 = vmatpush1.msra.mxu0 0.0
        %3306 = vmatprep.subr.mxu0 0.0
        %3307 = vmatpush1.msra.mxu0 0.0
        %3308 = vmatprep.subr.mxu0 0.0
        %3309 = vmatpush1.msra.mxu0 0.0
        %3310 = vmatprep.subr.mxu0 0.0
        %3311 = vmatpush1.msra.mxu0 0.0
        %3312 = vmatprep.subr.mxu0 0.0
        %3313 = vmatpush1.msra.mxu0 0.0
        %3314 = vmatprep.subr.mxu0 0.0
        %3315 = vmatpush1.msra.mxu0 0.0
        %3316 = vmatprep.subr.mxu0 0.0
        %3317 = vmatpush1.msra.mxu0 0.0
        %3318 = vmatprep.subr.mxu0 0.0
        %3319 = vmatpush1.msra.mxu0 0.0
        %3320 = vmatprep.subr.mxu0 0.0
        %3321 = vmatpush1.msra.mxu0 %v3199
        %3322 = vmatprep.subr.mxu0 0.0
        %3323 = vmatpush2.msra.mxu0 0.0
        %3324 = vmatprep.subr.mxu0 0.0
        %3325 = vmatpush2.msra.mxu0 0.0
        %3326 = vmatprep.subr.mxu0 0.0
        %3327 = vmatpush2.msra.mxu0 0.0
        %3328 = vmatprep.subr.mxu0 0.0
        %3329 = vmatpush2.msra.mxu0 0.0
        %3330 = vmatprep.subr.mxu0 0.0
        %3331 = vmatpush2.msra.mxu0 0.0
        %3332 = vmatprep.subr.mxu0 0.0
        %3333 = vmatpush2.msra.mxu0 0.0
        %3334 = vmatprep.subr.mxu0 0.0
        %3335 = vmatpush2.msra.mxu0 0.0
        %3336 = vmatprep.subr.mxu0 0.0
        %3337 = vmatpush2.msra.mxu0 0.0
        %3338 = vmatprep.subr.mxu0 0.0
        %3339 = vmatpush2.msra.mxu0 0.0
        %3340 = vmatprep.subr.mxu0 0.0
        %3341 = vmatpush2.msra.mxu0 0.0
        %3342 = vmatprep.subr.mxu0 0.0
        %3343 = vmatpush2.msra.mxu0 0.0
        %3344 = vmatprep.subr.mxu0 0.0
        %3345 = vmatpush2.msra.mxu0 0.0
        %3346 = vmatprep.subr.mxu0 0.0
        %3347 = vmatpush2.msra.mxu0 0.0
        %3348 = vmatprep.subr.mxu0 0.0
        %3349 = vmatpush2.msra.mxu0 0.0
        %3350 = vmatprep.subr.mxu0 0.0
        %3351 = vmatpush2.msra.mxu0 0.0
        %3352 = vmatprep.subr.mxu0 0.0
        %3353 = vmatpush2.msra.mxu0 0.0
        %3354 = vmatprep.mubr.f32.mxu0 0.0
        %3355 = vmatmul.mubr.f32.gmra.mxu0 %v3201
        %v3356 = vpop.f32.mrf.mxu0
        %v3357 = vadd.f32 0.0, %v3356
        %v3358 = vpop.f32.mrf.mxu0
        %3359 = vmatprep.mubr.f32.mxu0 0.0
        %3360 = vmatmul.mubr.f32.gmra.mxu0 %v3204
        %v3361 = vpop.f32.mrf.mxu0
        %v3362 = vadd.f32 0.0, %v3361
        %v3363 = vpop.f32.mrf.mxu0
        %3364 = vmatprep.mubr.f32.mxu0 0.0
        %3365 = vmatmul.mubr.f32.gmra.mxu0 %v3207
        %v3366 = vpop.f32.mrf.mxu0
        %v3367 = vadd.f32 0.0, %v3366
        %v3368 = vpop.f32.mrf.mxu0
        %3369 = vmatprep.mubr.f32.mxu0 0.0
        %3370 = vmatmul.mubr.f32.gmra.mxu0 %v3210
        %v3371 = vpop.f32.mrf.mxu0
        %v3372 = vadd.f32 0.0, %v3371
        %v3373 = vpop.f32.mrf.mxu0
        %3374 = vmatprep.mubr.f32.mxu0 0.0
        %3375 = vmatmul.mubr.f32.gmra.mxu0 %v3213
        %v3376 = vpop.f32.mrf.mxu0
        %v3377 = vadd.f32 0.0, %v3376
        %v3378 = vpop.f32.mrf.mxu0
        %3379 = vmatprep.mubr.f32.mxu0 0.0
        %3380 = vmatmul.mubr.f32.gmra.mxu0 %v3216
        %v3381 = vpop.f32.mrf.mxu0
        %v3382 = vadd.f32 0.0, %v3381
        %v3383 = vpop.f32.mrf.mxu0
        %3384 = vmatprep.mubr.f32.mxu0 0.0
        %3385 = vmatmul.mubr.f32.gmra.mxu0 %v3219
        %v3386 = vpop.f32.mrf.mxu0
        %v3387 = vadd.f32 0.0, %v3386
        %v3388 = vpop.f32.mrf.mxu0
        %3389 = vmatprep.mubr.f32.mxu0 0.0
        %3390 = vmatmul.mubr.f32.gmra.mxu0 %v3222
        %v3391 = vpop.f32.mrf.mxu0
        %v3392 = vadd.f32 0.0, %v3391
        %v3393 = vpop.f32.mrf.mxu0
        %3394 = vmatprep.mubr.f32.mxu0 0.0
        %3395 = vmatmul.mubr.f32.gmra.mxu0 %v3225
        %v3396 = vpop.f32.mrf.mxu0
        %v3397 = vadd.f32 0.0, %v3396
        %v3398 = vpop.f32.mrf.mxu0
        %3399 = vmatprep.mubr.f32.mxu0 0.0
        %3400 = vmatmul.mubr.f32.gmra.mxu0 %v3228
        %v3401 = vpop.f32.mrf.mxu0
        %v3402 = vadd.f32 0.0, %v3401
        %v3403 = vpop.f32.mrf.mxu0
        %3404 = vmatprep.mubr.f32.mxu0 0.0
        %3405 = vmatmul.mubr.f32.gmra.mxu0 %v3231
        %v3406 = vpop.f32.mrf.mxu0
        %v3407 = vadd.f32 0.0, %v3406
        %v3408 = vpop.f32.mrf.mxu0
        %3409 = vmatprep.mubr.f32.mxu0 0.0
        %3410 = vmatmul.mubr.f32.gmra.mxu0 %v3234
        %v3411 = vpop.f32.mrf.mxu0
        %v3412 = vadd.f32 0.0, %v3411
        %v3413 = vpop.f32.mrf.mxu0
        %3414 = vmatprep.mubr.f32.mxu0 0.0
        %3415 = vmatmul.mubr.f32.gmra.mxu0 %v3237
        %v3416 = vpop.f32.mrf.mxu0
        %v3417 = vadd.f32 0.0, %v3416
        %v3418 = vpop.f32.mrf.mxu0
        %3419 = vmatprep.mubr.f32.mxu0 0.0
        %3420 = vmatmul.mubr.f32.gmra.mxu0 %v3240
        %v3421 = vpop.f32.mrf.mxu0
        %v3422 = vadd.f32 0.0, %v3421
        %v3423 = vpop.f32.mrf.mxu0
        %3424 = vmatprep.mubr.f32.mxu0 0.0
        %3425 = vmatmul.mubr.f32.gmra.mxu0 %v3243
        %v3426 = vpop.f32.mrf.mxu0
        %v3427 = vadd.f32 0.0, %v3426
        %v3428 = vpop.f32.mrf.mxu0
        %3429 = vmatprep.mubr.f32.mxu0 0.0
        %3430 = vmatmul.mubr.f32.gmra.mxu0 %v3246
        %v3431 = vpop.f32.mrf.mxu0
        %v3432 = vadd.f32 0.0, %v3431
        %v3433 = vpop.f32.mrf.mxu0
        %3434 = vmatprep.mubr.f32.mxu0 0.0
        %3435 = vmatmul.mubr.f32.gmra.mxu0 %v3249
        %v3436 = vpop.f32.mrf.mxu0
        %v3437 = vadd.f32 0.0, %v3436
        %v3438 = vpop.f32.mrf.mxu0
        %3439 = vmatprep.mubr.f32.mxu0 0.0
        %3440 = vmatmul.mubr.f32.gmra.mxu0 %v3252
        %v3441 = vpop.f32.mrf.mxu0
        %v3442 = vadd.f32 0.0, %v3441
        %v3443 = vpop.f32.mrf.mxu0
        %3444 = vmatprep.mubr.f32.mxu0 0.0
        %3445 = vmatmul.mubr.f32.gmra.mxu0 %v3255
        %v3446 = vpop.f32.mrf.mxu0
        %v3447 = vadd.f32 0.0, %v3446
        %v3448 = vpop.f32.mrf.mxu0
        %3449 = vmatprep.mubr.f32.mxu0 0.0
        %3450 = vmatmul.mubr.f32.gmra.mxu0 %v3258
        %v3451 = vpop.f32.mrf.mxu0
        %v3452 = vadd.f32 0.0, %v3451
        %v3453 = vpop.f32.mrf.mxu0
        %3454 = vmatprep.mubr.f32.mxu0 0.0
        %3455 = vmatmul.mubr.f32.gmra.mxu0 %v3261
        %v3456 = vpop.f32.mrf.mxu0
        %v3457 = vadd.f32 0.0, %v3456
        %v3458 = vpop.f32.mrf.mxu0
        %3459 = vmatprep.mubr.f32.mxu0 0.0
        %3460 = vmatmul.mubr.f32.gmra.mxu0 %v3264
        %v3461 = vpop.f32.mrf.mxu0
        %v3462 = vadd.f32 0.0, %v3461
        %v3463 = vpop.f32.mrf.mxu0
        %3464 = vmatprep.mubr.f32.mxu0 0.0
        %3465 = vmatmul.mubr.f32.gmra.mxu0 %v3267
        %v3466 = vpop.f32.mrf.mxu0
        %v3467 = vadd.f32 0.0, %v3466
        %v3468 = vpop.f32.mrf.mxu0
        %3469 = vmatprep.mubr.f32.mxu0 0.0
        %3470 = vmatmul.mubr.f32.gmra.mxu0 %v3270
        %v3471 = vpop.f32.mrf.mxu0
        %v3472 = vadd.f32 0.0, %v3471
        %v3473 = vpop.f32.mrf.mxu0
        %3474 = vmatprep.mubr.f32.mxu0 0.0
        %3475 = vmatmul.mubr.f32.gmra.mxu0 %v3273
        %v3476 = vpop.f32.mrf.mxu0
        %v3477 = vadd.f32 0.0, %v3476
        %v3478 = vpop.f32.mrf.mxu0
        %3479 = vmatprep.mubr.f32.mxu0 0.0
        %3480 = vmatmul.mubr.f32.gmra.mxu0 %v3276
        %v3481 = vpop.f32.mrf.mxu0
        %v3482 = vadd.f32 0.0, %v3481
        %v3483 = vpop.f32.mrf.mxu0
        %3484 = vmatprep.mubr.f32.mxu0 0.0
        %3485 = vmatmul.mubr.f32.gmra.mxu0 %v3279
        %v3486 = vpop.f32.mrf.mxu0
        %v3487 = vadd.f32 0.0, %v3486
        %v3488 = vpop.f32.mrf.mxu0
        %3489 = vmatprep.mubr.f32.mxu0 0.0
        %3490 = vmatmul.mubr.f32.gmra.mxu0 %v3282
        %v3491 = vpop.f32.mrf.mxu0
        %v3492 = vadd.f32 0.0, %v3491
        %v3493 = vpop.f32.mrf.mxu0
        %3494 = vmatprep.mubr.f32.mxu0 0.0
        %3495 = vmatmul.mubr.f32.gmra.mxu0 %v3285
        %v3496 = vpop.f32.mrf.mxu0
        %v3497 = vadd.f32 0.0, %v3496
        %v3498 = vpop.f32.mrf.mxu0
        %3499 = vmatprep.mubr.f32.mxu0 0.0
        %3500 = vmatmul.mubr.f32.gmra.mxu0 %v3288
        %v3501 = vpop.f32.mrf.mxu0
        %v3502 = vadd.f32 0.0, %v3501
        %v3503 = vpop.f32.mrf.mxu0
        %3504 = vdwg.mxu0
        %v3505 = vadd.f32 %v3138, %v3357
        %v3506 = vadd.f32 %v3139, %v3362
        %v3507 = vadd.f32 %v3140, %v3367
        %v3508 = vadd.f32 %v3141, %v3372
        %v3509 = vadd.f32 %v3142, %v3377
        %v3510 = vadd.f32 %v3143, %v3382
        %v3511 = vadd.f32 %v3144, %v3387
        %v3512 = vadd.f32 %v3145, %v3392
        %v3513 = vadd.f32 %v3146, %v3397
        %v3514 = vadd.f32 %v3147, %v3402
        %v3515 = vadd.f32 %v3148, %v3407
        %v3516 = vadd.f32 %v3149, %v3412
        %v3517 = vadd.f32 %v3150, %v3417
        %v3518 = vadd.f32 %v3151, %v3422
        %v3519 = vadd.f32 %v3152, %v3427
        %v3520 = vadd.f32 %v3153, %v3432
        %v3521 = vadd.f32 %v3154, %v3437
        %v3522 = vadd.f32 %v3155, %v3442
        %v3523 = vadd.f32 %v3156, %v3447
        %v3524 = vadd.f32 %v3157, %v3452
        %v3525 = vadd.f32 %v3158, %v3457
        %v3526 = vadd.f32 %v3159, %v3462
        %v3527 = vadd.f32 %v3160, %v3467
        %v3528 = vadd.f32 %v3161, %v3472
        %v3529 = vadd.f32 %v3162, %v3477
        %v3530 = vadd.f32 %v3163, %v3482
        %v3531 = vadd.f32 %v3164, %v3487
        %v3532 = vadd.f32 %v3165, %v3492
        %v3533 = vadd.f32 %v3166, %v3497
        %v3534 = vadd.f32 %v3167, %v3502
        %vm3535 = vcmask 261120
        %3536 = vst.msk [vmem:[#allocation2] sm:$0xff] %vm3535, %v3505
        %3537 = vst.msk [vmem:[#allocation2 + $0x8] sm:$0xff] %vm3535, %v3506
        %3538 = vst.msk [vmem:[#allocation2 + $0x10] sm:$0xff] %vm3535, %v3507
        %3539 = vst.msk [vmem:[#allocation2 + $0x18] sm:$0xff] %vm3535, %v3508
        %3540 = vst.msk [vmem:[#allocation2 + $0x20] sm:$0xff] %vm3535, %v3509
        %3541 = vst.msk [vmem:[#allocation2 + $0x28] sm:$0xff] %vm3535, %v3510
        %3542 = vst.msk [vmem:[#allocation2 + $0x30] sm:$0xff] %vm3535, %v3511
        %3543 = vst.msk [vmem:[#allocation2 + $0x38] sm:$0xff] %vm3535, %v3512
        %3544 = vst.msk [vmem:[#allocation2 + $0x40] sm:$0xff] %vm3535, %v3513
        %3545 = vst.msk [vmem:[#allocation2 + $0x48] sm:$0xff] %vm3535, %v3514
        %3546 = vst.msk [vmem:[#allocation2 + $0x50] sm:$0xff] %vm3535, %v3515
        %3547 = vst.msk [vmem:[#allocation2 + $0x58] sm:$0xff] %vm3535, %v3516
        %3548 = vst.msk [vmem:[#allocation2 + $0x60] sm:$0xff] %vm3535, %v3517
        %3549 = vst.msk [vmem:[#allocation2 + $0x68] sm:$0xff] %vm3535, %v3518
        %3550 = vst.msk [vmem:[#allocation2 + $0x70] sm:$0xff] %vm3535, %v3519
        %3551 = vst.msk [vmem:[#allocation2 + $0x78] sm:$0xff] %vm3535, %v3520
        %3552 = vst.msk [vmem:[#allocation2 + $0x80] sm:$0xff] %vm3535, %v3521
        %3553 = vst.msk [vmem:[#allocation2 + $0x88] sm:$0xff] %vm3535, %v3522
        %3554 = vst.msk [vmem:[#allocation2 + $0x90] sm:$0xff] %vm3535, %v3523
        %3555 = vst.msk [vmem:[#allocation2 + $0x98] sm:$0xff] %vm3535, %v3524
        %3556 = vst.msk [vmem:[#allocation2 + $0xa0] sm:$0xff] %vm3535, %v3525
        %3557 = vst.msk [vmem:[#allocation2 + $0xa8] sm:$0xff] %vm3535, %v3526
        %3558 = vst.msk [vmem:[#allocation2 + $0xb0] sm:$0xff] %vm3535, %v3527
        %3559 = vst.msk [vmem:[#allocation2 + $0xb8] sm:$0xff] %vm3535, %v3528
        %3560 = vst.msk [vmem:[#allocation2 + $0xc0] sm:$0xff] %vm3535, %v3529
        %3561 = vst.msk [vmem:[#allocation2 + $0xc8] sm:$0xff] %vm3535, %v3530
        %3562 = vst.msk [vmem:[#allocation2 + $0xd0] sm:$0xff] %vm3535, %v3531
        %3563 = vst.msk [vmem:[#allocation2 + $0xd8] sm:$0xff] %vm3535, %v3532
        %3564 = vst.msk [vmem:[#allocation2 + $0xe0] sm:$0xff] %vm3535, %v3533
        %3565 = vst.msk [vmem:[#allocation2 + $0xe8] sm:$0xff] %vm3535, %v3534
        %v3566 = vld [vmem:[#allocation2] sm:$0xff]
        %v3567 = vld [vmem:[#allocation2 + $0x8] sm:$0xff]
        %v3568 = vld [vmem:[#allocation2 + $0x10] sm:$0xff]
        %v3569 = vld [vmem:[#allocation2 + $0x18] sm:$0xff]
        %v3570 = vld [vmem:[#allocation2 + $0x20] sm:$0xff]
        %v3571 = vld [vmem:[#allocation2 + $0x28] sm:$0xff]
        %v3572 = vld [vmem:[#allocation2 + $0x30] sm:$0xff]
        %v3573 = vld [vmem:[#allocation2 + $0x38] sm:$0xff]
        %v3574 = vld [vmem:[#allocation2 + $0x40] sm:$0xff]
        %v3575 = vld [vmem:[#allocation2 + $0x48] sm:$0xff]
        %v3576 = vld [vmem:[#allocation2 + $0x50] sm:$0xff]
        %v3577 = vld [vmem:[#allocation2 + $0x58] sm:$0xff]
        %v3578 = vld [vmem:[#allocation2 + $0x60] sm:$0xff]
        %v3579 = vld [vmem:[#allocation2 + $0x68] sm:$0xff]
        %v3580 = vld [vmem:[#allocation2 + $0x70] sm:$0xff]
        %v3581 = vld [vmem:[#allocation2 + $0x78] sm:$0xff]
        %v3582 = vld [vmem:[#allocation2 + $0x80] sm:$0xff]
        %v3583 = vld [vmem:[#allocation2 + $0x88] sm:$0xff]
        %v3584 = vld [vmem:[#allocation2 + $0x90] sm:$0xff]
        %v3585 = vld [vmem:[#allocation2 + $0x98] sm:$0xff]
        %v3586 = vld [vmem:[#allocation2 + $0xa0] sm:$0xff]
        %v3587 = vld [vmem:[#allocation2 + $0xa8] sm:$0xff]
        %v3588 = vld [vmem:[#allocation2 + $0xb0] sm:$0xff]
        %v3589 = vld [vmem:[#allocation2 + $0xb8] sm:$0xff]
        %v3590 = vld [vmem:[#allocation2 + $0xc0] sm:$0xff]
        %v3591 = vld [vmem:[#allocation2 + $0xc8] sm:$0xff]
        %v3592 = vld [vmem:[#allocation2 + $0xd0] sm:$0xff]
        %v3593 = vld [vmem:[#allocation2 + $0x1] sm:$0xff]
        %v3594 = vld [vmem:[#allocation2 + $0x9] sm:$0xff]
        %v3595 = vld [vmem:[#allocation2 + $0x11] sm:$0xff]
        %v3596 = vld [vmem:[#allocation2 + $0x19] sm:$0xff]
        %v3597 = vld [vmem:[#allocation2 + $0x21] sm:$0xff]
        %v3598 = vld [vmem:[#allocation2 + $0x29] sm:$0xff]
        %v3599 = vld [vmem:[#allocation2 + $0x31] sm:$0xff]
        %v3600 = vld [vmem:[#allocation2 + $0x39] sm:$0xff]
        %v3601 = vld [vmem:[#allocation2 + $0x41] sm:$0xff]
        %v3602 = vld [vmem:[#allocation2 + $0x49] sm:$0xff]
        %v3603 = vld [vmem:[#allocation2 + $0x51] sm:$0xff]
        %v3604 = vld [vmem:[#allocation2 + $0x59] sm:$0xff]
        %v3605 = vld [vmem:[#allocation2 + $0x61] sm:$0xff]
        %v3606 = vld [vmem:[#allocation2 + $0x69] sm:$0xff]
        %v3607 = vld [vmem:[#allocation2 + $0x71] sm:$0xff]
        %v3608 = vld [vmem:[#allocation2 + $0x79] sm:$0xff]
        %v3609 = vld [vmem:[#allocation2 + $0x81] sm:$0xff]
        %v3610 = vld [vmem:[#allocation2 + $0x89] sm:$0xff]
        %v3611 = vld [vmem:[#allocation2 + $0x91] sm:$0xff]
        %v3612 = vld [vmem:[#allocation2 + $0x99] sm:$0xff]
        %v3613 = vld [vmem:[#allocation2 + $0xa1] sm:$0xff]
        %v3614 = vld [vmem:[#allocation2 + $0xa9] sm:$0xff]
        %v3615 = vld [vmem:[#allocation2 + $0xb1] sm:$0xff]
        %v3616 = vld [vmem:[#allocation2 + $0xb9] sm:$0xff]
        %v3617 = vld [vmem:[#allocation2 + $0xc1] sm:$0xff]
        %v3618 = vld [vmem:[#allocation2 + $0xc9] sm:$0xff]
        %v3619 = vld [vmem:[#allocation2 + $0xd1] sm:$0xff]
        %v3620 = vadd.f32 %v3566, %v3593
        %v3621 = vadd.f32 %v3567, %v3594
        %v3622 = vadd.f32 %v3568, %v3595
        %v3623 = vadd.f32 %v3569, %v3596
        %v3624 = vadd.f32 %v3570, %v3597
        %v3625 = vadd.f32 %v3571, %v3598
        %v3626 = vadd.f32 %v3572, %v3599
        %v3627 = vadd.f32 %v3573, %v3600
        %v3628 = vadd.f32 %v3574, %v3601
        %v3629 = vadd.f32 %v3575, %v3602
        %v3630 = vadd.f32 %v3576, %v3603
        %v3631 = vadd.f32 %v3577, %v3604
        %v3632 = vadd.f32 %v3578, %v3605
        %v3633 = vadd.f32 %v3579, %v3606
        %v3634 = vadd.f32 %v3580, %v3607
        %v3635 = vadd.f32 %v3581, %v3608
        %v3636 = vadd.f32 %v3582, %v3609
        %v3637 = vadd.f32 %v3583, %v3610
        %v3638 = vadd.f32 %v3584, %v3611
        %v3639 = vadd.f32 %v3585, %v3612
        %v3640 = vadd.f32 %v3586, %v3613
        %v3641 = vadd.f32 %v3587, %v3614
        %v3642 = vadd.f32 %v3588, %v3615
        %v3643 = vadd.f32 %v3589, %v3616
        %v3644 = vadd.f32 %v3590, %v3617
        %v3645 = vadd.f32 %v3591, %v3618
        %v3646 = vadd.f32 %v3592, %v3619
        %v3647 = vld [vmem:[#allocation2 + $0xd8] sm:$0xff]
        %v3648 = vld [vmem:[#allocation2 + $0xe0] sm:$0xff]
        %v3649 = vadd.f32 %v3620, %v3568
        %v3650 = vadd.f32 %v3621, %v3569
        %v3651 = vadd.f32 %v3622, %v3570
        %v3652 = vadd.f32 %v3623, %v3571
        %v3653 = vadd.f32 %v3624, %v3572
        %v3654 = vadd.f32 %v3625, %v3573
        %v3655 = vadd.f32 %v3626, %v3574
        %v3656 = vadd.f32 %v3627, %v3575
        %v3657 = vadd.f32 %v3628, %v3576
        %v3658 = vadd.f32 %v3629, %v3577
        %v3659 = vadd.f32 %v3630, %v3578
        %v3660 = vadd.f32 %v3631, %v3579
        %v3661 = vadd.f32 %v3632, %v3580
        %v3662 = vadd.f32 %v3633, %v3581
        %v3663 = vadd.f32 %v3634, %v3582
        %v3664 = vadd.f32 %v3635, %v3583
        %v3665 = vadd.f32 %v3636, %v3584
        %v3666 = vadd.f32 %v3637, %v3585
        %v3667 = vadd.f32 %v3638, %v3586
        %v3668 = vadd.f32 %v3639, %v3587
        %v3669 = vadd.f32 %v3640, %v3588
        %v3670 = vadd.f32 %v3641, %v3589
        %v3671 = vadd.f32 %v3642, %v3590
        %v3672 = vadd.f32 %v3643, %v3591
        %v3673 = vadd.f32 %v3644, %v3592
        %v3674 = vadd.f32 %v3645, %v3647
        %v3675 = vadd.f32 %v3646, %v3648
        %v3676 = vld [vmem:[#allocation2 + $0xd9] sm:$0xff]
        %v3677 = vld [vmem:[#allocation2 + $0xe1] sm:$0xff]
        %v3678 = vadd.f32 %v3649, %v3595
        %v3679 = vadd.f32 %v3650, %v3596
        %v3680 = vadd.f32 %v3651, %v3597
        %v3681 = vadd.f32 %v3652, %v3598
        %v3682 = vadd.f32 %v3653, %v3599
        %v3683 = vadd.f32 %v3654, %v3600
        %v3684 = vadd.f32 %v3655, %v3601
        %v3685 = vadd.f32 %v3656, %v3602
        %v3686 = vadd.f32 %v3657, %v3603
        %v3687 = vadd.f32 %v3658, %v3604
        %v3688 = vadd.f32 %v3659, %v3605
        %v3689 = vadd.f32 %v3660, %v3606
        %v3690 = vadd.f32 %v3661, %v3607
        %v3691 = vadd.f32 %v3662, %v3608
        %v3692 = vadd.f32 %v3663, %v3609
        %v3693 = vadd.f32 %v3664, %v3610
        %v3694 = vadd.f32 %v3665, %v3611
        %v3695 = vadd.f32 %v3666, %v3612
        %v3696 = vadd.f32 %v3667, %v3613
        %v3697 = vadd.f32 %v3668, %v3614
        %v3698 = vadd.f32 %v3669, %v3615
        %v3699 = vadd.f32 %v3670, %v3616
        %v3700 = vadd.f32 %v3671, %v3617
        %v3701 = vadd.f32 %v3672, %v3618
        %v3702 = vadd.f32 %v3673, %v3619
        %v3703 = vadd.f32 %v3674, %v3676
        %v3704 = vadd.f32 %v3675, %v3677
        %v3705 = vmul.f32 %v3678, 0.25
        %v3706 = vmul.f32 %v3679, 0.25
        %v3707 = vmul.f32 %v3680, 0.25
        %v3708 = vmul.f32 %v3681, 0.25
        %v3709 = vmul.f32 %v3682, 0.25
        %v3710 = vmul.f32 %v3683, 0.25
        %v3711 = vmul.f32 %v3684, 0.25
        %v3712 = vmul.f32 %v3685, 0.25
        %v3713 = vmul.f32 %v3686, 0.25
        %v3714 = vmul.f32 %v3687, 0.25
        %v3715 = vmul.f32 %v3688, 0.25
        %v3716 = vmul.f32 %v3689, 0.25
        %v3717 = vmul.f32 %v3690, 0.25
        %v3718 = vmul.f32 %v3691, 0.25
        %v3719 = vmul.f32 %v3692, 0.25
        %v3720 = vmul.f32 %v3693, 0.25
        %v3721 = vmul.f32 %v3694, 0.25
        %v3722 = vmul.f32 %v3695, 0.25
        %v3723 = vmul.f32 %v3696, 0.25
        %v3724 = vmul.f32 %v3697, 0.25
        %v3725 = vmul.f32 %v3698, 0.25
        %v3726 = vmul.f32 %v3699, 0.25
        %v3727 = vmul.f32 %v3700, 0.25
        %v3728 = vmul.f32 %v3701, 0.25
        %v3729 = vmul.f32 %v3702, 0.25
        %v3730 = vmul.f32 %v3703, 0.25
        %v3731 = vmul.f32 %v3704, 0.25
        %v3732 = vld [vmem:[%s2] sm:$0x1]
        %v3734 = vlaneseq
        %v3735 = vshrl.u32 %v3734, 7
        %v3736 = vsub.s32 0, %v3735
        %v3737 = vrot.slane %v3732, %v3736
        %v3739 = vadd.f32 %v3705, %v3737
        %v3740 = vadd.f32 %v3706, %v3737
        %v3741 = vadd.f32 %v3707, %v3737
        %v3742 = vadd.f32 %v3708, %v3737
        %v3743 = vadd.f32 %v3709, %v3737
        %v3744 = vadd.f32 %v3710, %v3737
        %v3745 = vadd.f32 %v3711, %v3737
        %v3746 = vadd.f32 %v3712, %v3737
        %v3747 = vadd.f32 %v3713, %v3737
        %v3748 = vadd.f32 %v3714, %v3737
        %v3749 = vadd.f32 %v3715, %v3737
        %v3750 = vadd.f32 %v3716, %v3737
        %v3751 = vadd.f32 %v3717, %v3737
        %v3752 = vadd.f32 %v3718, %v3737
        %v3753 = vadd.f32 %v3719, %v3737
        %v3754 = vadd.f32 %v3720, %v3737
        %v3755 = vadd.f32 %v3721, %v3737
        %v3756 = vadd.f32 %v3722, %v3737
        %v3757 = vadd.f32 %v3723, %v3737
        %v3758 = vadd.f32 %v3724, %v3737
        %v3759 = vadd.f32 %v3725, %v3737
        %v3760 = vadd.f32 %v3726, %v3737
        %v3761 = vadd.f32 %v3727, %v3737
        %v3762 = vadd.f32 %v3728, %v3737
        %v3763 = vadd.f32 %v3729, %v3737
        %v3764 = vadd.f32 %v3730, %v3737
        %v3765 = vadd.f32 %v3731, %v3737
        %3766 = vst.msk [vmem:[#allocation3] sm:$0xff] %vm3535, %v3739
        %3767 = vst.msk [vmem:[#allocation3 + $0x8] sm:$0xff] %vm3535, %v3740
        %3768 = vst.msk [vmem:[#allocation3 + $0x10] sm:$0xff] %vm3535, %v3741
        %3769 = vst.msk [vmem:[#allocation3 + $0x18] sm:$0xff] %vm3535, %v3742
        %3770 = vst.msk [vmem:[#allocation3 + $0x20] sm:$0xff] %vm3535, %v3743
        %3771 = vst.msk [vmem:[#allocation3 + $0x28] sm:$0xff] %vm3535, %v3744
        %3772 = vst.msk [vmem:[#allocation3 + $0x30] sm:$0xff] %vm3535, %v3745
        %3773 = vst.msk [vmem:[#allocation3 + $0x38] sm:$0xff] %vm3535, %v3746
        %3774 = vst.msk [vmem:[#allocation3 + $0x40] sm:$0xff] %vm3535, %v3747
        %3775 = vst.msk [vmem:[#allocation3 + $0x48] sm:$0xff] %vm3535, %v3748
        %3776 = vst.msk [vmem:[#allocation3 + $0x50] sm:$0xff] %vm3535, %v3749
        %3777 = vst.msk [vmem:[#allocation3 + $0x58] sm:$0xff] %vm3535, %v3750
        %3778 = vst.msk [vmem:[#allocation3 + $0x60] sm:$0xff] %vm3535, %v3751
        %3779 = vst.msk [vmem:[#allocation3 + $0x68] sm:$0xff] %vm3535, %v3752
        %3780 = vst.msk [vmem:[#allocation3 + $0x70] sm:$0xff] %vm3535, %v3753
        %3781 = vst.msk [vmem:[#allocation3 + $0x78] sm:$0xff] %vm3535, %v3754
        %3782 = vst.msk [vmem:[#allocation3 + $0x80] sm:$0xff] %vm3535, %v3755
        %3783 = vst.msk [vmem:[#allocation3 + $0x88] sm:$0xff] %vm3535, %v3756
        %3784 = vst.msk [vmem:[#allocation3 + $0x90] sm:$0xff] %vm3535, %v3757
        %3785 = vst.msk [vmem:[#allocation3 + $0x98] sm:$0xff] %vm3535, %v3758
        %3786 = vst.msk [vmem:[#allocation3 + $0xa0] sm:$0xff] %vm3535, %v3759
        %3787 = vst.msk [vmem:[#allocation3 + $0xa8] sm:$0xff] %vm3535, %v3760
        %3788 = vst.msk [vmem:[#allocation3 + $0xb0] sm:$0xff] %vm3535, %v3761
        %3789 = vst.msk [vmem:[#allocation3 + $0xb8] sm:$0xff] %vm3535, %v3762
        %3790 = vst.msk [vmem:[#allocation3 + $0xc0] sm:$0xff] %vm3535, %v3763
        %3791 = vst.msk [vmem:[#allocation3 + $0xc8] sm:$0xff] %vm3535, %v3764
        %3792 = vst.msk [vmem:[#allocation3 + $0xd0] sm:$0xff] %vm3535, %v3765
        %v3793 = vld [vmem:[#allocation3] sm:$0xff]
        %v3794 = vld [vmem:[#allocation3 + $0x8] sm:$0xff]
        %v3795 = vld [vmem:[#allocation3 + $0x10] sm:$0xff]
        %v3796 = vld [vmem:[#allocation3 + $0x18] sm:$0xff]
        %v3797 = vld [vmem:[#allocation3 + $0x20] sm:$0xff]
        %v3798 = vld [vmem:[#allocation3 + $0x28] sm:$0xff]
        %v3799 = vld [vmem:[#allocation3 + $0x30] sm:$0xff]
        %v3800 = vld [vmem:[#allocation3 + $0x38] sm:$0xff]
        %v3801 = vld [vmem:[#allocation3 + $0x40] sm:$0xff]
        %v3802 = vld [vmem:[#allocation3 + $0x48] sm:$0xff]
        %v3803 = vld [vmem:[#allocation3 + $0x50] sm:$0xff]
        %v3804 = vld [vmem:[#allocation3 + $0x58] sm:$0xff]
        %v3805 = vld [vmem:[#allocation3 + $0x60] sm:$0xff]
        %v3806 = vld [vmem:[#allocation3 + $0x68] sm:$0xff]
        %v3807 = vld [vmem:[#allocation3 + $0x70] sm:$0xff]
        %v3808 = vld [vmem:[#allocation3 + $0x78] sm:$0xff]
        %v3809 = vld [vmem:[#allocation3 + $0x80] sm:$0xff]
        %v3810 = vld [vmem:[#allocation3 + $0x88] sm:$0xff]
        %v3811 = vld [vmem:[#allocation4] sm:$0xff]
        %v3812 = vld [vmem:[#allocation4 + $0x8] sm:$0xff]
        %v3813 = vld [vmem:[#allocation4 + $0x10] sm:$0xff]
        %v3814 = vld [vmem:[#allocation4 + $0x18] sm:$0xff]
        %v3815 = vld [vmem:[#allocation3 + $0x2] sm:$0xff]
        %v3816 = vld [vmem:[#allocation3 + $0xa] sm:$0xff]
        %v3817 = vld [vmem:[#allocation3 + $0x12] sm:$0xff]
        %v3818 = vld [vmem:[#allocation3 + $0x1a] sm:$0xff]
        %v3819 = vld [vmem:[#allocation3 + $0x22] sm:$0xff]
        %v3820 = vld [vmem:[#allocation3 + $0x2a] sm:$0xff]
        %v3821 = vld [vmem:[#allocation3 + $0x32] sm:$0xff]
        %v3822 = vld [vmem:[#allocation3 + $0x3a] sm:$0xff]
        %v3823 = vld [vmem:[#allocation3 + $0x42] sm:$0xff]
        %v3824 = vld [vmem:[#allocation3 + $0x4a] sm:$0xff]
        %v3825 = vld [vmem:[#allocation3 + $0x52] sm:$0xff]
        %v3826 = vld [vmem:[#allocation3 + $0x5a] sm:$0xff]
        %v3827 = vld [vmem:[#allocation3 + $0x62] sm:$0xff]
        %v3828 = vld [vmem:[#allocation3 + $0x6a] sm:$0xff]
        %v3829 = vld [vmem:[#allocation3 + $0x72] sm:$0xff]
        %v3830 = vld [vmem:[#allocation3 + $0x7a] sm:$0xff]
        %v3831 = vld [vmem:[#allocation3 + $0x82] sm:$0xff]
        %v3832 = vld [vmem:[#allocation3 + $0x8a] sm:$0xff]
        %s3833 = scalar_lea.vmem [#allocation4], 32
        %v3834 = vld [vmem:[%s3833] sm:$0xff]
        %v3835 = vld [vmem:[%s3833 + $0x8] sm:$0xff]
        %v3836 = vld [vmem:[%s3833 + $0x10] sm:$0xff]
        %v3837 = vld [vmem:[%s3833 + $0x18] sm:$0xff]
        %v3839 = vsel %vm3535, %v3815, 0
        %v3842 = vsel %vm3535, %v3816, 0
        %v3845 = vsel %vm3535, %v3817, 0
        %v3848 = vsel %vm3535, %v3818, 0
        %v3851 = vsel %vm3535, %v3819, 0
        %v3854 = vsel %vm3535, %v3820, 0
        %v3857 = vsel %vm3535, %v3821, 0
        %v3860 = vsel %vm3535, %v3822, 0
        %v3863 = vsel %vm3535, %v3823, 0
        %v3866 = vsel %vm3535, %v3824, 0
        %v3869 = vsel %vm3535, %v3825, 0
        %v3872 = vsel %vm3535, %v3826, 0
        %v3875 = vsel %vm3535, %v3827, 0
        %v3878 = vsel %vm3535, %v3828, 0
        %v3881 = vsel %vm3535, %v3829, 0
        %v3884 = vsel %vm3535, %v3830, 0
        %v3887 = vsel %vm3535, %v3831, 0
        %v3890 = vsel %vm3535, %v3832, 0
        %3892 = vmatprep.subr.mxu0 0.0
        %3893 = vmatpush1.msra.mxu0 0.0
        %3894 = vmatprep.subr.mxu0 0.0
        %3895 = vmatpush1.msra.mxu0 0.0
        %3896 = vmatprep.subr.mxu0 0.0
        %3897 = vmatpush1.msra.mxu0 0.0
        %3898 = vmatprep.subr.mxu0 0.0
        %3899 = vmatpush1.msra.mxu0 0.0
        %3900 = vmatprep.subr.mxu0 0.0
        %3901 = vmatpush1.msra.mxu0 0.0
        %3902 = vmatprep.subr.mxu0 0.0
        %3903 = vmatpush1.msra.mxu0 0.0
        %3904 = vmatprep.subr.mxu0 0.0
        %3905 = vmatpush1.msra.mxu0 0.0
        %3906 = vmatprep.subr.mxu0 0.0
        %3907 = vmatpush1.msra.mxu0 0.0
        %3908 = vmatprep.subr.mxu0 0.0
        %3909 = vmatpush1.msra.mxu0 0.0
        %3910 = vmatprep.subr.mxu0 0.0
        %3911 = vmatpush1.msra.mxu0 0.0
        %3912 = vmatprep.subr.mxu0 0.0
        %3913 = vmatpush1.msra.mxu0 0.0
        %3914 = vmatprep.subr.mxu0 0.0
        %3915 = vmatpush1.msra.mxu0 0.0
        %3916 = vmatprep.subr.mxu0 0.0
        %3917 = vmatpush1.msra.mxu0 %v3837
        %3918 = vmatprep.subr.mxu0 0.0
        %3919 = vmatpush1.msra.mxu0 %v3836
        %3920 = vmatprep.subr.mxu0 0.0
        %3921 = vmatpush1.msra.mxu0 %v3835
        %3922 = vmatprep.subr.mxu0 0.0
        %3923 = vmatpush1.msra.mxu0 %v3834
        %3924 = vmatprep.subr.mxu0 0.0
        %3925 = vmatpush2.msra.mxu0 0.0
        %3926 = vmatprep.subr.mxu0 0.0
        %3927 = vmatpush2.msra.mxu0 0.0
        %3928 = vmatprep.subr.mxu0 0.0
        %3929 = vmatpush2.msra.mxu0 0.0
        %3930 = vmatprep.subr.mxu0 0.0
        %3931 = vmatpush2.msra.mxu0 0.0
        %3932 = vmatprep.subr.mxu0 0.0
        %3933 = vmatpush2.msra.mxu0 0.0
        %3934 = vmatprep.subr.mxu0 0.0
        %3935 = vmatpush2.msra.mxu0 0.0
        %3936 = vmatprep.subr.mxu0 0.0
        %3937 = vmatpush2.msra.mxu0 0.0
        %3938 = vmatprep.subr.mxu0 0.0
        %3939 = vmatpush2.msra.mxu0 0.0
        %3940 = vmatprep.subr.mxu0 0.0
        %3941 = vmatpush2.msra.mxu0 0.0
        %3942 = vmatprep.subr.mxu0 0.0
        %3943 = vmatpush2.msra.mxu0 0.0
        %3944 = vmatprep.subr.mxu0 0.0
        %3945 = vmatpush2.msra.mxu0 0.0
        %3946 = vmatprep.subr.mxu0 0.0
        %3947 = vmatpush2.msra.mxu0 0.0
        %3948 = vmatprep.subr.mxu0 0.0
        %3949 = vmatpush2.msra.mxu0 0.0
        %3950 = vmatprep.subr.mxu0 0.0
        %3951 = vmatpush2.msra.mxu0 0.0
        %3952 = vmatprep.subr.mxu0 0.0
        %3953 = vmatpush2.msra.mxu0 0.0
        %3954 = vmatprep.subr.mxu0 0.0
        %3955 = vmatpush2.msra.mxu0 0.0
        %3956 = vmatprep.mubr.f32.mxu0 0.0
        %3957 = vmatmul.mubr.f32.gmra.mxu0 %v3839
        %v3958 = vpop.f32.mrf.mxu0
        %v3959 = vadd.f32 0.0, %v3958
        %v3960 = vpop.f32.mrf.mxu0
        %3961 = vmatprep.mubr.f32.mxu0 0.0
        %3962 = vmatmul.mubr.f32.gmra.mxu0 %v3842
        %v3963 = vpop.f32.mrf.mxu0
        %v3964 = vadd.f32 0.0, %v3963
        %v3965 = vpop.f32.mrf.mxu0
        %3966 = vmatprep.mubr.f32.mxu0 0.0
        %3967 = vmatmul.mubr.f32.gmra.mxu0 %v3845
        %v3968 = vpop.f32.mrf.mxu0
        %v3969 = vpop.f32.mrf.mxu0
        %3970 = vmatprep.mubr.f32.mxu0 0.0
        %3971 = vmatmul.mubr.f32.gmra.mxu0 %v3848
        %v3972 = vpop.f32.mrf.mxu0
        %v3973 = vpop.f32.mrf.mxu0
        %3974 = vmatprep.mubr.f32.mxu0 0.0
        %3975 = vmatmul.mubr.f32.gmra.mxu0 %v3851
        %v3976 = vpop.f32.mrf.mxu0
        %v3977 = vadd.f32 0.0, %v3976
        %v3978 = vpop.f32.mrf.mxu0
        %3979 = vmatprep.mubr.f32.mxu0 0.0
        %3980 = vmatmul.mubr.f32.gmra.mxu0 %v3854
        %v3981 = vpop.f32.mrf.mxu0
        %v3982 = vadd.f32 0.0, %v3981
        %v3983 = vpop.f32.mrf.mxu0
        %3984 = vmatprep.mubr.f32.mxu0 0.0
        %3985 = vmatmul.mubr.f32.gmra.mxu0 %v3857
        %v3986 = vpop.f32.mrf.mxu0
        %v3987 = vpop.f32.mrf.mxu0
        %3988 = vmatprep.mubr.f32.mxu0 0.0
        %3989 = vmatmul.mubr.f32.gmra.mxu0 %v3860
        %v3990 = vpop.f32.mrf.mxu0
        %v3991 = vpop.f32.mrf.mxu0
        %3992 = vmatprep.mubr.f32.mxu0 0.0
        %3993 = vmatmul.mubr.f32.gmra.mxu0 %v3863
        %v3994 = vpop.f32.mrf.mxu0
        %v3995 = vadd.f32 0.0, %v3994
        %v3996 = vpop.f32.mrf.mxu0
        %3997 = vmatprep.mubr.f32.mxu0 0.0
        %3998 = vmatmul.mubr.f32.gmra.mxu0 %v3866
        %v3999 = vpop.f32.mrf.mxu0
        %v4000 = vadd.f32 0.0, %v3999
        %v4001 = vpop.f32.mrf.mxu0
        %4002 = vmatprep.mubr.f32.mxu0 0.0
        %4003 = vmatmul.mubr.f32.gmra.mxu0 %v3869
        %v4004 = vpop.f32.mrf.mxu0
        %v4005 = vpop.f32.mrf.mxu0
        %4006 = vmatprep.mubr.f32.mxu0 0.0
        %4007 = vmatmul.mubr.f32.gmra.mxu0 %v3872
        %v4008 = vpop.f32.mrf.mxu0
        %v4009 = vpop.f32.mrf.mxu0
        %4010 = vmatprep.mubr.f32.mxu0 0.0
        %4011 = vmatmul.mubr.f32.gmra.mxu0 %v3875
        %v4012 = vpop.f32.mrf.mxu0
        %v4013 = vadd.f32 0.0, %v4012
        %v4014 = vpop.f32.mrf.mxu0
        %4015 = vmatprep.mubr.f32.mxu0 0.0
        %4016 = vmatmul.mubr.f32.gmra.mxu0 %v3878
        %v4017 = vpop.f32.mrf.mxu0
        %v4018 = vadd.f32 0.0, %v4017
        %v4019 = vpop.f32.mrf.mxu0
        %4020 = vmatprep.mubr.f32.mxu0 0.0
        %4021 = vmatmul.mubr.f32.gmra.mxu0 %v3881
        %v4022 = vpop.f32.mrf.mxu0
        %v4023 = vpop.f32.mrf.mxu0
        %4024 = vmatprep.mubr.f32.mxu0 0.0
        %4025 = vmatmul.mubr.f32.gmra.mxu0 %v3884
        %v4026 = vpop.f32.mrf.mxu0
        %v4027 = vpop.f32.mrf.mxu0
        %4028 = vmatprep.mubr.f32.mxu0 0.0
        %4029 = vmatmul.mubr.f32.gmra.mxu0 %v3887
        %v4030 = vpop.f32.mrf.mxu0
        %v4031 = vadd.f32 0.0, %v4030
        %v4032 = vpop.f32.mrf.mxu0
        %4033 = vmatprep.mubr.f32.mxu0 0.0
        %4034 = vmatmul.mubr.f32.gmra.mxu0 %v3890
        %v4035 = vpop.f32.mrf.mxu0
        %v4036 = vadd.f32 0.0, %v4035
        %v4037 = vpop.f32.mrf.mxu0
        %4038 = vdwg.mxu0
        %v4040 = vsel %vm3535, %v3793, 0
        %v4043 = vsel %vm3535, %v3794, 0
        %v4046 = vsel %vm3535, %v3795, 0
        %v4049 = vsel %vm3535, %v3796, 0
        %v4052 = vsel %vm3535, %v3797, 0
        %v4055 = vsel %vm3535, %v3798, 0
        %v4058 = vsel %vm3535, %v3799, 0
        %v4061 = vsel %vm3535, %v3800, 0
        %v4064 = vsel %vm3535, %v3801, 0
        %v4067 = vsel %vm3535, %v3802, 0
        %v4070 = vsel %vm3535, %v3803, 0
        %v4073 = vsel %vm3535, %v3804, 0
        %v4076 = vsel %vm3535, %v3805, 0
        %v4079 = vsel %vm3535, %v3806, 0
        %v4082 = vsel %vm3535, %v3807, 0
        %v4085 = vsel %vm3535, %v3808, 0
        %v4088 = vsel %vm3535, %v3809, 0
        %v4091 = vsel %vm3535, %v3810, 0
        %4093 = vmatprep.subr.mxu0 0.0
        %4094 = vmatpush1.msra.mxu0 0.0
        %4095 = vmatprep.subr.mxu0 0.0
        %4096 = vmatpush1.msra.mxu0 0.0
        %4097 = vmatprep.subr.mxu0 0.0
        %4098 = vmatpush1.msra.mxu0 0.0
        %4099 = vmatprep.subr.mxu0 0.0
        %4100 = vmatpush1.msra.mxu0 0.0
        %4101 = vmatprep.subr.mxu0 0.0
        %4102 = vmatpush1.msra.mxu0 0.0
        %4103 = vmatprep.subr.mxu0 0.0
        %4104 = vmatpush1.msra.mxu0 0.0
        %4105 = vmatprep.subr.mxu0 0.0
        %4106 = vmatpush1.msra.mxu0 0.0
        %4107 = vmatprep.subr.mxu0 0.0
        %4108 = vmatpush1.msra.mxu0 0.0
        %4109 = vmatprep.subr.mxu0 0.0
        %4110 = vmatpush1.msra.mxu0 0.0
        %4111 = vmatprep.subr.mxu0 0.0
        %4112 = vmatpush1.msra.mxu0 0.0
        %4113 = vmatprep.subr.mxu0 0.0
        %4114 = vmatpush1.msra.mxu0 0.0
        %4115 = vmatprep.subr.mxu0 0.0
        %4116 = vmatpush1.msra.mxu0 0.0
        %4117 = vmatprep.subr.mxu0 0.0
        %4118 = vmatpush1.msra.mxu0 %v3814
        %4119 = vmatprep.subr.mxu0 0.0
        %4120 = vmatpush1.msra.mxu0 %v3813
        %4121 = vmatprep.subr.mxu0 0.0
        %4122 = vmatpush1.msra.mxu0 %v3812
        %4123 = vmatprep.subr.mxu0 0.0
        %4124 = vmatpush1.msra.mxu0 %v3811
        %4125 = vmatprep.subr.mxu0 0.0
        %4126 = vmatpush2.msra.mxu0 0.0
        %4127 = vmatprep.subr.mxu0 0.0
        %4128 = vmatpush2.msra.mxu0 0.0
        %4129 = vmatprep.subr.mxu0 0.0
        %4130 = vmatpush2.msra.mxu0 0.0
        %4131 = vmatprep.subr.mxu0 0.0
        %4132 = vmatpush2.msra.mxu0 0.0
        %4133 = vmatprep.subr.mxu0 0.0
        %4134 = vmatpush2.msra.mxu0 0.0
        %4135 = vmatprep.subr.mxu0 0.0
        %4136 = vmatpush2.msra.mxu0 0.0
        %4137 = vmatprep.subr.mxu0 0.0
        %4138 = vmatpush2.msra.mxu0 0.0
        %4139 = vmatprep.subr.mxu0 0.0
        %4140 = vmatpush2.msra.mxu0 0.0
        %4141 = vmatprep.subr.mxu0 0.0
        %4142 = vmatpush2.msra.mxu0 0.0
        %4143 = vmatprep.subr.mxu0 0.0
        %4144 = vmatpush2.msra.mxu0 0.0
        %4145 = vmatprep.subr.mxu0 0.0
        %4146 = vmatpush2.msra.mxu0 0.0
        %4147 = vmatprep.subr.mxu0 0.0
        %4148 = vmatpush2.msra.mxu0 0.0
        %4149 = vmatprep.subr.mxu0 0.0
        %4150 = vmatpush2.msra.mxu0 0.0
        %4151 = vmatprep.subr.mxu0 0.0
        %4152 = vmatpush2.msra.mxu0 0.0
        %4153 = vmatprep.subr.mxu0 0.0
        %4154 = vmatpush2.msra.mxu0 0.0
        %4155 = vmatprep.subr.mxu0 0.0
        %4156 = vmatpush2.msra.mxu0 0.0
        %4157 = vmatprep.mubr.f32.mxu0 0.0
        %4158 = vmatmul.mubr.f32.gmra.mxu0 %v4040
        %v4159 = vpop.f32.mrf.mxu0
        %v4160 = vadd.f32 %v3959, %v4159
        %v4161 = vpop.f32.mrf.mxu0
        %4162 = vmatprep.mubr.f32.mxu0 0.0
        %4163 = vmatmul.mubr.f32.gmra.mxu0 %v4043
        %v4164 = vpop.f32.mrf.mxu0
        %v4165 = vadd.f32 %v3964, %v4164
        %v4166 = vpop.f32.mrf.mxu0
        %4167 = vmatprep.mubr.f32.mxu0 0.0
        %4168 = vmatmul.mubr.f32.gmra.mxu0 %v4046
        %v4169 = vpop.f32.mrf.mxu0
        %v4170 = vpop.f32.mrf.mxu0
        %4171 = vmatprep.mubr.f32.mxu0 0.0
        %4172 = vmatmul.mubr.f32.gmra.mxu0 %v4049
        %v4173 = vpop.f32.mrf.mxu0
        %v4174 = vpop.f32.mrf.mxu0
        %4175 = vmatprep.mubr.f32.mxu0 0.0
        %4176 = vmatmul.mubr.f32.gmra.mxu0 %v4052
        %v4177 = vpop.f32.mrf.mxu0
        %v4178 = vadd.f32 %v3977, %v4177
        %v4179 = vpop.f32.mrf.mxu0
        %4180 = vmatprep.mubr.f32.mxu0 0.0
        %4181 = vmatmul.mubr.f32.gmra.mxu0 %v4055
        %v4182 = vpop.f32.mrf.mxu0
        %v4183 = vadd.f32 %v3982, %v4182
        %v4184 = vpop.f32.mrf.mxu0
        %4185 = vmatprep.mubr.f32.mxu0 0.0
        %4186 = vmatmul.mubr.f32.gmra.mxu0 %v4058
        %v4187 = vpop.f32.mrf.mxu0
        %v4188 = vpop.f32.mrf.mxu0
        %4189 = vmatprep.mubr.f32.mxu0 0.0
        %4190 = vmatmul.mubr.f32.gmra.mxu0 %v4061
        %v4191 = vpop.f32.mrf.mxu0
        %v4192 = vpop.f32.mrf.mxu0
        %4193 = vmatprep.mubr.f32.mxu0 0.0
        %4194 = vmatmul.mubr.f32.gmra.mxu0 %v4064
        %v4195 = vpop.f32.mrf.mxu0
        %v4196 = vadd.f32 %v3995, %v4195
        %v4197 = vpop.f32.mrf.mxu0
        %4198 = vmatprep.mubr.f32.mxu0 0.0
        %4199 = vmatmul.mubr.f32.gmra.mxu0 %v4067
        %v4200 = vpop.f32.mrf.mxu0
        %v4201 = vadd.f32 %v4000, %v4200
        %v4202 = vpop.f32.mrf.mxu0
        %4203 = vmatprep.mubr.f32.mxu0 0.0
        %4204 = vmatmul.mubr.f32.gmra.mxu0 %v4070
        %v4205 = vpop.f32.mrf.mxu0
        %v4206 = vpop.f32.mrf.mxu0
        %4207 = vmatprep.mubr.f32.mxu0 0.0
        %4208 = vmatmul.mubr.f32.gmra.mxu0 %v4073
        %v4209 = vpop.f32.mrf.mxu0
        %v4210 = vpop.f32.mrf.mxu0
        %4211 = vmatprep.mubr.f32.mxu0 0.0
        %4212 = vmatmul.mubr.f32.gmra.mxu0 %v4076
        %v4213 = vpop.f32.mrf.mxu0
        %v4214 = vadd.f32 %v4013, %v4213
        %v4215 = vpop.f32.mrf.mxu0
        %4216 = vmatprep.mubr.f32.mxu0 0.0
        %4217 = vmatmul.mubr.f32.gmra.mxu0 %v4079
        %v4218 = vpop.f32.mrf.mxu0
        %v4219 = vadd.f32 %v4018, %v4218
        %v4220 = vpop.f32.mrf.mxu0
        %4221 = vmatprep.mubr.f32.mxu0 0.0
        %4222 = vmatmul.mubr.f32.gmra.mxu0 %v4082
        %v4223 = vpop.f32.mrf.mxu0
        %v4224 = vpop.f32.mrf.mxu0
        %4225 = vmatprep.mubr.f32.mxu0 0.0
        %4226 = vmatmul.mubr.f32.gmra.mxu0 %v4085
        %v4227 = vpop.f32.mrf.mxu0
        %v4228 = vpop.f32.mrf.mxu0
        %4229 = vmatprep.mubr.f32.mxu0 0.0
        %4230 = vmatmul.mubr.f32.gmra.mxu0 %v4088
        %v4231 = vpop.f32.mrf.mxu0
        %v4232 = vadd.f32 %v4031, %v4231
        %v4233 = vpop.f32.mrf.mxu0
        %4234 = vmatprep.mubr.f32.mxu0 0.0
        %4235 = vmatmul.mubr.f32.gmra.mxu0 %v4091
        %v4236 = vpop.f32.mrf.mxu0
        %v4237 = vadd.f32 %v4036, %v4236
        %v4238 = vpop.f32.mrf.mxu0
        %4239 = vdwg.mxu0
        %v4240 = vld [vmem:[#allocation3 + $0x4] sm:$0xff]
        %v4241 = vld [vmem:[#allocation3 + $0xc] sm:$0xff]
        %v4242 = vld [vmem:[#allocation3 + $0x14] sm:$0xff]
        %v4243 = vld [vmem:[#allocation3 + $0x1c] sm:$0xff]
        %v4244 = vld [vmem:[#allocation3 + $0x24] sm:$0xff]
        %v4245 = vld [vmem:[#allocation3 + $0x2c] sm:$0xff]
        %v4246 = vld [vmem:[#allocation3 + $0x34] sm:$0xff]
        %v4247 = vld [vmem:[#allocation3 + $0x3c] sm:$0xff]
        %v4248 = vld [vmem:[#allocation3 + $0x44] sm:$0xff]
        %v4249 = vld [vmem:[#allocation3 + $0x4c] sm:$0xff]
        %v4250 = vld [vmem:[#allocation3 + $0x54] sm:$0xff]
        %v4251 = vld [vmem:[#allocation3 + $0x5c] sm:$0xff]
        %v4252 = vld [vmem:[#allocation3 + $0x64] sm:$0xff]
        %v4253 = vld [vmem:[#allocation3 + $0x6c] sm:$0xff]
        %v4254 = vld [vmem:[#allocation3 + $0x74] sm:$0xff]
        %v4255 = vld [vmem:[#allocation3 + $0x7c] sm:$0xff]
        %v4256 = vld [vmem:[#allocation3 + $0x84] sm:$0xff]
        %v4257 = vld [vmem:[#allocation3 + $0x8c] sm:$0xff]
        %s4258 = scalar_lea.vmem [#allocation4], 64
        %v4259 = vld [vmem:[%s4258] sm:$0xff]
        %v4260 = vld [vmem:[%s4258 + $0x8] sm:$0xff]
        %v4261 = vld [vmem:[%s4258 + $0x10] sm:$0xff]
        %v4262 = vld [vmem:[%s4258 + $0x18] sm:$0xff]
        %v4264 = vsel %vm3535, %v4240, 0
        %v4267 = vsel %vm3535, %v4241, 0
        %v4270 = vsel %vm3535, %v4242, 0
        %v4273 = vsel %vm3535, %v4243, 0
        %v4276 = vsel %vm3535, %v4244, 0
        %v4279 = vsel %vm3535, %v4245, 0
        %v4282 = vsel %vm3535, %v4246, 0
        %v4285 = vsel %vm3535, %v4247, 0
        %v4288 = vsel %vm3535, %v4248, 0
        %v4291 = vsel %vm3535, %v4249, 0
        %v4294 = vsel %vm3535, %v4250, 0
        %v4297 = vsel %vm3535, %v4251, 0
        %v4300 = vsel %vm3535, %v4252, 0
        %v4303 = vsel %vm3535, %v4253, 0
        %v4306 = vsel %vm3535, %v4254, 0
        %v4309 = vsel %vm3535, %v4255, 0
        %v4312 = vsel %vm3535, %v4256, 0
        %v4315 = vsel %vm3535, %v4257, 0
        %4317 = vmatprep.subr.mxu0 0.0
        %4318 = vmatpush1.msra.mxu0 0.0
        %4319 = vmatprep.subr.mxu0 0.0
        %4320 = vmatpush1.msra.mxu0 0.0
        %4321 = vmatprep.subr.mxu0 0.0
        %4322 = vmatpush1.msra.mxu0 0.0
        %4323 = vmatprep.subr.mxu0 0.0
        %4324 = vmatpush1.msra.mxu0 0.0
        %4325 = vmatprep.subr.mxu0 0.0
        %4326 = vmatpush1.msra.mxu0 0.0
        %4327 = vmatprep.subr.mxu0 0.0
        %4328 = vmatpush1.msra.mxu0 0.0
        %4329 = vmatprep.subr.mxu0 0.0
        %4330 = vmatpush1.msra.mxu0 0.0
        %4331 = vmatprep.subr.mxu0 0.0
        %4332 = vmatpush1.msra.mxu0 0.0
        %4333 = vmatprep.subr.mxu0 0.0
        %4334 = vmatpush1.msra.mxu0 0.0
        %4335 = vmatprep.subr.mxu0 0.0
        %4336 = vmatpush1.msra.mxu0 0.0
        %4337 = vmatprep.subr.mxu0 0.0
        %4338 = vmatpush1.msra.mxu0 0.0
        %4339 = vmatprep.subr.mxu0 0.0
        %4340 = vmatpush1.msra.mxu0 0.0
        %4341 = vmatprep.subr.mxu0 0.0
        %4342 = vmatpush1.msra.mxu0 %v4262
        %4343 = vmatprep.subr.mxu0 0.0
        %4344 = vmatpush1.msra.mxu0 %v4261
        %4345 = vmatprep.subr.mxu0 0.0
        %4346 = vmatpush1.msra.mxu0 %v4260
        %4347 = vmatprep.subr.mxu0 0.0
        %4348 = vmatpush1.msra.mxu0 %v4259
        %4349 = vmatprep.subr.mxu0 0.0
        %4350 = vmatpush2.msra.mxu0 0.0
        %4351 = vmatprep.subr.mxu0 0.0
        %4352 = vmatpush2.msra.mxu0 0.0
        %4353 = vmatprep.subr.mxu0 0.0
        %4354 = vmatpush2.msra.mxu0 0.0
        %4355 = vmatprep.subr.mxu0 0.0
        %4356 = vmatpush2.msra.mxu0 0.0
        %4357 = vmatprep.subr.mxu0 0.0
        %4358 = vmatpush2.msra.mxu0 0.0
        %4359 = vmatprep.subr.mxu0 0.0
        %4360 = vmatpush2.msra.mxu0 0.0
        %4361 = vmatprep.subr.mxu0 0.0
        %4362 = vmatpush2.msra.mxu0 0.0
        %4363 = vmatprep.subr.mxu0 0.0
        %4364 = vmatpush2.msra.mxu0 0.0
        %4365 = vmatprep.subr.mxu0 0.0
        %4366 = vmatpush2.msra.mxu0 0.0
        %4367 = vmatprep.subr.mxu0 0.0
        %4368 = vmatpush2.msra.mxu0 0.0
        %4369 = vmatprep.subr.mxu0 0.0
        %4370 = vmatpush2.msra.mxu0 0.0
        %4371 = vmatprep.subr.mxu0 0.0
        %4372 = vmatpush2.msra.mxu0 0.0
        %4373 = vmatprep.subr.mxu0 0.0
        %4374 = vmatpush2.msra.mxu0 0.0
        %4375 = vmatprep.subr.mxu0 0.0
        %4376 = vmatpush2.msra.mxu0 0.0
        %4377 = vmatprep.subr.mxu0 0.0
        %4378 = vmatpush2.msra.mxu0 0.0
        %4379 = vmatprep.subr.mxu0 0.0
        %4380 = vmatpush2.msra.mxu0 0.0
        %4381 = vmatprep.mubr.f32.mxu0 0.0
        %4382 = vmatmul.mubr.f32.gmra.mxu0 %v4264
        %v4383 = vpop.f32.mrf.mxu0
        %v4384 = vadd.f32 0.0, %v4383
        %v4385 = vpop.f32.mrf.mxu0
        %4386 = vmatprep.mubr.f32.mxu0 0.0
        %4387 = vmatmul.mubr.f32.gmra.mxu0 %v4267
        %v4388 = vpop.f32.mrf.mxu0
        %v4389 = vadd.f32 0.0, %v4388
        %v4390 = vpop.f32.mrf.mxu0
        %4391 = vmatprep.mubr.f32.mxu0 0.0
        %4392 = vmatmul.mubr.f32.gmra.mxu0 %v4270
        %v4393 = vpop.f32.mrf.mxu0
        %v4394 = vpop.f32.mrf.mxu0
        %4395 = vmatprep.mubr.f32.mxu0 0.0
        %4396 = vmatmul.mubr.f32.gmra.mxu0 %v4273
        %v4397 = vpop.f32.mrf.mxu0
        %v4398 = vpop.f32.mrf.mxu0
        %4399 = vmatprep.mubr.f32.mxu0 0.0
        %4400 = vmatmul.mubr.f32.gmra.mxu0 %v4276
        %v4401 = vpop.f32.mrf.mxu0
        %v4402 = vadd.f32 0.0, %v4401
        %v4403 = vpop.f32.mrf.mxu0
        %4404 = vmatprep.mubr.f32.mxu0 0.0
        %4405 = vmatmul.mubr.f32.gmra.mxu0 %v4279
        %v4406 = vpop.f32.mrf.mxu0
        %v4407 = vadd.f32 0.0, %v4406
        %v4408 = vpop.f32.mrf.mxu0
        %4409 = vmatprep.mubr.f32.mxu0 0.0
        %4410 = vmatmul.mubr.f32.gmra.mxu0 %v4282
        %v4411 = vpop.f32.mrf.mxu0
        %v4412 = vpop.f32.mrf.mxu0
        %4413 = vmatprep.mubr.f32.mxu0 0.0
        %4414 = vmatmul.mubr.f32.gmra.mxu0 %v4285
        %v4415 = vpop.f32.mrf.mxu0
        %v4416 = vpop.f32.mrf.mxu0
        %4417 = vmatprep.mubr.f32.mxu0 0.0
        %4418 = vmatmul.mubr.f32.gmra.mxu0 %v4288
        %v4419 = vpop.f32.mrf.mxu0
        %v4420 = vadd.f32 0.0, %v4419
        %v4421 = vpop.f32.mrf.mxu0
        %4422 = vmatprep.mubr.f32.mxu0 0.0
        %4423 = vmatmul.mubr.f32.gmra.mxu0 %v4291
        %v4424 = vpop.f32.mrf.mxu0
        %v4425 = vadd.f32 0.0, %v4424
        %v4426 = vpop.f32.mrf.mxu0
        %4427 = vmatprep.mubr.f32.mxu0 0.0
        %4428 = vmatmul.mubr.f32.gmra.mxu0 %v4294
        %v4429 = vpop.f32.mrf.mxu0
        %v4430 = vpop.f32.mrf.mxu0
        %4431 = vmatprep.mubr.f32.mxu0 0.0
        %4432 = vmatmul.mubr.f32.gmra.mxu0 %v4297
        %v4433 = vpop.f32.mrf.mxu0
        %v4434 = vpop.f32.mrf.mxu0
        %4435 = vmatprep.mubr.f32.mxu0 0.0
        %4436 = vmatmul.mubr.f32.gmra.mxu0 %v4300
        %v4437 = vpop.f32.mrf.mxu0
        %v4438 = vadd.f32 0.0, %v4437
        %v4439 = vpop.f32.mrf.mxu0
        %4440 = vmatprep.mubr.f32.mxu0 0.0
        %4441 = vmatmul.mubr.f32.gmra.mxu0 %v4303
        %v4442 = vpop.f32.mrf.mxu0
        %v4443 = vadd.f32 0.0, %v4442
        %v4444 = vpop.f32.mrf.mxu0
        %4445 = vmatprep.mubr.f32.mxu0 0.0
        %4446 = vmatmul.mubr.f32.gmra.mxu0 %v4306
        %v4447 = vpop.f32.mrf.mxu0
        %v4448 = vpop.f32.mrf.mxu0
        %4449 = vmatprep.mubr.f32.mxu0 0.0
        %4450 = vmatmul.mubr.f32.gmra.mxu0 %v4309
        %v4451 = vpop.f32.mrf.mxu0
        %v4452 = vpop.f32.mrf.mxu0
        %4453 = vmatprep.mubr.f32.mxu0 0.0
        %4454 = vmatmul.mubr.f32.gmra.mxu0 %v4312
        %v4455 = vpop.f32.mrf.mxu0
        %v4456 = vadd.f32 0.0, %v4455
        %v4457 = vpop.f32.mrf.mxu0
        %4458 = vmatprep.mubr.f32.mxu0 0.0
        %4459 = vmatmul.mubr.f32.gmra.mxu0 %v4315
        %v4460 = vpop.f32.mrf.mxu0
        %v4461 = vadd.f32 0.0, %v4460
        %v4462 = vpop.f32.mrf.mxu0
        %4463 = vdwg.mxu0
        %v4464 = vadd.f32 %v4160, %v4384
        %v4465 = vadd.f32 %v4165, %v4389
        %v4466 = vadd.f32 %v4178, %v4402
        %v4467 = vadd.f32 %v4183, %v4407
        %v4468 = vadd.f32 %v4196, %v4420
        %v4469 = vadd.f32 %v4201, %v4425
        %v4470 = vadd.f32 %v4214, %v4438
        %v4471 = vadd.f32 %v4219, %v4443
        %v4472 = vadd.f32 %v4232, %v4456
        %v4473 = vadd.f32 %v4237, %v4461
        %v4474 = vld [vmem:[#allocation3 + $0x20] sm:$0xff]
        %v4475 = vld [vmem:[#allocation3 + $0x28] sm:$0xff]
        %v4476 = vld [vmem:[#allocation3 + $0x30] sm:$0xff]
        %v4477 = vld [vmem:[#allocation3 + $0x38] sm:$0xff]
        %v4478 = vld [vmem:[#allocation3 + $0x40] sm:$0xff]
        %v4479 = vld [vmem:[#allocation3 + $0x48] sm:$0xff]
        %v4480 = vld [vmem:[#allocation3 + $0x50] sm:$0xff]
        %v4481 = vld [vmem:[#allocation3 + $0x58] sm:$0xff]
        %v4482 = vld [vmem:[#allocation3 + $0x60] sm:$0xff]
        %v4483 = vld [vmem:[#allocation3 + $0x68] sm:$0xff]
        %v4484 = vld [vmem:[#allocation3 + $0x70] sm:$0xff]
        %v4485 = vld [vmem:[#allocation3 + $0x78] sm:$0xff]
        %v4486 = vld [vmem:[#allocation3 + $0x80] sm:$0xff]
        %v4487 = vld [vmem:[#allocation3 + $0x88] sm:$0xff]
        %v4488 = vld [vmem:[#allocation3 + $0x90] sm:$0xff]
        %v4489 = vld [vmem:[#allocation3 + $0x98] sm:$0xff]
        %v4490 = vld [vmem:[#allocation3 + $0xa0] sm:$0xff]
        %v4491 = vld [vmem:[#allocation3 + $0xa8] sm:$0xff]
        %s4492 = scalar_lea.vmem [#allocation4], 96
        %v4493 = vld [vmem:[%s4492] sm:$0xff]
        %v4494 = vld [vmem:[%s4492 + $0x8] sm:$0xff]
        %v4495 = vld [vmem:[%s4492 + $0x10] sm:$0xff]
        %v4496 = vld [vmem:[%s4492 + $0x18] sm:$0xff]
        %v4498 = vsel %vm3535, %v4474, 0
        %v4501 = vsel %vm3535, %v4475, 0
        %v4504 = vsel %vm3535, %v4476, 0
        %v4507 = vsel %vm3535, %v4477, 0
        %v4510 = vsel %vm3535, %v4478, 0
        %v4513 = vsel %vm3535, %v4479, 0
        %v4516 = vsel %vm3535, %v4480, 0
        %v4519 = vsel %vm3535, %v4481, 0
        %v4522 = vsel %vm3535, %v4482, 0
        %v4525 = vsel %vm3535, %v4483, 0
        %v4528 = vsel %vm3535, %v4484, 0
        %v4531 = vsel %vm3535, %v4485, 0
        %v4534 = vsel %vm3535, %v4486, 0
        %v4537 = vsel %vm3535, %v4487, 0
        %v4540 = vsel %vm3535, %v4488, 0
        %v4543 = vsel %vm3535, %v4489, 0
        %v4546 = vsel %vm3535, %v4490, 0
        %v4549 = vsel %vm3535, %v4491, 0
        %4551 = vmatprep.subr.mxu0 0.0
        %4552 = vmatpush1.msra.mxu0 0.0
        %4553 = vmatprep.subr.mxu0 0.0
        %4554 = vmatpush1.msra.mxu0 0.0
        %4555 = vmatprep.subr.mxu0 0.0
        %4556 = vmatpush1.msra.mxu0 0.0
        %4557 = vmatprep.subr.mxu0 0.0
        %4558 = vmatpush1.msra.mxu0 0.0
        %4559 = vmatprep.subr.mxu0 0.0
        %4560 = vmatpush1.msra.mxu0 0.0
        %4561 = vmatprep.subr.mxu0 0.0
        %4562 = vmatpush1.msra.mxu0 0.0
        %4563 = vmatprep.subr.mxu0 0.0
        %4564 = vmatpush1.msra.mxu0 0.0
        %4565 = vmatprep.subr.mxu0 0.0
        %4566 = vmatpush1.msra.mxu0 0.0
        %4567 = vmatprep.subr.mxu0 0.0
        %4568 = vmatpush1.msra.mxu0 0.0
        %4569 = vmatprep.subr.mxu0 0.0
        %4570 = vmatpush1.msra.mxu0 0.0
        %4571 = vmatprep.subr.mxu0 0.0
        %4572 = vmatpush1.msra.mxu0 0.0
        %4573 = vmatprep.subr.mxu0 0.0
        %4574 = vmatpush1.msra.mxu0 0.0
        %4575 = vmatprep.subr.mxu0 0.0
        %4576 = vmatpush1.msra.mxu0 %v4496
        %4577 = vmatprep.subr.mxu0 0.0
        %4578 = vmatpush1.msra.mxu0 %v4495
        %4579 = vmatprep.subr.mxu0 0.0
        %4580 = vmatpush1.msra.mxu0 %v4494
        %4581 = vmatprep.subr.mxu0 0.0
        %4582 = vmatpush1.msra.mxu0 %v4493
        %4583 = vmatprep.subr.mxu0 0.0
        %4584 = vmatpush2.msra.mxu0 0.0
        %4585 = vmatprep.subr.mxu0 0.0
        %4586 = vmatpush2.msra.mxu0 0.0
        %4587 = vmatprep.subr.mxu0 0.0
        %4588 = vmatpush2.msra.mxu0 0.0
        %4589 = vmatprep.subr.mxu0 0.0
        %4590 = vmatpush2.msra.mxu0 0.0
        %4591 = vmatprep.subr.mxu0 0.0
        %4592 = vmatpush2.msra.mxu0 0.0
        %4593 = vmatprep.subr.mxu0 0.0
        %4594 = vmatpush2.msra.mxu0 0.0
        %4595 = vmatprep.subr.mxu0 0.0
        %4596 = vmatpush2.msra.mxu0 0.0
        %4597 = vmatprep.subr.mxu0 0.0
        %4598 = vmatpush2.msra.mxu0 0.0
        %4599 = vmatprep.subr.mxu0 0.0
        %4600 = vmatpush2.msra.mxu0 0.0
        %4601 = vmatprep.subr.mxu0 0.0
        %4602 = vmatpush2.msra.mxu0 0.0
        %4603 = vmatprep.subr.mxu0 0.0
        %4604 = vmatpush2.msra.mxu0 0.0
        %4605 = vmatprep.subr.mxu0 0.0
        %4606 = vmatpush2.msra.mxu0 0.0
        %4607 = vmatprep.subr.mxu0 0.0
        %4608 = vmatpush2.msra.mxu0 0.0
        %4609 = vmatprep.subr.mxu0 0.0
        %4610 = vmatpush2.msra.mxu0 0.0
        %4611 = vmatprep.subr.mxu0 0.0
        %4612 = vmatpush2.msra.mxu0 0.0
        %4613 = vmatprep.subr.mxu0 0.0
        %4614 = vmatpush2.msra.mxu0 0.0
        %4615 = vmatprep.mubr.f32.mxu0 0.0
        %4616 = vmatmul.mubr.f32.gmra.mxu0 %v4498
        %v4617 = vpop.f32.mrf.mxu0
        %v4618 = vadd.f32 0.0, %v4617
        %v4619 = vpop.f32.mrf.mxu0
        %4620 = vmatprep.mubr.f32.mxu0 0.0
        %4621 = vmatmul.mubr.f32.gmra.mxu0 %v4501
        %v4622 = vpop.f32.mrf.mxu0
        %v4623 = vadd.f32 0.0, %v4622
        %v4624 = vpop.f32.mrf.mxu0
        %4625 = vmatprep.mubr.f32.mxu0 0.0
        %4626 = vmatmul.mubr.f32.gmra.mxu0 %v4504
        %v4627 = vpop.f32.mrf.mxu0
        %v4628 = vpop.f32.mrf.mxu0
        %4629 = vmatprep.mubr.f32.mxu0 0.0
        %4630 = vmatmul.mubr.f32.gmra.mxu0 %v4507
        %v4631 = vpop.f32.mrf.mxu0
        %v4632 = vpop.f32.mrf.mxu0
        %4633 = vmatprep.mubr.f32.mxu0 0.0
        %4634 = vmatmul.mubr.f32.gmra.mxu0 %v4510
        %v4635 = vpop.f32.mrf.mxu0
        %v4636 = vadd.f32 0.0, %v4635
        %v4637 = vpop.f32.mrf.mxu0
        %4638 = vmatprep.mubr.f32.mxu0 0.0
        %4639 = vmatmul.mubr.f32.gmra.mxu0 %v4513
        %v4640 = vpop.f32.mrf.mxu0
        %v4641 = vadd.f32 0.0, %v4640
        %v4642 = vpop.f32.mrf.mxu0
        %4643 = vmatprep.mubr.f32.mxu0 0.0
        %4644 = vmatmul.mubr.f32.gmra.mxu0 %v4516
        %v4645 = vpop.f32.mrf.mxu0
        %v4646 = vpop.f32.mrf.mxu0
        %4647 = vmatprep.mubr.f32.mxu0 0.0
        %4648 = vmatmul.mubr.f32.gmra.mxu0 %v4519
        %v4649 = vpop.f32.mrf.mxu0
        %v4650 = vpop.f32.mrf.mxu0
        %4651 = vmatprep.mubr.f32.mxu0 0.0
        %4652 = vmatmul.mubr.f32.gmra.mxu0 %v4522
        %v4653 = vpop.f32.mrf.mxu0
        %v4654 = vadd.f32 0.0, %v4653
        %v4655 = vpop.f32.mrf.mxu0
        %4656 = vmatprep.mubr.f32.mxu0 0.0
        %4657 = vmatmul.mubr.f32.gmra.mxu0 %v4525
        %v4658 = vpop.f32.mrf.mxu0
        %v4659 = vadd.f32 0.0, %v4658
        %v4660 = vpop.f32.mrf.mxu0
        %4661 = vmatprep.mubr.f32.mxu0 0.0
        %4662 = vmatmul.mubr.f32.gmra.mxu0 %v4528
        %v4663 = vpop.f32.mrf.mxu0
        %v4664 = vpop.f32.mrf.mxu0
        %4665 = vmatprep.mubr.f32.mxu0 0.0
        %4666 = vmatmul.mubr.f32.gmra.mxu0 %v4531
        %v4667 = vpop.f32.mrf.mxu0
        %v4668 = vpop.f32.mrf.mxu0
        %4669 = vmatprep.mubr.f32.mxu0 0.0
        %4670 = vmatmul.mubr.f32.gmra.mxu0 %v4534
        %v4671 = vpop.f32.mrf.mxu0
        %v4672 = vadd.f32 0.0, %v4671
        %v4673 = vpop.f32.mrf.mxu0
        %4674 = vmatprep.mubr.f32.mxu0 0.0
        %4675 = vmatmul.mubr.f32.gmra.mxu0 %v4537
        %v4676 = vpop.f32.mrf.mxu0
        %v4677 = vadd.f32 0.0, %v4676
        %v4678 = vpop.f32.mrf.mxu0
        %4679 = vmatprep.mubr.f32.mxu0 0.0
        %4680 = vmatmul.mubr.f32.gmra.mxu0 %v4540
        %v4681 = vpop.f32.mrf.mxu0
        %v4682 = vpop.f32.mrf.mxu0
        %4683 = vmatprep.mubr.f32.mxu0 0.0
        %4684 = vmatmul.mubr.f32.gmra.mxu0 %v4543
        %v4685 = vpop.f32.mrf.mxu0
        %v4686 = vpop.f32.mrf.mxu0
        %4687 = vmatprep.mubr.f32.mxu0 0.0
        %4688 = vmatmul.mubr.f32.gmra.mxu0 %v4546
        %v4689 = vpop.f32.mrf.mxu0
        %v4690 = vadd.f32 0.0, %v4689
        %v4691 = vpop.f32.mrf.mxu0
        %4692 = vmatprep.mubr.f32.mxu0 0.0
        %4693 = vmatmul.mubr.f32.gmra.mxu0 %v4549
        %v4694 = vpop.f32.mrf.mxu0
        %v4695 = vadd.f32 0.0, %v4694
        %v4696 = vpop.f32.mrf.mxu0
        %4697 = vdwg.mxu0
        %v4698 = vadd.f32 %v4464, %v4618
        %v4699 = vadd.f32 %v4465, %v4623
        %v4700 = vadd.f32 %v4466, %v4636
        %v4701 = vadd.f32 %v4467, %v4641
        %v4702 = vadd.f32 %v4468, %v4654
        %v4703 = vadd.f32 %v4469, %v4659
        %v4704 = vadd.f32 %v4470, %v4672
        %v4705 = vadd.f32 %v4471, %v4677
        %v4706 = vadd.f32 %v4472, %v4690
        %v4707 = vadd.f32 %v4473, %v4695
        %v4708 = vld [vmem:[#allocation3 + $0x22] sm:$0xff]
        %v4709 = vld [vmem:[#allocation3 + $0x2a] sm:$0xff]
        %v4710 = vld [vmem:[#allocation3 + $0x32] sm:$0xff]
        %v4711 = vld [vmem:[#allocation3 + $0x3a] sm:$0xff]
        %v4712 = vld [vmem:[#allocation3 + $0x42] sm:$0xff]
        %v4713 = vld [vmem:[#allocation3 + $0x4a] sm:$0xff]
        %v4714 = vld [vmem:[#allocation3 + $0x52] sm:$0xff]
        %v4715 = vld [vmem:[#allocation3 + $0x5a] sm:$0xff]
        %v4716 = vld [vmem:[#allocation3 + $0x62] sm:$0xff]
        %v4717 = vld [vmem:[#allocation3 + $0x6a] sm:$0xff]
        %v4718 = vld [vmem:[#allocation3 + $0x72] sm:$0xff]
        %v4719 = vld [vmem:[#allocation3 + $0x7a] sm:$0xff]
        %v4720 = vld [vmem:[#allocation3 + $0x82] sm:$0xff]
        %v4721 = vld [vmem:[#allocation3 + $0x8a] sm:$0xff]
        %v4722 = vld [vmem:[#allocation3 + $0x92] sm:$0xff]
        %v4723 = vld [vmem:[#allocation3 + $0x9a] sm:$0xff]
        %v4724 = vld [vmem:[#allocation3 + $0xa2] sm:$0xff]
        %v4725 = vld [vmem:[#allocation3 + $0xaa] sm:$0xff]
        %s4726 = scalar_lea.vmem [#allocation4], 128
        %v4727 = vld [vmem:[%s4726] sm:$0xff]
        %v4728 = vld [vmem:[%s4726 + $0x8] sm:$0xff]
        %v4729 = vld [vmem:[%s4726 + $0x10] sm:$0xff]
        %v4730 = vld [vmem:[%s4726 + $0x18] sm:$0xff]
        %v4732 = vsel %vm3535, %v4708, 0
        %v4735 = vsel %vm3535, %v4709, 0
        %v4738 = vsel %vm3535, %v4710, 0
        %v4741 = vsel %vm3535, %v4711, 0
        %v4744 = vsel %vm3535, %v4712, 0
        %v4747 = vsel %vm3535, %v4713, 0
        %v4750 = vsel %vm3535, %v4714, 0
        %v4753 = vsel %vm3535, %v4715, 0
        %v4756 = vsel %vm3535, %v4716, 0
        %v4759 = vsel %vm3535, %v4717, 0
        %v4762 = vsel %vm3535, %v4718, 0
        %v4765 = vsel %vm3535, %v4719, 0
        %v4768 = vsel %vm3535, %v4720, 0
        %v4771 = vsel %vm3535, %v4721, 0
        %v4774 = vsel %vm3535, %v4722, 0
        %v4777 = vsel %vm3535, %v4723, 0
        %v4780 = vsel %vm3535, %v4724, 0
        %v4783 = vsel %vm3535, %v4725, 0
        %4785 = vmatprep.subr.mxu0 0.0
        %4786 = vmatpush1.msra.mxu0 0.0
        %4787 = vmatprep.subr.mxu0 0.0
        %4788 = vmatpush1.msra.mxu0 0.0
        %4789 = vmatprep.subr.mxu0 0.0
        %4790 = vmatpush1.msra.mxu0 0.0
        %4791 = vmatprep.subr.mxu0 0.0
        %4792 = vmatpush1.msra.mxu0 0.0
        %4793 = vmatprep.subr.mxu0 0.0
        %4794 = vmatpush1.msra.mxu0 0.0
        %4795 = vmatprep.subr.mxu0 0.0
        %4796 = vmatpush1.msra.mxu0 0.0
        %4797 = vmatprep.subr.mxu0 0.0
        %4798 = vmatpush1.msra.mxu0 0.0
        %4799 = vmatprep.subr.mxu0 0.0
        %4800 = vmatpush1.msra.mxu0 0.0
        %4801 = vmatprep.subr.mxu0 0.0
        %4802 = vmatpush1.msra.mxu0 0.0
        %4803 = vmatprep.subr.mxu0 0.0
        %4804 = vmatpush1.msra.mxu0 0.0
        %4805 = vmatprep.subr.mxu0 0.0
        %4806 = vmatpush1.msra.mxu0 0.0
        %4807 = vmatprep.subr.mxu0 0.0
        %4808 = vmatpush1.msra.mxu0 0.0
        %4809 = vmatprep.subr.mxu0 0.0
        %4810 = vmatpush1.msra.mxu0 %v4730
        %4811 = vmatprep.subr.mxu0 0.0
        %4812 = vmatpush1.msra.mxu0 %v4729
        %4813 = vmatprep.subr.mxu0 0.0
        %4814 = vmatpush1.msra.mxu0 %v4728
        %4815 = vmatprep.subr.mxu0 0.0
        %4816 = vmatpush1.msra.mxu0 %v4727
        %4817 = vmatprep.subr.mxu0 0.0
        %4818 = vmatpush2.msra.mxu0 0.0
        %4819 = vmatprep.subr.mxu0 0.0
        %4820 = vmatpush2.msra.mxu0 0.0
        %4821 = vmatprep.subr.mxu0 0.0
        %4822 = vmatpush2.msra.mxu0 0.0
        %4823 = vmatprep.subr.mxu0 0.0
        %4824 = vmatpush2.msra.mxu0 0.0
        %4825 = vmatprep.subr.mxu0 0.0
        %4826 = vmatpush2.msra.mxu0 0.0
        %4827 = vmatprep.subr.mxu0 0.0
        %4828 = vmatpush2.msra.mxu0 0.0
        %4829 = vmatprep.subr.mxu0 0.0
        %4830 = vmatpush2.msra.mxu0 0.0
        %4831 = vmatprep.subr.mxu0 0.0
        %4832 = vmatpush2.msra.mxu0 0.0
        %4833 = vmatprep.subr.mxu0 0.0
        %4834 = vmatpush2.msra.mxu0 0.0
        %4835 = vmatprep.subr.mxu0 0.0
        %4836 = vmatpush2.msra.mxu0 0.0
        %4837 = vmatprep.subr.mxu0 0.0
        %4838 = vmatpush2.msra.mxu0 0.0
        %4839 = vmatprep.subr.mxu0 0.0
        %4840 = vmatpush2.msra.mxu0 0.0
        %4841 = vmatprep.subr.mxu0 0.0
        %4842 = vmatpush2.msra.mxu0 0.0
        %4843 = vmatprep.subr.mxu0 0.0
        %4844 = vmatpush2.msra.mxu0 0.0
        %4845 = vmatprep.subr.mxu0 0.0
        %4846 = vmatpush2.msra.mxu0 0.0
        %4847 = vmatprep.subr.mxu0 0.0
        %4848 = vmatpush2.msra.mxu0 0.0
        %4849 = vmatprep.mubr.f32.mxu0 0.0
        %4850 = vmatmul.mubr.f32.gmra.mxu0 %v4732
        %v4851 = vpop.f32.mrf.mxu0
        %v4852 = vadd.f32 0.0, %v4851
        %v4853 = vpop.f32.mrf.mxu0
        %4854 = vmatprep.mubr.f32.mxu0 0.0
        %4855 = vmatmul.mubr.f32.gmra.mxu0 %v4735
        %v4856 = vpop.f32.mrf.mxu0
        %v4857 = vadd.f32 0.0, %v4856
        %v4858 = vpop.f32.mrf.mxu0
        %4859 = vmatprep.mubr.f32.mxu0 0.0
        %4860 = vmatmul.mubr.f32.gmra.mxu0 %v4738
        %v4861 = vpop.f32.mrf.mxu0
        %v4862 = vpop.f32.mrf.mxu0
        %4863 = vmatprep.mubr.f32.mxu0 0.0
        %4864 = vmatmul.mubr.f32.gmra.mxu0 %v4741
        %v4865 = vpop.f32.mrf.mxu0
        %v4866 = vpop.f32.mrf.mxu0
        %4867 = vmatprep.mubr.f32.mxu0 0.0
        %4868 = vmatmul.mubr.f32.gmra.mxu0 %v4744
        %v4869 = vpop.f32.mrf.mxu0
        %v4870 = vadd.f32 0.0, %v4869
        %v4871 = vpop.f32.mrf.mxu0
        %4872 = vmatprep.mubr.f32.mxu0 0.0
        %4873 = vmatmul.mubr.f32.gmra.mxu0 %v4747
        %v4874 = vpop.f32.mrf.mxu0
        %v4875 = vadd.f32 0.0, %v4874
        %v4876 = vpop.f32.mrf.mxu0
        %4877 = vmatprep.mubr.f32.mxu0 0.0
        %4878 = vmatmul.mubr.f32.gmra.mxu0 %v4750
        %v4879 = vpop.f32.mrf.mxu0
        %v4880 = vpop.f32.mrf.mxu0
        %4881 = vmatprep.mubr.f32.mxu0 0.0
        %4882 = vmatmul.mubr.f32.gmra.mxu0 %v4753
        %v4883 = vpop.f32.mrf.mxu0
        %v4884 = vpop.f32.mrf.mxu0
        %4885 = vmatprep.mubr.f32.mxu0 0.0
        %4886 = vmatmul.mubr.f32.gmra.mxu0 %v4756
        %v4887 = vpop.f32.mrf.mxu0
        %v4888 = vadd.f32 0.0, %v4887
        %v4889 = vpop.f32.mrf.mxu0
        %4890 = vmatprep.mubr.f32.mxu0 0.0
        %4891 = vmatmul.mubr.f32.gmra.mxu0 %v4759
        %v4892 = vpop.f32.mrf.mxu0
        %v4893 = vadd.f32 0.0, %v4892
        %v4894 = vpop.f32.mrf.mxu0
        %4895 = vmatprep.mubr.f32.mxu0 0.0
        %4896 = vmatmul.mubr.f32.gmra.mxu0 %v4762
        %v4897 = vpop.f32.mrf.mxu0
        %v4898 = vpop.f32.mrf.mxu0
        %4899 = vmatprep.mubr.f32.mxu0 0.0
        %4900 = vmatmul.mubr.f32.gmra.mxu0 %v4765
        %v4901 = vpop.f32.mrf.mxu0
        %v4902 = vpop.f32.mrf.mxu0
        %4903 = vmatprep.mubr.f32.mxu0 0.0
        %4904 = vmatmul.mubr.f32.gmra.mxu0 %v4768
        %v4905 = vpop.f32.mrf.mxu0
        %v4906 = vadd.f32 0.0, %v4905
        %v4907 = vpop.f32.mrf.mxu0
        %4908 = vmatprep.mubr.f32.mxu0 0.0
        %4909 = vmatmul.mubr.f32.gmra.mxu0 %v4771
        %v4910 = vpop.f32.mrf.mxu0
        %v4911 = vadd.f32 0.0, %v4910
        %v4912 = vpop.f32.mrf.mxu0
        %4913 = vmatprep.mubr.f32.mxu0 0.0
        %4914 = vmatmul.mubr.f32.gmra.mxu0 %v4774
        %v4915 = vpop.f32.mrf.mxu0
        %v4916 = vpop.f32.mrf.mxu0
        %4917 = vmatprep.mubr.f32.mxu0 0.0
        %4918 = vmatmul.mubr.f32.gmra.mxu0 %v4777
        %v4919 = vpop.f32.mrf.mxu0
        %v4920 = vpop.f32.mrf.mxu0
        %4921 = vmatprep.mubr.f32.mxu0 0.0
        %4922 = vmatmul.mubr.f32.gmra.mxu0 %v4780
        %v4923 = vpop.f32.mrf.mxu0
        %v4924 = vadd.f32 0.0, %v4923
        %v4925 = vpop.f32.mrf.mxu0
        %4926 = vmatprep.mubr.f32.mxu0 0.0
        %4927 = vmatmul.mubr.f32.gmra.mxu0 %v4783
        %v4928 = vpop.f32.mrf.mxu0
        %v4929 = vadd.f32 0.0, %v4928
        %v4930 = vpop.f32.mrf.mxu0
        %4931 = vdwg.mxu0
        %v4932 = vadd.f32 %v4698, %v4852
        %v4933 = vadd.f32 %v4699, %v4857
        %v4934 = vadd.f32 %v4700, %v4870
        %v4935 = vadd.f32 %v4701, %v4875
        %v4936 = vadd.f32 %v4702, %v4888
        %v4937 = vadd.f32 %v4703, %v4893
        %v4938 = vadd.f32 %v4704, %v4906
        %v4939 = vadd.f32 %v4705, %v4911
        %v4940 = vadd.f32 %v4706, %v4924
        %v4941 = vadd.f32 %v4707, %v4929
        %v4942 = vld [vmem:[#allocation3 + $0x24] sm:$0xff]
        %v4943 = vld [vmem:[#allocation3 + $0x2c] sm:$0xff]
        %v4944 = vld [vmem:[#allocation3 + $0x34] sm:$0xff]
        %v4945 = vld [vmem:[#allocation3 + $0x3c] sm:$0xff]
        %v4946 = vld [vmem:[#allocation3 + $0x44] sm:$0xff]
        %v4947 = vld [vmem:[#allocation3 + $0x4c] sm:$0xff]
        %v4948 = vld [vmem:[#allocation3 + $0x54] sm:$0xff]
        %v4949 = vld [vmem:[#allocation3 + $0x5c] sm:$0xff]
        %v4950 = vld [vmem:[#allocation3 + $0x64] sm:$0xff]
        %v4951 = vld [vmem:[#allocation3 + $0x6c] sm:$0xff]
        %v4952 = vld [vmem:[#allocation3 + $0x74] sm:$0xff]
        %v4953 = vld [vmem:[#allocation3 + $0x7c] sm:$0xff]
        %v4954 = vld [vmem:[#allocation3 + $0x84] sm:$0xff]
        %v4955 = vld [vmem:[#allocation3 + $0x8c] sm:$0xff]
        %v4956 = vld [vmem:[#allocation3 + $0x94] sm:$0xff]
        %v4957 = vld [vmem:[#allocation3 + $0x9c] sm:$0xff]
        %v4958 = vld [vmem:[#allocation3 + $0xa4] sm:$0xff]
        %v4959 = vld [vmem:[#allocation3 + $0xac] sm:$0xff]
        %s4960 = scalar_lea.vmem [#allocation4], 160
        %v4961 = vld [vmem:[%s4960] sm:$0xff]
        %v4962 = vld [vmem:[%s4960 + $0x8] sm:$0xff]
        %v4963 = vld [vmem:[%s4960 + $0x10] sm:$0xff]
        %v4964 = vld [vmem:[%s4960 + $0x18] sm:$0xff]
        %v4966 = vsel %vm3535, %v4942, 0
        %v4969 = vsel %vm3535, %v4943, 0
        %v4972 = vsel %vm3535, %v4944, 0
        %v4975 = vsel %vm3535, %v4945, 0
        %v4978 = vsel %vm3535, %v4946, 0
        %v4981 = vsel %vm3535, %v4947, 0
        %v4984 = vsel %vm3535, %v4948, 0
        %v4987 = vsel %vm3535, %v4949, 0
        %v4990 = vsel %vm3535, %v4950, 0
        %v4993 = vsel %vm3535, %v4951, 0
        %v4996 = vsel %vm3535, %v4952, 0
        %v4999 = vsel %vm3535, %v4953, 0
        %v5002 = vsel %vm3535, %v4954, 0
        %v5005 = vsel %vm3535, %v4955, 0
        %v5008 = vsel %vm3535, %v4956, 0
        %v5011 = vsel %vm3535, %v4957, 0
        %v5014 = vsel %vm3535, %v4958, 0
        %v5017 = vsel %vm3535, %v4959, 0
        %5019 = vmatprep.subr.mxu0 0.0
        %5020 = vmatpush1.msra.mxu0 0.0
        %5021 = vmatprep.subr.mxu0 0.0
        %5022 = vmatpush1.msra.mxu0 0.0
        %5023 = vmatprep.subr.mxu0 0.0
        %5024 = vmatpush1.msra.mxu0 0.0
        %5025 = vmatprep.subr.mxu0 0.0
        %5026 = vmatpush1.msra.mxu0 0.0
        %5027 = vmatprep.subr.mxu0 0.0
        %5028 = vmatpush1.msra.mxu0 0.0
        %5029 = vmatprep.subr.mxu0 0.0
        %5030 = vmatpush1.msra.mxu0 0.0
        %5031 = vmatprep.subr.mxu0 0.0
        %5032 = vmatpush1.msra.mxu0 0.0
        %5033 = vmatprep.subr.mxu0 0.0
        %5034 = vmatpush1.msra.mxu0 0.0
        %5035 = vmatprep.subr.mxu0 0.0
        %5036 = vmatpush1.msra.mxu0 0.0
        %5037 = vmatprep.subr.mxu0 0.0
        %5038 = vmatpush1.msra.mxu0 0.0
        %5039 = vmatprep.subr.mxu0 0.0
        %5040 = vmatpush1.msra.mxu0 0.0
        %5041 = vmatprep.subr.mxu0 0.0
        %5042 = vmatpush1.msra.mxu0 0.0
        %5043 = vmatprep.subr.mxu0 0.0
        %5044 = vmatpush1.msra.mxu0 %v4964
        %5045 = vmatprep.subr.mxu0 0.0
        %5046 = vmatpush1.msra.mxu0 %v4963
        %5047 = vmatprep.subr.mxu0 0.0
        %5048 = vmatpush1.msra.mxu0 %v4962
        %5049 = vmatprep.subr.mxu0 0.0
        %5050 = vmatpush1.msra.mxu0 %v4961
        %5051 = vmatprep.subr.mxu0 0.0
        %5052 = vmatpush2.msra.mxu0 0.0
        %5053 = vmatprep.subr.mxu0 0.0
        %5054 = vmatpush2.msra.mxu0 0.0
        %5055 = vmatprep.subr.mxu0 0.0
        %5056 = vmatpush2.msra.mxu0 0.0
        %5057 = vmatprep.subr.mxu0 0.0
        %5058 = vmatpush2.msra.mxu0 0.0
        %5059 = vmatprep.subr.mxu0 0.0
        %5060 = vmatpush2.msra.mxu0 0.0
        %5061 = vmatprep.subr.mxu0 0.0
        %5062 = vmatpush2.msra.mxu0 0.0
        %5063 = vmatprep.subr.mxu0 0.0
        %5064 = vmatpush2.msra.mxu0 0.0
        %5065 = vmatprep.subr.mxu0 0.0
        %5066 = vmatpush2.msra.mxu0 0.0
        %5067 = vmatprep.subr.mxu0 0.0
        %5068 = vmatpush2.msra.mxu0 0.0
        %5069 = vmatprep.subr.mxu0 0.0
        %5070 = vmatpush2.msra.mxu0 0.0
        %5071 = vmatprep.subr.mxu0 0.0
        %5072 = vmatpush2.msra.mxu0 0.0
        %5073 = vmatprep.subr.mxu0 0.0
        %5074 = vmatpush2.msra.mxu0 0.0
        %5075 = vmatprep.subr.mxu0 0.0
        %5076 = vmatpush2.msra.mxu0 0.0
        %5077 = vmatprep.subr.mxu0 0.0
        %5078 = vmatpush2.msra.mxu0 0.0
        %5079 = vmatprep.subr.mxu0 0.0
        %5080 = vmatpush2.msra.mxu0 0.0
        %5081 = vmatprep.subr.mxu0 0.0
        %5082 = vmatpush2.msra.mxu0 0.0
        %5083 = vmatprep.mubr.f32.mxu0 0.0
        %5084 = vmatmul.mubr.f32.gmra.mxu0 %v4966
        %v5085 = vpop.f32.mrf.mxu0
        %v5086 = vadd.f32 0.0, %v5085
        %v5087 = vpop.f32.mrf.mxu0
        %5088 = vmatprep.mubr.f32.mxu0 0.0
        %5089 = vmatmul.mubr.f32.gmra.mxu0 %v4969
        %v5090 = vpop.f32.mrf.mxu0
        %v5091 = vadd.f32 0.0, %v5090
        %v5092 = vpop.f32.mrf.mxu0
        %5093 = vmatprep.mubr.f32.mxu0 0.0
        %5094 = vmatmul.mubr.f32.gmra.mxu0 %v4972
        %v5095 = vpop.f32.mrf.mxu0
        %v5096 = vpop.f32.mrf.mxu0
        %5097 = vmatprep.mubr.f32.mxu0 0.0
        %5098 = vmatmul.mubr.f32.gmra.mxu0 %v4975
        %v5099 = vpop.f32.mrf.mxu0
        %v5100 = vpop.f32.mrf.mxu0
        %5101 = vmatprep.mubr.f32.mxu0 0.0
        %5102 = vmatmul.mubr.f32.gmra.mxu0 %v4978
        %v5103 = vpop.f32.mrf.mxu0
        %v5104 = vadd.f32 0.0, %v5103
        %v5105 = vpop.f32.mrf.mxu0
        %5106 = vmatprep.mubr.f32.mxu0 0.0
        %5107 = vmatmul.mubr.f32.gmra.mxu0 %v4981
        %v5108 = vpop.f32.mrf.mxu0
        %v5109 = vadd.f32 0.0, %v5108
        %v5110 = vpop.f32.mrf.mxu0
        %5111 = vmatprep.mubr.f32.mxu0 0.0
        %5112 = vmatmul.mubr.f32.gmra.mxu0 %v4984
        %v5113 = vpop.f32.mrf.mxu0
        %v5114 = vpop.f32.mrf.mxu0
        %5115 = vmatprep.mubr.f32.mxu0 0.0
        %5116 = vmatmul.mubr.f32.gmra.mxu0 %v4987
        %v5117 = vpop.f32.mrf.mxu0
        %v5118 = vpop.f32.mrf.mxu0
        %5119 = vmatprep.mubr.f32.mxu0 0.0
        %5120 = vmatmul.mubr.f32.gmra.mxu0 %v4990
        %v5121 = vpop.f32.mrf.mxu0
        %v5122 = vadd.f32 0.0, %v5121
        %v5123 = vpop.f32.mrf.mxu0
        %5124 = vmatprep.mubr.f32.mxu0 0.0
        %5125 = vmatmul.mubr.f32.gmra.mxu0 %v4993
        %v5126 = vpop.f32.mrf.mxu0
        %v5127 = vadd.f32 0.0, %v5126
        %v5128 = vpop.f32.mrf.mxu0
        %5129 = vmatprep.mubr.f32.mxu0 0.0
        %5130 = vmatmul.mubr.f32.gmra.mxu0 %v4996
        %v5131 = vpop.f32.mrf.mxu0
        %v5132 = vpop.f32.mrf.mxu0
        %5133 = vmatprep.mubr.f32.mxu0 0.0
        %5134 = vmatmul.mubr.f32.gmra.mxu0 %v4999
        %v5135 = vpop.f32.mrf.mxu0
        %v5136 = vpop.f32.mrf.mxu0
        %5137 = vmatprep.mubr.f32.mxu0 0.0
        %5138 = vmatmul.mubr.f32.gmra.mxu0 %v5002
        %v5139 = vpop.f32.mrf.mxu0
        %v5140 = vadd.f32 0.0, %v5139
        %v5141 = vpop.f32.mrf.mxu0
        %5142 = vmatprep.mubr.f32.mxu0 0.0
        %5143 = vmatmul.mubr.f32.gmra.mxu0 %v5005
        %v5144 = vpop.f32.mrf.mxu0
        %v5145 = vadd.f32 0.0, %v5144
        %v5146 = vpop.f32.mrf.mxu0
        %5147 = vmatprep.mubr.f32.mxu0 0.0
        %5148 = vmatmul.mubr.f32.gmra.mxu0 %v5008
        %v5149 = vpop.f32.mrf.mxu0
        %v5150 = vpop.f32.mrf.mxu0
        %5151 = vmatprep.mubr.f32.mxu0 0.0
        %5152 = vmatmul.mubr.f32.gmra.mxu0 %v5011
        %v5153 = vpop.f32.mrf.mxu0
        %v5154 = vpop.f32.mrf.mxu0
        %5155 = vmatprep.mubr.f32.mxu0 0.0
        %5156 = vmatmul.mubr.f32.gmra.mxu0 %v5014
        %v5157 = vpop.f32.mrf.mxu0
        %v5158 = vadd.f32 0.0, %v5157
        %v5159 = vpop.f32.mrf.mxu0
        %5160 = vmatprep.mubr.f32.mxu0 0.0
        %5161 = vmatmul.mubr.f32.gmra.mxu0 %v5017
        %v5162 = vpop.f32.mrf.mxu0
        %v5163 = vadd.f32 0.0, %v5162
        %v5164 = vpop.f32.mrf.mxu0
        %5165 = vdwg.mxu0
        %v5166 = vadd.f32 %v4932, %v5086
        %v5167 = vadd.f32 %v4933, %v5091
        %v5168 = vadd.f32 %v4934, %v5104
        %v5169 = vadd.f32 %v4935, %v5109
        %v5170 = vadd.f32 %v4936, %v5122
        %v5171 = vadd.f32 %v4937, %v5127
        %v5172 = vadd.f32 %v4938, %v5140
        %v5173 = vadd.f32 %v4939, %v5145
        %v5174 = vadd.f32 %v4940, %v5158
        %v5175 = vadd.f32 %v4941, %v5163
        %v5176 = vld [vmem:[#allocation3 + $0x40] sm:$0xff]
        %v5177 = vld [vmem:[#allocation3 + $0x48] sm:$0xff]
        %v5178 = vld [vmem:[#allocation3 + $0x50] sm:$0xff]
        %v5179 = vld [vmem:[#allocation3 + $0x58] sm:$0xff]
        %v5180 = vld [vmem:[#allocation3 + $0x60] sm:$0xff]
        %v5181 = vld [vmem:[#allocation3 + $0x68] sm:$0xff]
        %v5182 = vld [vmem:[#allocation3 + $0x70] sm:$0xff]
        %v5183 = vld [vmem:[#allocation3 + $0x78] sm:$0xff]
        %v5184 = vld [vmem:[#allocation3 + $0x80] sm:$0xff]
        %v5185 = vld [vmem:[#allocation3 + $0x88] sm:$0xff]
        %v5186 = vld [vmem:[#allocation3 + $0x90] sm:$0xff]
        %v5187 = vld [vmem:[#allocation3 + $0x98] sm:$0xff]
        %v5188 = vld [vmem:[#allocation3 + $0xa0] sm:$0xff]
        %v5189 = vld [vmem:[#allocation3 + $0xa8] sm:$0xff]
        %v5190 = vld [vmem:[#allocation3 + $0xb0] sm:$0xff]
        %v5191 = vld [vmem:[#allocation3 + $0xb8] sm:$0xff]
        %v5192 = vld [vmem:[#allocation3 + $0xc0] sm:$0xff]
        %v5193 = vld [vmem:[#allocation3 + $0xc8] sm:$0xff]
        %s5194 = scalar_lea.vmem [#allocation4], 192
        %v5195 = vld [vmem:[%s5194] sm:$0xff]
        %v5196 = vld [vmem:[%s5194 + $0x8] sm:$0xff]
        %v5197 = vld [vmem:[%s5194 + $0x10] sm:$0xff]
        %v5198 = vld [vmem:[%s5194 + $0x18] sm:$0xff]
        %v5200 = vsel %vm3535, %v5176, 0
        %v5203 = vsel %vm3535, %v5177, 0
        %v5206 = vsel %vm3535, %v5178, 0
        %v5209 = vsel %vm3535, %v5179, 0
        %v5212 = vsel %vm3535, %v5180, 0
        %v5215 = vsel %vm3535, %v5181, 0
        %v5218 = vsel %vm3535, %v5182, 0
        %v5221 = vsel %vm3535, %v5183, 0
        %v5224 = vsel %vm3535, %v5184, 0
        %v5227 = vsel %vm3535, %v5185, 0
        %v5230 = vsel %vm3535, %v5186, 0
        %v5233 = vsel %vm3535, %v5187, 0
        %v5236 = vsel %vm3535, %v5188, 0
        %v5239 = vsel %vm3535, %v5189, 0
        %v5242 = vsel %vm3535, %v5190, 0
        %v5245 = vsel %vm3535, %v5191, 0
        %v5248 = vsel %vm3535, %v5192, 0
        %v5251 = vsel %vm3535, %v5193, 0
        %5253 = vmatprep.subr.mxu0 0.0
        %5254 = vmatpush1.msra.mxu0 0.0
        %5255 = vmatprep.subr.mxu0 0.0
        %5256 = vmatpush1.msra.mxu0 0.0
        %5257 = vmatprep.subr.mxu0 0.0
        %5258 = vmatpush1.msra.mxu0 0.0
        %5259 = vmatprep.subr.mxu0 0.0
        %5260 = vmatpush1.msra.mxu0 0.0
        %5261 = vmatprep.subr.mxu0 0.0
        %5262 = vmatpush1.msra.mxu0 0.0
        %5263 = vmatprep.subr.mxu0 0.0
        %5264 = vmatpush1.msra.mxu0 0.0
        %5265 = vmatprep.subr.mxu0 0.0
        %5266 = vmatpush1.msra.mxu0 0.0
        %5267 = vmatprep.subr.mxu0 0.0
        %5268 = vmatpush1.msra.mxu0 0.0
        %5269 = vmatprep.subr.mxu0 0.0
        %5270 = vmatpush1.msra.mxu0 0.0
        %5271 = vmatprep.subr.mxu0 0.0
        %5272 = vmatpush1.msra.mxu0 0.0
        %5273 = vmatprep.subr.mxu0 0.0
        %5274 = vmatpush1.msra.mxu0 0.0
        %5275 = vmatprep.subr.mxu0 0.0
        %5276 = vmatpush1.msra.mxu0 0.0
        %5277 = vmatprep.subr.mxu0 0.0
        %5278 = vmatpush1.msra.mxu0 %v5198
        %5279 = vmatprep.subr.mxu0 0.0
        %5280 = vmatpush1.msra.mxu0 %v5197
        %5281 = vmatprep.subr.mxu0 0.0
        %5282 = vmatpush1.msra.mxu0 %v5196
        %5283 = vmatprep.subr.mxu0 0.0
        %5284 = vmatpush1.msra.mxu0 %v5195
        %5285 = vmatprep.subr.mxu0 0.0
        %5286 = vmatpush2.msra.mxu0 0.0
        %5287 = vmatprep.subr.mxu0 0.0
        %5288 = vmatpush2.msra.mxu0 0.0
        %5289 = vmatprep.subr.mxu0 0.0
        %5290 = vmatpush2.msra.mxu0 0.0
        %5291 = vmatprep.subr.mxu0 0.0
        %5292 = vmatpush2.msra.mxu0 0.0
        %5293 = vmatprep.subr.mxu0 0.0
        %5294 = vmatpush2.msra.mxu0 0.0
        %5295 = vmatprep.subr.mxu0 0.0
        %5296 = vmatpush2.msra.mxu0 0.0
        %5297 = vmatprep.subr.mxu0 0.0
        %5298 = vmatpush2.msra.mxu0 0.0
        %5299 = vmatprep.subr.mxu0 0.0
        %5300 = vmatpush2.msra.mxu0 0.0
        %5301 = vmatprep.subr.mxu0 0.0
        %5302 = vmatpush2.msra.mxu0 0.0
        %5303 = vmatprep.subr.mxu0 0.0
        %5304 = vmatpush2.msra.mxu0 0.0
        %5305 = vmatprep.subr.mxu0 0.0
        %5306 = vmatpush2.msra.mxu0 0.0
        %5307 = vmatprep.subr.mxu0 0.0
        %5308 = vmatpush2.msra.mxu0 0.0
        %5309 = vmatprep.subr.mxu0 0.0
        %5310 = vmatpush2.msra.mxu0 0.0
        %5311 = vmatprep.subr.mxu0 0.0
        %5312 = vmatpush2.msra.mxu0 0.0
        %5313 = vmatprep.subr.mxu0 0.0
        %5314 = vmatpush2.msra.mxu0 0.0
        %5315 = vmatprep.subr.mxu0 0.0
        %5316 = vmatpush2.msra.mxu0 0.0
        %5317 = vmatprep.mubr.f32.mxu0 0.0
        %5318 = vmatmul.mubr.f32.gmra.mxu0 %v5200
        %v5319 = vpop.f32.mrf.mxu0
        %v5320 = vadd.f32 0.0, %v5319
        %v5321 = vpop.f32.mrf.mxu0
        %5322 = vmatprep.mubr.f32.mxu0 0.0
        %5323 = vmatmul.mubr.f32.gmra.mxu0 %v5203
        %v5324 = vpop.f32.mrf.mxu0
        %v5325 = vadd.f32 0.0, %v5324
        %v5326 = vpop.f32.mrf.mxu0
        %5327 = vmatprep.mubr.f32.mxu0 0.0
        %5328 = vmatmul.mubr.f32.gmra.mxu0 %v5206
        %v5329 = vpop.f32.mrf.mxu0
        %v5330 = vpop.f32.mrf.mxu0
        %5331 = vmatprep.mubr.f32.mxu0 0.0
        %5332 = vmatmul.mubr.f32.gmra.mxu0 %v5209
        %v5333 = vpop.f32.mrf.mxu0
        %v5334 = vpop.f32.mrf.mxu0
        %5335 = vmatprep.mubr.f32.mxu0 0.0
        %5336 = vmatmul.mubr.f32.gmra.mxu0 %v5212
        %v5337 = vpop.f32.mrf.mxu0
        %v5338 = vadd.f32 0.0, %v5337
        %v5339 = vpop.f32.mrf.mxu0
        %5340 = vmatprep.mubr.f32.mxu0 0.0
        %5341 = vmatmul.mubr.f32.gmra.mxu0 %v5215
        %v5342 = vpop.f32.mrf.mxu0
        %v5343 = vadd.f32 0.0, %v5342
        %v5344 = vpop.f32.mrf.mxu0
        %5345 = vmatprep.mubr.f32.mxu0 0.0
        %5346 = vmatmul.mubr.f32.gmra.mxu0 %v5218
        %v5347 = vpop.f32.mrf.mxu0
        %v5348 = vpop.f32.mrf.mxu0
        %5349 = vmatprep.mubr.f32.mxu0 0.0
        %5350 = vmatmul.mubr.f32.gmra.mxu0 %v5221
        %v5351 = vpop.f32.mrf.mxu0
        %v5352 = vpop.f32.mrf.mxu0
        %5353 = vmatprep.mubr.f32.mxu0 0.0
        %5354 = vmatmul.mubr.f32.gmra.mxu0 %v5224
        %v5355 = vpop.f32.mrf.mxu0
        %v5356 = vadd.f32 0.0, %v5355
        %v5357 = vpop.f32.mrf.mxu0
        %5358 = vmatprep.mubr.f32.mxu0 0.0
        %5359 = vmatmul.mubr.f32.gmra.mxu0 %v5227
        %v5360 = vpop.f32.mrf.mxu0
        %v5361 = vadd.f32 0.0, %v5360
        %v5362 = vpop.f32.mrf.mxu0
        %5363 = vmatprep.mubr.f32.mxu0 0.0
        %5364 = vmatmul.mubr.f32.gmra.mxu0 %v5230
        %v5365 = vpop.f32.mrf.mxu0
        %v5366 = vpop.f32.mrf.mxu0
        %5367 = vmatprep.mubr.f32.mxu0 0.0
        %5368 = vmatmul.mubr.f32.gmra.mxu0 %v5233
        %v5369 = vpop.f32.mrf.mxu0
        %v5370 = vpop.f32.mrf.mxu0
        %5371 = vmatprep.mubr.f32.mxu0 0.0
        %5372 = vmatmul.mubr.f32.gmra.mxu0 %v5236
        %v5373 = vpop.f32.mrf.mxu0
        %v5374 = vadd.f32 0.0, %v5373
        %v5375 = vpop.f32.mrf.mxu0
        %5376 = vmatprep.mubr.f32.mxu0 0.0
        %5377 = vmatmul.mubr.f32.gmra.mxu0 %v5239
        %v5378 = vpop.f32.mrf.mxu0
        %v5379 = vadd.f32 0.0, %v5378
        %v5380 = vpop.f32.mrf.mxu0
        %5381 = vmatprep.mubr.f32.mxu0 0.0
        %5382 = vmatmul.mubr.f32.gmra.mxu0 %v5242
        %v5383 = vpop.f32.mrf.mxu0
        %v5384 = vpop.f32.mrf.mxu0
        %5385 = vmatprep.mubr.f32.mxu0 0.0
        %5386 = vmatmul.mubr.f32.gmra.mxu0 %v5245
        %v5387 = vpop.f32.mrf.mxu0
        %v5388 = vpop.f32.mrf.mxu0
        %5389 = vmatprep.mubr.f32.mxu0 0.0
        %5390 = vmatmul.mubr.f32.gmra.mxu0 %v5248
        %v5391 = vpop.f32.mrf.mxu0
        %v5392 = vadd.f32 0.0, %v5391
        %v5393 = vpop.f32.mrf.mxu0
        %5394 = vmatprep.mubr.f32.mxu0 0.0
        %5395 = vmatmul.mubr.f32.gmra.mxu0 %v5251
        %v5396 = vpop.f32.mrf.mxu0
        %v5397 = vadd.f32 0.0, %v5396
        %v5398 = vpop.f32.mrf.mxu0
        %5399 = vdwg.mxu0
        %v5400 = vadd.f32 %v5166, %v5320
        %v5401 = vadd.f32 %v5167, %v5325
        %v5402 = vadd.f32 %v5168, %v5338
        %v5403 = vadd.f32 %v5169, %v5343
        %v5404 = vadd.f32 %v5170, %v5356
        %v5405 = vadd.f32 %v5171, %v5361
        %v5406 = vadd.f32 %v5172, %v5374
        %v5407 = vadd.f32 %v5173, %v5379
        %v5408 = vadd.f32 %v5174, %v5392
        %v5409 = vadd.f32 %v5175, %v5397
        %v5410 = vld [vmem:[#allocation3 + $0x42] sm:$0xff]
        %v5411 = vld [vmem:[#allocation3 + $0x4a] sm:$0xff]
        %v5412 = vld [vmem:[#allocation3 + $0x52] sm:$0xff]
        %v5413 = vld [vmem:[#allocation3 + $0x5a] sm:$0xff]
        %v5414 = vld [vmem:[#allocation3 + $0x62] sm:$0xff]
        %v5415 = vld [vmem:[#allocation3 + $0x6a] sm:$0xff]
        %v5416 = vld [vmem:[#allocation3 + $0x72] sm:$0xff]
        %v5417 = vld [vmem:[#allocation3 + $0x7a] sm:$0xff]
        %v5418 = vld [vmem:[#allocation3 + $0x82] sm:$0xff]
        %v5419 = vld [vmem:[#allocation3 + $0x8a] sm:$0xff]
        %v5420 = vld [vmem:[#allocation3 + $0x92] sm:$0xff]
        %v5421 = vld [vmem:[#allocation3 + $0x9a] sm:$0xff]
        %v5422 = vld [vmem:[#allocation3 + $0xa2] sm:$0xff]
        %v5423 = vld [vmem:[#allocation3 + $0xaa] sm:$0xff]
        %v5424 = vld [vmem:[#allocation3 + $0xb2] sm:$0xff]
        %v5425 = vld [vmem:[#allocation3 + $0xba] sm:$0xff]
        %v5426 = vld [vmem:[#allocation3 + $0xc2] sm:$0xff]
        %v5427 = vld [vmem:[#allocation3 + $0xca] sm:$0xff]
        %s5428 = scalar_lea.vmem [#allocation4], 224
        %v5429 = vld [vmem:[%s5428] sm:$0xff]
        %v5430 = vld [vmem:[%s5428 + $0x8] sm:$0xff]
        %v5431 = vld [vmem:[%s5428 + $0x10] sm:$0xff]
        %v5432 = vld [vmem:[%s5428 + $0x18] sm:$0xff]
        %v5434 = vsel %vm3535, %v5410, 0
        %v5437 = vsel %vm3535, %v5411, 0
        %v5440 = vsel %vm3535, %v5412, 0
        %v5443 = vsel %vm3535, %v5413, 0
        %v5446 = vsel %vm3535, %v5414, 0
        %v5449 = vsel %vm3535, %v5415, 0
        %v5452 = vsel %vm3535, %v5416, 0
        %v5455 = vsel %vm3535, %v5417, 0
        %v5458 = vsel %vm3535, %v5418, 0
        %v5461 = vsel %vm3535, %v5419, 0
        %v5464 = vsel %vm3535, %v5420, 0
        %v5467 = vsel %vm3535, %v5421, 0
        %v5470 = vsel %vm3535, %v5422, 0
        %v5473 = vsel %vm3535, %v5423, 0
        %v5476 = vsel %vm3535, %v5424, 0
        %v5479 = vsel %vm3535, %v5425, 0
        %v5482 = vsel %vm3535, %v5426, 0
        %v5485 = vsel %vm3535, %v5427, 0
        %5487 = vmatprep.subr.mxu0 0.0
        %5488 = vmatpush1.msra.mxu0 0.0
        %5489 = vmatprep.subr.mxu0 0.0
        %5490 = vmatpush1.msra.mxu0 0.0
        %5491 = vmatprep.subr.mxu0 0.0
        %5492 = vmatpush1.msra.mxu0 0.0
        %5493 = vmatprep.subr.mxu0 0.0
        %5494 = vmatpush1.msra.mxu0 0.0
        %5495 = vmatprep.subr.mxu0 0.0
        %5496 = vmatpush1.msra.mxu0 0.0
        %5497 = vmatprep.subr.mxu0 0.0
        %5498 = vmatpush1.msra.mxu0 0.0
        %5499 = vmatprep.subr.mxu0 0.0
        %5500 = vmatpush1.msra.mxu0 0.0
        %5501 = vmatprep.subr.mxu0 0.0
        %5502 = vmatpush1.msra.mxu0 0.0
        %5503 = vmatprep.subr.mxu0 0.0
        %5504 = vmatpush1.msra.mxu0 0.0
        %5505 = vmatprep.subr.mxu0 0.0
        %5506 = vmatpush1.msra.mxu0 0.0
        %5507 = vmatprep.subr.mxu0 0.0
        %5508 = vmatpush1.msra.mxu0 0.0
        %5509 = vmatprep.subr.mxu0 0.0
        %5510 = vmatpush1.msra.mxu0 0.0
        %5511 = vmatprep.subr.mxu0 0.0
        %5512 = vmatpush1.msra.mxu0 %v5432
        %5513 = vmatprep.subr.mxu0 0.0
        %5514 = vmatpush1.msra.mxu0 %v5431
        %5515 = vmatprep.subr.mxu0 0.0
        %5516 = vmatpush1.msra.mxu0 %v5430
        %5517 = vmatprep.subr.mxu0 0.0
        %5518 = vmatpush1.msra.mxu0 %v5429
        %5519 = vmatprep.subr.mxu0 0.0
        %5520 = vmatpush2.msra.mxu0 0.0
        %5521 = vmatprep.subr.mxu0 0.0
        %5522 = vmatpush2.msra.mxu0 0.0
        %5523 = vmatprep.subr.mxu0 0.0
        %5524 = vmatpush2.msra.mxu0 0.0
        %5525 = vmatprep.subr.mxu0 0.0
        %5526 = vmatpush2.msra.mxu0 0.0
        %5527 = vmatprep.subr.mxu0 0.0
        %5528 = vmatpush2.msra.mxu0 0.0
        %5529 = vmatprep.subr.mxu0 0.0
        %5530 = vmatpush2.msra.mxu0 0.0
        %5531 = vmatprep.subr.mxu0 0.0
        %5532 = vmatpush2.msra.mxu0 0.0
        %5533 = vmatprep.subr.mxu0 0.0
        %5534 = vmatpush2.msra.mxu0 0.0
        %5535 = vmatprep.subr.mxu0 0.0
        %5536 = vmatpush2.msra.mxu0 0.0
        %5537 = vmatprep.subr.mxu0 0.0
        %5538 = vmatpush2.msra.mxu0 0.0
        %5539 = vmatprep.subr.mxu0 0.0
        %5540 = vmatpush2.msra.mxu0 0.0
        %5541 = vmatprep.subr.mxu0 0.0
        %5542 = vmatpush2.msra.mxu0 0.0
        %5543 = vmatprep.subr.mxu0 0.0
        %5544 = vmatpush2.msra.mxu0 0.0
        %5545 = vmatprep.subr.mxu0 0.0
        %5546 = vmatpush2.msra.mxu0 0.0
        %5547 = vmatprep.subr.mxu0 0.0
        %5548 = vmatpush2.msra.mxu0 0.0
        %5549 = vmatprep.subr.mxu0 0.0
        %5550 = vmatpush2.msra.mxu0 0.0
        %5551 = vmatprep.mubr.f32.mxu0 0.0
        %5552 = vmatmul.mubr.f32.gmra.mxu0 %v5434
        %v5553 = vpop.f32.mrf.mxu0
        %v5554 = vadd.f32 0.0, %v5553
        %v5555 = vpop.f32.mrf.mxu0
        %5556 = vmatprep.mubr.f32.mxu0 0.0
        %5557 = vmatmul.mubr.f32.gmra.mxu0 %v5437
        %v5558 = vpop.f32.mrf.mxu0
        %v5559 = vadd.f32 0.0, %v5558
        %v5560 = vpop.f32.mrf.mxu0
        %5561 = vmatprep.mubr.f32.mxu0 0.0
        %5562 = vmatmul.mubr.f32.gmra.mxu0 %v5440
        %v5563 = vpop.f32.mrf.mxu0
        %v5564 = vpop.f32.mrf.mxu0
        %5565 = vmatprep.mubr.f32.mxu0 0.0
        %5566 = vmatmul.mubr.f32.gmra.mxu0 %v5443
        %v5567 = vpop.f32.mrf.mxu0
        %v5568 = vpop.f32.mrf.mxu0
        %5569 = vmatprep.mubr.f32.mxu0 0.0
        %5570 = vmatmul.mubr.f32.gmra.mxu0 %v5446
        %v5571 = vpop.f32.mrf.mxu0
        %v5572 = vadd.f32 0.0, %v5571
        %v5573 = vpop.f32.mrf.mxu0
        %5574 = vmatprep.mubr.f32.mxu0 0.0
        %5575 = vmatmul.mubr.f32.gmra.mxu0 %v5449
        %v5576 = vpop.f32.mrf.mxu0
        %v5577 = vadd.f32 0.0, %v5576
        %v5578 = vpop.f32.mrf.mxu0
        %5579 = vmatprep.mubr.f32.mxu0 0.0
        %5580 = vmatmul.mubr.f32.gmra.mxu0 %v5452
        %v5581 = vpop.f32.mrf.mxu0
        %v5582 = vpop.f32.mrf.mxu0
        %5583 = vmatprep.mubr.f32.mxu0 0.0
        %5584 = vmatmul.mubr.f32.gmra.mxu0 %v5455
        %v5585 = vpop.f32.mrf.mxu0
        %v5586 = vpop.f32.mrf.mxu0
        %5587 = vmatprep.mubr.f32.mxu0 0.0
        %5588 = vmatmul.mubr.f32.gmra.mxu0 %v5458
        %v5589 = vpop.f32.mrf.mxu0
        %v5590 = vadd.f32 0.0, %v5589
        %v5591 = vpop.f32.mrf.mxu0
        %5592 = vmatprep.mubr.f32.mxu0 0.0
        %5593 = vmatmul.mubr.f32.gmra.mxu0 %v5461
        %v5594 = vpop.f32.mrf.mxu0
        %v5595 = vadd.f32 0.0, %v5594
        %v5596 = vpop.f32.mrf.mxu0
        %5597 = vmatprep.mubr.f32.mxu0 0.0
        %5598 = vmatmul.mubr.f32.gmra.mxu0 %v5464
        %v5599 = vpop.f32.mrf.mxu0
        %v5600 = vpop.f32.mrf.mxu0
        %5601 = vmatprep.mubr.f32.mxu0 0.0
        %5602 = vmatmul.mubr.f32.gmra.mxu0 %v5467
        %v5603 = vpop.f32.mrf.mxu0
        %v5604 = vpop.f32.mrf.mxu0
        %5605 = vmatprep.mubr.f32.mxu0 0.0
        %5606 = vmatmul.mubr.f32.gmra.mxu0 %v5470
        %v5607 = vpop.f32.mrf.mxu0
        %v5608 = vadd.f32 0.0, %v5607
        %v5609 = vpop.f32.mrf.mxu0
        %5610 = vmatprep.mubr.f32.mxu0 0.0
        %5611 = vmatmul.mubr.f32.gmra.mxu0 %v5473
        %v5612 = vpop.f32.mrf.mxu0
        %v5613 = vadd.f32 0.0, %v5612
        %v5614 = vpop.f32.mrf.mxu0
        %5615 = vmatprep.mubr.f32.mxu0 0.0
        %5616 = vmatmul.mubr.f32.gmra.mxu0 %v5476
        %v5617 = vpop.f32.mrf.mxu0
        %v5618 = vpop.f32.mrf.mxu0
        %5619 = vmatprep.mubr.f32.mxu0 0.0
        %5620 = vmatmul.mubr.f32.gmra.mxu0 %v5479
        %v5621 = vpop.f32.mrf.mxu0
        %v5622 = vpop.f32.mrf.mxu0
        %5623 = vmatprep.mubr.f32.mxu0 0.0
        %5624 = vmatmul.mubr.f32.gmra.mxu0 %v5482
        %v5625 = vpop.f32.mrf.mxu0
        %v5626 = vadd.f32 0.0, %v5625
        %v5627 = vpop.f32.mrf.mxu0
        %5628 = vmatprep.mubr.f32.mxu0 0.0
        %5629 = vmatmul.mubr.f32.gmra.mxu0 %v5485
        %v5630 = vpop.f32.mrf.mxu0
        %v5631 = vadd.f32 0.0, %v5630
        %v5632 = vpop.f32.mrf.mxu0
        %5633 = vdwg.mxu0
        %v5634 = vadd.f32 %v5400, %v5554
        %v5635 = vadd.f32 %v5401, %v5559
        %v5636 = vadd.f32 %v5402, %v5572
        %v5637 = vadd.f32 %v5403, %v5577
        %v5638 = vadd.f32 %v5404, %v5590
        %v5639 = vadd.f32 %v5405, %v5595
        %v5640 = vadd.f32 %v5406, %v5608
        %v5641 = vadd.f32 %v5407, %v5613
        %v5642 = vadd.f32 %v5408, %v5626
        %v5643 = vadd.f32 %v5409, %v5631
        %v5644 = vld [vmem:[#allocation3 + $0x44] sm:$0xff]
        %v5645 = vld [vmem:[#allocation3 + $0x4c] sm:$0xff]
        %v5646 = vld [vmem:[#allocation3 + $0x54] sm:$0xff]
        %v5647 = vld [vmem:[#allocation3 + $0x5c] sm:$0xff]
        %v5648 = vld [vmem:[#allocation3 + $0x64] sm:$0xff]
        %v5649 = vld [vmem:[#allocation3 + $0x6c] sm:$0xff]
        %v5650 = vld [vmem:[#allocation3 + $0x74] sm:$0xff]
        %v5651 = vld [vmem:[#allocation3 + $0x7c] sm:$0xff]
        %v5652 = vld [vmem:[#allocation3 + $0x84] sm:$0xff]
        %v5653 = vld [vmem:[#allocation3 + $0x8c] sm:$0xff]
        %v5654 = vld [vmem:[#allocation3 + $0x94] sm:$0xff]
        %v5655 = vld [vmem:[#allocation3 + $0x9c] sm:$0xff]
        %v5656 = vld [vmem:[#allocation3 + $0xa4] sm:$0xff]
        %v5657 = vld [vmem:[#allocation3 + $0xac] sm:$0xff]
        %v5658 = vld [vmem:[#allocation3 + $0xb4] sm:$0xff]
        %v5659 = vld [vmem:[#allocation3 + $0xbc] sm:$0xff]
        %v5660 = vld [vmem:[#allocation3 + $0xc4] sm:$0xff]
        %v5661 = vld [vmem:[#allocation3 + $0xcc] sm:$0xff]
        %s5662 = scalar_lea.vmem [#allocation4], 256
        %v5663 = vld [vmem:[%s5662] sm:$0xff]
        %v5664 = vld [vmem:[%s5662 + $0x8] sm:$0xff]
        %v5665 = vld [vmem:[%s5662 + $0x10] sm:$0xff]
        %v5666 = vld [vmem:[%s5662 + $0x18] sm:$0xff]
        %v5668 = vsel %vm3535, %v5644, 0
        %v5671 = vsel %vm3535, %v5645, 0
        %v5674 = vsel %vm3535, %v5646, 0
        %v5677 = vsel %vm3535, %v5647, 0
        %v5680 = vsel %vm3535, %v5648, 0
        %v5683 = vsel %vm3535, %v5649, 0
        %v5686 = vsel %vm3535, %v5650, 0
        %v5689 = vsel %vm3535, %v5651, 0
        %v5692 = vsel %vm3535, %v5652, 0
        %v5695 = vsel %vm3535, %v5653, 0
        %v5698 = vsel %vm3535, %v5654, 0
        %v5701 = vsel %vm3535, %v5655, 0
        %v5704 = vsel %vm3535, %v5656, 0
        %v5707 = vsel %vm3535, %v5657, 0
        %v5710 = vsel %vm3535, %v5658, 0
        %v5713 = vsel %vm3535, %v5659, 0
        %v5716 = vsel %vm3535, %v5660, 0
        %v5719 = vsel %vm3535, %v5661, 0
        %5721 = vmatprep.subr.mxu0 0.0
        %5722 = vmatpush1.msra.mxu0 0.0
        %5723 = vmatprep.subr.mxu0 0.0
        %5724 = vmatpush1.msra.mxu0 0.0
        %5725 = vmatprep.subr.mxu0 0.0
        %5726 = vmatpush1.msra.mxu0 0.0
        %5727 = vmatprep.subr.mxu0 0.0
        %5728 = vmatpush1.msra.mxu0 0.0
        %5729 = vmatprep.subr.mxu0 0.0
        %5730 = vmatpush1.msra.mxu0 0.0
        %5731 = vmatprep.subr.mxu0 0.0
        %5732 = vmatpush1.msra.mxu0 0.0
        %5733 = vmatprep.subr.mxu0 0.0
        %5734 = vmatpush1.msra.mxu0 0.0
        %5735 = vmatprep.subr.mxu0 0.0
        %5736 = vmatpush1.msra.mxu0 0.0
        %5737 = vmatprep.subr.mxu0 0.0
        %5738 = vmatpush1.msra.mxu0 0.0
        %5739 = vmatprep.subr.mxu0 0.0
        %5740 = vmatpush1.msra.mxu0 0.0
        %5741 = vmatprep.subr.mxu0 0.0
        %5742 = vmatpush1.msra.mxu0 0.0
        %5743 = vmatprep.subr.mxu0 0.0
        %5744 = vmatpush1.msra.mxu0 0.0
        %5745 = vmatprep.subr.mxu0 0.0
        %5746 = vmatpush1.msra.mxu0 %v5666
        %5747 = vmatprep.subr.mxu0 0.0
        %5748 = vmatpush1.msra.mxu0 %v5665
        %5749 = vmatprep.subr.mxu0 0.0
        %5750 = vmatpush1.msra.mxu0 %v5664
        %5751 = vmatprep.subr.mxu0 0.0
        %5752 = vmatpush1.msra.mxu0 %v5663
        %5753 = vmatprep.subr.mxu0 0.0
        %5754 = vmatpush2.msra.mxu0 0.0
        %5755 = vmatprep.subr.mxu0 0.0
        %5756 = vmatpush2.msra.mxu0 0.0
        %5757 = vmatprep.subr.mxu0 0.0
        %5758 = vmatpush2.msra.mxu0 0.0
        %5759 = vmatprep.subr.mxu0 0.0
        %5760 = vmatpush2.msra.mxu0 0.0
        %5761 = vmatprep.subr.mxu0 0.0
        %5762 = vmatpush2.msra.mxu0 0.0
        %5763 = vmatprep.subr.mxu0 0.0
        %5764 = vmatpush2.msra.mxu0 0.0
        %5765 = vmatprep.subr.mxu0 0.0
        %5766 = vmatpush2.msra.mxu0 0.0
        %5767 = vmatprep.subr.mxu0 0.0
        %5768 = vmatpush2.msra.mxu0 0.0
        %5769 = vmatprep.subr.mxu0 0.0
        %5770 = vmatpush2.msra.mxu0 0.0
        %5771 = vmatprep.subr.mxu0 0.0
        %5772 = vmatpush2.msra.mxu0 0.0
        %5773 = vmatprep.subr.mxu0 0.0
        %5774 = vmatpush2.msra.mxu0 0.0
        %5775 = vmatprep.subr.mxu0 0.0
        %5776 = vmatpush2.msra.mxu0 0.0
        %5777 = vmatprep.subr.mxu0 0.0
        %5778 = vmatpush2.msra.mxu0 0.0
        %5779 = vmatprep.subr.mxu0 0.0
        %5780 = vmatpush2.msra.mxu0 0.0
        %5781 = vmatprep.subr.mxu0 0.0
        %5782 = vmatpush2.msra.mxu0 0.0
        %5783 = vmatprep.subr.mxu0 0.0
        %5784 = vmatpush2.msra.mxu0 0.0
        %5785 = vmatprep.mubr.f32.mxu0 0.0
        %5786 = vmatmul.mubr.f32.gmra.mxu0 %v5668
        %v5787 = vpop.f32.mrf.mxu0
        %v5788 = vadd.f32 0.0, %v5787
        %v5789 = vpop.f32.mrf.mxu0
        %5790 = vmatprep.mubr.f32.mxu0 0.0
        %5791 = vmatmul.mubr.f32.gmra.mxu0 %v5671
        %v5792 = vpop.f32.mrf.mxu0
        %v5793 = vadd.f32 0.0, %v5792
        %v5794 = vpop.f32.mrf.mxu0
        %5795 = vmatprep.mubr.f32.mxu0 0.0
        %5796 = vmatmul.mubr.f32.gmra.mxu0 %v5674
        %v5797 = vpop.f32.mrf.mxu0
        %v5798 = vpop.f32.mrf.mxu0
        %5799 = vmatprep.mubr.f32.mxu0 0.0
        %5800 = vmatmul.mubr.f32.gmra.mxu0 %v5677
        %v5801 = vpop.f32.mrf.mxu0
        %v5802 = vpop.f32.mrf.mxu0
        %5803 = vmatprep.mubr.f32.mxu0 0.0
        %5804 = vmatmul.mubr.f32.gmra.mxu0 %v5680
        %v5805 = vpop.f32.mrf.mxu0
        %v5806 = vadd.f32 0.0, %v5805
        %v5807 = vpop.f32.mrf.mxu0
        %5808 = vmatprep.mubr.f32.mxu0 0.0
        %5809 = vmatmul.mubr.f32.gmra.mxu0 %v5683
        %v5810 = vpop.f32.mrf.mxu0
        %v5811 = vadd.f32 0.0, %v5810
        %v5812 = vpop.f32.mrf.mxu0
        %5813 = vmatprep.mubr.f32.mxu0 0.0
        %5814 = vmatmul.mubr.f32.gmra.mxu0 %v5686
        %v5815 = vpop.f32.mrf.mxu0
        %v5816 = vpop.f32.mrf.mxu0
        %5817 = vmatprep.mubr.f32.mxu0 0.0
        %5818 = vmatmul.mubr.f32.gmra.mxu0 %v5689
        %v5819 = vpop.f32.mrf.mxu0
        %v5820 = vpop.f32.mrf.mxu0
        %5821 = vmatprep.mubr.f32.mxu0 0.0
        %5822 = vmatmul.mubr.f32.gmra.mxu0 %v5692
        %v5823 = vpop.f32.mrf.mxu0
        %v5824 = vadd.f32 0.0, %v5823
        %v5825 = vpop.f32.mrf.mxu0
        %5826 = vmatprep.mubr.f32.mxu0 0.0
        %5827 = vmatmul.mubr.f32.gmra.mxu0 %v5695
        %v5828 = vpop.f32.mrf.mxu0
        %v5829 = vadd.f32 0.0, %v5828
        %v5830 = vpop.f32.mrf.mxu0
        %5831 = vmatprep.mubr.f32.mxu0 0.0
        %5832 = vmatmul.mubr.f32.gmra.mxu0 %v5698
        %v5833 = vpop.f32.mrf.mxu0
        %v5834 = vpop.f32.mrf.mxu0
        %5835 = vmatprep.mubr.f32.mxu0 0.0
        %5836 = vmatmul.mubr.f32.gmra.mxu0 %v5701
        %v5837 = vpop.f32.mrf.mxu0
        %v5838 = vpop.f32.mrf.mxu0
        %5839 = vmatprep.mubr.f32.mxu0 0.0
        %5840 = vmatmul.mubr.f32.gmra.mxu0 %v5704
        %v5841 = vpop.f32.mrf.mxu0
        %v5842 = vadd.f32 0.0, %v5841
        %v5843 = vpop.f32.mrf.mxu0
        %5844 = vmatprep.mubr.f32.mxu0 0.0
        %5845 = vmatmul.mubr.f32.gmra.mxu0 %v5707
        %v5846 = vpop.f32.mrf.mxu0
        %v5847 = vadd.f32 0.0, %v5846
        %v5848 = vpop.f32.mrf.mxu0
        %5849 = vmatprep.mubr.f32.mxu0 0.0
        %5850 = vmatmul.mubr.f32.gmra.mxu0 %v5710
        %v5851 = vpop.f32.mrf.mxu0
        %v5852 = vpop.f32.mrf.mxu0
        %5853 = vmatprep.mubr.f32.mxu0 0.0
        %5854 = vmatmul.mubr.f32.gmra.mxu0 %v5713
        %v5855 = vpop.f32.mrf.mxu0
        %v5856 = vpop.f32.mrf.mxu0
        %5857 = vmatprep.mubr.f32.mxu0 0.0
        %5858 = vmatmul.mubr.f32.gmra.mxu0 %v5716
        %v5859 = vpop.f32.mrf.mxu0
        %v5860 = vadd.f32 0.0, %v5859
        %v5861 = vpop.f32.mrf.mxu0
        %5862 = vmatprep.mubr.f32.mxu0 0.0
        %5863 = vmatmul.mubr.f32.gmra.mxu0 %v5719
        %v5864 = vpop.f32.mrf.mxu0
        %v5865 = vadd.f32 0.0, %v5864
        %v5866 = vpop.f32.mrf.mxu0
        %5867 = vdwg.mxu0
        %v5868 = vadd.f32 %v5634, %v5788
        %v5869 = vadd.f32 %v5635, %v5793
        %v5870 = vadd.f32 %v5636, %v5806
        %v5871 = vadd.f32 %v5637, %v5811
        %v5872 = vadd.f32 %v5638, %v5824
        %v5873 = vadd.f32 %v5639, %v5829
        %v5874 = vadd.f32 %v5640, %v5842
        %v5875 = vadd.f32 %v5641, %v5847
        %v5876 = vadd.f32 %v5642, %v5860
        %v5877 = vadd.f32 %v5643, %v5865
        %v5878 = vld [vmem:[%s4] sm:$0x1]
        %v5880 = vlaneseq
        %v5881 = vshrl.u32 %v5880, 7
        %v5882 = vsub.s32 0, %v5881
        %v5883 = vrot.slane %v5878, %v5882
        %v5885 = vadd.f32 %v5868, %v5883
        %v5886 = vadd.f32 %v5869, %v5883
        %v5887 = vadd.f32 %v5870, %v5883
        %v5888 = vadd.f32 %v5871, %v5883
        %v5889 = vadd.f32 %v5872, %v5883
        %v5890 = vadd.f32 %v5873, %v5883
        %v5891 = vadd.f32 %v5874, %v5883
        %v5892 = vadd.f32 %v5875, %v5883
        %v5893 = vadd.f32 %v5876, %v5883
        %v5894 = vadd.f32 %v5877, %v5883
        %v5895 = vmax.f32 %v5885, 0.0
        %v5896 = vmax.f32 %v5886, 0.0
        %v5897 = vmax.f32 %v5887, 0.0
        %v5898 = vmax.f32 %v5888, 0.0
        %v5899 = vmax.f32 %v5889, 0.0
        %v5900 = vmax.f32 %v5890, 0.0
        %v5901 = vmax.f32 %v5891, 0.0
        %v5902 = vmax.f32 %v5892, 0.0
        %v5903 = vmax.f32 %v5893, 0.0
        %v5904 = vmax.f32 %v5894, 0.0
        %v5905 = vld [vmem:[%s5] sm:$0xff]
        %v5906 = vld [vmem:[%s5 + $0x8] sm:$0xff]
        %v5907 = vld [vmem:[%s5 + $0x10] sm:$0xff]
        %v5908 = vld [vmem:[%s5 + $0x18] sm:$0xff]
        %v5909 = vld [vmem:[%s5 + $0x20] sm:$0xff]
        %v5910 = vld [vmem:[%s5 + $0x28] sm:$0xff]
        %v5911 = vld [vmem:[%s5 + $0x30] sm:$0xff]
        %v5912 = vld [vmem:[%s5 + $0x38] sm:$0xff]
        %v5913 = vld [vmem:[%s5 + $0x40] sm:$0xff]
        %v5914 = vld [vmem:[%s5 + $0x48] sm:$0xff]
        %v5915 = vld [vmem:[%s5 + $0x190] sm:$0xff]
        %v5916 = vld [vmem:[%s5 + $0x198] sm:$0xff]
        %v5917 = vld [vmem:[%s5 + $0x1a0] sm:$0xff]
        %v5918 = vld [vmem:[%s5 + $0x1a8] sm:$0xff]
        %v5919 = vld [vmem:[%s5 + $0x1b0] sm:$0xff]
        %v5920 = vld [vmem:[%s5 + $0x1b8] sm:$0xff]
        %v5921 = vld [vmem:[%s5 + $0x1c0] sm:$0xff]
        %v5922 = vld [vmem:[%s5 + $0x1c8] sm:$0xff]
        %v5923 = vld [vmem:[%s5 + $0x1d0] sm:$0xff]
        %v5924 = vld [vmem:[%s5 + $0x1d8] sm:$0xff]
        %v5925 = vld [vmem:[%s5 + $0x320] sm:$0xff]
        %v5926 = vld [vmem:[%s5 + $0x328] sm:$0xff]
        %v5927 = vld [vmem:[%s5 + $0x330] sm:$0xff]
        %v5928 = vld [vmem:[%s5 + $0x338] sm:$0xff]
        %v5929 = vld [vmem:[%s5 + $0x340] sm:$0xff]
        %v5930 = vld [vmem:[%s5 + $0x348] sm:$0xff]
        %v5931 = vld [vmem:[%s5 + $0x350] sm:$0xff]
        %v5932 = vld [vmem:[%s5 + $0x358] sm:$0xff]
        %v5933 = vld [vmem:[%s5 + $0x360] sm:$0xff]
        %v5934 = vld [vmem:[%s5 + $0x368] sm:$0xff]
        %v5935 = vld [vmem:[%s5 + $0x4b0] sm:$0xff]
        %v5936 = vld [vmem:[%s5 + $0x4b8] sm:$0xff]
        %v5937 = vld [vmem:[%s5 + $0x4c0] sm:$0xff]
        %v5938 = vld [vmem:[%s5 + $0x4c8] sm:$0xff]
        %v5939 = vld [vmem:[%s5 + $0x4d0] sm:$0xff]
        %v5940 = vld [vmem:[%s5 + $0x4d8] sm:$0xff]
        %v5941 = vld [vmem:[%s5 + $0x4e0] sm:$0xff]
        %v5942 = vld [vmem:[%s5 + $0x4e8] sm:$0xff]
        %v5943 = vld [vmem:[%s5 + $0x4f0] sm:$0xff]
        %v5944 = vld [vmem:[%s5 + $0x4f8] sm:$0xff]
        %v5946 = vsel %vm3535, %v5895, 0
        %v5949 = vsel %vm3535, %v5896, 0
        %5951 = vmatprep.subr.mxu0 0.0
        %5952 = vmatpush1.msra.mxu0 0.0
        %5953 = vmatprep.subr.mxu0 0.0
        %5954 = vmatpush1.msra.mxu0 0.0
        %5955 = vmatprep.subr.mxu0 0.0
        %5956 = vmatpush1.msra.mxu0 0.0
        %5957 = vmatprep.subr.mxu0 0.0
        %5958 = vmatpush1.msra.mxu0 0.0
        %5959 = vmatprep.subr.mxu0 0.0
        %5960 = vmatpush1.msra.mxu0 0.0
        %5961 = vmatprep.subr.mxu0 0.0
        %5962 = vmatpush1.msra.mxu0 0.0
        %5963 = vmatprep.subr.mxu0 0.0
        %5964 = vmatpush1.msra.mxu0 0.0
        %5965 = vmatprep.subr.mxu0 0.0
        %5966 = vmatpush1.msra.mxu0 0.0
        %5967 = vmatprep.subr.mxu0 0.0
        %5968 = vmatpush1.msra.mxu0 0.0
        %5969 = vmatprep.subr.mxu0 0.0
        %5970 = vmatpush1.msra.mxu0 0.0
        %5971 = vmatprep.subr.mxu0 0.0
        %5972 = vmatpush1.msra.mxu0 0.0
        %5973 = vmatprep.subr.mxu0 0.0
        %5974 = vmatpush1.msra.mxu0 0.0
        %5975 = vmatprep.subr.mxu0 %v5936
        %5976 = vmatpush1.msra.mxu0 %v5935
        %5977 = vmatprep.subr.mxu0 %v5926
        %5978 = vmatpush1.msra.mxu0 %v5925
        %5979 = vmatprep.subr.mxu0 %v5916
        %5980 = vmatpush1.msra.mxu0 %v5915
        %5981 = vmatprep.subr.mxu0 %v5906
        %5982 = vmatpush1.msra.mxu0 %v5905
        %5983 = vmatprep.subr.mxu0 0.0
        %5984 = vmatpush2.msra.mxu0 0.0
        %5985 = vmatprep.subr.mxu0 0.0
        %5986 = vmatpush2.msra.mxu0 0.0
        %5987 = vmatprep.subr.mxu0 0.0
        %5988 = vmatpush2.msra.mxu0 0.0
        %5989 = vmatprep.subr.mxu0 0.0
        %5990 = vmatpush2.msra.mxu0 0.0
        %5991 = vmatprep.subr.mxu0 0.0
        %5992 = vmatpush2.msra.mxu0 0.0
        %5993 = vmatprep.subr.mxu0 0.0
        %5994 = vmatpush2.msra.mxu0 0.0
        %5995 = vmatprep.subr.mxu0 0.0
        %5996 = vmatpush2.msra.mxu0 0.0
        %5997 = vmatprep.subr.mxu0 0.0
        %5998 = vmatpush2.msra.mxu0 0.0
        %5999 = vmatprep.subr.mxu0 0.0
        %6000 = vmatpush2.msra.mxu0 0.0
        %6001 = vmatprep.subr.mxu0 0.0
        %6002 = vmatpush2.msra.mxu0 0.0
        %6003 = vmatprep.subr.mxu0 0.0
        %6004 = vmatpush2.msra.mxu0 0.0
        %6005 = vmatprep.subr.mxu0 0.0
        %6006 = vmatpush2.msra.mxu0 0.0
        %6007 = vmatprep.subr.mxu0 0.0
        %6008 = vmatpush2.msra.mxu0 0.0
        %6009 = vmatprep.subr.mxu0 0.0
        %6010 = vmatpush2.msra.mxu0 0.0
        %6011 = vmatprep.subr.mxu0 0.0
        %6012 = vmatpush2.msra.mxu0 0.0
        %6013 = vmatprep.subr.mxu0 0.0
        %6014 = vmatpush2.msra.mxu0 0.0
        %6015 = vmatprep.mubr.f32.mxu0 0.0
        %6016 = vmatmul.mubr.f32.gmra.mxu0 %v5946
        %v6017 = vpop.f32.mrf.mxu0
        %v6018 = vadd.f32 0.0, %v6017
        %v6019 = vpop.f32.mrf.mxu0
        %v6020 = vadd.f32 0.0, %v6019
        %6021 = vmatprep.mubr.f32.mxu0 0.0
        %6022 = vmatmul.mubr.f32.gmra.mxu0 %v5949
        %v6023 = vpop.f32.mrf.mxu0
        %v6024 = vpop.f32.mrf.mxu0
        %6025 = vdwg.mxu0
        %6026 = vmatprep.subr.mxu0 0.0
        %6027 = vmatpush1.msra.mxu0 0.0
        %6028 = vmatprep.subr.mxu0 0.0
        %6029 = vmatpush1.msra.mxu0 0.0
        %6030 = vmatprep.subr.mxu0 0.0
        %6031 = vmatpush1.msra.mxu0 0.0
        %6032 = vmatprep.subr.mxu0 0.0
        %6033 = vmatpush1.msra.mxu0 0.0
        %6034 = vmatprep.subr.mxu0 0.0
        %6035 = vmatpush1.msra.mxu0 0.0
        %6036 = vmatprep.subr.mxu0 0.0
        %6037 = vmatpush1.msra.mxu0 0.0
        %6038 = vmatprep.subr.mxu0 0.0
        %6039 = vmatpush1.msra.mxu0 0.0
        %6040 = vmatprep.subr.mxu0 0.0
        %6041 = vmatpush1.msra.mxu0 0.0
        %6042 = vmatprep.subr.mxu0 0.0
        %6043 = vmatpush1.msra.mxu0 0.0
        %6044 = vmatprep.subr.mxu0 0.0
        %6045 = vmatpush1.msra.mxu0 0.0
        %6046 = vmatprep.subr.mxu0 0.0
        %6047 = vmatpush1.msra.mxu0 0.0
        %6048 = vmatprep.subr.mxu0 0.0
        %6049 = vmatpush1.msra.mxu0 0.0
        %6050 = vmatprep.subr.mxu0 %v5938
        %6051 = vmatpush1.msra.mxu0 %v5937
        %6052 = vmatprep.subr.mxu0 %v5928
        %6053 = vmatpush1.msra.mxu0 %v5927
        %6054 = vmatprep.subr.mxu0 %v5918
        %6055 = vmatpush1.msra.mxu0 %v5917
        %6056 = vmatprep.subr.mxu0 %v5908
        %6057 = vmatpush1.msra.mxu0 %v5907
        %6058 = vmatprep.subr.mxu0 0.0
        %6059 = vmatpush2.msra.mxu0 0.0
        %6060 = vmatprep.subr.mxu0 0.0
        %6061 = vmatpush2.msra.mxu0 0.0
        %6062 = vmatprep.subr.mxu0 0.0
        %6063 = vmatpush2.msra.mxu0 0.0
        %6064 = vmatprep.subr.mxu0 0.0
        %6065 = vmatpush2.msra.mxu0 0.0
        %6066 = vmatprep.subr.mxu0 0.0
        %6067 = vmatpush2.msra.mxu0 0.0
        %6068 = vmatprep.subr.mxu0 0.0
        %6069 = vmatpush2.msra.mxu0 0.0
        %6070 = vmatprep.subr.mxu0 0.0
        %6071 = vmatpush2.msra.mxu0 0.0
        %6072 = vmatprep.subr.mxu0 0.0
        %6073 = vmatpush2.msra.mxu0 0.0
        %6074 = vmatprep.subr.mxu0 0.0
        %6075 = vmatpush2.msra.mxu0 0.0
        %6076 = vmatprep.subr.mxu0 0.0
        %6077 = vmatpush2.msra.mxu0 0.0
        %6078 = vmatprep.subr.mxu0 0.0
        %6079 = vmatpush2.msra.mxu0 0.0
        %6080 = vmatprep.subr.mxu0 0.0
        %6081 = vmatpush2.msra.mxu0 0.0
        %6082 = vmatprep.subr.mxu0 0.0
        %6083 = vmatpush2.msra.mxu0 0.0
        %6084 = vmatprep.subr.mxu0 0.0
        %6085 = vmatpush2.msra.mxu0 0.0
        %6086 = vmatprep.subr.mxu0 0.0
        %6087 = vmatpush2.msra.mxu0 0.0
        %6088 = vmatprep.subr.mxu0 0.0
        %6089 = vmatpush2.msra.mxu0 0.0
        %6090 = vmatprep.mubr.f32.mxu0 0.0
        %6091 = vmatmul.mubr.f32.gmra.mxu0 %v5946
        %v6092 = vpop.f32.mrf.mxu0
        %v6093 = vadd.f32 0.0, %v6092
        %v6094 = vpop.f32.mrf.mxu0
        %v6095 = vadd.f32 0.0, %v6094
        %6096 = vmatprep.mubr.f32.mxu0 0.0
        %6097 = vmatmul.mubr.f32.gmra.mxu0 %v5949
        %v6098 = vpop.f32.mrf.mxu0
        %v6099 = vpop.f32.mrf.mxu0
        %6100 = vdwg.mxu0
        %6101 = vmatprep.subr.mxu0 0.0
        %6102 = vmatpush1.msra.mxu0 0.0
        %6103 = vmatprep.subr.mxu0 0.0
        %6104 = vmatpush1.msra.mxu0 0.0
        %6105 = vmatprep.subr.mxu0 0.0
        %6106 = vmatpush1.msra.mxu0 0.0
        %6107 = vmatprep.subr.mxu0 0.0
        %6108 = vmatpush1.msra.mxu0 0.0
        %6109 = vmatprep.subr.mxu0 0.0
        %6110 = vmatpush1.msra.mxu0 0.0
        %6111 = vmatprep.subr.mxu0 0.0
        %6112 = vmatpush1.msra.mxu0 0.0
        %6113 = vmatprep.subr.mxu0 0.0
        %6114 = vmatpush1.msra.mxu0 0.0
        %6115 = vmatprep.subr.mxu0 0.0
        %6116 = vmatpush1.msra.mxu0 0.0
        %6117 = vmatprep.subr.mxu0 0.0
        %6118 = vmatpush1.msra.mxu0 0.0
        %6119 = vmatprep.subr.mxu0 0.0
        %6120 = vmatpush1.msra.mxu0 0.0
        %6121 = vmatprep.subr.mxu0 0.0
        %6122 = vmatpush1.msra.mxu0 0.0
        %6123 = vmatprep.subr.mxu0 0.0
        %6124 = vmatpush1.msra.mxu0 0.0
        %6125 = vmatprep.subr.mxu0 %v5940
        %6126 = vmatpush1.msra.mxu0 %v5939
        %6127 = vmatprep.subr.mxu0 %v5930
        %6128 = vmatpush1.msra.mxu0 %v5929
        %6129 = vmatprep.subr.mxu0 %v5920
        %6130 = vmatpush1.msra.mxu0 %v5919
        %6131 = vmatprep.subr.mxu0 %v5910
        %6132 = vmatpush1.msra.mxu0 %v5909
        %6133 = vmatprep.subr.mxu0 0.0
        %6134 = vmatpush2.msra.mxu0 0.0
        %6135 = vmatprep.subr.mxu0 0.0
        %6136 = vmatpush2.msra.mxu0 0.0
        %6137 = vmatprep.subr.mxu0 0.0
        %6138 = vmatpush2.msra.mxu0 0.0
        %6139 = vmatprep.subr.mxu0 0.0
        %6140 = vmatpush2.msra.mxu0 0.0
        %6141 = vmatprep.subr.mxu0 0.0
        %6142 = vmatpush2.msra.mxu0 0.0
        %6143 = vmatprep.subr.mxu0 0.0
        %6144 = vmatpush2.msra.mxu0 0.0
        %6145 = vmatprep.subr.mxu0 0.0
        %6146 = vmatpush2.msra.mxu0 0.0
        %6147 = vmatprep.subr.mxu0 0.0
        %6148 = vmatpush2.msra.mxu0 0.0
        %6149 = vmatprep.subr.mxu0 0.0
        %6150 = vmatpush2.msra.mxu0 0.0
        %6151 = vmatprep.subr.mxu0 0.0
        %6152 = vmatpush2.msra.mxu0 0.0
        %6153 = vmatprep.subr.mxu0 0.0
        %6154 = vmatpush2.msra.mxu0 0.0
        %6155 = vmatprep.subr.mxu0 0.0
        %6156 = vmatpush2.msra.mxu0 0.0
        %6157 = vmatprep.subr.mxu0 0.0
        %6158 = vmatpush2.msra.mxu0 0.0
        %6159 = vmatprep.subr.mxu0 0.0
        %6160 = vmatpush2.msra.mxu0 0.0
        %6161 = vmatprep.subr.mxu0 0.0
        %6162 = vmatpush2.msra.mxu0 0.0
        %6163 = vmatprep.subr.mxu0 0.0
        %6164 = vmatpush2.msra.mxu0 0.0
        %6165 = vmatprep.mubr.f32.mxu0 0.0
        %6166 = vmatmul.mubr.f32.gmra.mxu0 %v5946
        %v6167 = vpop.f32.mrf.mxu0
        %v6168 = vadd.f32 0.0, %v6167
        %v6169 = vpop.f32.mrf.mxu0
        %v6170 = vadd.f32 0.0, %v6169
        %6171 = vmatprep.mubr.f32.mxu0 0.0
        %6172 = vmatmul.mubr.f32.gmra.mxu0 %v5949
        %v6173 = vpop.f32.mrf.mxu0
        %v6174 = vpop.f32.mrf.mxu0
        %6175 = vdwg.mxu0
        %6176 = vmatprep.subr.mxu0 0.0
        %6177 = vmatpush1.msra.mxu0 0.0
        %6178 = vmatprep.subr.mxu0 0.0
        %6179 = vmatpush1.msra.mxu0 0.0
        %6180 = vmatprep.subr.mxu0 0.0
        %6181 = vmatpush1.msra.mxu0 0.0
        %6182 = vmatprep.subr.mxu0 0.0
        %6183 = vmatpush1.msra.mxu0 0.0
        %6184 = vmatprep.subr.mxu0 0.0
        %6185 = vmatpush1.msra.mxu0 0.0
        %6186 = vmatprep.subr.mxu0 0.0
        %6187 = vmatpush1.msra.mxu0 0.0
        %6188 = vmatprep.subr.mxu0 0.0
        %6189 = vmatpush1.msra.mxu0 0.0
        %6190 = vmatprep.subr.mxu0 0.0
        %6191 = vmatpush1.msra.mxu0 0.0
        %6192 = vmatprep.subr.mxu0 0.0
        %6193 = vmatpush1.msra.mxu0 0.0
        %6194 = vmatprep.subr.mxu0 0.0
        %6195 = vmatpush1.msra.mxu0 0.0
        %6196 = vmatprep.subr.mxu0 0.0
        %6197 = vmatpush1.msra.mxu0 0.0
        %6198 = vmatprep.subr.mxu0 0.0
        %6199 = vmatpush1.msra.mxu0 0.0
        %6200 = vmatprep.subr.mxu0 %v5942
        %6201 = vmatpush1.msra.mxu0 %v5941
        %6202 = vmatprep.subr.mxu0 %v5932
        %6203 = vmatpush1.msra.mxu0 %v5931
        %6204 = vmatprep.subr.mxu0 %v5922
        %6205 = vmatpush1.msra.mxu0 %v5921
        %6206 = vmatprep.subr.mxu0 %v5912
        %6207 = vmatpush1.msra.mxu0 %v5911
        %6208 = vmatprep.subr.mxu0 0.0
        %6209 = vmatpush2.msra.mxu0 0.0
        %6210 = vmatprep.subr.mxu0 0.0
        %6211 = vmatpush2.msra.mxu0 0.0
        %6212 = vmatprep.subr.mxu0 0.0
        %6213 = vmatpush2.msra.mxu0 0.0
        %6214 = vmatprep.subr.mxu0 0.0
        %6215 = vmatpush2.msra.mxu0 0.0
        %6216 = vmatprep.subr.mxu0 0.0
        %6217 = vmatpush2.msra.mxu0 0.0
        %6218 = vmatprep.subr.mxu0 0.0
        %6219 = vmatpush2.msra.mxu0 0.0
        %6220 = vmatprep.subr.mxu0 0.0
        %6221 = vmatpush2.msra.mxu0 0.0
        %6222 = vmatprep.subr.mxu0 0.0
        %6223 = vmatpush2.msra.mxu0 0.0
        %6224 = vmatprep.subr.mxu0 0.0
        %6225 = vmatpush2.msra.mxu0 0.0
        %6226 = vmatprep.subr.mxu0 0.0
        %6227 = vmatpush2.msra.mxu0 0.0
        %6228 = vmatprep.subr.mxu0 0.0
        %6229 = vmatpush2.msra.mxu0 0.0
        %6230 = vmatprep.subr.mxu0 0.0
        %6231 = vmatpush2.msra.mxu0 0.0
        %6232 = vmatprep.subr.mxu0 0.0
        %6233 = vmatpush2.msra.mxu0 0.0
        %6234 = vmatprep.subr.mxu0 0.0
        %6235 = vmatpush2.msra.mxu0 0.0
        %6236 = vmatprep.subr.mxu0 0.0
        %6237 = vmatpush2.msra.mxu0 0.0
        %6238 = vmatprep.subr.mxu0 0.0
        %6239 = vmatpush2.msra.mxu0 0.0
        %6240 = vmatprep.mubr.f32.mxu0 0.0
        %6241 = vmatmul.mubr.f32.gmra.mxu0 %v5946
        %v6242 = vpop.f32.mrf.mxu0
        %v6243 = vadd.f32 0.0, %v6242
        %v6244 = vpop.f32.mrf.mxu0
        %v6245 = vadd.f32 0.0, %v6244
        %6246 = vmatprep.mubr.f32.mxu0 0.0
        %6247 = vmatmul.mubr.f32.gmra.mxu0 %v5949
        %v6248 = vpop.f32.mrf.mxu0
        %v6249 = vpop.f32.mrf.mxu0
        %6250 = vdwg.mxu0
        %6251 = vmatprep.subr.mxu0 0.0
        %6252 = vmatpush1.msra.mxu0 0.0
        %6253 = vmatprep.subr.mxu0 0.0
        %6254 = vmatpush1.msra.mxu0 0.0
        %6255 = vmatprep.subr.mxu0 0.0
        %6256 = vmatpush1.msra.mxu0 0.0
        %6257 = vmatprep.subr.mxu0 0.0
        %6258 = vmatpush1.msra.mxu0 0.0
        %6259 = vmatprep.subr.mxu0 0.0
        %6260 = vmatpush1.msra.mxu0 0.0
        %6261 = vmatprep.subr.mxu0 0.0
        %6262 = vmatpush1.msra.mxu0 0.0
        %6263 = vmatprep.subr.mxu0 0.0
        %6264 = vmatpush1.msra.mxu0 0.0
        %6265 = vmatprep.subr.mxu0 0.0
        %6266 = vmatpush1.msra.mxu0 0.0
        %6267 = vmatprep.subr.mxu0 0.0
        %6268 = vmatpush1.msra.mxu0 0.0
        %6269 = vmatprep.subr.mxu0 0.0
        %6270 = vmatpush1.msra.mxu0 0.0
        %6271 = vmatprep.subr.mxu0 0.0
        %6272 = vmatpush1.msra.mxu0 0.0
        %6273 = vmatprep.subr.mxu0 0.0
        %6274 = vmatpush1.msra.mxu0 0.0
        %6275 = vmatprep.subr.mxu0 %v5944
        %6276 = vmatpush1.msra.mxu0 %v5943
        %6277 = vmatprep.subr.mxu0 %v5934
        %6278 = vmatpush1.msra.mxu0 %v5933
        %6279 = vmatprep.subr.mxu0 %v5924
        %6280 = vmatpush1.msra.mxu0 %v5923
        %6281 = vmatprep.subr.mxu0 %v5914
        %6282 = vmatpush1.msra.mxu0 %v5913
        %6283 = vmatprep.subr.mxu0 0.0
        %6284 = vmatpush2.msra.mxu0 0.0
        %6285 = vmatprep.subr.mxu0 0.0
        %6286 = vmatpush2.msra.mxu0 0.0
        %6287 = vmatprep.subr.mxu0 0.0
        %6288 = vmatpush2.msra.mxu0 0.0
        %6289 = vmatprep.subr.mxu0 0.0
        %6290 = vmatpush2.msra.mxu0 0.0
        %6291 = vmatprep.subr.mxu0 0.0
        %6292 = vmatpush2.msra.mxu0 0.0
        %6293 = vmatprep.subr.mxu0 0.0
        %6294 = vmatpush2.msra.mxu0 0.0
        %6295 = vmatprep.subr.mxu0 0.0
        %6296 = vmatpush2.msra.mxu0 0.0
        %6297 = vmatprep.subr.mxu0 0.0
        %6298 = vmatpush2.msra.mxu0 0.0
        %6299 = vmatprep.subr.mxu0 0.0
        %6300 = vmatpush2.msra.mxu0 0.0
        %6301 = vmatprep.subr.mxu0 0.0
        %6302 = vmatpush2.msra.mxu0 0.0
        %6303 = vmatprep.subr.mxu0 0.0
        %6304 = vmatpush2.msra.mxu0 0.0
        %6305 = vmatprep.subr.mxu0 0.0
        %6306 = vmatpush2.msra.mxu0 0.0
        %6307 = vmatprep.subr.mxu0 0.0
        %6308 = vmatpush2.msra.mxu0 0.0
        %6309 = vmatprep.subr.mxu0 0.0
        %6310 = vmatpush2.msra.mxu0 0.0
        %6311 = vmatprep.subr.mxu0 0.0
        %6312 = vmatpush2.msra.mxu0 0.0
        %6313 = vmatprep.subr.mxu0 0.0
        %6314 = vmatpush2.msra.mxu0 0.0
        %6315 = vmatprep.mubr.f32.mxu0 0.0
        %6316 = vmatmul.mubr.f32.gmra.mxu0 %v5946
        %v6317 = vpop.f32.mrf.mxu0
        %v6318 = vpop.f32.mrf.mxu0
        %6319 = vmatprep.mubr.f32.mxu0 0.0
        %6320 = vmatmul.mubr.f32.gmra.mxu0 %v5949
        %v6321 = vpop.f32.mrf.mxu0
        %v6322 = vadd.f32 0.0, %v6321
        %v6323 = vpop.f32.mrf.mxu0
        %v6324 = vadd.f32 0.0, %v6323
        %6325 = vdwg.mxu0
        %v6326 = vadd.f32 %v6018, 0.0
        %v6327 = vadd.f32 %v6020, 0.0
        %v6330 = vrot.slane %v6093, 2
        %v6331 = vrot.slane %v6095, 2
        %v6334 = vadd.f32 %v6326, %v6330
        %v6335 = vadd.f32 %v6327, %v6331
        %v6338 = vrot.slane %v6168, 4
        %v6339 = vrot.slane %v6170, 4
        %v6342 = vadd.f32 %v6334, %v6338
        %v6343 = vadd.f32 %v6335, %v6339
        %v6346 = vrot.slane %v6243, 6
        %v6347 = vrot.slane %v6245, 6
        %v6350 = vadd.f32 %v6342, %v6346
        %v6351 = vadd.f32 %v6343, %v6347
        %v6352 = vadd.f32 %v6350, %v6322
        %v6353 = vadd.f32 %v6351, %v6324
        %v6354 = vld [vmem:[%s5 + $0x50] sm:$0xff]
        %v6355 = vld [vmem:[%s5 + $0x58] sm:$0xff]
        %v6356 = vld [vmem:[%s5 + $0x60] sm:$0xff]
        %v6357 = vld [vmem:[%s5 + $0x68] sm:$0xff]
        %v6358 = vld [vmem:[%s5 + $0x70] sm:$0xff]
        %v6359 = vld [vmem:[%s5 + $0x78] sm:$0xff]
        %v6360 = vld [vmem:[%s5 + $0x80] sm:$0xff]
        %v6361 = vld [vmem:[%s5 + $0x88] sm:$0xff]
        %v6362 = vld [vmem:[%s5 + $0x90] sm:$0xff]
        %v6363 = vld [vmem:[%s5 + $0x98] sm:$0xff]
        %v6364 = vld [vmem:[%s5 + $0x1e0] sm:$0xff]
        %v6365 = vld [vmem:[%s5 + $0x1e8] sm:$0xff]
        %v6366 = vld [vmem:[%s5 + $0x1f0] sm:$0xff]
        %v6367 = vld [vmem:[%s5 + $0x1f8] sm:$0xff]
        %v6368 = vld [vmem:[%s5 + $0x200] sm:$0xff]
        %v6369 = vld [vmem:[%s5 + $0x208] sm:$0xff]
        %v6370 = vld [vmem:[%s5 + $0x210] sm:$0xff]
        %v6371 = vld [vmem:[%s5 + $0x218] sm:$0xff]
        %v6372 = vld [vmem:[%s5 + $0x220] sm:$0xff]
        %v6373 = vld [vmem:[%s5 + $0x228] sm:$0xff]
        %v6374 = vld [vmem:[%s5 + $0x370] sm:$0xff]
        %v6375 = vld [vmem:[%s5 + $0x378] sm:$0xff]
        %v6376 = vld [vmem:[%s5 + $0x380] sm:$0xff]
        %v6377 = vld [vmem:[%s5 + $0x388] sm:$0xff]
        %v6378 = vld [vmem:[%s5 + $0x390] sm:$0xff]
        %v6379 = vld [vmem:[%s5 + $0x398] sm:$0xff]
        %v6380 = vld [vmem:[%s5 + $0x3a0] sm:$0xff]
        %v6381 = vld [vmem:[%s5 + $0x3a8] sm:$0xff]
        %v6382 = vld [vmem:[%s5 + $0x3b0] sm:$0xff]
        %v6383 = vld [vmem:[%s5 + $0x3b8] sm:$0xff]
        %v6384 = vld [vmem:[%s5 + $0x500] sm:$0xff]
        %v6385 = vld [vmem:[%s5 + $0x508] sm:$0xff]
        %v6386 = vld [vmem:[%s5 + $0x510] sm:$0xff]
        %v6387 = vld [vmem:[%s5 + $0x518] sm:$0xff]
        %v6388 = vld [vmem:[%s5 + $0x520] sm:$0xff]
        %v6389 = vld [vmem:[%s5 + $0x528] sm:$0xff]
        %v6390 = vld [vmem:[%s5 + $0x530] sm:$0xff]
        %v6391 = vld [vmem:[%s5 + $0x538] sm:$0xff]
        %v6392 = vld [vmem:[%s5 + $0x540] sm:$0xff]
        %v6393 = vld [vmem:[%s5 + $0x548] sm:$0xff]
        %v6395 = vsel %vm3535, %v5897, 0
        %v6398 = vsel %vm3535, %v5898, 0
        %6400 = vmatprep.subr.mxu0 0.0
        %6401 = vmatpush1.msra.mxu0 0.0
        %6402 = vmatprep.subr.mxu0 0.0
        %6403 = vmatpush1.msra.mxu0 0.0
        %6404 = vmatprep.subr.mxu0 0.0
        %6405 = vmatpush1.msra.mxu0 0.0
        %6406 = vmatprep.subr.mxu0 0.0
        %6407 = vmatpush1.msra.mxu0 0.0
        %6408 = vmatprep.subr.mxu0 0.0
        %6409 = vmatpush1.msra.mxu0 0.0
        %6410 = vmatprep.subr.mxu0 0.0
        %6411 = vmatpush1.msra.mxu0 0.0
        %6412 = vmatprep.subr.mxu0 0.0
        %6413 = vmatpush1.msra.mxu0 0.0
        %6414 = vmatprep.subr.mxu0 0.0
        %6415 = vmatpush1.msra.mxu0 0.0
        %6416 = vmatprep.subr.mxu0 0.0
        %6417 = vmatpush1.msra.mxu0 0.0
        %6418 = vmatprep.subr.mxu0 0.0
        %6419 = vmatpush1.msra.mxu0 0.0
        %6420 = vmatprep.subr.mxu0 0.0
        %6421 = vmatpush1.msra.mxu0 0.0
        %6422 = vmatprep.subr.mxu0 0.0
        %6423 = vmatpush1.msra.mxu0 0.0
        %6424 = vmatprep.subr.mxu0 %v6385
        %6425 = vmatpush1.msra.mxu0 %v6384
        %6426 = vmatprep.subr.mxu0 %v6375
        %6427 = vmatpush1.msra.mxu0 %v6374
        %6428 = vmatprep.subr.mxu0 %v6365
        %6429 = vmatpush1.msra.mxu0 %v6364
        %6430 = vmatprep.subr.mxu0 %v6355
        %6431 = vmatpush1.msra.mxu0 %v6354
        %6432 = vmatprep.subr.mxu0 0.0
        %6433 = vmatpush2.msra.mxu0 0.0
        %6434 = vmatprep.subr.mxu0 0.0
        %6435 = vmatpush2.msra.mxu0 0.0
        %6436 = vmatprep.subr.mxu0 0.0
        %6437 = vmatpush2.msra.mxu0 0.0
        %6438 = vmatprep.subr.mxu0 0.0
        %6439 = vmatpush2.msra.mxu0 0.0
        %6440 = vmatprep.subr.mxu0 0.0
        %6441 = vmatpush2.msra.mxu0 0.0
        %6442 = vmatprep.subr.mxu0 0.0
        %6443 = vmatpush2.msra.mxu0 0.0
        %6444 = vmatprep.subr.mxu0 0.0
        %6445 = vmatpush2.msra.mxu0 0.0
        %6446 = vmatprep.subr.mxu0 0.0
        %6447 = vmatpush2.msra.mxu0 0.0
        %6448 = vmatprep.subr.mxu0 0.0
        %6449 = vmatpush2.msra.mxu0 0.0
        %6450 = vmatprep.subr.mxu0 0.0
        %6451 = vmatpush2.msra.mxu0 0.0
        %6452 = vmatprep.subr.mxu0 0.0
        %6453 = vmatpush2.msra.mxu0 0.0
        %6454 = vmatprep.subr.mxu0 0.0
        %6455 = vmatpush2.msra.mxu0 0.0
        %6456 = vmatprep.subr.mxu0 0.0
        %6457 = vmatpush2.msra.mxu0 0.0
        %6458 = vmatprep.subr.mxu0 0.0
        %6459 = vmatpush2.msra.mxu0 0.0
        %6460 = vmatprep.subr.mxu0 0.0
        %6461 = vmatpush2.msra.mxu0 0.0
        %6462 = vmatprep.subr.mxu0 0.0
        %6463 = vmatpush2.msra.mxu0 0.0
        %6464 = vmatprep.mubr.f32.mxu0 0.0
        %6465 = vmatmul.mubr.f32.gmra.mxu0 %v6395
        %v6466 = vpop.f32.mrf.mxu0
        %v6467 = vadd.f32 0.0, %v6466
        %v6468 = vpop.f32.mrf.mxu0
        %v6469 = vadd.f32 0.0, %v6468
        %6470 = vmatprep.mubr.f32.mxu0 0.0
        %6471 = vmatmul.mubr.f32.gmra.mxu0 %v6398
        %v6472 = vpop.f32.mrf.mxu0
        %v6473 = vpop.f32.mrf.mxu0
        %6474 = vdwg.mxu0
        %6475 = vmatprep.subr.mxu0 0.0
        %6476 = vmatpush1.msra.mxu0 0.0
        %6477 = vmatprep.subr.mxu0 0.0
        %6478 = vmatpush1.msra.mxu0 0.0
        %6479 = vmatprep.subr.mxu0 0.0
        %6480 = vmatpush1.msra.mxu0 0.0
        %6481 = vmatprep.subr.mxu0 0.0
        %6482 = vmatpush1.msra.mxu0 0.0
        %6483 = vmatprep.subr.mxu0 0.0
        %6484 = vmatpush1.msra.mxu0 0.0
        %6485 = vmatprep.subr.mxu0 0.0
        %6486 = vmatpush1.msra.mxu0 0.0
        %6487 = vmatprep.subr.mxu0 0.0
        %6488 = vmatpush1.msra.mxu0 0.0
        %6489 = vmatprep.subr.mxu0 0.0
        %6490 = vmatpush1.msra.mxu0 0.0
        %6491 = vmatprep.subr.mxu0 0.0
        %6492 = vmatpush1.msra.mxu0 0.0
        %6493 = vmatprep.subr.mxu0 0.0
        %6494 = vmatpush1.msra.mxu0 0.0
        %6495 = vmatprep.subr.mxu0 0.0
        %6496 = vmatpush1.msra.mxu0 0.0
        %6497 = vmatprep.subr.mxu0 0.0
        %6498 = vmatpush1.msra.mxu0 0.0
        %6499 = vmatprep.subr.mxu0 %v6387
        %6500 = vmatpush1.msra.mxu0 %v6386
        %6501 = vmatprep.subr.mxu0 %v6377
        %6502 = vmatpush1.msra.mxu0 %v6376
        %6503 = vmatprep.subr.mxu0 %v6367
        %6504 = vmatpush1.msra.mxu0 %v6366
        %6505 = vmatprep.subr.mxu0 %v6357
        %6506 = vmatpush1.msra.mxu0 %v6356
        %6507 = vmatprep.subr.mxu0 0.0
        %6508 = vmatpush2.msra.mxu0 0.0
        %6509 = vmatprep.subr.mxu0 0.0
        %6510 = vmatpush2.msra.mxu0 0.0
        %6511 = vmatprep.subr.mxu0 0.0
        %6512 = vmatpush2.msra.mxu0 0.0
        %6513 = vmatprep.subr.mxu0 0.0
        %6514 = vmatpush2.msra.mxu0 0.0
        %6515 = vmatprep.subr.mxu0 0.0
        %6516 = vmatpush2.msra.mxu0 0.0
        %6517 = vmatprep.subr.mxu0 0.0
        %6518 = vmatpush2.msra.mxu0 0.0
        %6519 = vmatprep.subr.mxu0 0.0
        %6520 = vmatpush2.msra.mxu0 0.0
        %6521 = vmatprep.subr.mxu0 0.0
        %6522 = vmatpush2.msra.mxu0 0.0
        %6523 = vmatprep.subr.mxu0 0.0
        %6524 = vmatpush2.msra.mxu0 0.0
        %6525 = vmatprep.subr.mxu0 0.0
        %6526 = vmatpush2.msra.mxu0 0.0
        %6527 = vmatprep.subr.mxu0 0.0
        %6528 = vmatpush2.msra.mxu0 0.0
        %6529 = vmatprep.subr.mxu0 0.0
        %6530 = vmatpush2.msra.mxu0 0.0
        %6531 = vmatprep.subr.mxu0 0.0
        %6532 = vmatpush2.msra.mxu0 0.0
        %6533 = vmatprep.subr.mxu0 0.0
        %6534 = vmatpush2.msra.mxu0 0.0
        %6535 = vmatprep.subr.mxu0 0.0
        %6536 = vmatpush2.msra.mxu0 0.0
        %6537 = vmatprep.subr.mxu0 0.0
        %6538 = vmatpush2.msra.mxu0 0.0
        %6539 = vmatprep.mubr.f32.mxu0 0.0
        %6540 = vmatmul.mubr.f32.gmra.mxu0 %v6395
        %v6541 = vpop.f32.mrf.mxu0
        %v6542 = vadd.f32 0.0, %v6541
        %v6543 = vpop.f32.mrf.mxu0
        %v6544 = vadd.f32 0.0, %v6543
        %6545 = vmatprep.mubr.f32.mxu0 0.0
        %6546 = vmatmul.mubr.f32.gmra.mxu0 %v6398
        %v6547 = vpop.f32.mrf.mxu0
        %v6548 = vpop.f32.mrf.mxu0
        %6549 = vdwg.mxu0
        %6550 = vmatprep.subr.mxu0 0.0
        %6551 = vmatpush1.msra.mxu0 0.0
        %6552 = vmatprep.subr.mxu0 0.0
        %6553 = vmatpush1.msra.mxu0 0.0
        %6554 = vmatprep.subr.mxu0 0.0
        %6555 = vmatpush1.msra.mxu0 0.0
        %6556 = vmatprep.subr.mxu0 0.0
        %6557 = vmatpush1.msra.mxu0 0.0
        %6558 = vmatprep.subr.mxu0 0.0
        %6559 = vmatpush1.msra.mxu0 0.0
        %6560 = vmatprep.subr.mxu0 0.0
        %6561 = vmatpush1.msra.mxu0 0.0
        %6562 = vmatprep.subr.mxu0 0.0
        %6563 = vmatpush1.msra.mxu0 0.0
        %6564 = vmatprep.subr.mxu0 0.0
        %6565 = vmatpush1.msra.mxu0 0.0
        %6566 = vmatprep.subr.mxu0 0.0
        %6567 = vmatpush1.msra.mxu0 0.0
        %6568 = vmatprep.subr.mxu0 0.0
        %6569 = vmatpush1.msra.mxu0 0.0
        %6570 = vmatprep.subr.mxu0 0.0
        %6571 = vmatpush1.msra.mxu0 0.0
        %6572 = vmatprep.subr.mxu0 0.0
        %6573 = vmatpush1.msra.mxu0 0.0
        %6574 = vmatprep.subr.mxu0 %v6389
        %6575 = vmatpush1.msra.mxu0 %v6388
        %6576 = vmatprep.subr.mxu0 %v6379
        %6577 = vmatpush1.msra.mxu0 %v6378
        %6578 = vmatprep.subr.mxu0 %v6369
        %6579 = vmatpush1.msra.mxu0 %v6368
        %6580 = vmatprep.subr.mxu0 %v6359
        %6581 = vmatpush1.msra.mxu0 %v6358
        %6582 = vmatprep.subr.mxu0 0.0
        %6583 = vmatpush2.msra.mxu0 0.0
        %6584 = vmatprep.subr.mxu0 0.0
        %6585 = vmatpush2.msra.mxu0 0.0
        %6586 = vmatprep.subr.mxu0 0.0
        %6587 = vmatpush2.msra.mxu0 0.0
        %6588 = vmatprep.subr.mxu0 0.0
        %6589 = vmatpush2.msra.mxu0 0.0
        %6590 = vmatprep.subr.mxu0 0.0
        %6591 = vmatpush2.msra.mxu0 0.0
        %6592 = vmatprep.subr.mxu0 0.0
        %6593 = vmatpush2.msra.mxu0 0.0
        %6594 = vmatprep.subr.mxu0 0.0
        %6595 = vmatpush2.msra.mxu0 0.0
        %6596 = vmatprep.subr.mxu0 0.0
        %6597 = vmatpush2.msra.mxu0 0.0
        %6598 = vmatprep.subr.mxu0 0.0
        %6599 = vmatpush2.msra.mxu0 0.0
        %6600 = vmatprep.subr.mxu0 0.0
        %6601 = vmatpush2.msra.mxu0 0.0
        %6602 = vmatprep.subr.mxu0 0.0
        %6603 = vmatpush2.msra.mxu0 0.0
        %6604 = vmatprep.subr.mxu0 0.0
        %6605 = vmatpush2.msra.mxu0 0.0
        %6606 = vmatprep.subr.mxu0 0.0
        %6607 = vmatpush2.msra.mxu0 0.0
        %6608 = vmatprep.subr.mxu0 0.0
        %6609 = vmatpush2.msra.mxu0 0.0
        %6610 = vmatprep.subr.mxu0 0.0
        %6611 = vmatpush2.msra.mxu0 0.0
        %6612 = vmatprep.subr.mxu0 0.0
        %6613 = vmatpush2.msra.mxu0 0.0
        %6614 = vmatprep.mubr.f32.mxu0 0.0
        %6615 = vmatmul.mubr.f32.gmra.mxu0 %v6395
        %v6616 = vpop.f32.mrf.mxu0
        %v6617 = vadd.f32 0.0, %v6616
        %v6618 = vpop.f32.mrf.mxu0
        %v6619 = vadd.f32 0.0, %v6618
        %6620 = vmatprep.mubr.f32.mxu0 0.0
        %6621 = vmatmul.mubr.f32.gmra.mxu0 %v6398
        %v6622 = vpop.f32.mrf.mxu0
        %v6623 = vpop.f32.mrf.mxu0
        %6624 = vdwg.mxu0
        %6625 = vmatprep.subr.mxu0 0.0
        %6626 = vmatpush1.msra.mxu0 0.0
        %6627 = vmatprep.subr.mxu0 0.0
        %6628 = vmatpush1.msra.mxu0 0.0
        %6629 = vmatprep.subr.mxu0 0.0
        %6630 = vmatpush1.msra.mxu0 0.0
        %6631 = vmatprep.subr.mxu0 0.0
        %6632 = vmatpush1.msra.mxu0 0.0
        %6633 = vmatprep.subr.mxu0 0.0
        %6634 = vmatpush1.msra.mxu0 0.0
        %6635 = vmatprep.subr.mxu0 0.0
        %6636 = vmatpush1.msra.mxu0 0.0
        %6637 = vmatprep.subr.mxu0 0.0
        %6638 = vmatpush1.msra.mxu0 0.0
        %6639 = vmatprep.subr.mxu0 0.0
        %6640 = vmatpush1.msra.mxu0 0.0
        %6641 = vmatprep.subr.mxu0 0.0
        %6642 = vmatpush1.msra.mxu0 0.0
        %6643 = vmatprep.subr.mxu0 0.0
        %6644 = vmatpush1.msra.mxu0 0.0
        %6645 = vmatprep.subr.mxu0 0.0
        %6646 = vmatpush1.msra.mxu0 0.0
        %6647 = vmatprep.subr.mxu0 0.0
        %6648 = vmatpush1.msra.mxu0 0.0
        %6649 = vmatprep.subr.mxu0 %v6391
        %6650 = vmatpush1.msra.mxu0 %v6390
        %6651 = vmatprep.subr.mxu0 %v6381
        %6652 = vmatpush1.msra.mxu0 %v6380
        %6653 = vmatprep.subr.mxu0 %v6371
        %6654 = vmatpush1.msra.mxu0 %v6370
        %6655 = vmatprep.subr.mxu0 %v6361
        %6656 = vmatpush1.msra.mxu0 %v6360
        %6657 = vmatprep.subr.mxu0 0.0
        %6658 = vmatpush2.msra.mxu0 0.0
        %6659 = vmatprep.subr.mxu0 0.0
        %6660 = vmatpush2.msra.mxu0 0.0
        %6661 = vmatprep.subr.mxu0 0.0
        %6662 = vmatpush2.msra.mxu0 0.0
        %6663 = vmatprep.subr.mxu0 0.0
        %6664 = vmatpush2.msra.mxu0 0.0
        %6665 = vmatprep.subr.mxu0 0.0
        %6666 = vmatpush2.msra.mxu0 0.0
        %6667 = vmatprep.subr.mxu0 0.0
        %6668 = vmatpush2.msra.mxu0 0.0
        %6669 = vmatprep.subr.mxu0 0.0
        %6670 = vmatpush2.msra.mxu0 0.0
        %6671 = vmatprep.subr.mxu0 0.0
        %6672 = vmatpush2.msra.mxu0 0.0
        %6673 = vmatprep.subr.mxu0 0.0
        %6674 = vmatpush2.msra.mxu0 0.0
        %6675 = vmatprep.subr.mxu0 0.0
        %6676 = vmatpush2.msra.mxu0 0.0
        %6677 = vmatprep.subr.mxu0 0.0
        %6678 = vmatpush2.msra.mxu0 0.0
        %6679 = vmatprep.subr.mxu0 0.0
        %6680 = vmatpush2.msra.mxu0 0.0
        %6681 = vmatprep.subr.mxu0 0.0
        %6682 = vmatpush2.msra.mxu0 0.0
        %6683 = vmatprep.subr.mxu0 0.0
        %6684 = vmatpush2.msra.mxu0 0.0
        %6685 = vmatprep.subr.mxu0 0.0
        %6686 = vmatpush2.msra.mxu0 0.0
        %6687 = vmatprep.subr.mxu0 0.0
        %6688 = vmatpush2.msra.mxu0 0.0
        %6689 = vmatprep.mubr.f32.mxu0 0.0
        %6690 = vmatmul.mubr.f32.gmra.mxu0 %v6395
        %v6691 = vpop.f32.mrf.mxu0
        %v6692 = vadd.f32 0.0, %v6691
        %v6693 = vpop.f32.mrf.mxu0
        %v6694 = vadd.f32 0.0, %v6693
        %6695 = vmatprep.mubr.f32.mxu0 0.0
        %6696 = vmatmul.mubr.f32.gmra.mxu0 %v6398
        %v6697 = vpop.f32.mrf.mxu0
        %v6698 = vpop.f32.mrf.mxu0
        %6699 = vdwg.mxu0
        %6700 = vmatprep.subr.mxu0 0.0
        %6701 = vmatpush1.msra.mxu0 0.0
        %6702 = vmatprep.subr.mxu0 0.0
        %6703 = vmatpush1.msra.mxu0 0.0
        %6704 = vmatprep.subr.mxu0 0.0
        %6705 = vmatpush1.msra.mxu0 0.0
        %6706 = vmatprep.subr.mxu0 0.0
        %6707 = vmatpush1.msra.mxu0 0.0
        %6708 = vmatprep.subr.mxu0 0.0
        %6709 = vmatpush1.msra.mxu0 0.0
        %6710 = vmatprep.subr.mxu0 0.0
        %6711 = vmatpush1.msra.mxu0 0.0
        %6712 = vmatprep.subr.mxu0 0.0
        %6713 = vmatpush1.msra.mxu0 0.0
        %6714 = vmatprep.subr.mxu0 0.0
        %6715 = vmatpush1.msra.mxu0 0.0
        %6716 = vmatprep.subr.mxu0 0.0
        %6717 = vmatpush1.msra.mxu0 0.0
        %6718 = vmatprep.subr.mxu0 0.0
        %6719 = vmatpush1.msra.mxu0 0.0
        %6720 = vmatprep.subr.mxu0 0.0
        %6721 = vmatpush1.msra.mxu0 0.0
        %6722 = vmatprep.subr.mxu0 0.0
        %6723 = vmatpush1.msra.mxu0 0.0
        %6724 = vmatprep.subr.mxu0 %v6393
        %6725 = vmatpush1.msra.mxu0 %v6392
        %6726 = vmatprep.subr.mxu0 %v6383
        %6727 = vmatpush1.msra.mxu0 %v6382
        %6728 = vmatprep.subr.mxu0 %v6373
        %6729 = vmatpush1.msra.mxu0 %v6372
        %6730 = vmatprep.subr.mxu0 %v6363
        %6731 = vmatpush1.msra.mxu0 %v6362
        %6732 = vmatprep.subr.mxu0 0.0
        %6733 = vmatpush2.msra.mxu0 0.0
        %6734 = vmatprep.subr.mxu0 0.0
        %6735 = vmatpush2.msra.mxu0 0.0
        %6736 = vmatprep.subr.mxu0 0.0
        %6737 = vmatpush2.msra.mxu0 0.0
        %6738 = vmatprep.subr.mxu0 0.0
        %6739 = vmatpush2.msra.mxu0 0.0
        %6740 = vmatprep.subr.mxu0 0.0
        %6741 = vmatpush2.msra.mxu0 0.0
        %6742 = vmatprep.subr.mxu0 0.0
        %6743 = vmatpush2.msra.mxu0 0.0
        %6744 = vmatprep.subr.mxu0 0.0
        %6745 = vmatpush2.msra.mxu0 0.0
        %6746 = vmatprep.subr.mxu0 0.0
        %6747 = vmatpush2.msra.mxu0 0.0
        %6748 = vmatprep.subr.mxu0 0.0
        %6749 = vmatpush2.msra.mxu0 0.0
        %6750 = vmatprep.subr.mxu0 0.0
        %6751 = vmatpush2.msra.mxu0 0.0
        %6752 = vmatprep.subr.mxu0 0.0
        %6753 = vmatpush2.msra.mxu0 0.0
        %6754 = vmatprep.subr.mxu0 0.0
        %6755 = vmatpush2.msra.mxu0 0.0
        %6756 = vmatprep.subr.mxu0 0.0
        %6757 = vmatpush2.msra.mxu0 0.0
        %6758 = vmatprep.subr.mxu0 0.0
        %6759 = vmatpush2.msra.mxu0 0.0
        %6760 = vmatprep.subr.mxu0 0.0
        %6761 = vmatpush2.msra.mxu0 0.0
        %6762 = vmatprep.subr.mxu0 0.0
        %6763 = vmatpush2.msra.mxu0 0.0
        %6764 = vmatprep.mubr.f32.mxu0 0.0
        %6765 = vmatmul.mubr.f32.gmra.mxu0 %v6395
        %v6766 = vpop.f32.mrf.mxu0
        %v6767 = vpop.f32.mrf.mxu0
        %6768 = vmatprep.mubr.f32.mxu0 0.0
        %6769 = vmatmul.mubr.f32.gmra.mxu0 %v6398
        %v6770 = vpop.f32.mrf.mxu0
        %v6771 = vadd.f32 0.0, %v6770
        %v6772 = vpop.f32.mrf.mxu0
        %v6773 = vadd.f32 0.0, %v6772
        %6774 = vdwg.mxu0
        %v6775 = vadd.f32 %v6352, %v6467
        %v6776 = vadd.f32 %v6353, %v6469
        %v6779 = vrot.slane %v6542, 2
        %v6780 = vrot.slane %v6544, 2
        %v6783 = vadd.f32 %v6775, %v6779
        %v6784 = vadd.f32 %v6776, %v6780
        %v6787 = vrot.slane %v6617, 4
        %v6788 = vrot.slane %v6619, 4
        %v6791 = vadd.f32 %v6783, %v6787
        %v6792 = vadd.f32 %v6784, %v6788
        %v6795 = vrot.slane %v6692, 6
        %v6796 = vrot.slane %v6694, 6
        %v6799 = vadd.f32 %v6791, %v6795
        %v6800 = vadd.f32 %v6792, %v6796
        %v6801 = vadd.f32 %v6799, %v6771
        %v6802 = vadd.f32 %v6800, %v6773
        %v6803 = vld [vmem:[%s5 + $0xa0] sm:$0xff]
        %v6804 = vld [vmem:[%s5 + $0xa8] sm:$0xff]
        %v6805 = vld [vmem:[%s5 + $0xb0] sm:$0xff]
        %v6806 = vld [vmem:[%s5 + $0xb8] sm:$0xff]
        %v6807 = vld [vmem:[%s5 + $0xc0] sm:$0xff]
        %v6808 = vld [vmem:[%s5 + $0xc8] sm:$0xff]
        %v6809 = vld [vmem:[%s5 + $0xd0] sm:$0xff]
        %v6810 = vld [vmem:[%s5 + $0xd8] sm:$0xff]
        %v6811 = vld [vmem:[%s5 + $0xe0] sm:$0xff]
        %v6812 = vld [vmem:[%s5 + $0xe8] sm:$0xff]
        %v6813 = vld [vmem:[%s5 + $0x230] sm:$0xff]
        %v6814 = vld [vmem:[%s5 + $0x238] sm:$0xff]
        %v6815 = vld [vmem:[%s5 + $0x240] sm:$0xff]
        %v6816 = vld [vmem:[%s5 + $0x248] sm:$0xff]
        %v6817 = vld [vmem:[%s5 + $0x250] sm:$0xff]
        %v6818 = vld [vmem:[%s5 + $0x258] sm:$0xff]
        %v6819 = vld [vmem:[%s5 + $0x260] sm:$0xff]
        %v6820 = vld [vmem:[%s5 + $0x268] sm:$0xff]
        %v6821 = vld [vmem:[%s5 + $0x270] sm:$0xff]
        %v6822 = vld [vmem:[%s5 + $0x278] sm:$0xff]
        %v6823 = vld [vmem:[%s5 + $0x3c0] sm:$0xff]
        %v6824 = vld [vmem:[%s5 + $0x3c8] sm:$0xff]
        %v6825 = vld [vmem:[%s5 + $0x3d0] sm:$0xff]
        %v6826 = vld [vmem:[%s5 + $0x3d8] sm:$0xff]
        %v6827 = vld [vmem:[%s5 + $0x3e0] sm:$0xff]
        %v6828 = vld [vmem:[%s5 + $0x3e8] sm:$0xff]
        %v6829 = vld [vmem:[%s5 + $0x3f0] sm:$0xff]
        %v6830 = vld [vmem:[%s5 + $0x3f8] sm:$0xff]
        %v6831 = vld [vmem:[%s5 + $0x400] sm:$0xff]
        %v6832 = vld [vmem:[%s5 + $0x408] sm:$0xff]
        %v6833 = vld [vmem:[%s5 + $0x550] sm:$0xff]
        %v6834 = vld [vmem:[%s5 + $0x558] sm:$0xff]
        %v6835 = vld [vmem:[%s5 + $0x560] sm:$0xff]
        %v6836 = vld [vmem:[%s5 + $0x568] sm:$0xff]
        %v6837 = vld [vmem:[%s5 + $0x570] sm:$0xff]
        %v6838 = vld [vmem:[%s5 + $0x578] sm:$0xff]
        %v6839 = vld [vmem:[%s5 + $0x580] sm:$0xff]
        %v6840 = vld [vmem:[%s5 + $0x588] sm:$0xff]
        %v6841 = vld [vmem:[%s5 + $0x590] sm:$0xff]
        %v6842 = vld [vmem:[%s5 + $0x598] sm:$0xff]
        %v6844 = vsel %vm3535, %v5899, 0
        %v6847 = vsel %vm3535, %v5900, 0
        %6849 = vmatprep.subr.mxu0 0.0
        %6850 = vmatpush1.msra.mxu0 0.0
        %6851 = vmatprep.subr.mxu0 0.0
        %6852 = vmatpush1.msra.mxu0 0.0
        %6853 = vmatprep.subr.mxu0 0.0
        %6854 = vmatpush1.msra.mxu0 0.0
        %6855 = vmatprep.subr.mxu0 0.0
        %6856 = vmatpush1.msra.mxu0 0.0
        %6857 = vmatprep.subr.mxu0 0.0
        %6858 = vmatpush1.msra.mxu0 0.0
        %6859 = vmatprep.subr.mxu0 0.0
        %6860 = vmatpush1.msra.mxu0 0.0
        %6861 = vmatprep.subr.mxu0 0.0
        %6862 = vmatpush1.msra.mxu0 0.0
        %6863 = vmatprep.subr.mxu0 0.0
        %6864 = vmatpush1.msra.mxu0 0.0
        %6865 = vmatprep.subr.mxu0 0.0
        %6866 = vmatpush1.msra.mxu0 0.0
        %6867 = vmatprep.subr.mxu0 0.0
        %6868 = vmatpush1.msra.mxu0 0.0
        %6869 = vmatprep.subr.mxu0 0.0
        %6870 = vmatpush1.msra.mxu0 0.0
        %6871 = vmatprep.subr.mxu0 0.0
        %6872 = vmatpush1.msra.mxu0 0.0
        %6873 = vmatprep.subr.mxu0 %v6834
        %6874 = vmatpush1.msra.mxu0 %v6833
        %6875 = vmatprep.subr.mxu0 %v6824
        %6876 = vmatpush1.msra.mxu0 %v6823
        %6877 = vmatprep.subr.mxu0 %v6814
        %6878 = vmatpush1.msra.mxu0 %v6813
        %6879 = vmatprep.subr.mxu0 %v6804
        %6880 = vmatpush1.msra.mxu0 %v6803
        %6881 = vmatprep.subr.mxu0 0.0
        %6882 = vmatpush2.msra.mxu0 0.0
        %6883 = vmatprep.subr.mxu0 0.0
        %6884 = vmatpush2.msra.mxu0 0.0
        %6885 = vmatprep.subr.mxu0 0.0
        %6886 = vmatpush2.msra.mxu0 0.0
        %6887 = vmatprep.subr.mxu0 0.0
        %6888 = vmatpush2.msra.mxu0 0.0
        %6889 = vmatprep.subr.mxu0 0.0
        %6890 = vmatpush2.msra.mxu0 0.0
        %6891 = vmatprep.subr.mxu0 0.0
        %6892 = vmatpush2.msra.mxu0 0.0
        %6893 = vmatprep.subr.mxu0 0.0
        %6894 = vmatpush2.msra.mxu0 0.0
        %6895 = vmatprep.subr.mxu0 0.0
        %6896 = vmatpush2.msra.mxu0 0.0
        %6897 = vmatprep.subr.mxu0 0.0
        %6898 = vmatpush2.msra.mxu0 0.0
        %6899 = vmatprep.subr.mxu0 0.0
        %6900 = vmatpush2.msra.mxu0 0.0
        %6901 = vmatprep.subr.mxu0 0.0
        %6902 = vmatpush2.msra.mxu0 0.0
        %6903 = vmatprep.subr.mxu0 0.0
        %6904 = vmatpush2.msra.mxu0 0.0
        %6905 = vmatprep.subr.mxu0 0.0
        %6906 = vmatpush2.msra.mxu0 0.0
        %6907 = vmatprep.subr.mxu0 0.0
        %6908 = vmatpush2.msra.mxu0 0.0
        %6909 = vmatprep.subr.mxu0 0.0
        %6910 = vmatpush2.msra.mxu0 0.0
        %6911 = vmatprep.subr.mxu0 0.0
        %6912 = vmatpush2.msra.mxu0 0.0
        %6913 = vmatprep.mubr.f32.mxu0 0.0
        %6914 = vmatmul.mubr.f32.gmra.mxu0 %v6844
        %v6915 = vpop.f32.mrf.mxu0
        %v6916 = vadd.f32 0.0, %v6915
        %v6917 = vpop.f32.mrf.mxu0
        %v6918 = vadd.f32 0.0, %v6917
        %6919 = vmatprep.mubr.f32.mxu0 0.0
        %6920 = vmatmul.mubr.f32.gmra.mxu0 %v6847
        %v6921 = vpop.f32.mrf.mxu0
        %v6922 = vpop.f32.mrf.mxu0
        %6923 = vdwg.mxu0
        %6924 = vmatprep.subr.mxu0 0.0
        %6925 = vmatpush1.msra.mxu0 0.0
        %6926 = vmatprep.subr.mxu0 0.0
        %6927 = vmatpush1.msra.mxu0 0.0
        %6928 = vmatprep.subr.mxu0 0.0
        %6929 = vmatpush1.msra.mxu0 0.0
        %6930 = vmatprep.subr.mxu0 0.0
        %6931 = vmatpush1.msra.mxu0 0.0
        %6932 = vmatprep.subr.mxu0 0.0
        %6933 = vmatpush1.msra.mxu0 0.0
        %6934 = vmatprep.subr.mxu0 0.0
        %6935 = vmatpush1.msra.mxu0 0.0
        %6936 = vmatprep.subr.mxu0 0.0
        %6937 = vmatpush1.msra.mxu0 0.0
        %6938 = vmatprep.subr.mxu0 0.0
        %6939 = vmatpush1.msra.mxu0 0.0
        %6940 = vmatprep.subr.mxu0 0.0
        %6941 = vmatpush1.msra.mxu0 0.0
        %6942 = vmatprep.subr.mxu0 0.0
        %6943 = vmatpush1.msra.mxu0 0.0
        %6944 = vmatprep.subr.mxu0 0.0
        %6945 = vmatpush1.msra.mxu0 0.0
        %6946 = vmatprep.subr.mxu0 0.0
        %6947 = vmatpush1.msra.mxu0 0.0
        %6948 = vmatprep.subr.mxu0 %v6836
        %6949 = vmatpush1.msra.mxu0 %v6835
        %6950 = vmatprep.subr.mxu0 %v6826
        %6951 = vmatpush1.msra.mxu0 %v6825
        %6952 = vmatprep.subr.mxu0 %v6816
        %6953 = vmatpush1.msra.mxu0 %v6815
        %6954 = vmatprep.subr.mxu0 %v6806
        %6955 = vmatpush1.msra.mxu0 %v6805
        %6956 = vmatprep.subr.mxu0 0.0
        %6957 = vmatpush2.msra.mxu0 0.0
        %6958 = vmatprep.subr.mxu0 0.0
        %6959 = vmatpush2.msra.mxu0 0.0
        %6960 = vmatprep.subr.mxu0 0.0
        %6961 = vmatpush2.msra.mxu0 0.0
        %6962 = vmatprep.subr.mxu0 0.0
        %6963 = vmatpush2.msra.mxu0 0.0
        %6964 = vmatprep.subr.mxu0 0.0
        %6965 = vmatpush2.msra.mxu0 0.0
        %6966 = vmatprep.subr.mxu0 0.0
        %6967 = vmatpush2.msra.mxu0 0.0
        %6968 = vmatprep.subr.mxu0 0.0
        %6969 = vmatpush2.msra.mxu0 0.0
        %6970 = vmatprep.subr.mxu0 0.0
        %6971 = vmatpush2.msra.mxu0 0.0
        %6972 = vmatprep.subr.mxu0 0.0
        %6973 = vmatpush2.msra.mxu0 0.0
        %6974 = vmatprep.subr.mxu0 0.0
        %6975 = vmatpush2.msra.mxu0 0.0
        %6976 = vmatprep.subr.mxu0 0.0
        %6977 = vmatpush2.msra.mxu0 0.0
        %6978 = vmatprep.subr.mxu0 0.0
        %6979 = vmatpush2.msra.mxu0 0.0
        %6980 = vmatprep.subr.mxu0 0.0
        %6981 = vmatpush2.msra.mxu0 0.0
        %6982 = vmatprep.subr.mxu0 0.0
        %6983 = vmatpush2.msra.mxu0 0.0
        %6984 = vmatprep.subr.mxu0 0.0
        %6985 = vmatpush2.msra.mxu0 0.0
        %6986 = vmatprep.subr.mxu0 0.0
        %6987 = vmatpush2.msra.mxu0 0.0
        %6988 = vmatprep.mubr.f32.mxu0 0.0
        %6989 = vmatmul.mubr.f32.gmra.mxu0 %v6844
        %v6990 = vpop.f32.mrf.mxu0
        %v6991 = vadd.f32 0.0, %v6990
        %v6992 = vpop.f32.mrf.mxu0
        %v6993 = vadd.f32 0.0, %v6992
        %6994 = vmatprep.mubr.f32.mxu0 0.0
        %6995 = vmatmul.mubr.f32.gmra.mxu0 %v6847
        %v6996 = vpop.f32.mrf.mxu0
        %v6997 = vpop.f32.mrf.mxu0
        %6998 = vdwg.mxu0
        %6999 = vmatprep.subr.mxu0 0.0
        %7000 = vmatpush1.msra.mxu0 0.0
        %7001 = vmatprep.subr.mxu0 0.0
        %7002 = vmatpush1.msra.mxu0 0.0
        %7003 = vmatprep.subr.mxu0 0.0
        %7004 = vmatpush1.msra.mxu0 0.0
        %7005 = vmatprep.subr.mxu0 0.0
        %7006 = vmatpush1.msra.mxu0 0.0
        %7007 = vmatprep.subr.mxu0 0.0
        %7008 = vmatpush1.msra.mxu0 0.0
        %7009 = vmatprep.subr.mxu0 0.0
        %7010 = vmatpush1.msra.mxu0 0.0
        %7011 = vmatprep.subr.mxu0 0.0
        %7012 = vmatpush1.msra.mxu0 0.0
        %7013 = vmatprep.subr.mxu0 0.0
        %7014 = vmatpush1.msra.mxu0 0.0
        %7015 = vmatprep.subr.mxu0 0.0
        %7016 = vmatpush1.msra.mxu0 0.0
        %7017 = vmatprep.subr.mxu0 0.0
        %7018 = vmatpush1.msra.mxu0 0.0
        %7019 = vmatprep.subr.mxu0 0.0
        %7020 = vmatpush1.msra.mxu0 0.0
        %7021 = vmatprep.subr.mxu0 0.0
        %7022 = vmatpush1.msra.mxu0 0.0
        %7023 = vmatprep.subr.mxu0 %v6838
        %7024 = vmatpush1.msra.mxu0 %v6837
        %7025 = vmatprep.subr.mxu0 %v6828
        %7026 = vmatpush1.msra.mxu0 %v6827
        %7027 = vmatprep.subr.mxu0 %v6818
        %7028 = vmatpush1.msra.mxu0 %v6817
        %7029 = vmatprep.subr.mxu0 %v6808
        %7030 = vmatpush1.msra.mxu0 %v6807
        %7031 = vmatprep.subr.mxu0 0.0
        %7032 = vmatpush2.msra.mxu0 0.0
        %7033 = vmatprep.subr.mxu0 0.0
        %7034 = vmatpush2.msra.mxu0 0.0
        %7035 = vmatprep.subr.mxu0 0.0
        %7036 = vmatpush2.msra.mxu0 0.0
        %7037 = vmatprep.subr.mxu0 0.0
        %7038 = vmatpush2.msra.mxu0 0.0
        %7039 = vmatprep.subr.mxu0 0.0
        %7040 = vmatpush2.msra.mxu0 0.0
        %7041 = vmatprep.subr.mxu0 0.0
        %7042 = vmatpush2.msra.mxu0 0.0
        %7043 = vmatprep.subr.mxu0 0.0
        %7044 = vmatpush2.msra.mxu0 0.0
        %7045 = vmatprep.subr.mxu0 0.0
        %7046 = vmatpush2.msra.mxu0 0.0
        %7047 = vmatprep.subr.mxu0 0.0
        %7048 = vmatpush2.msra.mxu0 0.0
        %7049 = vmatprep.subr.mxu0 0.0
        %7050 = vmatpush2.msra.mxu0 0.0
        %7051 = vmatprep.subr.mxu0 0.0
        %7052 = vmatpush2.msra.mxu0 0.0
        %7053 = vmatprep.subr.mxu0 0.0
        %7054 = vmatpush2.msra.mxu0 0.0
        %7055 = vmatprep.subr.mxu0 0.0
        %7056 = vmatpush2.msra.mxu0 0.0
        %7057 = vmatprep.subr.mxu0 0.0
        %7058 = vmatpush2.msra.mxu0 0.0
        %7059 = vmatprep.subr.mxu0 0.0
        %7060 = vmatpush2.msra.mxu0 0.0
        %7061 = vmatprep.subr.mxu0 0.0
        %7062 = vmatpush2.msra.mxu0 0.0
        %7063 = vmatprep.mubr.f32.mxu0 0.0
        %7064 = vmatmul.mubr.f32.gmra.mxu0 %v6844
        %v7065 = vpop.f32.mrf.mxu0
        %v7066 = vadd.f32 0.0, %v7065
        %v7067 = vpop.f32.mrf.mxu0
        %v7068 = vadd.f32 0.0, %v7067
        %7069 = vmatprep.mubr.f32.mxu0 0.0
        %7070 = vmatmul.mubr.f32.gmra.mxu0 %v6847
        %v7071 = vpop.f32.mrf.mxu0
        %v7072 = vpop.f32.mrf.mxu0
        %7073 = vdwg.mxu0
        %7074 = vmatprep.subr.mxu0 0.0
        %7075 = vmatpush1.msra.mxu0 0.0
        %7076 = vmatprep.subr.mxu0 0.0
        %7077 = vmatpush1.msra.mxu0 0.0
        %7078 = vmatprep.subr.mxu0 0.0
        %7079 = vmatpush1.msra.mxu0 0.0
        %7080 = vmatprep.subr.mxu0 0.0
        %7081 = vmatpush1.msra.mxu0 0.0
        %7082 = vmatprep.subr.mxu0 0.0
        %7083 = vmatpush1.msra.mxu0 0.0
        %7084 = vmatprep.subr.mxu0 0.0
        %7085 = vmatpush1.msra.mxu0 0.0
        %7086 = vmatprep.subr.mxu0 0.0
        %7087 = vmatpush1.msra.mxu0 0.0
        %7088 = vmatprep.subr.mxu0 0.0
        %7089 = vmatpush1.msra.mxu0 0.0
        %7090 = vmatprep.subr.mxu0 0.0
        %7091 = vmatpush1.msra.mxu0 0.0
        %7092 = vmatprep.subr.mxu0 0.0
        %7093 = vmatpush1.msra.mxu0 0.0
        %7094 = vmatprep.subr.mxu0 0.0
        %7095 = vmatpush1.msra.mxu0 0.0
        %7096 = vmatprep.subr.mxu0 0.0
        %7097 = vmatpush1.msra.mxu0 0.0
        %7098 = vmatprep.subr.mxu0 %v6840
        %7099 = vmatpush1.msra.mxu0 %v6839
        %7100 = vmatprep.subr.mxu0 %v6830
        %7101 = vmatpush1.msra.mxu0 %v6829
        %7102 = vmatprep.subr.mxu0 %v6820
        %7103 = vmatpush1.msra.mxu0 %v6819
        %7104 = vmatprep.subr.mxu0 %v6810
        %7105 = vmatpush1.msra.mxu0 %v6809
        %7106 = vmatprep.subr.mxu0 0.0
        %7107 = vmatpush2.msra.mxu0 0.0
        %7108 = vmatprep.subr.mxu0 0.0
        %7109 = vmatpush2.msra.mxu0 0.0
        %7110 = vmatprep.subr.mxu0 0.0
        %7111 = vmatpush2.msra.mxu0 0.0
        %7112 = vmatprep.subr.mxu0 0.0
        %7113 = vmatpush2.msra.mxu0 0.0
        %7114 = vmatprep.subr.mxu0 0.0
        %7115 = vmatpush2.msra.mxu0 0.0
        %7116 = vmatprep.subr.mxu0 0.0
        %7117 = vmatpush2.msra.mxu0 0.0
        %7118 = vmatprep.subr.mxu0 0.0
        %7119 = vmatpush2.msra.mxu0 0.0
        %7120 = vmatprep.subr.mxu0 0.0
        %7121 = vmatpush2.msra.mxu0 0.0
        %7122 = vmatprep.subr.mxu0 0.0
        %7123 = vmatpush2.msra.mxu0 0.0
        %7124 = vmatprep.subr.mxu0 0.0
        %7125 = vmatpush2.msra.mxu0 0.0
        %7126 = vmatprep.subr.mxu0 0.0
        %7127 = vmatpush2.msra.mxu0 0.0
        %7128 = vmatprep.subr.mxu0 0.0
        %7129 = vmatpush2.msra.mxu0 0.0
        %7130 = vmatprep.subr.mxu0 0.0
        %7131 = vmatpush2.msra.mxu0 0.0
        %7132 = vmatprep.subr.mxu0 0.0
        %7133 = vmatpush2.msra.mxu0 0.0
        %7134 = vmatprep.subr.mxu0 0.0
        %7135 = vmatpush2.msra.mxu0 0.0
        %7136 = vmatprep.subr.mxu0 0.0
        %7137 = vmatpush2.msra.mxu0 0.0
        %7138 = vmatprep.mubr.f32.mxu0 0.0
        %7139 = vmatmul.mubr.f32.gmra.mxu0 %v6844
        %v7140 = vpop.f32.mrf.mxu0
        %v7141 = vadd.f32 0.0, %v7140
        %v7142 = vpop.f32.mrf.mxu0
        %v7143 = vadd.f32 0.0, %v7142
        %7144 = vmatprep.mubr.f32.mxu0 0.0
        %7145 = vmatmul.mubr.f32.gmra.mxu0 %v6847
        %v7146 = vpop.f32.mrf.mxu0
        %v7147 = vpop.f32.mrf.mxu0
        %7148 = vdwg.mxu0
        %7149 = vmatprep.subr.mxu0 0.0
        %7150 = vmatpush1.msra.mxu0 0.0
        %7151 = vmatprep.subr.mxu0 0.0
        %7152 = vmatpush1.msra.mxu0 0.0
        %7153 = vmatprep.subr.mxu0 0.0
        %7154 = vmatpush1.msra.mxu0 0.0
        %7155 = vmatprep.subr.mxu0 0.0
        %7156 = vmatpush1.msra.mxu0 0.0
        %7157 = vmatprep.subr.mxu0 0.0
        %7158 = vmatpush1.msra.mxu0 0.0
        %7159 = vmatprep.subr.mxu0 0.0
        %7160 = vmatpush1.msra.mxu0 0.0
        %7161 = vmatprep.subr.mxu0 0.0
        %7162 = vmatpush1.msra.mxu0 0.0
        %7163 = vmatprep.subr.mxu0 0.0
        %7164 = vmatpush1.msra.mxu0 0.0
        %7165 = vmatprep.subr.mxu0 0.0
        %7166 = vmatpush1.msra.mxu0 0.0
        %7167 = vmatprep.subr.mxu0 0.0
        %7168 = vmatpush1.msra.mxu0 0.0
        %7169 = vmatprep.subr.mxu0 0.0
        %7170 = vmatpush1.msra.mxu0 0.0
        %7171 = vmatprep.subr.mxu0 0.0
        %7172 = vmatpush1.msra.mxu0 0.0
        %7173 = vmatprep.subr.mxu0 %v6842
        %7174 = vmatpush1.msra.mxu0 %v6841
        %7175 = vmatprep.subr.mxu0 %v6832
        %7176 = vmatpush1.msra.mxu0 %v6831
        %7177 = vmatprep.subr.mxu0 %v6822
        %7178 = vmatpush1.msra.mxu0 %v6821
        %7179 = vmatprep.subr.mxu0 %v6812
        %7180 = vmatpush1.msra.mxu0 %v6811
        %7181 = vmatprep.subr.mxu0 0.0
        %7182 = vmatpush2.msra.mxu0 0.0
        %7183 = vmatprep.subr.mxu0 0.0
        %7184 = vmatpush2.msra.mxu0 0.0
        %7185 = vmatprep.subr.mxu0 0.0
        %7186 = vmatpush2.msra.mxu0 0.0
        %7187 = vmatprep.subr.mxu0 0.0
        %7188 = vmatpush2.msra.mxu0 0.0
        %7189 = vmatprep.subr.mxu0 0.0
        %7190 = vmatpush2.msra.mxu0 0.0
        %7191 = vmatprep.subr.mxu0 0.0
        %7192 = vmatpush2.msra.mxu0 0.0
        %7193 = vmatprep.subr.mxu0 0.0
        %7194 = vmatpush2.msra.mxu0 0.0
        %7195 = vmatprep.subr.mxu0 0.0
        %7196 = vmatpush2.msra.mxu0 0.0
        %7197 = vmatprep.subr.mxu0 0.0
        %7198 = vmatpush2.msra.mxu0 0.0
        %7199 = vmatprep.subr.mxu0 0.0
        %7200 = vmatpush2.msra.mxu0 0.0
        %7201 = vmatprep.subr.mxu0 0.0
        %7202 = vmatpush2.msra.mxu0 0.0
        %7203 = vmatprep.subr.mxu0 0.0
        %7204 = vmatpush2.msra.mxu0 0.0
        %7205 = vmatprep.subr.mxu0 0.0
        %7206 = vmatpush2.msra.mxu0 0.0
        %7207 = vmatprep.subr.mxu0 0.0
        %7208 = vmatpush2.msra.mxu0 0.0
        %7209 = vmatprep.subr.mxu0 0.0
        %7210 = vmatpush2.msra.mxu0 0.0
        %7211 = vmatprep.subr.mxu0 0.0
        %7212 = vmatpush2.msra.mxu0 0.0
        %7213 = vmatprep.mubr.f32.mxu0 0.0
        %7214 = vmatmul.mubr.f32.gmra.mxu0 %v6844
        %v7215 = vpop.f32.mrf.mxu0
        %v7216 = vpop.f32.mrf.mxu0
        %7217 = vmatprep.mubr.f32.mxu0 0.0
        %7218 = vmatmul.mubr.f32.gmra.mxu0 %v6847
        %v7219 = vpop.f32.mrf.mxu0
        %v7220 = vadd.f32 0.0, %v7219
        %v7221 = vpop.f32.mrf.mxu0
        %v7222 = vadd.f32 0.0, %v7221
        %7223 = vdwg.mxu0
        %v7224 = vadd.f32 %v6801, %v6916
        %v7225 = vadd.f32 %v6802, %v6918
        %v7228 = vrot.slane %v6991, 2
        %v7229 = vrot.slane %v6993, 2
        %v7232 = vadd.f32 %v7224, %v7228
        %v7233 = vadd.f32 %v7225, %v7229
        %v7236 = vrot.slane %v7066, 4
        %v7237 = vrot.slane %v7068, 4
        %v7240 = vadd.f32 %v7232, %v7236
        %v7241 = vadd.f32 %v7233, %v7237
        %v7244 = vrot.slane %v7141, 6
        %v7245 = vrot.slane %v7143, 6
        %v7248 = vadd.f32 %v7240, %v7244
        %v7249 = vadd.f32 %v7241, %v7245
        %v7250 = vadd.f32 %v7248, %v7220
        %v7251 = vadd.f32 %v7249, %v7222
        %v7252 = vld [vmem:[%s5 + $0xf0] sm:$0xff]
        %v7253 = vld [vmem:[%s5 + $0xf8] sm:$0xff]
        %v7254 = vld [vmem:[%s5 + $0x100] sm:$0xff]
        %v7255 = vld [vmem:[%s5 + $0x108] sm:$0xff]
        %v7256 = vld [vmem:[%s5 + $0x110] sm:$0xff]
        %v7257 = vld [vmem:[%s5 + $0x118] sm:$0xff]
        %v7258 = vld [vmem:[%s5 + $0x120] sm:$0xff]
        %v7259 = vld [vmem:[%s5 + $0x128] sm:$0xff]
        %v7260 = vld [vmem:[%s5 + $0x130] sm:$0xff]
        %v7261 = vld [vmem:[%s5 + $0x138] sm:$0xff]
        %v7262 = vld [vmem:[%s5 + $0x280] sm:$0xff]
        %v7263 = vld [vmem:[%s5 + $0x288] sm:$0xff]
        %v7264 = vld [vmem:[%s5 + $0x290] sm:$0xff]
        %v7265 = vld [vmem:[%s5 + $0x298] sm:$0xff]
        %v7266 = vld [vmem:[%s5 + $0x2a0] sm:$0xff]
        %v7267 = vld [vmem:[%s5 + $0x2a8] sm:$0xff]
        %v7268 = vld [vmem:[%s5 + $0x2b0] sm:$0xff]
        %v7269 = vld [vmem:[%s5 + $0x2b8] sm:$0xff]
        %v7270 = vld [vmem:[%s5 + $0x2c0] sm:$0xff]
        %v7271 = vld [vmem:[%s5 + $0x2c8] sm:$0xff]
        %v7272 = vld [vmem:[%s5 + $0x410] sm:$0xff]
        %v7273 = vld [vmem:[%s5 + $0x418] sm:$0xff]
        %v7274 = vld [vmem:[%s5 + $0x420] sm:$0xff]
        %v7275 = vld [vmem:[%s5 + $0x428] sm:$0xff]
        %v7276 = vld [vmem:[%s5 + $0x430] sm:$0xff]
        %v7277 = vld [vmem:[%s5 + $0x438] sm:$0xff]
        %v7278 = vld [vmem:[%s5 + $0x440] sm:$0xff]
        %v7279 = vld [vmem:[%s5 + $0x448] sm:$0xff]
        %v7280 = vld [vmem:[%s5 + $0x450] sm:$0xff]
        %v7281 = vld [vmem:[%s5 + $0x458] sm:$0xff]
        %v7282 = vld [vmem:[%s5 + $0x5a0] sm:$0xff]
        %v7283 = vld [vmem:[%s5 + $0x5a8] sm:$0xff]
        %v7284 = vld [vmem:[%s5 + $0x5b0] sm:$0xff]
        %v7285 = vld [vmem:[%s5 + $0x5b8] sm:$0xff]
        %v7286 = vld [vmem:[%s5 + $0x5c0] sm:$0xff]
        %v7287 = vld [vmem:[%s5 + $0x5c8] sm:$0xff]
        %v7288 = vld [vmem:[%s5 + $0x5d0] sm:$0xff]
        %v7289 = vld [vmem:[%s5 + $0x5d8] sm:$0xff]
        %v7290 = vld [vmem:[%s5 + $0x5e0] sm:$0xff]
        %v7291 = vld [vmem:[%s5 + $0x5e8] sm:$0xff]
        %v7293 = vsel %vm3535, %v5901, 0
        %v7296 = vsel %vm3535, %v5902, 0
        %7298 = vmatprep.subr.mxu0 0.0
        %7299 = vmatpush1.msra.mxu0 0.0
        %7300 = vmatprep.subr.mxu0 0.0
        %7301 = vmatpush1.msra.mxu0 0.0
        %7302 = vmatprep.subr.mxu0 0.0
        %7303 = vmatpush1.msra.mxu0 0.0
        %7304 = vmatprep.subr.mxu0 0.0
        %7305 = vmatpush1.msra.mxu0 0.0
        %7306 = vmatprep.subr.mxu0 0.0
        %7307 = vmatpush1.msra.mxu0 0.0
        %7308 = vmatprep.subr.mxu0 0.0
        %7309 = vmatpush1.msra.mxu0 0.0
        %7310 = vmatprep.subr.mxu0 0.0
        %7311 = vmatpush1.msra.mxu0 0.0
        %7312 = vmatprep.subr.mxu0 0.0
        %7313 = vmatpush1.msra.mxu0 0.0
        %7314 = vmatprep.subr.mxu0 0.0
        %7315 = vmatpush1.msra.mxu0 0.0
        %7316 = vmatprep.subr.mxu0 0.0
        %7317 = vmatpush1.msra.mxu0 0.0
        %7318 = vmatprep.subr.mxu0 0.0
        %7319 = vmatpush1.msra.mxu0 0.0
        %7320 = vmatprep.subr.mxu0 0.0
        %7321 = vmatpush1.msra.mxu0 0.0
        %7322 = vmatprep.subr.mxu0 %v7283
        %7323 = vmatpush1.msra.mxu0 %v7282
        %7324 = vmatprep.subr.mxu0 %v7273
        %7325 = vmatpush1.msra.mxu0 %v7272
        %7326 = vmatprep.subr.mxu0 %v7263
        %7327 = vmatpush1.msra.mxu0 %v7262
        %7328 = vmatprep.subr.mxu0 %v7253
        %7329 = vmatpush1.msra.mxu0 %v7252
        %7330 = vmatprep.subr.mxu0 0.0
        %7331 = vmatpush2.msra.mxu0 0.0
        %7332 = vmatprep.subr.mxu0 0.0
        %7333 = vmatpush2.msra.mxu0 0.0
        %7334 = vmatprep.subr.mxu0 0.0
        %7335 = vmatpush2.msra.mxu0 0.0
        %7336 = vmatprep.subr.mxu0 0.0
        %7337 = vmatpush2.msra.mxu0 0.0
        %7338 = vmatprep.subr.mxu0 0.0
        %7339 = vmatpush2.msra.mxu0 0.0
        %7340 = vmatprep.subr.mxu0 0.0
        %7341 = vmatpush2.msra.mxu0 0.0
        %7342 = vmatprep.subr.mxu0 0.0
        %7343 = vmatpush2.msra.mxu0 0.0
        %7344 = vmatprep.subr.mxu0 0.0
        %7345 = vmatpush2.msra.mxu0 0.0
        %7346 = vmatprep.subr.mxu0 0.0
        %7347 = vmatpush2.msra.mxu0 0.0
        %7348 = vmatprep.subr.mxu0 0.0
        %7349 = vmatpush2.msra.mxu0 0.0
        %7350 = vmatprep.subr.mxu0 0.0
        %7351 = vmatpush2.msra.mxu0 0.0
        %7352 = vmatprep.subr.mxu0 0.0
        %7353 = vmatpush2.msra.mxu0 0.0
        %7354 = vmatprep.subr.mxu0 0.0
        %7355 = vmatpush2.msra.mxu0 0.0
        %7356 = vmatprep.subr.mxu0 0.0
        %7357 = vmatpush2.msra.mxu0 0.0
        %7358 = vmatprep.subr.mxu0 0.0
        %7359 = vmatpush2.msra.mxu0 0.0
        %7360 = vmatprep.subr.mxu0 0.0
        %7361 = vmatpush2.msra.mxu0 0.0
        %7362 = vmatprep.mubr.f32.mxu0 0.0
        %7363 = vmatmul.mubr.f32.gmra.mxu0 %v7293
        %v7364 = vpop.f32.mrf.mxu0
        %v7365 = vadd.f32 0.0, %v7364
        %v7366 = vpop.f32.mrf.mxu0
        %v7367 = vadd.f32 0.0, %v7366
        %7368 = vmatprep.mubr.f32.mxu0 0.0
        %7369 = vmatmul.mubr.f32.gmra.mxu0 %v7296
        %v7370 = vpop.f32.mrf.mxu0
        %v7371 = vpop.f32.mrf.mxu0
        %7372 = vdwg.mxu0
        %7373 = vmatprep.subr.mxu0 0.0
        %7374 = vmatpush1.msra.mxu0 0.0
        %7375 = vmatprep.subr.mxu0 0.0
        %7376 = vmatpush1.msra.mxu0 0.0
        %7377 = vmatprep.subr.mxu0 0.0
        %7378 = vmatpush1.msra.mxu0 0.0
        %7379 = vmatprep.subr.mxu0 0.0
        %7380 = vmatpush1.msra.mxu0 0.0
        %7381 = vmatprep.subr.mxu0 0.0
        %7382 = vmatpush1.msra.mxu0 0.0
        %7383 = vmatprep.subr.mxu0 0.0
        %7384 = vmatpush1.msra.mxu0 0.0
        %7385 = vmatprep.subr.mxu0 0.0
        %7386 = vmatpush1.msra.mxu0 0.0
        %7387 = vmatprep.subr.mxu0 0.0
        %7388 = vmatpush1.msra.mxu0 0.0
        %7389 = vmatprep.subr.mxu0 0.0
        %7390 = vmatpush1.msra.mxu0 0.0
        %7391 = vmatprep.subr.mxu0 0.0
        %7392 = vmatpush1.msra.mxu0 0.0
        %7393 = vmatprep.subr.mxu0 0.0
        %7394 = vmatpush1.msra.mxu0 0.0
        %7395 = vmatprep.subr.mxu0 0.0
        %7396 = vmatpush1.msra.mxu0 0.0
        %7397 = vmatprep.subr.mxu0 %v7285
        %7398 = vmatpush1.msra.mxu0 %v7284
        %7399 = vmatprep.subr.mxu0 %v7275
        %7400 = vmatpush1.msra.mxu0 %v7274
        %7401 = vmatprep.subr.mxu0 %v7265
        %7402 = vmatpush1.msra.mxu0 %v7264
        %7403 = vmatprep.subr.mxu0 %v7255
        %7404 = vmatpush1.msra.mxu0 %v7254
        %7405 = vmatprep.subr.mxu0 0.0
        %7406 = vmatpush2.msra.mxu0 0.0
        %7407 = vmatprep.subr.mxu0 0.0
        %7408 = vmatpush2.msra.mxu0 0.0
        %7409 = vmatprep.subr.mxu0 0.0
        %7410 = vmatpush2.msra.mxu0 0.0
        %7411 = vmatprep.subr.mxu0 0.0
        %7412 = vmatpush2.msra.mxu0 0.0
        %7413 = vmatprep.subr.mxu0 0.0
        %7414 = vmatpush2.msra.mxu0 0.0
        %7415 = vmatprep.subr.mxu0 0.0
        %7416 = vmatpush2.msra.mxu0 0.0
        %7417 = vmatprep.subr.mxu0 0.0
        %7418 = vmatpush2.msra.mxu0 0.0
        %7419 = vmatprep.subr.mxu0 0.0
        %7420 = vmatpush2.msra.mxu0 0.0
        %7421 = vmatprep.subr.mxu0 0.0
        %7422 = vmatpush2.msra.mxu0 0.0
        %7423 = vmatprep.subr.mxu0 0.0
        %7424 = vmatpush2.msra.mxu0 0.0
        %7425 = vmatprep.subr.mxu0 0.0
        %7426 = vmatpush2.msra.mxu0 0.0
        %7427 = vmatprep.subr.mxu0 0.0
        %7428 = vmatpush2.msra.mxu0 0.0
        %7429 = vmatprep.subr.mxu0 0.0
        %7430 = vmatpush2.msra.mxu0 0.0
        %7431 = vmatprep.subr.mxu0 0.0
        %7432 = vmatpush2.msra.mxu0 0.0
        %7433 = vmatprep.subr.mxu0 0.0
        %7434 = vmatpush2.msra.mxu0 0.0
        %7435 = vmatprep.subr.mxu0 0.0
        %7436 = vmatpush2.msra.mxu0 0.0
        %7437 = vmatprep.mubr.f32.mxu0 0.0
        %7438 = vmatmul.mubr.f32.gmra.mxu0 %v7293
        %v7439 = vpop.f32.mrf.mxu0
        %v7440 = vadd.f32 0.0, %v7439
        %v7441 = vpop.f32.mrf.mxu0
        %v7442 = vadd.f32 0.0, %v7441
        %7443 = vmatprep.mubr.f32.mxu0 0.0
        %7444 = vmatmul.mubr.f32.gmra.mxu0 %v7296
        %v7445 = vpop.f32.mrf.mxu0
        %v7446 = vpop.f32.mrf.mxu0
        %7447 = vdwg.mxu0
        %7448 = vmatprep.subr.mxu0 0.0
        %7449 = vmatpush1.msra.mxu0 0.0
        %7450 = vmatprep.subr.mxu0 0.0
        %7451 = vmatpush1.msra.mxu0 0.0
        %7452 = vmatprep.subr.mxu0 0.0
        %7453 = vmatpush1.msra.mxu0 0.0
        %7454 = vmatprep.subr.mxu0 0.0
        %7455 = vmatpush1.msra.mxu0 0.0
        %7456 = vmatprep.subr.mxu0 0.0
        %7457 = vmatpush1.msra.mxu0 0.0
        %7458 = vmatprep.subr.mxu0 0.0
        %7459 = vmatpush1.msra.mxu0 0.0
        %7460 = vmatprep.subr.mxu0 0.0
        %7461 = vmatpush1.msra.mxu0 0.0
        %7462 = vmatprep.subr.mxu0 0.0
        %7463 = vmatpush1.msra.mxu0 0.0
        %7464 = vmatprep.subr.mxu0 0.0
        %7465 = vmatpush1.msra.mxu0 0.0
        %7466 = vmatprep.subr.mxu0 0.0
        %7467 = vmatpush1.msra.mxu0 0.0
        %7468 = vmatprep.subr.mxu0 0.0
        %7469 = vmatpush1.msra.mxu0 0.0
        %7470 = vmatprep.subr.mxu0 0.0
        %7471 = vmatpush1.msra.mxu0 0.0
        %7472 = vmatprep.subr.mxu0 %v7287
        %7473 = vmatpush1.msra.mxu0 %v7286
        %7474 = vmatprep.subr.mxu0 %v7277
        %7475 = vmatpush1.msra.mxu0 %v7276
        %7476 = vmatprep.subr.mxu0 %v7267
        %7477 = vmatpush1.msra.mxu0 %v7266
        %7478 = vmatprep.subr.mxu0 %v7257
        %7479 = vmatpush1.msra.mxu0 %v7256
        %7480 = vmatprep.subr.mxu0 0.0
        %7481 = vmatpush2.msra.mxu0 0.0
        %7482 = vmatprep.subr.mxu0 0.0
        %7483 = vmatpush2.msra.mxu0 0.0
        %7484 = vmatprep.subr.mxu0 0.0
        %7485 = vmatpush2.msra.mxu0 0.0
        %7486 = vmatprep.subr.mxu0 0.0
        %7487 = vmatpush2.msra.mxu0 0.0
        %7488 = vmatprep.subr.mxu0 0.0
        %7489 = vmatpush2.msra.mxu0 0.0
        %7490 = vmatprep.subr.mxu0 0.0
        %7491 = vmatpush2.msra.mxu0 0.0
        %7492 = vmatprep.subr.mxu0 0.0
        %7493 = vmatpush2.msra.mxu0 0.0
        %7494 = vmatprep.subr.mxu0 0.0
        %7495 = vmatpush2.msra.mxu0 0.0
        %7496 = vmatprep.subr.mxu0 0.0
        %7497 = vmatpush2.msra.mxu0 0.0
        %7498 = vmatprep.subr.mxu0 0.0
        %7499 = vmatpush2.msra.mxu0 0.0
        %7500 = vmatprep.subr.mxu0 0.0
        %7501 = vmatpush2.msra.mxu0 0.0
        %7502 = vmatprep.subr.mxu0 0.0
        %7503 = vmatpush2.msra.mxu0 0.0
        %7504 = vmatprep.subr.mxu0 0.0
        %7505 = vmatpush2.msra.mxu0 0.0
        %7506 = vmatprep.subr.mxu0 0.0
        %7507 = vmatpush2.msra.mxu0 0.0
        %7508 = vmatprep.subr.mxu0 0.0
        %7509 = vmatpush2.msra.mxu0 0.0
        %7510 = vmatprep.subr.mxu0 0.0
        %7511 = vmatpush2.msra.mxu0 0.0
        %7512 = vmatprep.mubr.f32.mxu0 0.0
        %7513 = vmatmul.mubr.f32.gmra.mxu0 %v7293
        %v7514 = vpop.f32.mrf.mxu0
        %v7515 = vadd.f32 0.0, %v7514
        %v7516 = vpop.f32.mrf.mxu0
        %v7517 = vadd.f32 0.0, %v7516
        %7518 = vmatprep.mubr.f32.mxu0 0.0
        %7519 = vmatmul.mubr.f32.gmra.mxu0 %v7296
        %v7520 = vpop.f32.mrf.mxu0
        %v7521 = vpop.f32.mrf.mxu0
        %7522 = vdwg.mxu0
        %7523 = vmatprep.subr.mxu0 0.0
        %7524 = vmatpush1.msra.mxu0 0.0
        %7525 = vmatprep.subr.mxu0 0.0
        %7526 = vmatpush1.msra.mxu0 0.0
        %7527 = vmatprep.subr.mxu0 0.0
        %7528 = vmatpush1.msra.mxu0 0.0
        %7529 = vmatprep.subr.mxu0 0.0
        %7530 = vmatpush1.msra.mxu0 0.0
        %7531 = vmatprep.subr.mxu0 0.0
        %7532 = vmatpush1.msra.mxu0 0.0
        %7533 = vmatprep.subr.mxu0 0.0
        %7534 = vmatpush1.msra.mxu0 0.0
        %7535 = vmatprep.subr.mxu0 0.0
        %7536 = vmatpush1.msra.mxu0 0.0
        %7537 = vmatprep.subr.mxu0 0.0
        %7538 = vmatpush1.msra.mxu0 0.0
        %7539 = vmatprep.subr.mxu0 0.0
        %7540 = vmatpush1.msra.mxu0 0.0
        %7541 = vmatprep.subr.mxu0 0.0
        %7542 = vmatpush1.msra.mxu0 0.0
        %7543 = vmatprep.subr.mxu0 0.0
        %7544 = vmatpush1.msra.mxu0 0.0
        %7545 = vmatprep.subr.mxu0 0.0
        %7546 = vmatpush1.msra.mxu0 0.0
        %7547 = vmatprep.subr.mxu0 %v7289
        %7548 = vmatpush1.msra.mxu0 %v7288
        %7549 = vmatprep.subr.mxu0 %v7279
        %7550 = vmatpush1.msra.mxu0 %v7278
        %7551 = vmatprep.subr.mxu0 %v7269
        %7552 = vmatpush1.msra.mxu0 %v7268
        %7553 = vmatprep.subr.mxu0 %v7259
        %7554 = vmatpush1.msra.mxu0 %v7258
        %7555 = vmatprep.subr.mxu0 0.0
        %7556 = vmatpush2.msra.mxu0 0.0
        %7557 = vmatprep.subr.mxu0 0.0
        %7558 = vmatpush2.msra.mxu0 0.0
        %7559 = vmatprep.subr.mxu0 0.0
        %7560 = vmatpush2.msra.mxu0 0.0
        %7561 = vmatprep.subr.mxu0 0.0
        %7562 = vmatpush2.msra.mxu0 0.0
        %7563 = vmatprep.subr.mxu0 0.0
        %7564 = vmatpush2.msra.mxu0 0.0
        %7565 = vmatprep.subr.mxu0 0.0
        %7566 = vmatpush2.msra.mxu0 0.0
        %7567 = vmatprep.subr.mxu0 0.0
        %7568 = vmatpush2.msra.mxu0 0.0
        %7569 = vmatprep.subr.mxu0 0.0
        %7570 = vmatpush2.msra.mxu0 0.0
        %7571 = vmatprep.subr.mxu0 0.0
        %7572 = vmatpush2.msra.mxu0 0.0
        %7573 = vmatprep.subr.mxu0 0.0
        %7574 = vmatpush2.msra.mxu0 0.0
        %7575 = vmatprep.subr.mxu0 0.0
        %7576 = vmatpush2.msra.mxu0 0.0
        %7577 = vmatprep.subr.mxu0 0.0
        %7578 = vmatpush2.msra.mxu0 0.0
        %7579 = vmatprep.subr.mxu0 0.0
        %7580 = vmatpush2.msra.mxu0 0.0
        %7581 = vmatprep.subr.mxu0 0.0
        %7582 = vmatpush2.msra.mxu0 0.0
        %7583 = vmatprep.subr.mxu0 0.0
        %7584 = vmatpush2.msra.mxu0 0.0
        %7585 = vmatprep.subr.mxu0 0.0
        %7586 = vmatpush2.msra.mxu0 0.0
        %7587 = vmatprep.mubr.f32.mxu0 0.0
        %7588 = vmatmul.mubr.f32.gmra.mxu0 %v7293
        %v7589 = vpop.f32.mrf.mxu0
        %v7590 = vadd.f32 0.0, %v7589
        %v7591 = vpop.f32.mrf.mxu0
        %v7592 = vadd.f32 0.0, %v7591
        %7593 = vmatprep.mubr.f32.mxu0 0.0
        %7594 = vmatmul.mubr.f32.gmra.mxu0 %v7296
        %v7595 = vpop.f32.mrf.mxu0
        %v7596 = vpop.f32.mrf.mxu0
        %7597 = vdwg.mxu0
        %7598 = vmatprep.subr.mxu0 0.0
        %7599 = vmatpush1.msra.mxu0 0.0
        %7600 = vmatprep.subr.mxu0 0.0
        %7601 = vmatpush1.msra.mxu0 0.0
        %7602 = vmatprep.subr.mxu0 0.0
        %7603 = vmatpush1.msra.mxu0 0.0
        %7604 = vmatprep.subr.mxu0 0.0
        %7605 = vmatpush1.msra.mxu0 0.0
        %7606 = vmatprep.subr.mxu0 0.0
        %7607 = vmatpush1.msra.mxu0 0.0
        %7608 = vmatprep.subr.mxu0 0.0
        %7609 = vmatpush1.msra.mxu0 0.0
        %7610 = vmatprep.subr.mxu0 0.0
        %7611 = vmatpush1.msra.mxu0 0.0
        %7612 = vmatprep.subr.mxu0 0.0
        %7613 = vmatpush1.msra.mxu0 0.0
        %7614 = vmatprep.subr.mxu0 0.0
        %7615 = vmatpush1.msra.mxu0 0.0
        %7616 = vmatprep.subr.mxu0 0.0
        %7617 = vmatpush1.msra.mxu0 0.0
        %7618 = vmatprep.subr.mxu0 0.0
        %7619 = vmatpush1.msra.mxu0 0.0
        %7620 = vmatprep.subr.mxu0 0.0
        %7621 = vmatpush1.msra.mxu0 0.0
        %7622 = vmatprep.subr.mxu0 %v7291
        %7623 = vmatpush1.msra.mxu0 %v7290
        %7624 = vmatprep.subr.mxu0 %v7281
        %7625 = vmatpush1.msra.mxu0 %v7280
        %7626 = vmatprep.subr.mxu0 %v7271
        %7627 = vmatpush1.msra.mxu0 %v7270
        %7628 = vmatprep.subr.mxu0 %v7261
        %7629 = vmatpush1.msra.mxu0 %v7260
        %7630 = vmatprep.subr.mxu0 0.0
        %7631 = vmatpush2.msra.mxu0 0.0
        %7632 = vmatprep.subr.mxu0 0.0
        %7633 = vmatpush2.msra.mxu0 0.0
        %7634 = vmatprep.subr.mxu0 0.0
        %7635 = vmatpush2.msra.mxu0 0.0
        %7636 = vmatprep.subr.mxu0 0.0
        %7637 = vmatpush2.msra.mxu0 0.0
        %7638 = vmatprep.subr.mxu0 0.0
        %7639 = vmatpush2.msra.mxu0 0.0
        %7640 = vmatprep.subr.mxu0 0.0
        %7641 = vmatpush2.msra.mxu0 0.0
        %7642 = vmatprep.subr.mxu0 0.0
        %7643 = vmatpush2.msra.mxu0 0.0
        %7644 = vmatprep.subr.mxu0 0.0
        %7645 = vmatpush2.msra.mxu0 0.0
        %7646 = vmatprep.subr.mxu0 0.0
        %7647 = vmatpush2.msra.mxu0 0.0
        %7648 = vmatprep.subr.mxu0 0.0
        %7649 = vmatpush2.msra.mxu0 0.0
        %7650 = vmatprep.subr.mxu0 0.0
        %7651 = vmatpush2.msra.mxu0 0.0
        %7652 = vmatprep.subr.mxu0 0.0
        %7653 = vmatpush2.msra.mxu0 0.0
        %7654 = vmatprep.subr.mxu0 0.0
        %7655 = vmatpush2.msra.mxu0 0.0
        %7656 = vmatprep.subr.mxu0 0.0
        %7657 = vmatpush2.msra.mxu0 0.0
        %7658 = vmatprep.subr.mxu0 0.0
        %7659 = vmatpush2.msra.mxu0 0.0
        %7660 = vmatprep.subr.mxu0 0.0
        %7661 = vmatpush2.msra.mxu0 0.0
        %7662 = vmatprep.mubr.f32.mxu0 0.0
        %7663 = vmatmul.mubr.f32.gmra.mxu0 %v7293
        %v7664 = vpop.f32.mrf.mxu0
        %v7665 = vpop.f32.mrf.mxu0
        %7666 = vmatprep.mubr.f32.mxu0 0.0
        %7667 = vmatmul.mubr.f32.gmra.mxu0 %v7296
        %v7668 = vpop.f32.mrf.mxu0
        %v7669 = vadd.f32 0.0, %v7668
        %v7670 = vpop.f32.mrf.mxu0
        %v7671 = vadd.f32 0.0, %v7670
        %7672 = vdwg.mxu0
        %v7673 = vadd.f32 %v7250, %v7365
        %v7674 = vadd.f32 %v7251, %v7367
        %v7677 = vrot.slane %v7440, 2
        %v7678 = vrot.slane %v7442, 2
        %v7681 = vadd.f32 %v7673, %v7677
        %v7682 = vadd.f32 %v7674, %v7678
        %v7685 = vrot.slane %v7515, 4
        %v7686 = vrot.slane %v7517, 4
        %v7689 = vadd.f32 %v7681, %v7685
        %v7690 = vadd.f32 %v7682, %v7686
        %v7693 = vrot.slane %v7590, 6
        %v7694 = vrot.slane %v7592, 6
        %v7697 = vadd.f32 %v7689, %v7693
        %v7698 = vadd.f32 %v7690, %v7694
        %v7699 = vadd.f32 %v7697, %v7669
        %v7700 = vadd.f32 %v7698, %v7671
        %v7701 = vld [vmem:[%s5 + $0x140] sm:$0xff]
        %v7702 = vld [vmem:[%s5 + $0x148] sm:$0xff]
        %v7703 = vld [vmem:[%s5 + $0x150] sm:$0xff]
        %v7704 = vld [vmem:[%s5 + $0x158] sm:$0xff]
        %v7705 = vld [vmem:[%s5 + $0x160] sm:$0xff]
        %v7706 = vld [vmem:[%s5 + $0x168] sm:$0xff]
        %v7707 = vld [vmem:[%s5 + $0x170] sm:$0xff]
        %v7708 = vld [vmem:[%s5 + $0x178] sm:$0xff]
        %v7709 = vld [vmem:[%s5 + $0x180] sm:$0xff]
        %v7710 = vld [vmem:[%s5 + $0x188] sm:$0xff]
        %v7711 = vld [vmem:[%s5 + $0x2d0] sm:$0xff]
        %v7712 = vld [vmem:[%s5 + $0x2d8] sm:$0xff]
        %v7713 = vld [vmem:[%s5 + $0x2e0] sm:$0xff]
        %v7714 = vld [vmem:[%s5 + $0x2e8] sm:$0xff]
        %v7715 = vld [vmem:[%s5 + $0x2f0] sm:$0xff]
        %v7716 = vld [vmem:[%s5 + $0x2f8] sm:$0xff]
        %v7717 = vld [vmem:[%s5 + $0x300] sm:$0xff]
        %v7718 = vld [vmem:[%s5 + $0x308] sm:$0xff]
        %v7719 = vld [vmem:[%s5 + $0x310] sm:$0xff]
        %v7720 = vld [vmem:[%s5 + $0x318] sm:$0xff]
        %v7721 = vld [vmem:[%s5 + $0x460] sm:$0xff]
        %v7722 = vld [vmem:[%s5 + $0x468] sm:$0xff]
        %v7723 = vld [vmem:[%s5 + $0x470] sm:$0xff]
        %v7724 = vld [vmem:[%s5 + $0x478] sm:$0xff]
        %v7725 = vld [vmem:[%s5 + $0x480] sm:$0xff]
        %v7726 = vld [vmem:[%s5 + $0x488] sm:$0xff]
        %v7727 = vld [vmem:[%s5 + $0x490] sm:$0xff]
        %v7728 = vld [vmem:[%s5 + $0x498] sm:$0xff]
        %v7729 = vld [vmem:[%s5 + $0x4a0] sm:$0xff]
        %v7730 = vld [vmem:[%s5 + $0x4a8] sm:$0xff]
        %v7731 = vld [vmem:[%s5 + $0x5f0] sm:$0xff]
        %v7732 = vld [vmem:[%s5 + $0x5f8] sm:$0xff]
        %v7733 = vld [vmem:[%s5 + $0x600] sm:$0xff]
        %v7734 = vld [vmem:[%s5 + $0x608] sm:$0xff]
        %v7735 = vld [vmem:[%s5 + $0x610] sm:$0xff]
        %v7736 = vld [vmem:[%s5 + $0x618] sm:$0xff]
        %v7737 = vld [vmem:[%s5 + $0x620] sm:$0xff]
        %v7738 = vld [vmem:[%s5 + $0x628] sm:$0xff]
        %v7739 = vld [vmem:[%s5 + $0x630] sm:$0xff]
        %v7740 = vld [vmem:[%s5 + $0x638] sm:$0xff]
        %v7742 = vsel %vm3535, %v5903, 0
        %v7745 = vsel %vm3535, %v5904, 0
        %7747 = vmatprep.subr.mxu0 0.0
        %7748 = vmatpush1.msra.mxu0 0.0
        %7749 = vmatprep.subr.mxu0 0.0
        %7750 = vmatpush1.msra.mxu0 0.0
        %7751 = vmatprep.subr.mxu0 0.0
        %7752 = vmatpush1.msra.mxu0 0.0
        %7753 = vmatprep.subr.mxu0 0.0
        %7754 = vmatpush1.msra.mxu0 0.0
        %7755 = vmatprep.subr.mxu0 0.0
        %7756 = vmatpush1.msra.mxu0 0.0
        %7757 = vmatprep.subr.mxu0 0.0
        %7758 = vmatpush1.msra.mxu0 0.0
        %7759 = vmatprep.subr.mxu0 0.0
        %7760 = vmatpush1.msra.mxu0 0.0
        %7761 = vmatprep.subr.mxu0 0.0
        %7762 = vmatpush1.msra.mxu0 0.0
        %7763 = vmatprep.subr.mxu0 0.0
        %7764 = vmatpush1.msra.mxu0 0.0
        %7765 = vmatprep.subr.mxu0 0.0
        %7766 = vmatpush1.msra.mxu0 0.0
        %7767 = vmatprep.subr.mxu0 0.0
        %7768 = vmatpush1.msra.mxu0 0.0
        %7769 = vmatprep.subr.mxu0 0.0
        %7770 = vmatpush1.msra.mxu0 0.0
        %7771 = vmatprep.subr.mxu0 %v7732
        %7772 = vmatpush1.msra.mxu0 %v7731
        %7773 = vmatprep.subr.mxu0 %v7722
        %7774 = vmatpush1.msra.mxu0 %v7721
        %7775 = vmatprep.subr.mxu0 %v7712
        %7776 = vmatpush1.msra.mxu0 %v7711
        %7777 = vmatprep.subr.mxu0 %v7702
        %7778 = vmatpush1.msra.mxu0 %v7701
        %7779 = vmatprep.subr.mxu0 0.0
        %7780 = vmatpush2.msra.mxu0 0.0
        %7781 = vmatprep.subr.mxu0 0.0
        %7782 = vmatpush2.msra.mxu0 0.0
        %7783 = vmatprep.subr.mxu0 0.0
        %7784 = vmatpush2.msra.mxu0 0.0
        %7785 = vmatprep.subr.mxu0 0.0
        %7786 = vmatpush2.msra.mxu0 0.0
        %7787 = vmatprep.subr.mxu0 0.0
        %7788 = vmatpush2.msra.mxu0 0.0
        %7789 = vmatprep.subr.mxu0 0.0
        %7790 = vmatpush2.msra.mxu0 0.0
        %7791 = vmatprep.subr.mxu0 0.0
        %7792 = vmatpush2.msra.mxu0 0.0
        %7793 = vmatprep.subr.mxu0 0.0
        %7794 = vmatpush2.msra.mxu0 0.0
        %7795 = vmatprep.subr.mxu0 0.0
        %7796 = vmatpush2.msra.mxu0 0.0
        %7797 = vmatprep.subr.mxu0 0.0
        %7798 = vmatpush2.msra.mxu0 0.0
        %7799 = vmatprep.subr.mxu0 0.0
        %7800 = vmatpush2.msra.mxu0 0.0
        %7801 = vmatprep.subr.mxu0 0.0
        %7802 = vmatpush2.msra.mxu0 0.0
        %7803 = vmatprep.subr.mxu0 0.0
        %7804 = vmatpush2.msra.mxu0 0.0
        %7805 = vmatprep.subr.mxu0 0.0
        %7806 = vmatpush2.msra.mxu0 0.0
        %7807 = vmatprep.subr.mxu0 0.0
        %7808 = vmatpush2.msra.mxu0 0.0
        %7809 = vmatprep.subr.mxu0 0.0
        %7810 = vmatpush2.msra.mxu0 0.0
        %7811 = vmatprep.mubr.f32.mxu0 0.0
        %7812 = vmatmul.mubr.f32.gmra.mxu0 %v7742
        %v7813 = vpop.f32.mrf.mxu0
        %v7814 = vadd.f32 0.0, %v7813
        %v7815 = vpop.f32.mrf.mxu0
        %v7816 = vadd.f32 0.0, %v7815
        %7817 = vmatprep.mubr.f32.mxu0 0.0
        %7818 = vmatmul.mubr.f32.gmra.mxu0 %v7745
        %v7819 = vpop.f32.mrf.mxu0
        %v7820 = vpop.f32.mrf.mxu0
        %7821 = vdwg.mxu0
        %7822 = vmatprep.subr.mxu0 0.0
        %7823 = vmatpush1.msra.mxu0 0.0
        %7824 = vmatprep.subr.mxu0 0.0
        %7825 = vmatpush1.msra.mxu0 0.0
        %7826 = vmatprep.subr.mxu0 0.0
        %7827 = vmatpush1.msra.mxu0 0.0
        %7828 = vmatprep.subr.mxu0 0.0
        %7829 = vmatpush1.msra.mxu0 0.0
        %7830 = vmatprep.subr.mxu0 0.0
        %7831 = vmatpush1.msra.mxu0 0.0
        %7832 = vmatprep.subr.mxu0 0.0
        %7833 = vmatpush1.msra.mxu0 0.0
        %7834 = vmatprep.subr.mxu0 0.0
        %7835 = vmatpush1.msra.mxu0 0.0
        %7836 = vmatprep.subr.mxu0 0.0
        %7837 = vmatpush1.msra.mxu0 0.0
        %7838 = vmatprep.subr.mxu0 0.0
        %7839 = vmatpush1.msra.mxu0 0.0
        %7840 = vmatprep.subr.mxu0 0.0
        %7841 = vmatpush1.msra.mxu0 0.0
        %7842 = vmatprep.subr.mxu0 0.0
        %7843 = vmatpush1.msra.mxu0 0.0
        %7844 = vmatprep.subr.mxu0 0.0
        %7845 = vmatpush1.msra.mxu0 0.0
        %7846 = vmatprep.subr.mxu0 %v7734
        %7847 = vmatpush1.msra.mxu0 %v7733
        %7848 = vmatprep.subr.mxu0 %v7724
        %7849 = vmatpush1.msra.mxu0 %v7723
        %7850 = vmatprep.subr.mxu0 %v7714
        %7851 = vmatpush1.msra.mxu0 %v7713
        %7852 = vmatprep.subr.mxu0 %v7704
        %7853 = vmatpush1.msra.mxu0 %v7703
        %7854 = vmatprep.subr.mxu0 0.0
        %7855 = vmatpush2.msra.mxu0 0.0
        %7856 = vmatprep.subr.mxu0 0.0
        %7857 = vmatpush2.msra.mxu0 0.0
        %7858 = vmatprep.subr.mxu0 0.0
        %7859 = vmatpush2.msra.mxu0 0.0
        %7860 = vmatprep.subr.mxu0 0.0
        %7861 = vmatpush2.msra.mxu0 0.0
        %7862 = vmatprep.subr.mxu0 0.0
        %7863 = vmatpush2.msra.mxu0 0.0
        %7864 = vmatprep.subr.mxu0 0.0
        %7865 = vmatpush2.msra.mxu0 0.0
        %7866 = vmatprep.subr.mxu0 0.0
        %7867 = vmatpush2.msra.mxu0 0.0
        %7868 = vmatprep.subr.mxu0 0.0
        %7869 = vmatpush2.msra.mxu0 0.0
        %7870 = vmatprep.subr.mxu0 0.0
        %7871 = vmatpush2.msra.mxu0 0.0
        %7872 = vmatprep.subr.mxu0 0.0
        %7873 = vmatpush2.msra.mxu0 0.0
        %7874 = vmatprep.subr.mxu0 0.0
        %7875 = vmatpush2.msra.mxu0 0.0
        %7876 = vmatprep.subr.mxu0 0.0
        %7877 = vmatpush2.msra.mxu0 0.0
        %7878 = vmatprep.subr.mxu0 0.0
        %7879 = vmatpush2.msra.mxu0 0.0
        %7880 = vmatprep.subr.mxu0 0.0
        %7881 = vmatpush2.msra.mxu0 0.0
        %7882 = vmatprep.subr.mxu0 0.0
        %7883 = vmatpush2.msra.mxu0 0.0
        %7884 = vmatprep.subr.mxu0 0.0
        %7885 = vmatpush2.msra.mxu0 0.0
        %7886 = vmatprep.mubr.f32.mxu0 0.0
        %7887 = vmatmul.mubr.f32.gmra.mxu0 %v7742
        %v7888 = vpop.f32.mrf.mxu0
        %v7889 = vadd.f32 0.0, %v7888
        %v7890 = vpop.f32.mrf.mxu0
        %v7891 = vadd.f32 0.0, %v7890
        %7892 = vmatprep.mubr.f32.mxu0 0.0
        %7893 = vmatmul.mubr.f32.gmra.mxu0 %v7745
        %v7894 = vpop.f32.mrf.mxu0
        %v7895 = vpop.f32.mrf.mxu0
        %7896 = vdwg.mxu0
        %7897 = vmatprep.subr.mxu0 0.0
        %7898 = vmatpush1.msra.mxu0 0.0
        %7899 = vmatprep.subr.mxu0 0.0
        %7900 = vmatpush1.msra.mxu0 0.0
        %7901 = vmatprep.subr.mxu0 0.0
        %7902 = vmatpush1.msra.mxu0 0.0
        %7903 = vmatprep.subr.mxu0 0.0
        %7904 = vmatpush1.msra.mxu0 0.0
        %7905 = vmatprep.subr.mxu0 0.0
        %7906 = vmatpush1.msra.mxu0 0.0
        %7907 = vmatprep.subr.mxu0 0.0
        %7908 = vmatpush1.msra.mxu0 0.0
        %7909 = vmatprep.subr.mxu0 0.0
        %7910 = vmatpush1.msra.mxu0 0.0
        %7911 = vmatprep.subr.mxu0 0.0
        %7912 = vmatpush1.msra.mxu0 0.0
        %7913 = vmatprep.subr.mxu0 0.0
        %7914 = vmatpush1.msra.mxu0 0.0
        %7915 = vmatprep.subr.mxu0 0.0
        %7916 = vmatpush1.msra.mxu0 0.0
        %7917 = vmatprep.subr.mxu0 0.0
        %7918 = vmatpush1.msra.mxu0 0.0
        %7919 = vmatprep.subr.mxu0 0.0
        %7920 = vmatpush1.msra.mxu0 0.0
        %7921 = vmatprep.subr.mxu0 %v7736
        %7922 = vmatpush1.msra.mxu0 %v7735
        %7923 = vmatprep.subr.mxu0 %v7726
        %7924 = vmatpush1.msra.mxu0 %v7725
        %7925 = vmatprep.subr.mxu0 %v7716
        %7926 = vmatpush1.msra.mxu0 %v7715
        %7927 = vmatprep.subr.mxu0 %v7706
        %7928 = vmatpush1.msra.mxu0 %v7705
        %7929 = vmatprep.subr.mxu0 0.0
        %7930 = vmatpush2.msra.mxu0 0.0
        %7931 = vmatprep.subr.mxu0 0.0
        %7932 = vmatpush2.msra.mxu0 0.0
        %7933 = vmatprep.subr.mxu0 0.0
        %7934 = vmatpush2.msra.mxu0 0.0
        %7935 = vmatprep.subr.mxu0 0.0
        %7936 = vmatpush2.msra.mxu0 0.0
        %7937 = vmatprep.subr.mxu0 0.0
        %7938 = vmatpush2.msra.mxu0 0.0
        %7939 = vmatprep.subr.mxu0 0.0
        %7940 = vmatpush2.msra.mxu0 0.0
        %7941 = vmatprep.subr.mxu0 0.0
        %7942 = vmatpush2.msra.mxu0 0.0
        %7943 = vmatprep.subr.mxu0 0.0
        %7944 = vmatpush2.msra.mxu0 0.0
        %7945 = vmatprep.subr.mxu0 0.0
        %7946 = vmatpush2.msra.mxu0 0.0
        %7947 = vmatprep.subr.mxu0 0.0
        %7948 = vmatpush2.msra.mxu0 0.0
        %7949 = vmatprep.subr.mxu0 0.0
        %7950 = vmatpush2.msra.mxu0 0.0
        %7951 = vmatprep.subr.mxu0 0.0
        %7952 = vmatpush2.msra.mxu0 0.0
        %7953 = vmatprep.subr.mxu0 0.0
        %7954 = vmatpush2.msra.mxu0 0.0
        %7955 = vmatprep.subr.mxu0 0.0
        %7956 = vmatpush2.msra.mxu0 0.0
        %7957 = vmatprep.subr.mxu0 0.0
        %7958 = vmatpush2.msra.mxu0 0.0
        %7959 = vmatprep.subr.mxu0 0.0
        %7960 = vmatpush2.msra.mxu0 0.0
        %7961 = vmatprep.mubr.f32.mxu0 0.0
        %7962 = vmatmul.mubr.f32.gmra.mxu0 %v7742
        %v7963 = vpop.f32.mrf.mxu0
        %v7964 = vadd.f32 0.0, %v7963
        %v7965 = vpop.f32.mrf.mxu0
        %v7966 = vadd.f32 0.0, %v7965
        %7967 = vmatprep.mubr.f32.mxu0 0.0
        %7968 = vmatmul.mubr.f32.gmra.mxu0 %v7745
        %v7969 = vpop.f32.mrf.mxu0
        %v7970 = vpop.f32.mrf.mxu0
        %7971 = vdwg.mxu0
        %7972 = vmatprep.subr.mxu0 0.0
        %7973 = vmatpush1.msra.mxu0 0.0
        %7974 = vmatprep.subr.mxu0 0.0
        %7975 = vmatpush1.msra.mxu0 0.0
        %7976 = vmatprep.subr.mxu0 0.0
        %7977 = vmatpush1.msra.mxu0 0.0
        %7978 = vmatprep.subr.mxu0 0.0
        %7979 = vmatpush1.msra.mxu0 0.0
        %7980 = vmatprep.subr.mxu0 0.0
        %7981 = vmatpush1.msra.mxu0 0.0
        %7982 = vmatprep.subr.mxu0 0.0
        %7983 = vmatpush1.msra.mxu0 0.0
        %7984 = vmatprep.subr.mxu0 0.0
        %7985 = vmatpush1.msra.mxu0 0.0
        %7986 = vmatprep.subr.mxu0 0.0
        %7987 = vmatpush1.msra.mxu0 0.0
        %7988 = vmatprep.subr.mxu0 0.0
        %7989 = vmatpush1.msra.mxu0 0.0
        %7990 = vmatprep.subr.mxu0 0.0
        %7991 = vmatpush1.msra.mxu0 0.0
        %7992 = vmatprep.subr.mxu0 0.0
        %7993 = vmatpush1.msra.mxu0 0.0
        %7994 = vmatprep.subr.mxu0 0.0
        %7995 = vmatpush1.msra.mxu0 0.0
        %7996 = vmatprep.subr.mxu0 %v7738
        %7997 = vmatpush1.msra.mxu0 %v7737
        %7998 = vmatprep.subr.mxu0 %v7728
        %7999 = vmatpush1.msra.mxu0 %v7727
        %8000 = vmatprep.subr.mxu0 %v7718
        %8001 = vmatpush1.msra.mxu0 %v7717
        %8002 = vmatprep.subr.mxu0 %v7708
        %8003 = vmatpush1.msra.mxu0 %v7707
        %8004 = vmatprep.subr.mxu0 0.0
        %8005 = vmatpush2.msra.mxu0 0.0
        %8006 = vmatprep.subr.mxu0 0.0
        %8007 = vmatpush2.msra.mxu0 0.0
        %8008 = vmatprep.subr.mxu0 0.0
        %8009 = vmatpush2.msra.mxu0 0.0
        %8010 = vmatprep.subr.mxu0 0.0
        %8011 = vmatpush2.msra.mxu0 0.0
        %8012 = vmatprep.subr.mxu0 0.0
        %8013 = vmatpush2.msra.mxu0 0.0
        %8014 = vmatprep.subr.mxu0 0.0
        %8015 = vmatpush2.msra.mxu0 0.0
        %8016 = vmatprep.subr.mxu0 0.0
        %8017 = vmatpush2.msra.mxu0 0.0
        %8018 = vmatprep.subr.mxu0 0.0
        %8019 = vmatpush2.msra.mxu0 0.0
        %8020 = vmatprep.subr.mxu0 0.0
        %8021 = vmatpush2.msra.mxu0 0.0
        %8022 = vmatprep.subr.mxu0 0.0
        %8023 = vmatpush2.msra.mxu0 0.0
        %8024 = vmatprep.subr.mxu0 0.0
        %8025 = vmatpush2.msra.mxu0 0.0
        %8026 = vmatprep.subr.mxu0 0.0
        %8027 = vmatpush2.msra.mxu0 0.0
        %8028 = vmatprep.subr.mxu0 0.0
        %8029 = vmatpush2.msra.mxu0 0.0
        %8030 = vmatprep.subr.mxu0 0.0
        %8031 = vmatpush2.msra.mxu0 0.0
        %8032 = vmatprep.subr.mxu0 0.0
        %8033 = vmatpush2.msra.mxu0 0.0
        %8034 = vmatprep.subr.mxu0 0.0
        %8035 = vmatpush2.msra.mxu0 0.0
        %8036 = vmatprep.mubr.f32.mxu0 0.0
        %8037 = vmatmul.mubr.f32.gmra.mxu0 %v7742
        %v8038 = vpop.f32.mrf.mxu0
        %v8039 = vadd.f32 0.0, %v8038
        %v8040 = vpop.f32.mrf.mxu0
        %v8041 = vadd.f32 0.0, %v8040
        %8042 = vmatprep.mubr.f32.mxu0 0.0
        %8043 = vmatmul.mubr.f32.gmra.mxu0 %v7745
        %v8044 = vpop.f32.mrf.mxu0
        %v8045 = vpop.f32.mrf.mxu0
        %8046 = vdwg.mxu0
        %8047 = vmatprep.subr.mxu0 0.0
        %8048 = vmatpush1.msra.mxu0 0.0
        %8049 = vmatprep.subr.mxu0 0.0
        %8050 = vmatpush1.msra.mxu0 0.0
        %8051 = vmatprep.subr.mxu0 0.0
        %8052 = vmatpush1.msra.mxu0 0.0
        %8053 = vmatprep.subr.mxu0 0.0
        %8054 = vmatpush1.msra.mxu0 0.0
        %8055 = vmatprep.subr.mxu0 0.0
        %8056 = vmatpush1.msra.mxu0 0.0
        %8057 = vmatprep.subr.mxu0 0.0
        %8058 = vmatpush1.msra.mxu0 0.0
        %8059 = vmatprep.subr.mxu0 0.0
        %8060 = vmatpush1.msra.mxu0 0.0
        %8061 = vmatprep.subr.mxu0 0.0
        %8062 = vmatpush1.msra.mxu0 0.0
        %8063 = vmatprep.subr.mxu0 0.0
        %8064 = vmatpush1.msra.mxu0 0.0
        %8065 = vmatprep.subr.mxu0 0.0
        %8066 = vmatpush1.msra.mxu0 0.0
        %8067 = vmatprep.subr.mxu0 0.0
        %8068 = vmatpush1.msra.mxu0 0.0
        %8069 = vmatprep.subr.mxu0 0.0
        %8070 = vmatpush1.msra.mxu0 0.0
        %8071 = vmatprep.subr.mxu0 %v7740
        %8072 = vmatpush1.msra.mxu0 %v7739
        %8073 = vmatprep.subr.mxu0 %v7730
        %8074 = vmatpush1.msra.mxu0 %v7729
        %8075 = vmatprep.subr.mxu0 %v7720
        %8076 = vmatpush1.msra.mxu0 %v7719
        %8077 = vmatprep.subr.mxu0 %v7710
        %8078 = vmatpush1.msra.mxu0 %v7709
        %8079 = vmatprep.subr.mxu0 0.0
        %8080 = vmatpush2.msra.mxu0 0.0
        %8081 = vmatprep.subr.mxu0 0.0
        %8082 = vmatpush2.msra.mxu0 0.0
        %8083 = vmatprep.subr.mxu0 0.0
        %8084 = vmatpush2.msra.mxu0 0.0
        %8085 = vmatprep.subr.mxu0 0.0
        %8086 = vmatpush2.msra.mxu0 0.0
        %8087 = vmatprep.subr.mxu0 0.0
        %8088 = vmatpush2.msra.mxu0 0.0
        %8089 = vmatprep.subr.mxu0 0.0
        %8090 = vmatpush2.msra.mxu0 0.0
        %8091 = vmatprep.subr.mxu0 0.0
        %8092 = vmatpush2.msra.mxu0 0.0
        %8093 = vmatprep.subr.mxu0 0.0
        %8094 = vmatpush2.msra.mxu0 0.0
        %8095 = vmatprep.subr.mxu0 0.0
        %8096 = vmatpush2.msra.mxu0 0.0
        %8097 = vmatprep.subr.mxu0 0.0
        %8098 = vmatpush2.msra.mxu0 0.0
        %8099 = vmatprep.subr.mxu0 0.0
        %8100 = vmatpush2.msra.mxu0 0.0
        %8101 = vmatprep.subr.mxu0 0.0
        %8102 = vmatpush2.msra.mxu0 0.0
        %8103 = vmatprep.subr.mxu0 0.0
        %8104 = vmatpush2.msra.mxu0 0.0
        %8105 = vmatprep.subr.mxu0 0.0
        %8106 = vmatpush2.msra.mxu0 0.0
        %8107 = vmatprep.subr.mxu0 0.0
        %8108 = vmatpush2.msra.mxu0 0.0
        %8109 = vmatprep.subr.mxu0 0.0
        %8110 = vmatpush2.msra.mxu0 0.0
        %8111 = vmatprep.mubr.f32.mxu0 0.0
        %8112 = vmatmul.mubr.f32.gmra.mxu0 %v7742
        %v8113 = vpop.f32.mrf.mxu0
        %v8114 = vpop.f32.mrf.mxu0
        %8115 = vmatprep.mubr.f32.mxu0 0.0
        %8116 = vmatmul.mubr.f32.gmra.mxu0 %v7745
        %v8117 = vpop.f32.mrf.mxu0
        %v8118 = vadd.f32 0.0, %v8117
        %v8119 = vpop.f32.mrf.mxu0
        %v8120 = vadd.f32 0.0, %v8119
        %8121 = vdwg.mxu0
        %v8122 = vadd.f32 %v7699, %v7814
        %v8123 = vadd.f32 %v7700, %v7816
        %v8126 = vrot.slane %v7889, 2
        %v8127 = vrot.slane %v7891, 2
        %v8130 = vadd.f32 %v8122, %v8126
        %v8131 = vadd.f32 %v8123, %v8127
        %v8134 = vrot.slane %v7964, 4
        %v8135 = vrot.slane %v7966, 4
        %v8138 = vadd.f32 %v8130, %v8134
        %v8139 = vadd.f32 %v8131, %v8135
        %v8142 = vrot.slane %v8039, 6
        %v8143 = vrot.slane %v8041, 6
        %v8146 = vadd.f32 %v8138, %v8142
        %v8147 = vadd.f32 %v8139, %v8143
        %v8148 = vadd.f32 %v8146, %v8118
        %v8149 = vadd.f32 %v8147, %v8120
        %v8150 = vld [vmem:[%s6] sm:$0x3]
        %v8152 = vlaneseq
        %v8153 = vshrl.u32 %v8152, 7
        %v8154 = vsub.s32 0, %v8153
        %v8155 = vrot.slane %v8150, %v8154
        %v8156 = vlaneseq
        %v8157 = vshrl.u32 %v8156, 7
        %v8158 = vsub.s32 1, %v8157
        %v8159 = vrot.slane %v8150, %v8158
        %v8162 = vadd.f32 %v8148, %v8155
        %v8163 = vadd.f32 %v8149, %v8159
        %v8164 = vmax.f32 %v8162, 0.0
        %v8165 = vmax.f32 %v8163, 0.0
        %v8168 = vcombine.low %v8164, %v8165
        %v8170 = vunpack.c.l.s4 1966171168
        %v8171 = vunpack.c.0.s8 %v8170
        %v8172 = vlaneseq
        %v8173 = vshrl.u32 %v8172, 7
        %v8174 = vsub.s32 %v8171, %v8173
        %v8175 = vrot.slane %v8168, %v8174
        %v8177 = vunpack.c.l.s4 1966171168
        %v8178 = vunpack.c.0.s8 %v8177
        %v8179 = vlaneseq
        %v8180 = vshrl.u32 %v8179, 7
        %v8181 = vsub.s32 %v8178, %v8180
        %v8182 = vrot.slane %v8175, %v8181
        %v8184 = vlaneseq
        %vm8185 = vcmp.ge.s32.totalorder %v8184, 0
        %vm8186 = vcmp.lt.s32.totalorder %v8184, 256
        %vm8187 = vmand %vm8185, %vm8186
        %8188 = vst.msk [vmem:[%s291] sm:$0x3] %vm8187, %v8182
        %p8189 = scmp.lt.s32.totalorder %s19, 1
        %s8190 = scalar_select %p8189, %s19, 1
        %s8191 = smul.addr %s8190, 2
        %s8192 = scalar_lea.vmem %s7, %s8191
        // Predicated region
        $region53: #{cnn_forward.1} parent=47 // pred_check
          %p8193 = pneg %p189
        $region54: #{cnn_forward.1} parent=47 // pred_check_branch
          %8195 = sbr.rel (%p8193) target = $region56
        $region55: #{cnn_forward.1} parent=47 // pred_region
          _
        $region56: #{cnn_forward.1} parent=47 // pred_fallthru
          _
      $region48: #{cnn_forward.1} parent=5 // pred_fallthru
        _
      %p8196 = scmp.le.s32.totalorder 2, %s14
      // Predicated region
      $region57: #{cnn_forward.1} parent=5 // pred_check
        %p8197 = pneg %p8196
      $region58: #{cnn_forward.1} parent=5 // pred_check_branch
        %8199 = sbr.rel (%p8197) target = $region60
      $region59: #{cnn_forward.1} parent=5 // pred_region
        %s8200 = ssub.s32 %s14, 2
        // Predicated region
        $region61: #{cnn_forward.1} parent=59 // pred_check
          %p8201 = pneg %p195
        $region62: #{cnn_forward.1} parent=59 // pred_check_branch
          %8203 = sbr.rel (%p8201) target = $region64
        $region63: #{cnn_forward.1} parent=59 // pred_region
          %p8204 = scmp.lt.s32.totalorder %s20, 1
          %s8205 = scalar_select %p8204, %s20, 1
          %s8206 = smul.addr %s8205, 2
          %s8207 = scalar_lea.vmem %s7, %s8206
        $region64: #{cnn_forward.1} parent=59 // pred_fallthru
          _
      $region60: #{cnn_forward.1} parent=5 // pred_fallthru
        _
    $region6: #{cnn_forward.1} parent=1 // loop_footer
      %s18 = sadd.s32 1, %s14
    $region7: #{cnn_forward.1} parent=1 // loop_footer_branch
      %13 = sbr.rel target = $region3
    $region8: #{cnn_forward.1} parent=1 // loop_exit
      _
    %8208 = vsyncpa [#allocation5], 1
    %s8209 = scalar_lea.sflag [#allocation5], 1
    %8210 = vsyncpa %s8209, 1

</llo_original>
